<compile_context>
chip_gen: v7x
topology: tpu7x:2x2x1
jax: 0.10.0
libtpu: 0.0.40
codegen_flags: <defaults>
</compile_context>

<pallas_src>
import functools

import jax
import jax.numpy as jnp
from jax.experimental import pallas as pl
from jax.experimental.pallas import tpu as pltpu


def _round_up(x, m):
    return (x + m - 1) // m * m


def _pick_lane_tile(m):
    """Largest lane tile in {512,256,128} dividing m with >=4 (else >=2) grid
    steps; falls back to the full extent (single step) for small m."""
    cands = [t for t in (512, 256, 128) if m % t == 0]
    for min_steps in (4, 2):
        for t in cands:
            if m // t >= min_steps:
                return t
    return m


# ----------------------------------------------------------------------------
# Kernel 1: down conv  (Conv2d(C, 64, 3, stride=2, pad=1) + ReLU)
# ----------------------------------------------------------------------------
def _down_conv_kernel(x_ref, w_ref, b_ref, o_ref):
    """One (64, T) tile: relu(Wd @ patchesT + b); bf16 MXU, f32 accumulate."""
    acc = jnp.dot(w_ref[...], x_ref[...], preferred_element_type=jnp.float32)
    o_ref[...] = jnp.maximum(acc + b_ref[...], 0.0).astype(o_ref.dtype)


def down_conv(img, w, b):
    """Returns (B, 64, ds*ds) bf16; reshape(B, -1) == PyTorch out.view(B, -1)."""
    B, C, S, _ = img.shape
    ds = S // 2
    HW = ds * ds
    K = 9 * C
    Kp = _round_up(K, 16)                      # bf16 sublane packing granule

    # im2col (tiny), feature order (cin, ky, kx) == OIHW weight flatten order.
    img_pad = jnp.pad(img, ((0, 0), (0, 0), (1, 1), (1, 1))).astype(jnp.bfloat16)
    taps = [img_pad[:, :, ky:ky + 2 * ds:2, kx:kx + 2 * ds:2]
            for ky in range(3) for kx in range(3)]
    patches = jnp.stack(taps, axis=2).reshape(B, K, HW)        # (B, 9C, HW)
    if Kp != K:
        patches = jnp.pad(patches, ((0, 0), (0, Kp - K), (0, 0)))

    wT = w.reshape(64, K).astype(jnp.bfloat16)                 # (64, 9C)
    if Kp != K:
        wT = jnp.pad(wT, ((0, 0), (0, Kp - K)))

    T = _pick_lane_tile(HW)
    out = pl.pallas_call(
        _down_conv_kernel,
        out_shape=jax.ShapeDtypeStruct((B, 64, HW), jnp.bfloat16),
        grid=(B, HW // T),
        in_specs=[
            pl.BlockSpec((None, Kp, T), lambda bi, t: (bi, 0, t)),
            pl.BlockSpec((64, Kp), lambda bi, t: (0, 0)),
            pl.BlockSpec((64, 1), lambda bi, t: (0, 0)),
        ],
        out_specs=pl.BlockSpec((None, 64, T), lambda bi, t: (bi, 0, t)),
        compiler_params=pltpu.CompilerParams(
            dimension_semantics=("parallel", "parallel")),
    )(patches, wT, b.reshape(64, 1).astype(jnp.float32))
    return out


# ----------------------------------------------------------------------------
# Kernel 2: fc block  (Linear -> BN1d(32, eps=0.8) -> ReLU -> Linear -> BN1d -> ReLU)
# ----------------------------------------------------------------------------
def _fc_bn_kernel(x_ref, mask_ref, w1_ref, b1_ref, g1_ref, be1_ref,
                  w2_ref, b2_ref, g2_ref, be2_ref, o_ref, *,
                  eps1, eps2, inv_batch):
    """Training-mode BN (batch statistics, biased variance); the batch dim is
    padded to 8 sublanes and statistics use only the real rows via `mask`."""
    mask = mask_ref[...]                                          # (Bp, 1) f32
    h = jnp.dot(x_ref[...], w1_ref[...],
                preferred_element_type=jnp.float32) + b1_ref[...]
    mu1 = jnp.sum(h * mask, axis=0, keepdims=True) * inv_batch
    d1 = h - mu1
    var1 = jnp.sum(d1 * d1 * mask, axis=0, keepdims=True) * inv_batch
    h = jnp.maximum(d1 * jax.lax.rsqrt(var1 + eps1) * g1_ref[...] + be1_ref[...], 0.0)
    h = h * mask                                                  # zero padded rows

    y = jnp.dot(h.astype(jnp.bfloat16), w2_ref[...],
                preferred_element_type=jnp.float32) + b2_ref[...]
    mu2 = jnp.sum(y * mask, axis=0, keepdims=True) * inv_batch
    d2 = y - mu2
    var2 = jnp.sum(d2 * d2 * mask, axis=0, keepdims=True) * inv_batch
    y = jnp.maximum(d2 * jax.lax.rsqrt(var2 + eps2) * g2_ref[...] + be2_ref[...], 0.0)
    o_ref[...] = y.astype(o_ref.dtype)


def fc_bn_block(x, w1, b1, g1, be1, w2, b2, g2, be2, *, eps1, eps2):
    B, D = x.shape
    H = w1.shape[1]
    assert w1.shape[0] == D and w2.shape == (H, D)
    Bp = _round_up(max(B, 8), 8)
    if Bp != B:
        x = jnp.pad(x, ((0, Bp - B), (0, 0)))
    mask = (jnp.arange(Bp) < B).astype(jnp.float32).reshape(Bp, 1)
    row = lambda v: v.reshape(1, -1).astype(jnp.float32)
    full = lambda shape: pl.BlockSpec(shape, lambda i: (0, 0))
    # Single-block kernel: BN couples all of D through the (B, 32) bottleneck,
    # so there is no clean parallel grid axis at these shapes (blocks < 1 MiB).
    out = pl.pallas_call(
        functools.partial(_fc_bn_kernel, eps1=eps1, eps2=eps2, inv_batch=1.0 / B),
        out_shape=jax.ShapeDtypeStruct((Bp, D), jnp.bfloat16),
        grid=(1,),
        in_specs=[
            full((Bp, D)), full((Bp, 1)),
            full((D, H)), full((1, H)), full((1, H)), full((1, H)),
            full((H, D)), full((1, D)), full((1, D)), full((1, D)),
        ],
        out_specs=full((Bp, D)),
        compiler_params=pltpu.CompilerParams(
            dimension_semantics=("arbitrary",),
            vmem_limit_bytes=32 * 1024 * 1024),
    )(x.astype(jnp.bfloat16), mask,
      w1.astype(jnp.bfloat16), row(b1), row(g1), row(be1),
      w2.astype(jnp.bfloat16), row(b2), row(g2), row(be2))
    return out[:B]


# ----------------------------------------------------------------------------
# Kernel 3: up path  (Upsample x2 nearest + Conv2d(64, C, 3, stride=1, pad=1))
# ----------------------------------------------------------------------------
def _up_conv_kernel(a_ref, w_ref, b_ref, o_ref, *, w2p, l_out):
    """out[c, o] = b[c] + sum_{ky,kx} W[ky,kx] @ A[:, o + 1 + ky*w2p + kx].

    A is the row-major-flattened, zero-padded, upsampled activation for one
    batch element with one leading guard lane; all 9 tap offsets are static."""
    a = a_ref[...]                                           # (64, P_in) bf16
    acc = b_ref[...] + jnp.zeros(o_ref.shape, jnp.float32)   # (Cp, L_out)
    for ky in range(3):
        for kx in range(3):
            off = 1 + ky * w2p + kx
            acc = acc + jnp.dot(w_ref[ky * 3 + kx], a[:, off:off + l_out],
                                preferred_element_type=jnp.float32)
    o_ref[...] = acc


def up_conv(x, w, b):
    """x: (B, 64, ds, ds) -> (B, C, 2*ds, 2*ds).  No im2col patch matrix is
    materialized; the kernel accumulates 9 lane-shifted matmuls and writes a
    batch-major output (only a cheap slice/reshape remains outside)."""
    B, Cin, ds, _ = x.shape
    C = w.shape[0]
    S = 2 * ds
    W2p = S + 2                                              # padded row length
    Cp = _round_up(max(C, 8), 8)
    L_out = _round_up(S * W2p, 128)                          # row-padded output lanes
    P_in = _round_up(max(L_out + 2 * W2p + 3, (S + 2) * W2p + 1), 128)

    # nearest 2x upsample, spatial zero-pad 1, row-major flatten, 1 guard lane.
    u = jnp.repeat(jnp.repeat(x.astype(jnp.bfloat16), 2, axis=2), 2, axis=3)
    u = jnp.pad(u, ((0, 0), (0, 0), (1, 1), (1, 1)))         # (B, 64, S+2, S+2)
    a = u.reshape(B, Cin, (S + 2) * (S + 2))
    a = jnp.pad(a, ((0, 0), (0, 0), (1, P_in - 1 - (S + 2) * (S + 2))))

    wt = jnp.transpose(w, (2, 3, 0, 1)).reshape(9, C, Cin)   # (ky*3+kx, cout, cin)
    wt = jnp.pad(wt, ((0, 0), (0, Cp - C), (0, 0))).astype(jnp.bfloat16)
    bp = jnp.pad(b, ((0, Cp - C),)).reshape(Cp, 1).astype(jnp.float32)

    out = pl.pallas_call(
        functools.partial(_up_conv_kernel, w2p=W2p, l_out=L_out),
        out_shape=jax.ShapeDtypeStruct((B, Cp, L_out), jnp.float32),
        grid=(B,),
        in_specs=[
            pl.BlockSpec((None, Cin, P_in), lambda bi: (bi, 0, 0)),
            pl.BlockSpec((9, Cp, Cin), lambda bi: (0, 0, 0)),
            pl.BlockSpec((Cp, 1), lambda bi: (0, 0)),
        ],
        out_specs=pl.BlockSpec((None, Cp, L_out), lambda bi: (bi, 0, 0)),
        compiler_params=pltpu.CompilerParams(dimension_semantics=("parallel",)),
    )(a, wt, bp)

    return out[:, :C, :S * W2p].reshape(B, C, S, W2p)[..., :S]


# ----------------------------------------------------------------------------
# Discriminator
# ----------------------------------------------------------------------------
def init_params(key, channels, img_size):
    ds = img_size // 2
    down_dim = 64 * ds * ds
    ks = jax.random.split(key, 4)
    s = 0.05
    return {
        # Conv2d weights in PyTorch OIHW layout; Linear applied as x @ W.
        "down_w": jax.random.normal(ks[0], (64, channels, 3, 3), jnp.float32) * s,
        "down_b": jnp.zeros((64,), jnp.float32),
        "fc1_w": jax.random.normal(ks[1], (down_dim, 32), jnp.float32) * s,
        "fc1_b": jnp.zeros((32,), jnp.float32),
        "bn1_g": jnp.ones((32,), jnp.float32),
        "bn1_b": jnp.zeros((32,), jnp.float32),
        "fc2_w": jax.random.normal(ks[2], (32, down_dim), jnp.float32) * s,
        "fc2_b": jnp.zeros((down_dim,), jnp.float32),
        "bn2_g": jnp.ones((down_dim,), jnp.float32),
        "bn2_b": jnp.zeros((down_dim,), jnp.float32),
        "up_w": jax.random.normal(ks[3], (channels, 64, 3, 3), jnp.float32) * s,
        "up_b": jnp.zeros((channels,), jnp.float32),
    }


def discriminator_forward(params, img):
    B, C, S, _ = img.shape
    ds = S // 2
    down_dim = 64 * ds * ds

    # --- down: Conv2d(C, 64, 3, 2, 1) + ReLU  ->  (B, 64, ds*ds)
    down = down_conv(img, params["down_w"], params["down_b"])
    flat = down.reshape(B, down_dim)          # metadata-only; == out.view(B, -1)

    # --- fc: Linear -> BN1d(32, eps=0.8) -> ReLU -> Linear -> BN1d -> ReLU
    fc_out = fc_bn_block(
        flat,
        params["fc1_w"], params["fc1_b"], params["bn1_g"], params["bn1_b"],
        params["fc2_w"], params["fc2_b"], params["bn2_g"], params["bn2_b"],
        eps1=0.8, eps2=1e-5)                  # (B, down_dim) in (c, h, w) order

    # --- up: view (B, 64, ds, ds) -> Upsample(x2) -> Conv2d(64, C, 3, 1, 1)
    up_in = fc_out.reshape(B, 64, ds, ds)
    return up_conv(up_in, params["up_w"], params["up_b"])


if __name__ == "__main__":
    # Small shapes consistent with the module: opt.channels=4, opt.img_size=16.
    batch, channels, img_size = 2, 4, 16

    key = jax.random.PRNGKey(0)
    k_params, k_img = jax.random.split(key)
    params = init_params(k_params, channels, img_size)
    img = jax.random.normal(k_img, (batch, channels, img_size, img_size), jnp.float32)

    fwd = jax.jit(discriminator_forward)
    out = jax.block_until_ready(fwd(params, img))
    assert out.shape == (batch, channels, img_size, img_size), out.shape
    assert bool(jnp.all(jnp.isfinite(out)))
    print("KERNEL_OK")
</pallas_src>

<mosaic_0001>
module attributes {stable_mosaic.version = 11 : i64} {
  func.func @_down_conv_kernel(%arg0: i32, %arg1: i32, %arg2: memref<1x48x64xbf16, #tpu.memory_space<vmem>>, %arg3: memref<64x48xbf16, #tpu.memory_space<vmem>>, %arg4: memref<64x1xf32, #tpu.memory_space<vmem>>, %arg5: memref<1x64x64xbf16, #tpu.memory_space<vmem>>) attributes {dimension_semantics = [#tpu.dimension_semantics<parallel>, #tpu.dimension_semantics<parallel>], iteration_bounds = array<i64: 2, 1>, scalar_prefetch = 0 : i64, scratch_operands = 0 : i64, tpu.core_type = #tpu.core_type<tc>, window_params = [{transform_indices = @transform_0, window_bounds = array<i64: 1, 48, 64>}, {pipeline_mode = #tpu.pipeline_mode<synchronous>, transform_indices = @transform_1, window_bounds = array<i64: 64, 48>}, {pipeline_mode = #tpu.pipeline_mode<synchronous>, transform_indices = @transform_2, window_bounds = array<i64: 64, 1>}, {transform_indices = @transform_3, window_bounds = array<i64: 1, 64, 64>}]} {
    %c0 = arith.constant 0 : index
    %c0_0 = arith.constant 0 : index
    %0 = vector.load %arg3[%c0, %c0_0] : memref<64x48xbf16, #tpu.memory_space<vmem>>, vector<64x48xbf16>
    %c0_1 = arith.constant 0 : index
    %c0_2 = arith.constant 0 : index
    %c0_3 = arith.constant 0 : index
    %1 = vector.load %arg2[%c0_1, %c0_2, %c0_3] : memref<1x48x64xbf16, #tpu.memory_space<vmem>>, vector<1x48x64xbf16>
    %2 = vector.shape_cast %1 : vector<1x48x64xbf16> to vector<48x64xbf16>
    %cst = arith.constant dense<0.000000e+00> : vector<64x64xf32>
    %3 = tpu.matmul %0, %2, %cst {dimension_numbers = #tpu.dot_dimension_numbers<[1], [0], [0], [1], [0, 0, 1, 1], [], []>} : vector<64x48xbf16>, vector<48x64xbf16>, vector<64x64xf32> -> vector<64x64xf32>
    %c0_4 = arith.constant 0 : index
    %c0_5 = arith.constant 0 : index
    %4 = vector.load %arg4[%c0_4, %c0_5] : memref<64x1xf32, #tpu.memory_space<vmem>>, vector<64x1xf32>
    %5 = vector.broadcast %4 : vector<64x1xf32> to vector<64x64xf32>
    %6 = arith.addf %3, %5 : vector<64x64xf32>
    %cst_6 = arith.constant 0.000000e+00 : f32
    %7 = vector.broadcast %cst_6 : f32 to vector<64x64xf32>
    %8 = arith.maximumf %6, %7 : vector<64x64xf32>
    %9 = arith.truncf %8 : vector<64x64xf32> to vector<64x64xbf16>
    %c0_7 = arith.constant 0 : index
    %c0_8 = arith.constant 0 : index
    %c0_9 = arith.constant 0 : index
    %10 = vector.load %arg5[%c0_7, %c0_8, %c0_9] : memref<1x64x64xbf16, #tpu.memory_space<vmem>>, vector<1x64x64xbf16>
    %11 = vector.shape_cast %10 : vector<1x64x64xbf16> to vector<64x64xbf16>
    %12 = vector.shape_cast %9 : vector<64x64xbf16> to vector<1x64x64xbf16>
    tpu.vector_store %arg5[%c0_7, %c0_8, %c0_9], %12 {strides = array<i32>} : memref<1x64x64xbf16, #tpu.memory_space<vmem>>, vector<1x64x64xbf16>,
    return
  }
  func.func @transform_0(%arg0: i32, %arg1: i32) -> (i32, i32, i32) {
    %c0_i32 = arith.constant 0 : i32
    %c0_i32_0 = arith.constant 0 : i32
    return %arg0, %c0_i32, %arg1 : i32, i32, i32
  }
  func.func @transform_1(%arg0: i32, %arg1: i32) -> (i32, i32) {
    %c0_i32 = arith.constant 0 : i32
    %c0_i32_0 = arith.constant 0 : i32
    %c0_i32_1 = arith.constant 0 : i32
    return %c0_i32, %c0_i32_0 : i32, i32
  }
  func.func @transform_2(%arg0: i32, %arg1: i32) -> (i32, i32) {
    %c0_i32 = arith.constant 0 : i32
    %c0_i32_0 = arith.constant 0 : i32
    %c0_i32_1 = arith.constant 0 : i32
    return %c0_i32, %c0_i32_0 : i32, i32
  }
  func.func @transform_3(%arg0: i32, %arg1: i32) -> (i32, i32, i32) {
    %c0_i32 = arith.constant 0 : i32
    %c0_i32_0 = arith.constant 0 : i32
    return %arg0, %c0_i32, %arg1 : i32, i32, i32
  }
}

module attributes {stable_mosaic.version = 11 : i64} {
  func.func @_fc_bn_kernel(%arg0: i32, %arg1: memref<8x4096xbf16, #tpu.memory_space<vmem>>, %arg2: memref<8x1xf32, #tpu.memory_space<vmem>>, %arg3: memref<4096x32xbf16, #tpu.memory_space<vmem>>, %arg4: memref<1x32xf32, #tpu.memory_space<vmem>>, %arg5: memref<1x32xf32, #tpu.memory_space<vmem>>, %arg6: memref<1x32xf32, #tpu.memory_space<vmem>>, %arg7: memref<32x4096xbf16, #tpu.memory_space<vmem>>, %arg8: memref<1x4096xf32, #tpu.memory_space<vmem>>, %arg9: memref<1x4096xf32, #tpu.memory_space<vmem>>, %arg10: memref<1x4096xf32, #tpu.memory_space<vmem>>, %arg11: memref<8x4096xbf16, #tpu.memory_space<vmem>>) attributes {dimension_semantics = [#tpu.dimension_semantics<arbitrary>], iteration_bounds = array<i64: 1>, scalar_prefetch = 0 : i64, scratch_operands = 0 : i64, tpu.core_type = #tpu.core_type<tc>, window_params = [{pipeline_mode = #tpu.pipeline_mode<synchronous>, transform_indices = @transform_0, window_bounds = array<i64: 8, 4096>}, {pipeline_mode = #tpu.pipeline_mode<synchronous>, transform_indices = @transform_1, window_bounds = array<i64: 8, 1>}, {pipeline_mode = #tpu.pipeline_mode<synchronous>, transform_indices = @transform_2, window_bounds = array<i64: 4096, 32>}, {pipeline_mode = #tpu.pipeline_mode<synchronous>, transform_indices = @transform_3, window_bounds = array<i64: 1, 32>}, {pipeline_mode = #tpu.pipeline_mode<synchronous>, transform_indices = @transform_4, window_bounds = array<i64: 1, 32>}, {pipeline_mode = #tpu.pipeline_mode<synchronous>, transform_indices = @transform_5, window_bounds = array<i64: 1, 32>}, {pipeline_mode = #tpu.pipeline_mode<synchronous>, transform_indices = @transform_6, window_bounds = array<i64: 32, 4096>}, {pipeline_mode = #tpu.pipeline_mode<synchronous>, transform_indices = @transform_7, window_bounds = array<i64: 1, 4096>}, {pipeline_mode = #tpu.pipeline_mode<synchronous>, transform_indices = @transform_8, window_bounds = array<i64: 1, 4096>}, {pipeline_mode = #tpu.pipeline_mode<synchronous>, transform_indices = @transform_9, window_bounds = array<i64: 1, 4096>}, {pipeline_mode = #tpu.pipeline_mode<synchronous>, transform_indices = @transform_10, window_bounds = array<i64: 8, 4096>}]} {
    %c0 = arith.constant 0 : index
    %c0_0 = arith.constant 0 : index
    %0 = vector.load %arg2[%c0, %c0_0] : memref<8x1xf32, #tpu.memory_space<vmem>>, vector<8x1xf32>
    %c0_1 = arith.constant 0 : index
    %c0_2 = arith.constant 0 : index
    %1 = vector.load %arg1[%c0_1, %c0_2] : memref<8x4096xbf16, #tpu.memory_space<vmem>>, vector<8x4096xbf16>
    %c0_3 = arith.constant 0 : index
    %c0_4 = arith.constant 0 : index
    %2 = vector.load %arg3[%c0_3, %c0_4] : memref<4096x32xbf16, #tpu.memory_space<vmem>>, vector<4096x32xbf16>
    %cst = arith.constant dense<0.000000e+00> : vector<8x32xf32>
    %3 = tpu.matmul %1, %2, %cst {dimension_numbers = #tpu.dot_dimension_numbers<[1], [0], [0], [1], [0, 0, 1, 1], [], []>} : vector<8x4096xbf16>, vector<4096x32xbf16>, vector<8x32xf32> -> vector<8x32xf32>
    %c0_5 = arith.constant 0 : index
    %c0_6 = arith.constant 0 : index
    %4 = vector.load %arg4[%c0_5, %c0_6] : memref<1x32xf32, #tpu.memory_space<vmem>>, vector<1x32xf32>
    %5 = vector.broadcast %4 : vector<1x32xf32> to vector<8x32xf32>
    %6 = arith.addf %3, %5 : vector<8x32xf32>
    %7 = vector.broadcast %0 : vector<8x1xf32> to vector<8x32xf32>
    %8 = arith.mulf %6, %7 : vector<8x32xf32>
    %cst_7 = arith.constant dense<0.000000e+00> : vector<32xf32>
    %9 = vector.multi_reduction <add>, %8, %cst_7 [0] : vector<8x32xf32> to vector<32xf32>
    %10 = vector.shape_cast %9 : vector<32xf32> to vector<1x32xf32>
    %cst_8 = arith.constant 5.000000e-01 : f32
    %11 = vector.broadcast %cst_8 : f32 to vector<1x32xf32>
    %12 = arith.mulf %10, %11 : vector<1x32xf32>
    %13 = vector.broadcast %12 : vector<1x32xf32> to vector<8x32xf32>
    %14 = arith.subf %6, %13 : vector<8x32xf32>
    %15 = arith.mulf %14, %14 : vector<8x32xf32>
    %16 = vector.broadcast %0 : vector<8x1xf32> to vector<8x32xf32>
    %17 = arith.mulf %15, %16 : vector<8x32xf32>
    %cst_9 = arith.constant dense<0.000000e+00> : vector<32xf32>
    %18 = vector.multi_reduction <add>, %17, %cst_9 [0] : vector<8x32xf32> to vector<32xf32>
    %19 = vector.shape_cast %18 : vector<32xf32> to vector<1x32xf32>
    %cst_10 = arith.constant 5.000000e-01 : f32
    %20 = vector.broadcast %cst_10 : f32 to vector<1x32xf32>
    %21 = arith.mulf %19, %20 : vector<1x32xf32>
    %cst_11 = arith.constant 8.000000e-01 : f32
    %22 = vector.broadcast %cst_11 : f32 to vector<1x32xf32>
    %23 = arith.addf %21, %22 : vector<1x32xf32>
    %24 = math.rsqrt %23 : vector<1x32xf32>
    %25 = vector.broadcast %24 : vector<1x32xf32> to vector<8x32xf32>
    %26 = arith.mulf %14, %25 : vector<8x32xf32>
    %c0_12 = arith.constant 0 : index
    %c0_13 = arith.constant 0 : index
    %27 = vector.load %arg5[%c0_12, %c0_13] : memref<1x32xf32, #tpu.memory_space<vmem>>, vector<1x32xf32>
    %28 = vector.broadcast %27 : vector<1x32xf32> to vector<8x32xf32>
    %29 = arith.mulf %26, %28 : vector<8x32xf32>
    %c0_14 = arith.constant 0 : index
    %c0_15 = arith.constant 0 : index
    %30 = vector.load %arg6[%c0_14, %c0_15] : memref<1x32xf32, #tpu.memory_space<vmem>>, vector<1x32xf32>
    %31 = vector.broadcast %30 : vector<1x32xf32> to vector<8x32xf32>
    %32 = arith.addf %29, %31 : vector<8x32xf32>
    %cst_16 = arith.constant 0.000000e+00 : f32
    %33 = vector.broadcast %cst_16 : f32 to vector<8x32xf32>
    %34 = arith.maximumf %32, %33 : vector<8x32xf32>
    %35 = vector.broadcast %0 : vector<8x1xf32> to vector<8x32xf32>
    %36 = arith.mulf %34, %35 : vector<8x32xf32>
    %37 = arith.truncf %36 : vector<8x32xf32> to vector<8x32xbf16>
    %c0_17 = arith.constant 0 : index
    %c0_18 = arith.constant 0 : index
    %38 = vector.load %arg7[%c0_17, %c0_18] : memref<32x4096xbf16, #tpu.memory_space<vmem>>, vector<32x4096xbf16>
    %cst_19 = arith.constant dense<0.000000e+00> : vector<8x4096xf32>
    %39 = tpu.matmul %37, %38, %cst_19 {dimension_numbers = #tpu.dot_dimension_numbers<[1], [0], [0], [1], [0, 0, 1, 1], [], []>} : vector<8x32xbf16>, vector<32x4096xbf16>, vector<8x4096xf32> -> vector<8x4096xf32>
    %c0_20 = arith.constant 0 : index
    %c0_21 = arith.constant 0 : index
    %40 = vector.load %arg8[%c0_20, %c0_21] : memref<1x4096xf32, #tpu.memory_space<vmem>>, vector<1x4096xf32>
    %41 = vector.broadcast %40 : vector<1x4096xf32> to vector<8x4096xf32>
    %42 = arith.addf %39, %41 : vector<8x4096xf32>
    %43 = vector.broadcast %0 : vector<8x1xf32> to vector<8x4096xf32>
    %44 = arith.mulf %42, %43 : vector<8x4096xf32>
    %cst_22 = arith.constant dense<0.000000e+00> : vector<4096xf32>
    %45 = vector.multi_reduction <add>, %44, %cst_22 [0] : vector<8x4096xf32> to vector<4096xf32>
    %46 = vector.shape_cast %45 : vector<4096xf32> to vector<1x4096xf32>
    %cst_23 = arith.constant 5.000000e-01 : f32
    %47 = vector.broadcast %cst_23 : f32 to vector<1x4096xf32>
    %48 = arith.mulf %46, %47 : vector<1x4096xf32>
    %49 = vector.broadcast %48 : vector<1x4096xf32> to vector<8x4096xf32>
    %50 = arith.subf %42, %49 : vector<8x4096xf32>
    %51 = arith.mulf %50, %50 : vector<8x4096xf32>
    %52 = vector.broadcast %0 : vector<8x1xf32> to vector<8x4096xf32>
    %53 = arith.mulf %51, %52 : vector<8x4096xf32>
    %cst_24 = arith.constant dense<0.000000e+00> : vector<4096xf32>
    %54 = vector.multi_reduction <add>, %53, %cst_24 [0] : vector<8x4096xf32> to vector<4096xf32>
    %55 = vector.shape_cast %54 : vector<4096xf32> to vector<1x4096xf32>
    %cst_25 = arith.constant 5.000000e-01 : f32
    %56 = vector.broadcast %cst_25 : f32 to vector<1x4096xf32>
    %57 = arith.mulf %55, %56 : vector<1x4096xf32>
    %cst_26 = arith.constant 9.99999974E-6 : f32
    %58 = vector.broadcast %cst_26 : f32 to vector<1x4096xf32>
    %59 = arith.addf %57, %58 : vector<1x4096xf32>
    %60 = math.rsqrt %59 : vector<1x4096xf32>
    %61 = vector.broadcast %60 : vector<1x4096xf32> to vector<8x4096xf32>
    %62 = arith.mulf %50, %61 : vector<8x4096xf32>
    %c0_27 = arith.constant 0 : index
    %c0_28 = arith.constant 0 : index
    %63 = vector.load %arg9[%c0_27, %c0_28] : memref<1x4096xf32, #tpu.memory_space<vmem>>, vector<1x4096xf32>
    %64 = vector.broadcast %63 : vector<1x4096xf32> to vector<8x4096xf32>
    %65 = arith.mulf %62, %64 : vector<8x4096xf32>
    %c0_29 = arith.constant 0 : index
    %c0_30 = arith.constant 0 : index
    %66 = vector.load %arg10[%c0_29, %c0_30] : memref<1x4096xf32, #tpu.memory_space<vmem>>, vector<1x4096xf32>
    %67 = vector.broadcast %66 : vector<1x4096xf32> to vector<8x4096xf32>
    %68 = arith.addf %65, %67 : vector<8x4096xf32>
    %cst_31 = arith.constant 0.000000e+00 : f32
    %69 = vector.broadcast %cst_31 : f32 to vector<8x4096xf32>
    %70 = arith.maximumf %68, %69 : vector<8x4096xf32>
    %71 = arith.truncf %70 : vector<8x4096xf32> to vector<8x4096xbf16>
    %c0_32 = arith.constant 0 : index
    %c0_33 = arith.constant 0 : index
    %72 = vector.load %arg11[%c0_32, %c0_33] : memref<8x4096xbf16, #tpu.memory_space<vmem>>, vector<8x4096xbf16>
    tpu.vector_store %arg11[%c0_32, %c0_33], %71 {strides = array<i32>} : memref<8x4096xbf16, #tpu.memory_space<vmem>>, vector<8x4096xbf16>,
    return
  }
  func.func @transform_0(%arg0: i32) -> (i32, i32) {
    %c0_i32 = arith.constant 0 : i32
    %c0_i32_0 = arith.constant 0 : i32
    %c0_i32_1 = arith.constant 0 : i32
    return %c0_i32, %c0_i32_0 : i32, i32
  }
  func.func @transform_1(%arg0: i32) -> (i32, i32) {
    %c0_i32 = arith.constant 0 : i32
    %c0_i32_0 = arith.constant 0 : i32
    %c0_i32_1 = arith.constant 0 : i32
    return %c0_i32, %c0_i32_0 : i32, i32
  }
  func.func @transform_2(%arg0: i32) -> (i32, i32) {
    %c0_i32 = arith.constant 0 : i32
    %c0_i32_0 = arith.constant 0 : i32
    %c0_i32_1 = arith.constant 0 : i32
    return %c0_i32, %c0_i32_0 : i32, i32
  }
  func.func @transform_3(%arg0: i32) -> (i32, i32) {
    %c0_i32 = arith.constant 0 : i32
    %c0_i32_0 = arith.constant 0 : i32
    %c0_i32_1 = arith.constant 0 : i32
    return %c0_i32, %c0_i32_0 : i32, i32
  }
  func.func @transform_4(%arg0: i32) -> (i32, i32) {
    %c0_i32 = arith.constant 0 : i32
    %c0_i32_0 = arith.constant 0 : i32
    %c0_i32_1 = arith.constant 0 : i32
    return %c0_i32, %c0_i32_0 : i32, i32
  }
  func.func @transform_5(%arg0: i32) -> (i32, i32) {
    %c0_i32 = arith.constant 0 : i32
    %c0_i32_0 = arith.constant 0 : i32
    %c0_i32_1 = arith.constant 0 : i32
    return %c0_i32, %c0_i32_0 : i32, i32
  }
  func.func @transform_6(%arg0: i32) -> (i32, i32) {
    %c0_i32 = arith.constant 0 : i32
    %c0_i32_0 = arith.constant 0 : i32
    %c0_i32_1 = arith.constant 0 : i32
    return %c0_i32, %c0_i32_0 : i32, i32
  }
  func.func @transform_7(%arg0: i32) -> (i32, i32) {
    %c0_i32 = arith.constant 0 : i32
    %c0_i32_0 = arith.constant 0 : i32
    %c0_i32_1 = arith.constant 0 : i32
    return %c0_i32, %c0_i32_0 : i32, i32
  }
  func.func @transform_8(%arg0: i32) -> (i32, i32) {
    %c0_i32 = arith.constant 0 : i32
    %c0_i32_0 = arith.constant 0 : i32
    %c0_i32_1 = arith.constant 0 : i32
    return %c0_i32, %c0_i32_0 : i32, i32
  }
  func.func @transform_9(%arg0: i32) -> (i32, i32) {
    %c0_i32 = arith.constant 0 : i32
    %c0_i32_0 = arith.constant 0 : i32
    %c0_i32_1 = arith.constant 0 : i32
    return %c0_i32, %c0_i32_0 : i32, i32
  }
  func.func @transform_10(%arg0: i32) -> (i32, i32) {
    %c0_i32 = arith.constant 0 : i32
    %c0_i32_0 = arith.constant 0 : i32
    %c0_i32_1 = arith.constant 0 : i32
    return %c0_i32, %c0_i32_0 : i32, i32
  }
}

module attributes {stable_mosaic.version = 11 : i64} {
  func.func @_up_conv_kernel(%arg0: i32, %arg1: memref<1x64x512xbf16, #tpu.memory_space<vmem>>, %arg2: memref<9x8x64xbf16, #tpu.memory_space<vmem>>, %arg3: memref<8x1xf32, #tpu.memory_space<vmem>>, %arg4: memref<1x8x384xf32, #tpu.memory_space<vmem>>) attributes {dimension_semantics = [#tpu.dimension_semantics<parallel>], iteration_bounds = array<i64: 2>, scalar_prefetch = 0 : i64, scratch_operands = 0 : i64, tpu.core_type = #tpu.core_type<tc>, window_params = [{transform_indices = @transform_0, window_bounds = array<i64: 1, 64, 512>}, {pipeline_mode = #tpu.pipeline_mode<synchronous>, transform_indices = @transform_1, window_bounds = array<i64: 9, 8, 64>}, {pipeline_mode = #tpu.pipeline_mode<synchronous>, transform_indices = @transform_2, window_bounds = array<i64: 8, 1>}, {transform_indices = @transform_3, window_bounds = array<i64: 1, 8, 384>}]} {
    %c0 = arith.constant 0 : index
    %c0_0 = arith.constant 0 : index
    %c0_1 = arith.constant 0 : index
    %0 = vector.load %arg1[%c0, %c0_0, %c0_1] : memref<1x64x512xbf16, #tpu.memory_space<vmem>>, vector<1x64x512xbf16>
    %1 = vector.shape_cast %0 : vector<1x64x512xbf16> to vector<64x512xbf16>
    %c0_2 = arith.constant 0 : index
    %c0_3 = arith.constant 0 : index
    %2 = vector.load %arg3[%c0_2, %c0_3] : memref<8x1xf32, #tpu.memory_space<vmem>>, vector<8x1xf32>
    %cst = arith.constant 0.000000e+00 : f32
    %3 = vector.broadcast %cst : f32 to vector<8x384xf32>
    %4 = vector.broadcast %2 : vector<8x1xf32> to vector<8x384xf32>
    %5 = arith.addf %4, %3 : vector<8x384xf32>
    %c0_4 = arith.constant 0 : index
    %c0_5 = arith.constant 0 : index
    %c0_6 = arith.constant 0 : index
    %6 = vector.load %arg2[%c0_4, %c0_5, %c0_6] : memref<9x8x64xbf16, #tpu.memory_space<vmem>>, vector<1x8x64xbf16>
    %7 = vector.shape_cast %6 : vector<1x8x64xbf16> to vector<8x64xbf16>
    %8 = vector.extract_strided_slice %1 {offsets = [0, 1], sizes = [64, 384], strides = [1, 1]} : vector<64x512xbf16> to vector<64x384xbf16>
    %cst_7 = arith.constant dense<0.000000e+00> : vector<8x384xf32>
    %9 = tpu.matmul %7, %8, %cst_7 {dimension_numbers = #tpu.dot_dimension_numbers<[1], [0], [0], [1], [0, 0, 1, 1], [], []>} : vector<8x64xbf16>, vector<64x384xbf16>, vector<8x384xf32> -> vector<8x384xf32>
    %10 = arith.addf %5, %9 : vector<8x384xf32>
    %c1 = arith.constant 1 : index
    %c0_8 = arith.constant 0 : index
    %c0_9 = arith.constant 0 : index
    %11 = vector.load %arg2[%c1, %c0_8, %c0_9] : memref<9x8x64xbf16, #tpu.memory_space<vmem>>, vector<1x8x64xbf16>
    %12 = vector.shape_cast %11 : vector<1x8x64xbf16> to vector<8x64xbf16>
    %13 = vector.extract_strided_slice %1 {offsets = [0, 2], sizes = [64, 384], strides = [1, 1]} : vector<64x512xbf16> to vector<64x384xbf16>
    %cst_10 = arith.constant dense<0.000000e+00> : vector<8x384xf32>
    %14 = tpu.matmul %12, %13, %cst_10 {dimension_numbers = #tpu.dot_dimension_numbers<[1], [0], [0], [1], [0, 0, 1, 1], [], []>} : vector<8x64xbf16>, vector<64x384xbf16>, vector<8x384xf32> -> vector<8x384xf32>
    %15 = arith.addf %10, %14 : vector<8x384xf32>
    %c2 = arith.constant 2 : index
    %c0_11 = arith.constant 0 : index
    %c0_12 = arith.constant 0 : index
    %16 = vector.load %arg2[%c2, %c0_11, %c0_12] : memref<9x8x64xbf16, #tpu.memory_space<vmem>>, vector<1x8x64xbf16>
    %17 = vector.shape_cast %16 : vector<1x8x64xbf16> to vector<8x64xbf16>
    %18 = vector.extract_strided_slice %1 {offsets = [0, 3], sizes = [64, 384], strides = [1, 1]} : vector<64x512xbf16> to vector<64x384xbf16>
    %cst_13 = arith.constant dense<0.000000e+00> : vector<8x384xf32>
    %19 = tpu.matmul %17, %18, %cst_13 {dimension_numbers = #tpu.dot_dimension_numbers<[1], [0], [0], [1], [0, 0, 1, 1], [], []>} : vector<8x64xbf16>, vector<64x384xbf16>, vector<8x384xf32> -> vector<8x384xf32>
    %20 = arith.addf %15, %19 : vector<8x384xf32>
    %c3 = arith.constant 3 : index
    %c0_14 = arith.constant 0 : index
    %c0_15 = arith.constant 0 : index
    %21 = vector.load %arg2[%c3, %c0_14, %c0_15] : memref<9x8x64xbf16, #tpu.memory_space<vmem>>, vector<1x8x64xbf16>
    %22 = vector.shape_cast %21 : vector<1x8x64xbf16> to vector<8x64xbf16>
    %23 = vector.extract_strided_slice %1 {offsets = [0, 19], sizes = [64, 384], strides = [1, 1]} : vector<64x512xbf16> to vector<64x384xbf16>
    %cst_16 = arith.constant dense<0.000000e+00> : vector<8x384xf32>
    %24 = tpu.matmul %22, %23, %cst_16 {dimension_numbers = #tpu.dot_dimension_numbers<[1], [0], [0], [1], [0, 0, 1, 1], [], []>} : vector<8x64xbf16>, vector<64x384xbf16>, vector<8x384xf32> -> vector<8x384xf32>
    %25 = arith.addf %20, %24 : vector<8x384xf32>
    %c4 = arith.constant 4 : index
    %c0_17 = arith.constant 0 : index
    %c0_18 = arith.constant 0 : index
    %26 = vector.load %arg2[%c4, %c0_17, %c0_18] : memref<9x8x64xbf16, #tpu.memory_space<vmem>>, vector<1x8x64xbf16>
    %27 = vector.shape_cast %26 : vector<1x8x64xbf16> to vector<8x64xbf16>
    %28 = vector.extract_strided_slice %1 {offsets = [0, 20], sizes = [64, 384], strides = [1, 1]} : vector<64x512xbf16> to vector<64x384xbf16>
    %cst_19 = arith.constant dense<0.000000e+00> : vector<8x384xf32>
    %29 = tpu.matmul %27, %28, %cst_19 {dimension_numbers = #tpu.dot_dimension_numbers<[1], [0], [0], [1], [0, 0, 1, 1], [], []>} : vector<8x64xbf16>, vector<64x384xbf16>, vector<8x384xf32> -> vector<8x384xf32>
    %30 = arith.addf %25, %29 : vector<8x384xf32>
    %c5 = arith.constant 5 : index
    %c0_20 = arith.constant 0 : index
    %c0_21 = arith.constant 0 : index
    %31 = vector.load %arg2[%c5, %c0_20, %c0_21] : memref<9x8x64xbf16, #tpu.memory_space<vmem>>, vector<1x8x64xbf16>
    %32 = vector.shape_cast %31 : vector<1x8x64xbf16> to vector<8x64xbf16>
    %33 = vector.extract_strided_slice %1 {offsets = [0, 21], sizes = [64, 384], strides = [1, 1]} : vector<64x512xbf16> to vector<64x384xbf16>
    %cst_22 = arith.constant dense<0.000000e+00> : vector<8x384xf32>
    %34 = tpu.matmul %32, %33, %cst_22 {dimension_numbers = #tpu.dot_dimension_numbers<[1], [0], [0], [1], [0, 0, 1, 1], [], []>} : vector<8x64xbf16>, vector<64x384xbf16>, vector<8x384xf32> -> vector<8x384xf32>
    %35 = arith.addf %30, %34 : vector<8x384xf32>
    %c6 = arith.constant 6 : index
    %c0_23 = arith.constant 0 : index
    %c0_24 = arith.constant 0 : index
    %36 = vector.load %arg2[%c6, %c0_23, %c0_24] : memref<9x8x64xbf16, #tpu.memory_space<vmem>>, vector<1x8x64xbf16>
    %37 = vector.shape_cast %36 : vector<1x8x64xbf16> to vector<8x64xbf16>
    %38 = vector.extract_strided_slice %1 {offsets = [0, 37], sizes = [64, 384], strides = [1, 1]} : vector<64x512xbf16> to vector<64x384xbf16>
    %cst_25 = arith.constant dense<0.000000e+00> : vector<8x384xf32>
    %39 = tpu.matmul %37, %38, %cst_25 {dimension_numbers = #tpu.dot_dimension_numbers<[1], [0], [0], [1], [0, 0, 1, 1], [], []>} : vector<8x64xbf16>, vector<64x384xbf16>, vector<8x384xf32> -> vector<8x384xf32>
    %40 = arith.addf %35, %39 : vector<8x384xf32>
    %c7 = arith.constant 7 : index
    %c0_26 = arith.constant 0 : index
    %c0_27 = arith.constant 0 : index
    %41 = vector.load %arg2[%c7, %c0_26, %c0_27] : memref<9x8x64xbf16, #tpu.memory_space<vmem>>, vector<1x8x64xbf16>
    %42 = vector.shape_cast %41 : vector<1x8x64xbf16> to vector<8x64xbf16>
    %43 = vector.extract_strided_slice %1 {offsets = [0, 38], sizes = [64, 384], strides = [1, 1]} : vector<64x512xbf16> to vector<64x384xbf16>
    %cst_28 = arith.constant dense<0.000000e+00> : vector<8x384xf32>
    %44 = tpu.matmul %42, %43, %cst_28 {dimension_numbers = #tpu.dot_dimension_numbers<[1], [0], [0], [1], [0, 0, 1, 1], [], []>} : vector<8x64xbf16>, vector<64x384xbf16>, vector<8x384xf32> -> vector<8x384xf32>
    %45 = arith.addf %40, %44 : vector<8x384xf32>
    %c8 = arith.constant 8 : index
    %c0_29 = arith.constant 0 : index
    %c0_30 = arith.constant 0 : index
    %46 = vector.load %arg2[%c8, %c0_29, %c0_30] : memref<9x8x64xbf16, #tpu.memory_space<vmem>>, vector<1x8x64xbf16>
    %47 = vector.shape_cast %46 : vector<1x8x64xbf16> to vector<8x64xbf16>
    %48 = vector.extract_strided_slice %1 {offsets = [0, 39], sizes = [64, 384], strides = [1, 1]} : vector<64x512xbf16> to vector<64x384xbf16>
    %cst_31 = arith.constant dense<0.000000e+00> : vector<8x384xf32>
    %49 = tpu.matmul %47, %48, %cst_31 {dimension_numbers = #tpu.dot_dimension_numbers<[1], [0], [0], [1], [0, 0, 1, 1], [], []>} : vector<8x64xbf16>, vector<64x384xbf16>, vector<8x384xf32> -> vector<8x384xf32>
    %50 = arith.addf %45, %49 : vector<8x384xf32>
    %c0_32 = arith.constant 0 : index
    %c0_33 = arith.constant 0 : index
    %c0_34 = arith.constant 0 : index
    %51 = vector.load %arg4[%c0_32, %c0_33, %c0_34] : memref<1x8x384xf32, #tpu.memory_space<vmem>>, vector<1x8x384xf32>
    %52 = vector.shape_cast %51 : vector<1x8x384xf32> to vector<8x384xf32>
    %53 = vector.shape_cast %50 : vector<8x384xf32> to vector<1x8x384xf32>
    tpu.vector_store %arg4[%c0_32, %c0_33, %c0_34], %53 {strides = array<i32>} : memref<1x8x384xf32, #tpu.memory_space<vmem>>, vector<1x8x384xf32>,
    return
  }
  func.func @transform_0(%arg0: i32) -> (i32, i32, i32) {
    %c0_i32 = arith.constant 0 : i32
    %c0_i32_0 = arith.constant 0 : i32
    %c0_i32_1 = arith.constant 0 : i32
    return %arg0, %c0_i32, %c0_i32_0 : i32, i32, i32
  }
  func.func @transform_1(%arg0: i32) -> (i32, i32, i32) {
    %c0_i32 = arith.constant 0 : i32
    %c0_i32_0 = arith.constant 0 : i32
    %c0_i32_1 = arith.constant 0 : i32
    %c0_i32_2 = arith.constant 0 : i32
    return %c0_i32, %c0_i32_0, %c0_i32_1 : i32, i32, i32
  }
  func.func @transform_2(%arg0: i32) -> (i32, i32) {
    %c0_i32 = arith.constant 0 : i32
    %c0_i32_0 = arith.constant 0 : i32
    %c0_i32_1 = arith.constant 0 : i32
    return %c0_i32, %c0_i32_0 : i32, i32
  }
  func.func @transform_3(%arg0: i32) -> (i32, i32, i32) {
    %c0_i32 = arith.constant 0 : i32
    %c0_i32_0 = arith.constant 0 : i32
    %c0_i32_1 = arith.constant 0 : i32
    return %arg0, %c0_i32, %c0_i32_0 : i32, i32, i32
  }
}

</mosaic_0001>

<llo_original>
// kernel: discriminator_forward.3
$region0: #{discriminator_forward.3}
  #allocation0 [shape = 'u32[]', space=smem, size = 0x4, offset = 0x4, fixed_abs, tag = 'smem constant byte address 0x4 - core index']
  #allocation1 [shape = 'u32[144,128]{1,0:T(1,128)}', space=vmem, size = 0x12000, scoped, tag = 'internal scratch']
  %s0 = inlined_call_operand.vmem [shape: bf16[2,48,64], index: 0, kind: input, shape index: {}]
  %s1 = inlined_call_operand.vmem [shape: bf16[64,48], index: 1, kind: input, shape index: {}]
  %s2 = inlined_call_operand.vmem [shape: f32[64,1], index: 2, kind: input, shape index: {}]
  %s3 = inlined_call_operand.vmem [shape: bf16[2,64,64], index: 3, kind: output, shape index: {}]
  %s4 = sld [smem:[#allocation0]]
  $region45: #{discriminator_forward.3} parent=0
    _
  %s6 = ssub.s32 1, %s4
  %s7 = scalar_select 0, %s6, %s4
  loop: start=0, step=1, limit=4
  $region2: #{discriminator_forward.3} parent=0 // loop_pre_header
    _
  $region3: #{discriminator_forward.3} parent=0 // loop_header
    %s9 = sphi 0, %s13
    %p10 = scmp.ge.s32.totalorder %s9, 4
    %s16 = sphi 0, %s28
    %s17 = sphi 0, %s24
    %s18 = sphi 0, %s16
    %s19 = sphi 0, %s17
    %s20 = sphi 0, %s18
    %s21 = sphi 0, %s19
    %s33 = sphi 0, %s35
    %s36 = sphi 0, %s33
    %s37 = sphi 0, %s36
    %s53 = sphi 0, %s37
    %s57 = sphi 0, %s57
    %s59 = sphi 0, %s57
    %s60 = sphi 0, %s59
    %s74 = sphi 0, %s60
    %s78 = sphi 0, %s78
    %s80 = sphi 0, %s78
    %s81 = sphi 0, %s80
    %s95 = sphi 0, %s81
    %s103 = sphi 0, %s105
    %s106 = sphi 0, %s103
    %s107 = sphi 0, %s106
    %s123 = sphi 0, %s107
  $region4: #{discriminator_forward.3} parent=0 // loop_header_branch
    %12 = sbr.rel (%p10) target = $region8
  $region5: #{discriminator_forward.3} parent=0 // loop_body
    %s14 = ssub.s32 %s9, 1
    %s15 = ssub.s32 %s9, 2
    %s22 = sadd.s32 1, %s17
    %p23 = scmp.ge.s32.totalorder %s22, 1
    %s24 = scalar_select %p23, 0, %s22
    %s25 = sadd.s32 1, %s16
    %s26 = scalar_select %p23, %s25, %s16
    %p27 = scmp.ge.s32.totalorder %s26, 2
    %s28 = scalar_select %p27, 0, %s26
    %s29 = ssub.s32 %s16, %s28
    %s30 = ssub.s32 %s17, %s24
    %s31 = sor.u32 %s29, %s30
    %p32 = scmp.eq.s32.totalorder %s31, 0
    %s34 = sadd.s32 %s33, 1
    %s35 = scalar_select %p32, %s33, %s34
    %p38 = pneg %p32
    %p39 = scmp.eq.s32.totalorder %s9, 1
    %p40 = por %p38, %p39
    %p41 = scmp.ne.s32.totalorder %s33, %s36
    %p42 = scmp.eq.s32.totalorder %s9, 0
    %p43 = por %p41, %p42
    %p44 = scmp.ne.s32.totalorder %s33, %s36
    %p45 = scmp.eq.s32.totalorder %s14, 1
    %p46 = por %p44, %p45
    %p47 = scmp.ne.s32.totalorder %s36, %s37
    %p48 = scmp.eq.s32.totalorder %s14, 0
    %p49 = por %p47, %p48
    %p50 = scmp.ne.s32.totalorder %s36, %s37
    %p51 = scmp.eq.s32.totalorder %s15, 1
    %p52 = por %p50, %p51
    %p54 = scmp.ne.s32.totalorder %s37, %s53
    %p55 = scmp.eq.s32.totalorder %s15, 0
    %p56 = por %p54, %p55
    %s58 = sadd.s32 %s57, 1
    %p61 = scmp.eq.s32.totalorder %s9, 1
    %p62 = scmp.ne.s32.totalorder %s57, %s59
    %p63 = scmp.eq.s32.totalorder %s9, 0
    %p64 = por %p62, %p63
    %p65 = scmp.ne.s32.totalorder %s57, %s59
    %p66 = scmp.eq.s32.totalorder %s14, 1
    %p67 = por %p65, %p66
    %p68 = scmp.ne.s32.totalorder %s59, %s60
    %p69 = scmp.eq.s32.totalorder %s14, 0
    %p70 = por %p68, %p69
    %p71 = scmp.ne.s32.totalorder %s59, %s60
    %p72 = scmp.eq.s32.totalorder %s15, 1
    %p73 = por %p71, %p72
    %p75 = scmp.ne.s32.totalorder %s60, %s74
    %p76 = scmp.eq.s32.totalorder %s15, 0
    %p77 = por %p75, %p76
    %s79 = sadd.s32 %s78, 1
    %p82 = scmp.eq.s32.totalorder %s9, 1
    %p83 = scmp.ne.s32.totalorder %s78, %s80
    %p84 = scmp.eq.s32.totalorder %s9, 0
    %p85 = por %p83, %p84
    %p86 = scmp.ne.s32.totalorder %s78, %s80
    %p87 = scmp.eq.s32.totalorder %s14, 1
    %p88 = por %p86, %p87
    %p89 = scmp.ne.s32.totalorder %s80, %s81
    %p90 = scmp.eq.s32.totalorder %s14, 0
    %p91 = por %p89, %p90
    %p92 = scmp.ne.s32.totalorder %s80, %s81
    %p93 = scmp.eq.s32.totalorder %s15, 1
    %p94 = por %p92, %p93
    %p96 = scmp.ne.s32.totalorder %s81, %s95
    %p97 = scmp.eq.s32.totalorder %s15, 0
    %p98 = por %p96, %p97
    %s99 = ssub.s32 %s16, %s28
    %s100 = ssub.s32 %s17, %s24
    %s101 = sor.u32 %s99, %s100
    %p102 = scmp.eq.s32.totalorder %s101, 0
    %s104 = sadd.s32 %s103, 1
    %s105 = scalar_select %p102, %s103, %s104
    %p108 = pneg %p102
    %p109 = scmp.eq.s32.totalorder %s9, 1
    %p110 = por %p108, %p109
    %p111 = scmp.ne.s32.totalorder %s103, %s106
    %p112 = scmp.eq.s32.totalorder %s9, 0
    %p113 = por %p111, %p112
    %p114 = scmp.ne.s32.totalorder %s103, %s106
    %p115 = scmp.eq.s32.totalorder %s14, 1
    %p116 = por %p114, %p115
    %p117 = scmp.ne.s32.totalorder %s106, %s107
    %p118 = scmp.eq.s32.totalorder %s14, 0
    %p119 = por %p117, %p118
    %p120 = scmp.ne.s32.totalorder %s106, %s107
    %p121 = scmp.eq.s32.totalorder %s15, 1
    %p122 = por %p120, %p121
    %p124 = scmp.ne.s32.totalorder %s107, %s123
    %p125 = scmp.eq.s32.totalorder %s15, 0
    %p126 = por %p124, %p125
    %p127 = scmp.le.s32.totalorder 1, %s9
    %p128 = scmp.lt.s32.totalorder %s9, 3
    %p129 = pnand %p127, %p128
    %p130 = pneg %p129
    // Predicated region
    $region9: #{discriminator_forward.3} parent=5 // pred_check
      _
    $region10: #{discriminator_forward.3} parent=5 // pred_check_branch
      %132 = sbr.rel (%p129) target = $region12
    $region11: #{discriminator_forward.3} parent=5 // pred_region
      %s133 = ssub.s32 %s9, 1
      // Predicated region
      $region13: #{discriminator_forward.3} parent=11 // pred_check
        %p134 = pneg %p70
      $region14: #{discriminator_forward.3} parent=11 // pred_check_branch
        %136 = sbr.rel (%p134) target = $region16
      $region15: #{discriminator_forward.3} parent=11 // pred_region
        _
      $region16: #{discriminator_forward.3} parent=11 // pred_fallthru
        _
      // Predicated region
      $region17: #{discriminator_forward.3} parent=11 // pred_check
        %p137 = pneg %p91
      $region18: #{discriminator_forward.3} parent=11 // pred_check_branch
        %139 = sbr.rel (%p137) target = $region20
      $region19: #{discriminator_forward.3} parent=11 // pred_region
        _
      $region20: #{discriminator_forward.3} parent=11 // pred_fallthru
        _
    $region12: #{discriminator_forward.3} parent=5 // pred_fallthru
      _
    %p140 = scmp.lt.s32.totalorder %s9, 2
    // Predicated region
    $region21: #{discriminator_forward.3} parent=5 // pred_check
      %p141 = pneg %p140
    $region22: #{discriminator_forward.3} parent=5 // pred_check_branch
      %143 = sbr.rel (%p141) target = $region24
    $region23: #{discriminator_forward.3} parent=5 // pred_region
      // Predicated region
      $region25: #{discriminator_forward.3} parent=23 // pred_check
        %p144 = pneg %p43
      $region26: #{discriminator_forward.3} parent=23 // pred_check_branch
        %146 = sbr.rel (%p144) target = $region28
      $region27: #{discriminator_forward.3} parent=23 // pred_region
        %p147 = scmp.lt.s32.totalorder %s16, 1
        %s148 = scalar_select %p147, %s16, 1
        %p149 = scmp.lt.s32.totalorder %s17, 0
        %s150 = scalar_select %p149, %s17, 0
        %s151 = smul.addr %s148, 6
        %s152 = sadd.s32 %s150, %s151
        %s153 = smul.addr %s152, 4
        %s154 = scalar_lea.vmem %s0, %s153
      $region28: #{discriminator_forward.3} parent=23 // pred_fallthru
        _
    $region24: #{discriminator_forward.3} parent=5 // pred_fallthru
      _
    %p155 = scmp.le.s32.totalorder 1, %s9
    %p156 = scmp.lt.s32.totalorder %s9, 3
    %p157 = pnand %p155, %p156
    %p158 = pneg %p157
    // Predicated region
    $region29: #{discriminator_forward.3} parent=5 // pred_check
      _
    $region30: #{discriminator_forward.3} parent=5 // pred_check_branch
      %160 = sbr.rel (%p157) target = $region32
    $region31: #{discriminator_forward.3} parent=5 // pred_region
      %s161 = ssub.s32 %s9, 1
      %p162 = scmp.lt.s32.totalorder %s18, 1
      %s163 = scalar_select %p162, %s18, 1
      %p164 = scmp.lt.s32.totalorder %s19, 0
      %s165 = scalar_select %p164, %s19, 0
      %s166 = smul.addr %s163, 6
      %s167 = sadd.s32 %s165, %s166
      %s168 = smul.addr %s167, 4
      %s169 = scalar_lea.vmem %s0, %s168
      %p170 = pneg %p49
      %p171 = pneg %p46
      %p172 = pneg %p70
      %p173 = pneg %p67
      %p174 = pneg %p91
      %p175 = pneg %p88
      %p176 = pneg %p119
      %p177 = pneg %p116
      %p178 = scmp.lt.s32.totalorder %s18, 1
      %s179 = scalar_select %p178, %s18, 1
      %p180 = scmp.lt.s32.totalorder %s19, 0
      %s181 = scalar_select %p180, %s19, 0
      %s182 = smul.addr %s179, 8
      %s183 = sadd.s32 %s181, %s182
      %s184 = smul.addr %s183, 4
      %s185 = scalar_lea.vmem %s3, %s184
      %p186 = scmp.lt.s32.totalorder %s18, 1
      %s187 = scalar_select %p186, %s18, 1
      %p188 = scmp.lt.s32.totalorder %s19, 0
      %s189 = scalar_select %p188, %s19, 0
      %s190 = smul.addr %s187, 6
      %s191 = sadd.s32 %s189, %s190
      %s192 = smul.addr %s191, 4
      %s193 = scalar_lea.vmem %s0, %s192
      %p194 = scmp.lt.s32.totalorder %s18, 1
      %s195 = scalar_select %p194, %s18, 1
      %p196 = scmp.lt.s32.totalorder %s19, 0
      %s197 = scalar_select %p196, %s19, 0
      %s198 = smul.addr %s195, 8
      %s199 = sadd.s32 %s197, %s198
      %s200 = smul.addr %s199, 4
      %s201 = scalar_lea.vmem %s3, %s200
      %v203 = vld [vmem:[%s1] sm:$0xf]
      %v204 = vld [vmem:[%s1 + $0x4] sm:$0xf]
      %v205 = vld [vmem:[%s1 + $0x8] sm:$0xf]
      %v206 = vld [vmem:[%s1 + $0xc] sm:$0xf]
      %v207 = vld [vmem:[%s1 + $0x10] sm:$0xf]
      %v208 = vld [vmem:[%s1 + $0x14] sm:$0xf]
      %v209 = vld [vmem:[%s1 + $0x18] sm:$0xf]
      %v210 = vld [vmem:[%s1 + $0x1c] sm:$0xf]
      %v211 = vld [vmem:[%s193] sm:$0xf]
      %v212 = vld [vmem:[%s193 + $0x4] sm:$0xf]
      %v213 = vld [vmem:[%s193 + $0x8] sm:$0xf]
      %v214 = vld [vmem:[%s193 + $0xc] sm:$0xf]
      %v215 = vld [vmem:[%s193 + $0x10] sm:$0xf]
      %v216 = vld [vmem:[%s193 + $0x14] sm:$0xf]
      %v217 = vld [vmem:[%s2] sm:$0xff]
      %v218 = vld [vmem:[%s2 + $0x8] sm:$0xff]
      %v219 = vld [vmem:[%s2 + $0x10] sm:$0xff]
      %v220 = vld [vmem:[%s2 + $0x18] sm:$0xff]
      %v221 = vld [vmem:[%s2 + $0x20] sm:$0xff]
      %v222 = vld [vmem:[%s2 + $0x28] sm:$0xff]
      %v223 = vld [vmem:[%s2 + $0x30] sm:$0xff]
      %v224 = vld [vmem:[%s2 + $0x38] sm:$0xff]
      %226 = vset.pattern.permute.xlu0 0
      %227 = vperm.xlu0 %226, %v217
      %v228 = vpop.permute.xlu0 %227
      %231 = vset.pattern.permute.xlu0 0
      %232 = vperm.xlu0 %231, %v218
      %v233 = vpop.permute.xlu0 %232
      %236 = vset.pattern.permute.xlu0 0
      %237 = vperm.xlu0 %236, %v219
      %v238 = vpop.permute.xlu0 %237
      %241 = vset.pattern.permute.xlu0 0
      %242 = vperm.xlu0 %241, %v220
      %v243 = vpop.permute.xlu0 %242
      %246 = vset.pattern.permute.xlu0 0
      %247 = vperm.xlu0 %246, %v221
      %v248 = vpop.permute.xlu0 %247
      %251 = vset.pattern.permute.xlu0 0
      %252 = vperm.xlu0 %251, %v222
      %v253 = vpop.permute.xlu0 %252
      %256 = vset.pattern.permute.xlu0 0
      %257 = vperm.xlu0 %256, %v223
      %v258 = vpop.permute.xlu0 %257
      %261 = vset.pattern.permute.xlu0 0
      %262 = vperm.xlu0 %261, %v224
      %v263 = vpop.permute.xlu0 %262
      %v273 = vunpack.c.l.b16 %v203
      %v274 = vunpack.c.l.b16 %v204
      %v275 = vunpack.c.l.b16 %v205
      %v276 = vunpack.c.l.b16 %v206
      %v277 = vunpack.c.l.b16 %v207
      %v278 = vunpack.c.l.b16 %v208
      %v279 = vunpack.c.l.b16 %v209
      %v280 = vunpack.c.l.b16 %v210
      %v281 = vpack.c.b16 %v274, %v273
      %v282 = vpack.c.b16 %v276, %v275
      %v283 = vpack.c.b16 %v278, %v277
      %v284 = vpack.c.b16 %v280, %v279
      %v291 = vunpack.c.l.b16 %v211
      %v292 = vunpack.c.l.b16 %v212
      %v293 = vunpack.c.l.b16 %v213
      %v294 = vunpack.c.l.b16 %v214
      %v295 = vunpack.c.l.b16 %v215
      %v296 = vunpack.c.l.b16 %v216
      %v297 = vpack.c.b16 %v292, %v291
      %v298 = vpack.c.b16 %v294, %v293
      %v299 = vpack.c.b16 %v296, %v295
      %vm303 = vcmask 392192
      %v305 = vsel %vm303, %v281, 0
      %v308 = vsel %vm303, %v282, 0
      %v311 = vsel %vm303, %v283, 0
      %v314 = vsel %vm303, %v284, 0
      %316 = vmatprep.subr.bf16.mxu0 0
      %317 = vmatpush1.bf16.msra.mxu0 %v297
      %318 = vmatprep.subr.bf16.mxu0 0
      %319 = vmatpush1.bf16.msra.mxu0 %v298
      %320 = vmatprep.subr.bf16.mxu0 0
      %321 = vmatpush1.bf16.msra.mxu0 %v299
      %322 = vmatprep.subr.bf16.mxu0 0
      %323 = vmatpush1.bf16.msra.mxu0 0
      %324 = vmatprep.subr.bf16.mxu0 0
      %325 = vmatpush1.bf16.msra.mxu0 0
      %326 = vmatprep.subr.bf16.mxu0 0
      %327 = vmatpush1.bf16.msra.mxu0 0
      %328 = vmatprep.subr.bf16.mxu0 0
      %329 = vmatpush1.bf16.msra.mxu0 0
      %330 = vmatprep.subr.bf16.mxu0 0
      %331 = vmatpush1.bf16.msra.mxu0 0
      %332 = vmatprep.subr.bf16.mxu0 0
      %333 = vmatpush1.bf16.msra.mxu0 0
      %334 = vmatprep.subr.bf16.mxu0 0
      %335 = vmatpush1.bf16.msra.mxu0 0
      %336 = vmatprep.subr.bf16.mxu0 0
      %337 = vmatpush1.bf16.msra.mxu0 0
      %338 = vmatprep.subr.bf16.mxu0 0
      %339 = vmatpush1.bf16.msra.mxu0 0
      %340 = vmatprep.subr.bf16.mxu0 0
      %341 = vmatpush1.bf16.msra.mxu0 0
      %342 = vmatprep.subr.bf16.mxu0 0
      %343 = vmatpush1.bf16.msra.mxu0 0
      %344 = vmatprep.subr.bf16.mxu0 0
      %345 = vmatpush1.bf16.msra.mxu0 0
      %346 = vmatprep.subr.bf16.mxu0 0
      %347 = vmatpush1.bf16.msra.mxu0 0
      %348 = vmatprep.mubr.bf16.mxu0 0
      %349 = vmatmul.mubr.bf16.gmra.mrb[0].mxu0 %v305
      %v350 = vpop.f32.mrb[0].mxu0
      %v351 = vadd.f32 %v228, %v350
      %v352 = vpop.f32.mrb[0].mxu0
      %v353 = vpop.f32.mrb[0].mxu0
      %v354 = vadd.f32 %v233, %v353
      %v355 = vpop.f32.mrb[0].mxu0
      %356 = vmatprep.mubr.bf16.mxu0 0
      %357 = vmatmul.mubr.bf16.gmra.mrb[0].mxu0 %v308
      %v358 = vpop.f32.mrb[0].mxu0
      %v359 = vadd.f32 %v238, %v358
      %v360 = vpop.f32.mrb[0].mxu0
      %v361 = vpop.f32.mrb[0].mxu0
      %v362 = vadd.f32 %v243, %v361
      %v363 = vpop.f32.mrb[0].mxu0
      %364 = vmatprep.mubr.bf16.mxu0 0
      %365 = vmatmul.mubr.bf16.gmra.mrb[0].mxu0 %v311
      %v366 = vpop.f32.mrb[0].mxu0
      %v367 = vadd.f32 %v248, %v366
      %v368 = vpop.f32.mrb[0].mxu0
      %v369 = vpop.f32.mrb[0].mxu0
      %v370 = vadd.f32 %v253, %v369
      %v371 = vpop.f32.mrb[0].mxu0
      %372 = vmatprep.mubr.bf16.mxu0 0
      %373 = vmatmul.mubr.bf16.gmra.mrb[0].mxu0 %v314
      %v374 = vpop.f32.mrb[0].mxu0
      %v375 = vadd.f32 %v258, %v374
      %v376 = vpop.f32.mrb[0].mxu0
      %v377 = vpop.f32.mrb[0].mxu0
      %v378 = vadd.f32 %v263, %v377
      %v379 = vpop.f32.mrb[0].mxu0
      %380 = vdwg.mxu0
      %v381 = vmax.f32 %v351, 0.0
      %v382 = vmax.f32 %v354, 0.0
      %v383 = vmax.f32 %v359, 0.0
      %v384 = vmax.f32 %v362, 0.0
      %v385 = vmax.f32 %v367, 0.0
      %v386 = vmax.f32 %v370, 0.0
      %v387 = vmax.f32 %v375, 0.0
      %v388 = vmax.f32 %v378, 0.0
      %v389 = vpack.c.bf16 %v382, %v381
      %v390 = vpack.c.bf16 %v384, %v383
      %v391 = vpack.c.bf16 %v386, %v385
      %v392 = vpack.c.bf16 %v388, %v387
      %v397 = vunpack.c.l.b16 %v389
      %v398 = vunpack.c.h.b16 %v389
      %v399 = vunpack.c.l.b16 %v390
      %v400 = vunpack.c.h.b16 %v390
      %v401 = vunpack.c.l.b16 %v391
      %v402 = vunpack.c.h.b16 %v391
      %v403 = vunpack.c.l.b16 %v392
      %v404 = vunpack.c.h.b16 %v392
      %v405 = vpack.c.b16 %v397, %v397
      %v406 = vpack.c.b16 %v398, %v398
      %v407 = vpack.c.b16 %v399, %v399
      %v408 = vpack.c.b16 %v400, %v400
      %v409 = vpack.c.b16 %v401, %v401
      %v410 = vpack.c.b16 %v402, %v402
      %v411 = vpack.c.b16 %v403, %v403
      %v412 = vpack.c.b16 %v404, %v404
      %vm421 = vcmask 519168
      %422 = vst.msk [vmem:[%s201] sm:$0xf] %vm421, %v405
      %423 = vst.msk [vmem:[%s201 + $0x4] sm:$0xf] %vm421, %v406
      %424 = vst.msk [vmem:[%s201 + $0x8] sm:$0xf] %vm421, %v407
      %425 = vst.msk [vmem:[%s201 + $0xc] sm:$0xf] %vm421, %v408
      %426 = vst.msk [vmem:[%s201 + $0x10] sm:$0xf] %vm421, %v409
      %427 = vst.msk [vmem:[%s201 + $0x14] sm:$0xf] %vm421, %v410
      %428 = vst.msk [vmem:[%s201 + $0x18] sm:$0xf] %vm421, %v411
      %429 = vst.msk [vmem:[%s201 + $0x1c] sm:$0xf] %vm421, %v412
      %p430 = scmp.lt.s32.totalorder %s18, 1
      %s431 = scalar_select %p430, %s18, 1
      %p432 = scmp.lt.s32.totalorder %s19, 0
      %s433 = scalar_select %p432, %s19, 0
      %s434 = smul.addr %s431, 8
      %s435 = sadd.s32 %s433, %s434
      %s436 = smul.addr %s435, 4
      %s437 = scalar_lea.vmem %s3, %s436
      // Predicated region
      $region33: #{discriminator_forward.3} parent=31 // pred_check
        %p438 = pneg %p116
      $region34: #{discriminator_forward.3} parent=31 // pred_check_branch
        %440 = sbr.rel (%p438) target = $region36
      $region35: #{discriminator_forward.3} parent=31 // pred_region
        _
      $region36: #{discriminator_forward.3} parent=31 // pred_fallthru
        _
    $region32: #{discriminator_forward.3} parent=5 // pred_fallthru
      _
    %p441 = scmp.le.s32.totalorder 2, %s9
    // Predicated region
    $region37: #{discriminator_forward.3} parent=5 // pred_check
      %p442 = pneg %p441
    $region38: #{discriminator_forward.3} parent=5 // pred_check_branch
      %444 = sbr.rel (%p442) target = $region40
    $region39: #{discriminator_forward.3} parent=5 // pred_region
      %s445 = ssub.s32 %s9, 2
      // Predicated region
      $region41: #{discriminator_forward.3} parent=39 // pred_check
        %p446 = pneg %p122
      $region42: #{discriminator_forward.3} parent=39 // pred_check_branch
        %448 = sbr.rel (%p446) target = $region44
      $region43: #{discriminator_forward.3} parent=39 // pred_region
        %p449 = scmp.lt.s32.totalorder %s20, 1
        %s450 = scalar_select %p449, %s20, 1
        %p451 = scmp.lt.s32.totalorder %s21, 0
        %s452 = scalar_select %p451, %s21, 0
        %s453 = smul.addr %s450, 8
        %s454 = sadd.s32 %s452, %s453
        %s455 = smul.addr %s454, 4
        %s456 = scalar_lea.vmem %s3, %s455
      $region44: #{discriminator_forward.3} parent=39 // pred_fallthru
        _
    $region40: #{discriminator_forward.3} parent=5 // pred_fallthru
      _
  $region6: #{discriminator_forward.3} parent=0 // loop_footer
    %s13 = sadd.s32 1, %s9
  $region7: #{discriminator_forward.3} parent=0 // loop_footer_branch
    %8 = sbr.rel target = $region3
  $region8: #{discriminator_forward.3} parent=0 // loop_exit
    _

// kernel: discriminator_forward.4
$region0: #{discriminator_forward.4}
  #allocation0 [shape = 'u32[]', space=smem, size = 0x4, offset = 0x4, fixed_abs, tag = 'smem constant byte address 0x4 - core index']
  #allocation1 [shape = 'u32[144,128]{1,0:T(1,128)}', space=vmem, size = 0x12000, scoped, tag = 'internal scratch']
  %s0 = inlined_call_operand.vmem [shape: bf16[8,4096], index: 0, kind: input, shape index: {}]
  %s1 = inlined_call_operand.vmem [shape: f32[8,1], index: 1, kind: input, shape index: {}]
  %s2 = inlined_call_operand.vmem [shape: bf16[4096,32], index: 2, kind: input, shape index: {}]
  %s3 = inlined_call_operand.vmem [shape: f32[1,32], index: 3, kind: input, shape index: {}]
  %s4 = inlined_call_operand.vmem [shape: f32[1,32], index: 4, kind: input, shape index: {}]
  %s5 = inlined_call_operand.vmem [shape: f32[1,32], index: 5, kind: input, shape index: {}]
  %s6 = inlined_call_operand.vmem [shape: bf16[32,4096], index: 6, kind: input, shape index: {}]
  %s7 = inlined_call_operand.vmem [shape: f32[1,4096], index: 7, kind: input, shape index: {}]
  %s8 = inlined_call_operand.vmem [shape: f32[1,4096], index: 8, kind: input, shape index: {}]
  %s9 = inlined_call_operand.vmem [shape: f32[1,4096], index: 9, kind: input, shape index: {}]
  %s10 = inlined_call_operand.vmem [shape: bf16[8,4096], index: 10, kind: output, shape index: {}]
  %s11 = sld [smem:[#allocation0]]
  $region50: #{discriminator_forward.4} parent=0
    _
  %s13 = ssub.s32 1, %s11
  %s14 = scalar_select 0, %s13, %s11
  // Predicated region
  $region2: #{discriminator_forward.4} parent=0 // pred_check
    _
  $region3: #{discriminator_forward.4} parent=0 // pred_check_branch
    %16 = sbr.rel (0) target = $region5
  $region4: #{discriminator_forward.4} parent=0 // pred_region
    _
  $region5: #{discriminator_forward.4} parent=0 // pred_fallthru
    _
  // Predicated region
  $region6: #{discriminator_forward.4} parent=0 // pred_check
    _
  $region7: #{discriminator_forward.4} parent=0 // pred_check_branch
    %18 = sbr.rel (0) target = $region9
  $region8: #{discriminator_forward.4} parent=0 // pred_region
    _
  $region9: #{discriminator_forward.4} parent=0 // pred_fallthru
    _
  // Predicated region
  $region10: #{discriminator_forward.4} parent=0 // pred_check
    _
  $region11: #{discriminator_forward.4} parent=0 // pred_check_branch
    %20 = sbr.rel (0) target = $region13
  $region12: #{discriminator_forward.4} parent=0 // pred_region
    _
  $region13: #{discriminator_forward.4} parent=0 // pred_fallthru
    _
  // Predicated region
  $region14: #{discriminator_forward.4} parent=0 // pred_check
    _
  $region15: #{discriminator_forward.4} parent=0 // pred_check_branch
    %22 = sbr.rel (0) target = $region17
  $region16: #{discriminator_forward.4} parent=0 // pred_region
    _
  $region17: #{discriminator_forward.4} parent=0 // pred_fallthru
    _
  // Predicated region
  $region18: #{discriminator_forward.4} parent=0 // pred_check
    _
  $region19: #{discriminator_forward.4} parent=0 // pred_check_branch
    %24 = sbr.rel (0) target = $region21
  $region20: #{discriminator_forward.4} parent=0 // pred_region
    _
  $region21: #{discriminator_forward.4} parent=0 // pred_fallthru
    _
  // Predicated region
  $region22: #{discriminator_forward.4} parent=0 // pred_check
    _
  $region23: #{discriminator_forward.4} parent=0 // pred_check_branch
    %26 = sbr.rel (0) target = $region25
  $region24: #{discriminator_forward.4} parent=0 // pred_region
    _
  $region25: #{discriminator_forward.4} parent=0 // pred_fallthru
    _
  // Predicated region
  $region26: #{discriminator_forward.4} parent=0 // pred_check
    _
  $region27: #{discriminator_forward.4} parent=0 // pred_check_branch
    %28 = sbr.rel (0) target = $region29
  $region28: #{discriminator_forward.4} parent=0 // pred_region
    _
  $region29: #{discriminator_forward.4} parent=0 // pred_fallthru
    _
  // Predicated region
  $region30: #{discriminator_forward.4} parent=0 // pred_check
    _
  $region31: #{discriminator_forward.4} parent=0 // pred_check_branch
    %30 = sbr.rel (0) target = $region33
  $region32: #{discriminator_forward.4} parent=0 // pred_region
    _
  $region33: #{discriminator_forward.4} parent=0 // pred_fallthru
    _
  // Predicated region
  $region34: #{discriminator_forward.4} parent=0 // pred_check
    _
  $region35: #{discriminator_forward.4} parent=0 // pred_check_branch
    %32 = sbr.rel (0) target = $region37
  $region36: #{discriminator_forward.4} parent=0 // pred_region
    _
  $region37: #{discriminator_forward.4} parent=0 // pred_fallthru
    _
  // Predicated region
  $region38: #{discriminator_forward.4} parent=0 // pred_check
    _
  $region39: #{discriminator_forward.4} parent=0 // pred_check_branch
    %34 = sbr.rel (0) target = $region41
  $region40: #{discriminator_forward.4} parent=0 // pred_region
    _
  $region41: #{discriminator_forward.4} parent=0 // pred_fallthru
    _
  %v36 = vld [vmem:[%s1] sm:$0xff]
  %v37 = vld [vmem:[%s0] sm:$0xff]
  %v38 = vld [vmem:[%s0 + $0x8] sm:$0xff]
  %v39 = vld [vmem:[%s0 + $0x10] sm:$0xff]
  %v40 = vld [vmem:[%s0 + $0x18] sm:$0xff]
  %v41 = vld [vmem:[%s0 + $0x20] sm:$0xff]
  %v42 = vld [vmem:[%s0 + $0x28] sm:$0xff]
  %v43 = vld [vmem:[%s0 + $0x30] sm:$0xff]
  %v44 = vld [vmem:[%s0 + $0x38] sm:$0xff]
  %v45 = vld [vmem:[%s0 + $0x40] sm:$0xff]
  %v46 = vld [vmem:[%s0 + $0x48] sm:$0xff]
  %v47 = vld [vmem:[%s0 + $0x50] sm:$0xff]
  %v48 = vld [vmem:[%s0 + $0x58] sm:$0xff]
  %v49 = vld [vmem:[%s0 + $0x60] sm:$0xff]
  %v50 = vld [vmem:[%s0 + $0x68] sm:$0xff]
  %v51 = vld [vmem:[%s0 + $0x70] sm:$0xff]
  %v52 = vld [vmem:[%s0 + $0x78] sm:$0xff]
  %v53 = vld [vmem:[%s2] sm:$0xf]
  %v54 = vld [vmem:[%s2 + $0x4] sm:$0xf]
  %v55 = vld [vmem:[%s2 + $0x8] sm:$0xf]
  %v56 = vld [vmem:[%s2 + $0xc] sm:$0xf]
  %v57 = vld [vmem:[%s2 + $0x10] sm:$0xf]
  %v58 = vld [vmem:[%s2 + $0x14] sm:$0xf]
  %v59 = vld [vmem:[%s2 + $0x18] sm:$0xf]
  %v60 = vld [vmem:[%s2 + $0x1c] sm:$0xf]
  %v61 = vld [vmem:[%s2 + $0x20] sm:$0xf]
  %v62 = vld [vmem:[%s2 + $0x24] sm:$0xf]
  %v63 = vld [vmem:[%s2 + $0x28] sm:$0xf]
  %v64 = vld [vmem:[%s2 + $0x2c] sm:$0xf]
  %v65 = vld [vmem:[%s2 + $0x30] sm:$0xf]
  %v66 = vld [vmem:[%s2 + $0x34] sm:$0xf]
  %v67 = vld [vmem:[%s2 + $0x38] sm:$0xf]
  %v68 = vld [vmem:[%s2 + $0x3c] sm:$0xf]
  %v69 = vld [vmem:[%s2 + $0x40] sm:$0xf]
  %v70 = vld [vmem:[%s2 + $0x44] sm:$0xf]
  %v71 = vld [vmem:[%s2 + $0x48] sm:$0xf]
  %v72 = vld [vmem:[%s2 + $0x4c] sm:$0xf]
  %v73 = vld [vmem:[%s2 + $0x50] sm:$0xf]
  %v74 = vld [vmem:[%s2 + $0x54] sm:$0xf]
  %v75 = vld [vmem:[%s2 + $0x58] sm:$0xf]
  %v76 = vld [vmem:[%s2 + $0x5c] sm:$0xf]
  %v77 = vld [vmem:[%s2 + $0x60] sm:$0xf]
  %v78 = vld [vmem:[%s2 + $0x64] sm:$0xf]
  %v79 = vld [vmem:[%s2 + $0x68] sm:$0xf]
  %v80 = vld [vmem:[%s2 + $0x6c] sm:$0xf]
  %v81 = vld [vmem:[%s2 + $0x70] sm:$0xf]
  %v82 = vld [vmem:[%s2 + $0x74] sm:$0xf]
  %v83 = vld [vmem:[%s2 + $0x78] sm:$0xf]
  %v84 = vld [vmem:[%s2 + $0x7c] sm:$0xf]
  %v85 = vld [vmem:[%s2 + $0x80] sm:$0xf]
  %v86 = vld [vmem:[%s2 + $0x84] sm:$0xf]
  %v87 = vld [vmem:[%s2 + $0x88] sm:$0xf]
  %v88 = vld [vmem:[%s2 + $0x8c] sm:$0xf]
  %v89 = vld [vmem:[%s2 + $0x90] sm:$0xf]
  %v90 = vld [vmem:[%s2 + $0x94] sm:$0xf]
  %v91 = vld [vmem:[%s2 + $0x98] sm:$0xf]
  %v92 = vld [vmem:[%s2 + $0x9c] sm:$0xf]
  %v93 = vld [vmem:[%s2 + $0xa0] sm:$0xf]
  %v94 = vld [vmem:[%s2 + $0xa4] sm:$0xf]
  %v95 = vld [vmem:[%s2 + $0xa8] sm:$0xf]
  %v96 = vld [vmem:[%s2 + $0xac] sm:$0xf]
  %v97 = vld [vmem:[%s2 + $0xb0] sm:$0xf]
  %v98 = vld [vmem:[%s2 + $0xb4] sm:$0xf]
  %v99 = vld [vmem:[%s2 + $0xb8] sm:$0xf]
  %v100 = vld [vmem:[%s2 + $0xbc] sm:$0xf]
  %v101 = vld [vmem:[%s2 + $0xc0] sm:$0xf]
  %v102 = vld [vmem:[%s2 + $0xc4] sm:$0xf]
  %v103 = vld [vmem:[%s2 + $0xc8] sm:$0xf]
  %v104 = vld [vmem:[%s2 + $0xcc] sm:$0xf]
  %v105 = vld [vmem:[%s2 + $0xd0] sm:$0xf]
  %v106 = vld [vmem:[%s2 + $0xd4] sm:$0xf]
  %v107 = vld [vmem:[%s2 + $0xd8] sm:$0xf]
  %v108 = vld [vmem:[%s2 + $0xdc] sm:$0xf]
  %v109 = vld [vmem:[%s2 + $0xe0] sm:$0xf]
  %v110 = vld [vmem:[%s2 + $0xe4] sm:$0xf]
  %v111 = vld [vmem:[%s2 + $0xe8] sm:$0xf]
  %v112 = vld [vmem:[%s2 + $0xec] sm:$0xf]
  %v113 = vld [vmem:[%s2 + $0xf0] sm:$0xf]
  %v114 = vld [vmem:[%s2 + $0xf4] sm:$0xf]
  %v115 = vld [vmem:[%s2 + $0xf8] sm:$0xf]
  %v116 = vld [vmem:[%s2 + $0xfc] sm:$0xf]
  %v117 = vld [vmem:[%s2 + $0x100] sm:$0xf]
  %v118 = vld [vmem:[%s2 + $0x104] sm:$0xf]
  %v119 = vld [vmem:[%s2 + $0x108] sm:$0xf]
  %v120 = vld [vmem:[%s2 + $0x10c] sm:$0xf]
  %v121 = vld [vmem:[%s2 + $0x110] sm:$0xf]
  %v122 = vld [vmem:[%s2 + $0x114] sm:$0xf]
  %v123 = vld [vmem:[%s2 + $0x118] sm:$0xf]
  %v124 = vld [vmem:[%s2 + $0x11c] sm:$0xf]
  %v125 = vld [vmem:[%s2 + $0x120] sm:$0xf]
  %v126 = vld [vmem:[%s2 + $0x124] sm:$0xf]
  %v127 = vld [vmem:[%s2 + $0x128] sm:$0xf]
  %v128 = vld [vmem:[%s2 + $0x12c] sm:$0xf]
  %v129 = vld [vmem:[%s2 + $0x130] sm:$0xf]
  %v130 = vld [vmem:[%s2 + $0x134] sm:$0xf]
  %v131 = vld [vmem:[%s2 + $0x138] sm:$0xf]
  %v132 = vld [vmem:[%s2 + $0x13c] sm:$0xf]
  %v133 = vld [vmem:[%s2 + $0x140] sm:$0xf]
  %v134 = vld [vmem:[%s2 + $0x144] sm:$0xf]
  %v135 = vld [vmem:[%s2 + $0x148] sm:$0xf]
  %v136 = vld [vmem:[%s2 + $0x14c] sm:$0xf]
  %v137 = vld [vmem:[%s2 + $0x150] sm:$0xf]
  %v138 = vld [vmem:[%s2 + $0x154] sm:$0xf]
  %v139 = vld [vmem:[%s2 + $0x158] sm:$0xf]
  %v140 = vld [vmem:[%s2 + $0x15c] sm:$0xf]
  %v141 = vld [vmem:[%s2 + $0x160] sm:$0xf]
  %v142 = vld [vmem:[%s2 + $0x164] sm:$0xf]
  %v143 = vld [vmem:[%s2 + $0x168] sm:$0xf]
  %v144 = vld [vmem:[%s2 + $0x16c] sm:$0xf]
  %v145 = vld [vmem:[%s2 + $0x170] sm:$0xf]
  %v146 = vld [vmem:[%s2 + $0x174] sm:$0xf]
  %v147 = vld [vmem:[%s2 + $0x178] sm:$0xf]
  %v148 = vld [vmem:[%s2 + $0x17c] sm:$0xf]
  %v149 = vld [vmem:[%s2 + $0x180] sm:$0xf]
  %v150 = vld [vmem:[%s2 + $0x184] sm:$0xf]
  %v151 = vld [vmem:[%s2 + $0x188] sm:$0xf]
  %v152 = vld [vmem:[%s2 + $0x18c] sm:$0xf]
  %v153 = vld [vmem:[%s2 + $0x190] sm:$0xf]
  %v154 = vld [vmem:[%s2 + $0x194] sm:$0xf]
  %v155 = vld [vmem:[%s2 + $0x198] sm:$0xf]
  %v156 = vld [vmem:[%s2 + $0x19c] sm:$0xf]
  %v157 = vld [vmem:[%s2 + $0x1a0] sm:$0xf]
  %v158 = vld [vmem:[%s2 + $0x1a4] sm:$0xf]
  %v159 = vld [vmem:[%s2 + $0x1a8] sm:$0xf]
  %v160 = vld [vmem:[%s2 + $0x1ac] sm:$0xf]
  %v161 = vld [vmem:[%s2 + $0x1b0] sm:$0xf]
  %v162 = vld [vmem:[%s2 + $0x1b4] sm:$0xf]
  %v163 = vld [vmem:[%s2 + $0x1b8] sm:$0xf]
  %v164 = vld [vmem:[%s2 + $0x1bc] sm:$0xf]
  %v165 = vld [vmem:[%s2 + $0x1c0] sm:$0xf]
  %v166 = vld [vmem:[%s2 + $0x1c4] sm:$0xf]
  %v167 = vld [vmem:[%s2 + $0x1c8] sm:$0xf]
  %v168 = vld [vmem:[%s2 + $0x1cc] sm:$0xf]
  %v169 = vld [vmem:[%s2 + $0x1d0] sm:$0xf]
  %v170 = vld [vmem:[%s2 + $0x1d4] sm:$0xf]
  %v171 = vld [vmem:[%s2 + $0x1d8] sm:$0xf]
  %v172 = vld [vmem:[%s2 + $0x1dc] sm:$0xf]
  %v173 = vld [vmem:[%s2 + $0x1e0] sm:$0xf]
  %v174 = vld [vmem:[%s2 + $0x1e4] sm:$0xf]
  %v175 = vld [vmem:[%s2 + $0x1e8] sm:$0xf]
  %v176 = vld [vmem:[%s2 + $0x1ec] sm:$0xf]
  %v177 = vld [vmem:[%s2 + $0x1f0] sm:$0xf]
  %v178 = vld [vmem:[%s2 + $0x1f4] sm:$0xf]
  %v179 = vld [vmem:[%s2 + $0x1f8] sm:$0xf]
  %v180 = vld [vmem:[%s2 + $0x1fc] sm:$0xf]
  %v181 = vld [vmem:[%s2 + $0x200] sm:$0xf]
  %v182 = vld [vmem:[%s2 + $0x204] sm:$0xf]
  %v183 = vld [vmem:[%s2 + $0x208] sm:$0xf]
  %v184 = vld [vmem:[%s2 + $0x20c] sm:$0xf]
  %v185 = vld [vmem:[%s2 + $0x210] sm:$0xf]
  %v186 = vld [vmem:[%s2 + $0x214] sm:$0xf]
  %v187 = vld [vmem:[%s2 + $0x218] sm:$0xf]
  %v188 = vld [vmem:[%s2 + $0x21c] sm:$0xf]
  %v189 = vld [vmem:[%s2 + $0x220] sm:$0xf]
  %v190 = vld [vmem:[%s2 + $0x224] sm:$0xf]
  %v191 = vld [vmem:[%s2 + $0x228] sm:$0xf]
  %v192 = vld [vmem:[%s2 + $0x22c] sm:$0xf]
  %v193 = vld [vmem:[%s2 + $0x230] sm:$0xf]
  %v194 = vld [vmem:[%s2 + $0x234] sm:$0xf]
  %v195 = vld [vmem:[%s2 + $0x238] sm:$0xf]
  %v196 = vld [vmem:[%s2 + $0x23c] sm:$0xf]
  %v197 = vld [vmem:[%s2 + $0x240] sm:$0xf]
  %v198 = vld [vmem:[%s2 + $0x244] sm:$0xf]
  %v199 = vld [vmem:[%s2 + $0x248] sm:$0xf]
  %v200 = vld [vmem:[%s2 + $0x24c] sm:$0xf]
  %v201 = vld [vmem:[%s2 + $0x250] sm:$0xf]
  %v202 = vld [vmem:[%s2 + $0x254] sm:$0xf]
  %v203 = vld [vmem:[%s2 + $0x258] sm:$0xf]
  %v204 = vld [vmem:[%s2 + $0x25c] sm:$0xf]
  %v205 = vld [vmem:[%s2 + $0x260] sm:$0xf]
  %v206 = vld [vmem:[%s2 + $0x264] sm:$0xf]
  %v207 = vld [vmem:[%s2 + $0x268] sm:$0xf]
  %v208 = vld [vmem:[%s2 + $0x26c] sm:$0xf]
  %v209 = vld [vmem:[%s2 + $0x270] sm:$0xf]
  %v210 = vld [vmem:[%s2 + $0x274] sm:$0xf]
  %v211 = vld [vmem:[%s2 + $0x278] sm:$0xf]
  %v212 = vld [vmem:[%s2 + $0x27c] sm:$0xf]
  %v213 = vld [vmem:[%s2 + $0x280] sm:$0xf]
  %v214 = vld [vmem:[%s2 + $0x284] sm:$0xf]
  %v215 = vld [vmem:[%s2 + $0x288] sm:$0xf]
  %v216 = vld [vmem:[%s2 + $0x28c] sm:$0xf]
  %v217 = vld [vmem:[%s2 + $0x290] sm:$0xf]
  %v218 = vld [vmem:[%s2 + $0x294] sm:$0xf]
  %v219 = vld [vmem:[%s2 + $0x298] sm:$0xf]
  %v220 = vld [vmem:[%s2 + $0x29c] sm:$0xf]
  %v221 = vld [vmem:[%s2 + $0x2a0] sm:$0xf]
  %v222 = vld [vmem:[%s2 + $0x2a4] sm:$0xf]
  %v223 = vld [vmem:[%s2 + $0x2a8] sm:$0xf]
  %v224 = vld [vmem:[%s2 + $0x2ac] sm:$0xf]
  %v225 = vld [vmem:[%s2 + $0x2b0] sm:$0xf]
  %v226 = vld [vmem:[%s2 + $0x2b4] sm:$0xf]
  %v227 = vld [vmem:[%s2 + $0x2b8] sm:$0xf]
  %v228 = vld [vmem:[%s2 + $0x2bc] sm:$0xf]
  %v229 = vld [vmem:[%s2 + $0x2c0] sm:$0xf]
  %v230 = vld [vmem:[%s2 + $0x2c4] sm:$0xf]
  %v231 = vld [vmem:[%s2 + $0x2c8] sm:$0xf]
  %v232 = vld [vmem:[%s2 + $0x2cc] sm:$0xf]
  %v233 = vld [vmem:[%s2 + $0x2d0] sm:$0xf]
  %v234 = vld [vmem:[%s2 + $0x2d4] sm:$0xf]
  %v235 = vld [vmem:[%s2 + $0x2d8] sm:$0xf]
  %v236 = vld [vmem:[%s2 + $0x2dc] sm:$0xf]
  %v237 = vld [vmem:[%s2 + $0x2e0] sm:$0xf]
  %v238 = vld [vmem:[%s2 + $0x2e4] sm:$0xf]
  %v239 = vld [vmem:[%s2 + $0x2e8] sm:$0xf]
  %v240 = vld [vmem:[%s2 + $0x2ec] sm:$0xf]
  %v241 = vld [vmem:[%s2 + $0x2f0] sm:$0xf]
  %v242 = vld [vmem:[%s2 + $0x2f4] sm:$0xf]
  %v243 = vld [vmem:[%s2 + $0x2f8] sm:$0xf]
  %v244 = vld [vmem:[%s2 + $0x2fc] sm:$0xf]
  %v245 = vld [vmem:[%s2 + $0x300] sm:$0xf]
  %v246 = vld [vmem:[%s2 + $0x304] sm:$0xf]
  %v247 = vld [vmem:[%s2 + $0x308] sm:$0xf]
  %v248 = vld [vmem:[%s2 + $0x30c] sm:$0xf]
  %v249 = vld [vmem:[%s2 + $0x310] sm:$0xf]
  %v250 = vld [vmem:[%s2 + $0x314] sm:$0xf]
  %v251 = vld [vmem:[%s2 + $0x318] sm:$0xf]
  %v252 = vld [vmem:[%s2 + $0x31c] sm:$0xf]
  %v253 = vld [vmem:[%s2 + $0x320] sm:$0xf]
  %v254 = vld [vmem:[%s2 + $0x324] sm:$0xf]
  %v255 = vld [vmem:[%s2 + $0x328] sm:$0xf]
  %v256 = vld [vmem:[%s2 + $0x32c] sm:$0xf]
  %v257 = vld [vmem:[%s2 + $0x330] sm:$0xf]
  %v258 = vld [vmem:[%s2 + $0x334] sm:$0xf]
  %v259 = vld [vmem:[%s2 + $0x338] sm:$0xf]
  %v260 = vld [vmem:[%s2 + $0x33c] sm:$0xf]
  %v261 = vld [vmem:[%s2 + $0x340] sm:$0xf]
  %v262 = vld [vmem:[%s2 + $0x344] sm:$0xf]
  %v263 = vld [vmem:[%s2 + $0x348] sm:$0xf]
  %v264 = vld [vmem:[%s2 + $0x34c] sm:$0xf]
  %v265 = vld [vmem:[%s2 + $0x350] sm:$0xf]
  %v266 = vld [vmem:[%s2 + $0x354] sm:$0xf]
  %v267 = vld [vmem:[%s2 + $0x358] sm:$0xf]
  %v268 = vld [vmem:[%s2 + $0x35c] sm:$0xf]
  %v269 = vld [vmem:[%s2 + $0x360] sm:$0xf]
  %v270 = vld [vmem:[%s2 + $0x364] sm:$0xf]
  %v271 = vld [vmem:[%s2 + $0x368] sm:$0xf]
  %v272 = vld [vmem:[%s2 + $0x36c] sm:$0xf]
  %v273 = vld [vmem:[%s2 + $0x370] sm:$0xf]
  %v274 = vld [vmem:[%s2 + $0x374] sm:$0xf]
  %v275 = vld [vmem:[%s2 + $0x378] sm:$0xf]
  %v276 = vld [vmem:[%s2 + $0x37c] sm:$0xf]
  %v277 = vld [vmem:[%s2 + $0x380] sm:$0xf]
  %v278 = vld [vmem:[%s2 + $0x384] sm:$0xf]
  %v279 = vld [vmem:[%s2 + $0x388] sm:$0xf]
  %v280 = vld [vmem:[%s2 + $0x38c] sm:$0xf]
  %v281 = vld [vmem:[%s2 + $0x390] sm:$0xf]
  %v282 = vld [vmem:[%s2 + $0x394] sm:$0xf]
  %v283 = vld [vmem:[%s2 + $0x398] sm:$0xf]
  %v284 = vld [vmem:[%s2 + $0x39c] sm:$0xf]
  %v285 = vld [vmem:[%s2 + $0x3a0] sm:$0xf]
  %v286 = vld [vmem:[%s2 + $0x3a4] sm:$0xf]
  %v287 = vld [vmem:[%s2 + $0x3a8] sm:$0xf]
  %v288 = vld [vmem:[%s2 + $0x3ac] sm:$0xf]
  %v289 = vld [vmem:[%s2 + $0x3b0] sm:$0xf]
  %v290 = vld [vmem:[%s2 + $0x3b4] sm:$0xf]
  %v291 = vld [vmem:[%s2 + $0x3b8] sm:$0xf]
  %v292 = vld [vmem:[%s2 + $0x3bc] sm:$0xf]
  %v293 = vld [vmem:[%s2 + $0x3c0] sm:$0xf]
  %v294 = vld [vmem:[%s2 + $0x3c4] sm:$0xf]
  %v295 = vld [vmem:[%s2 + $0x3c8] sm:$0xf]
  %v296 = vld [vmem:[%s2 + $0x3cc] sm:$0xf]
  %v297 = vld [vmem:[%s2 + $0x3d0] sm:$0xf]
  %v298 = vld [vmem:[%s2 + $0x3d4] sm:$0xf]
  %v299 = vld [vmem:[%s2 + $0x3d8] sm:$0xf]
  %v300 = vld [vmem:[%s2 + $0x3dc] sm:$0xf]
  %v301 = vld [vmem:[%s2 + $0x3e0] sm:$0xf]
  %v302 = vld [vmem:[%s2 + $0x3e4] sm:$0xf]
  %v303 = vld [vmem:[%s2 + $0x3e8] sm:$0xf]
  %v304 = vld [vmem:[%s2 + $0x3ec] sm:$0xf]
  %v305 = vld [vmem:[%s2 + $0x3f0] sm:$0xf]
  %v306 = vld [vmem:[%s2 + $0x3f4] sm:$0xf]
  %v307 = vld [vmem:[%s2 + $0x3f8] sm:$0xf]
  %v308 = vld [vmem:[%s2 + $0x3fc] sm:$0xf]
  %v309 = vld [vmem:[%s2 + $0x400] sm:$0xf]
  %v310 = vld [vmem:[%s2 + $0x404] sm:$0xf]
  %v311 = vld [vmem:[%s2 + $0x408] sm:$0xf]
  %v312 = vld [vmem:[%s2 + $0x40c] sm:$0xf]
  %v313 = vld [vmem:[%s2 + $0x410] sm:$0xf]
  %v314 = vld [vmem:[%s2 + $0x414] sm:$0xf]
  %v315 = vld [vmem:[%s2 + $0x418] sm:$0xf]
  %v316 = vld [vmem:[%s2 + $0x41c] sm:$0xf]
  %v317 = vld [vmem:[%s2 + $0x420] sm:$0xf]
  %v318 = vld [vmem:[%s2 + $0x424] sm:$0xf]
  %v319 = vld [vmem:[%s2 + $0x428] sm:$0xf]
  %v320 = vld [vmem:[%s2 + $0x42c] sm:$0xf]
  %v321 = vld [vmem:[%s2 + $0x430] sm:$0xf]
  %v322 = vld [vmem:[%s2 + $0x434] sm:$0xf]
  %v323 = vld [vmem:[%s2 + $0x438] sm:$0xf]
  %v324 = vld [vmem:[%s2 + $0x43c] sm:$0xf]
  %v325 = vld [vmem:[%s2 + $0x440] sm:$0xf]
  %v326 = vld [vmem:[%s2 + $0x444] sm:$0xf]
  %v327 = vld [vmem:[%s2 + $0x448] sm:$0xf]
  %v328 = vld [vmem:[%s2 + $0x44c] sm:$0xf]
  %v329 = vld [vmem:[%s2 + $0x450] sm:$0xf]
  %v330 = vld [vmem:[%s2 + $0x454] sm:$0xf]
  %v331 = vld [vmem:[%s2 + $0x458] sm:$0xf]
  %v332 = vld [vmem:[%s2 + $0x45c] sm:$0xf]
  %v333 = vld [vmem:[%s2 + $0x460] sm:$0xf]
  %v334 = vld [vmem:[%s2 + $0x464] sm:$0xf]
  %v335 = vld [vmem:[%s2 + $0x468] sm:$0xf]
  %v336 = vld [vmem:[%s2 + $0x46c] sm:$0xf]
  %v337 = vld [vmem:[%s2 + $0x470] sm:$0xf]
  %v338 = vld [vmem:[%s2 + $0x474] sm:$0xf]
  %v339 = vld [vmem:[%s2 + $0x478] sm:$0xf]
  %v340 = vld [vmem:[%s2 + $0x47c] sm:$0xf]
  %v341 = vld [vmem:[%s2 + $0x480] sm:$0xf]
  %v342 = vld [vmem:[%s2 + $0x484] sm:$0xf]
  %v343 = vld [vmem:[%s2 + $0x488] sm:$0xf]
  %v344 = vld [vmem:[%s2 + $0x48c] sm:$0xf]
  %v345 = vld [vmem:[%s2 + $0x490] sm:$0xf]
  %v346 = vld [vmem:[%s2 + $0x494] sm:$0xf]
  %v347 = vld [vmem:[%s2 + $0x498] sm:$0xf]
  %v348 = vld [vmem:[%s2 + $0x49c] sm:$0xf]
  %v349 = vld [vmem:[%s2 + $0x4a0] sm:$0xf]
  %v350 = vld [vmem:[%s2 + $0x4a4] sm:$0xf]
  %v351 = vld [vmem:[%s2 + $0x4a8] sm:$0xf]
  %v352 = vld [vmem:[%s2 + $0x4ac] sm:$0xf]
  %v353 = vld [vmem:[%s2 + $0x4b0] sm:$0xf]
  %v354 = vld [vmem:[%s2 + $0x4b4] sm:$0xf]
  %v355 = vld [vmem:[%s2 + $0x4b8] sm:$0xf]
  %v356 = vld [vmem:[%s2 + $0x4bc] sm:$0xf]
  %v357 = vld [vmem:[%s2 + $0x4c0] sm:$0xf]
  %v358 = vld [vmem:[%s2 + $0x4c4] sm:$0xf]
  %v359 = vld [vmem:[%s2 + $0x4c8] sm:$0xf]
  %v360 = vld [vmem:[%s2 + $0x4cc] sm:$0xf]
  %v361 = vld [vmem:[%s2 + $0x4d0] sm:$0xf]
  %v362 = vld [vmem:[%s2 + $0x4d4] sm:$0xf]
  %v363 = vld [vmem:[%s2 + $0x4d8] sm:$0xf]
  %v364 = vld [vmem:[%s2 + $0x4dc] sm:$0xf]
  %v365 = vld [vmem:[%s2 + $0x4e0] sm:$0xf]
  %v366 = vld [vmem:[%s2 + $0x4e4] sm:$0xf]
  %v367 = vld [vmem:[%s2 + $0x4e8] sm:$0xf]
  %v368 = vld [vmem:[%s2 + $0x4ec] sm:$0xf]
  %v369 = vld [vmem:[%s2 + $0x4f0] sm:$0xf]
  %v370 = vld [vmem:[%s2 + $0x4f4] sm:$0xf]
  %v371 = vld [vmem:[%s2 + $0x4f8] sm:$0xf]
  %v372 = vld [vmem:[%s2 + $0x4fc] sm:$0xf]
  %v373 = vld [vmem:[%s2 + $0x500] sm:$0xf]
  %v374 = vld [vmem:[%s2 + $0x504] sm:$0xf]
  %v375 = vld [vmem:[%s2 + $0x508] sm:$0xf]
  %v376 = vld [vmem:[%s2 + $0x50c] sm:$0xf]
  %v377 = vld [vmem:[%s2 + $0x510] sm:$0xf]
  %v378 = vld [vmem:[%s2 + $0x514] sm:$0xf]
  %v379 = vld [vmem:[%s2 + $0x518] sm:$0xf]
  %v380 = vld [vmem:[%s2 + $0x51c] sm:$0xf]
  %v381 = vld [vmem:[%s2 + $0x520] sm:$0xf]
  %v382 = vld [vmem:[%s2 + $0x524] sm:$0xf]
  %v383 = vld [vmem:[%s2 + $0x528] sm:$0xf]
  %v384 = vld [vmem:[%s2 + $0x52c] sm:$0xf]
  %v385 = vld [vmem:[%s2 + $0x530] sm:$0xf]
  %v386 = vld [vmem:[%s2 + $0x534] sm:$0xf]
  %v387 = vld [vmem:[%s2 + $0x538] sm:$0xf]
  %v388 = vld [vmem:[%s2 + $0x53c] sm:$0xf]
  %v389 = vld [vmem:[%s2 + $0x540] sm:$0xf]
  %v390 = vld [vmem:[%s2 + $0x544] sm:$0xf]
  %v391 = vld [vmem:[%s2 + $0x548] sm:$0xf]
  %v392 = vld [vmem:[%s2 + $0x54c] sm:$0xf]
  %v393 = vld [vmem:[%s2 + $0x550] sm:$0xf]
  %v394 = vld [vmem:[%s2 + $0x554] sm:$0xf]
  %v395 = vld [vmem:[%s2 + $0x558] sm:$0xf]
  %v396 = vld [vmem:[%s2 + $0x55c] sm:$0xf]
  %v397 = vld [vmem:[%s2 + $0x560] sm:$0xf]
  %v398 = vld [vmem:[%s2 + $0x564] sm:$0xf]
  %v399 = vld [vmem:[%s2 + $0x568] sm:$0xf]
  %v400 = vld [vmem:[%s2 + $0x56c] sm:$0xf]
  %v401 = vld [vmem:[%s2 + $0x570] sm:$0xf]
  %v402 = vld [vmem:[%s2 + $0x574] sm:$0xf]
  %v403 = vld [vmem:[%s2 + $0x578] sm:$0xf]
  %v404 = vld [vmem:[%s2 + $0x57c] sm:$0xf]
  %v405 = vld [vmem:[%s2 + $0x580] sm:$0xf]
  %v406 = vld [vmem:[%s2 + $0x584] sm:$0xf]
  %v407 = vld [vmem:[%s2 + $0x588] sm:$0xf]
  %v408 = vld [vmem:[%s2 + $0x58c] sm:$0xf]
  %v409 = vld [vmem:[%s2 + $0x590] sm:$0xf]
  %v410 = vld [vmem:[%s2 + $0x594] sm:$0xf]
  %v411 = vld [vmem:[%s2 + $0x598] sm:$0xf]
  %v412 = vld [vmem:[%s2 + $0x59c] sm:$0xf]
  %v413 = vld [vmem:[%s2 + $0x5a0] sm:$0xf]
  %v414 = vld [vmem:[%s2 + $0x5a4] sm:$0xf]
  %v415 = vld [vmem:[%s2 + $0x5a8] sm:$0xf]
  %v416 = vld [vmem:[%s2 + $0x5ac] sm:$0xf]
  %v417 = vld [vmem:[%s2 + $0x5b0] sm:$0xf]
  %v418 = vld [vmem:[%s2 + $0x5b4] sm:$0xf]
  %v419 = vld [vmem:[%s2 + $0x5b8] sm:$0xf]
  %v420 = vld [vmem:[%s2 + $0x5bc] sm:$0xf]
  %v421 = vld [vmem:[%s2 + $0x5c0] sm:$0xf]
  %v422 = vld [vmem:[%s2 + $0x5c4] sm:$0xf]
  %v423 = vld [vmem:[%s2 + $0x5c8] sm:$0xf]
  %v424 = vld [vmem:[%s2 + $0x5cc] sm:$0xf]
  %v425 = vld [vmem:[%s2 + $0x5d0] sm:$0xf]
  %v426 = vld [vmem:[%s2 + $0x5d4] sm:$0xf]
  %v427 = vld [vmem:[%s2 + $0x5d8] sm:$0xf]
  %v428 = vld [vmem:[%s2 + $0x5dc] sm:$0xf]
  %v429 = vld [vmem:[%s2 + $0x5e0] sm:$0xf]
  %v430 = vld [vmem:[%s2 + $0x5e4] sm:$0xf]
  %v431 = vld [vmem:[%s2 + $0x5e8] sm:$0xf]
  %v432 = vld [vmem:[%s2 + $0x5ec] sm:$0xf]
  %v433 = vld [vmem:[%s2 + $0x5f0] sm:$0xf]
  %v434 = vld [vmem:[%s2 + $0x5f4] sm:$0xf]
  %v435 = vld [vmem:[%s2 + $0x5f8] sm:$0xf]
  %v436 = vld [vmem:[%s2 + $0x5fc] sm:$0xf]
  %v437 = vld [vmem:[%s2 + $0x600] sm:$0xf]
  %v438 = vld [vmem:[%s2 + $0x604] sm:$0xf]
  %v439 = vld [vmem:[%s2 + $0x608] sm:$0xf]
  %v440 = vld [vmem:[%s2 + $0x60c] sm:$0xf]
  %v441 = vld [vmem:[%s2 + $0x610] sm:$0xf]
  %v442 = vld [vmem:[%s2 + $0x614] sm:$0xf]
  %v443 = vld [vmem:[%s2 + $0x618] sm:$0xf]
  %v444 = vld [vmem:[%s2 + $0x61c] sm:$0xf]
  %v445 = vld [vmem:[%s2 + $0x620] sm:$0xf]
  %v446 = vld [vmem:[%s2 + $0x624] sm:$0xf]
  %v447 = vld [vmem:[%s2 + $0x628] sm:$0xf]
  %v448 = vld [vmem:[%s2 + $0x62c] sm:$0xf]
  %v449 = vld [vmem:[%s2 + $0x630] sm:$0xf]
  %v450 = vld [vmem:[%s2 + $0x634] sm:$0xf]
  %v451 = vld [vmem:[%s2 + $0x638] sm:$0xf]
  %v452 = vld [vmem:[%s2 + $0x63c] sm:$0xf]
  %v453 = vld [vmem:[%s2 + $0x640] sm:$0xf]
  %v454 = vld [vmem:[%s2 + $0x644] sm:$0xf]
  %v455 = vld [vmem:[%s2 + $0x648] sm:$0xf]
  %v456 = vld [vmem:[%s2 + $0x64c] sm:$0xf]
  %v457 = vld [vmem:[%s2 + $0x650] sm:$0xf]
  %v458 = vld [vmem:[%s2 + $0x654] sm:$0xf]
  %v459 = vld [vmem:[%s2 + $0x658] sm:$0xf]
  %v460 = vld [vmem:[%s2 + $0x65c] sm:$0xf]
  %v461 = vld [vmem:[%s2 + $0x660] sm:$0xf]
  %v462 = vld [vmem:[%s2 + $0x664] sm:$0xf]
  %v463 = vld [vmem:[%s2 + $0x668] sm:$0xf]
  %v464 = vld [vmem:[%s2 + $0x66c] sm:$0xf]
  %v465 = vld [vmem:[%s2 + $0x670] sm:$0xf]
  %v466 = vld [vmem:[%s2 + $0x674] sm:$0xf]
  %v467 = vld [vmem:[%s2 + $0x678] sm:$0xf]
  %v468 = vld [vmem:[%s2 + $0x67c] sm:$0xf]
  %v469 = vld [vmem:[%s2 + $0x680] sm:$0xf]
  %v470 = vld [vmem:[%s2 + $0x684] sm:$0xf]
  %v471 = vld [vmem:[%s2 + $0x688] sm:$0xf]
  %v472 = vld [vmem:[%s2 + $0x68c] sm:$0xf]
  %v473 = vld [vmem:[%s2 + $0x690] sm:$0xf]
  %v474 = vld [vmem:[%s2 + $0x694] sm:$0xf]
  %v475 = vld [vmem:[%s2 + $0x698] sm:$0xf]
  %v476 = vld [vmem:[%s2 + $0x69c] sm:$0xf]
  %v477 = vld [vmem:[%s2 + $0x6a0] sm:$0xf]
  %v478 = vld [vmem:[%s2 + $0x6a4] sm:$0xf]
  %v479 = vld [vmem:[%s2 + $0x6a8] sm:$0xf]
  %v480 = vld [vmem:[%s2 + $0x6ac] sm:$0xf]
  %v481 = vld [vmem:[%s2 + $0x6b0] sm:$0xf]
  %v482 = vld [vmem:[%s2 + $0x6b4] sm:$0xf]
  %v483 = vld [vmem:[%s2 + $0x6b8] sm:$0xf]
  %v484 = vld [vmem:[%s2 + $0x6bc] sm:$0xf]
  %v485 = vld [vmem:[%s2 + $0x6c0] sm:$0xf]
  %v486 = vld [vmem:[%s2 + $0x6c4] sm:$0xf]
  %v487 = vld [vmem:[%s2 + $0x6c8] sm:$0xf]
  %v488 = vld [vmem:[%s2 + $0x6cc] sm:$0xf]
  %v489 = vld [vmem:[%s2 + $0x6d0] sm:$0xf]
  %v490 = vld [vmem:[%s2 + $0x6d4] sm:$0xf]
  %v491 = vld [vmem:[%s2 + $0x6d8] sm:$0xf]
  %v492 = vld [vmem:[%s2 + $0x6dc] sm:$0xf]
  %v493 = vld [vmem:[%s2 + $0x6e0] sm:$0xf]
  %v494 = vld [vmem:[%s2 + $0x6e4] sm:$0xf]
  %v495 = vld [vmem:[%s2 + $0x6e8] sm:$0xf]
  %v496 = vld [vmem:[%s2 + $0x6ec] sm:$0xf]
  %v497 = vld [vmem:[%s2 + $0x6f0] sm:$0xf]
  %v498 = vld [vmem:[%s2 + $0x6f4] sm:$0xf]
  %v499 = vld [vmem:[%s2 + $0x6f8] sm:$0xf]
  %v500 = vld [vmem:[%s2 + $0x6fc] sm:$0xf]
  %v501 = vld [vmem:[%s2 + $0x700] sm:$0xf]
  %v502 = vld [vmem:[%s2 + $0x704] sm:$0xf]
  %v503 = vld [vmem:[%s2 + $0x708] sm:$0xf]
  %v504 = vld [vmem:[%s2 + $0x70c] sm:$0xf]
  %v505 = vld [vmem:[%s2 + $0x710] sm:$0xf]
  %v506 = vld [vmem:[%s2 + $0x714] sm:$0xf]
  %v507 = vld [vmem:[%s2 + $0x718] sm:$0xf]
  %v508 = vld [vmem:[%s2 + $0x71c] sm:$0xf]
  %v509 = vld [vmem:[%s2 + $0x720] sm:$0xf]
  %v510 = vld [vmem:[%s2 + $0x724] sm:$0xf]
  %v511 = vld [vmem:[%s2 + $0x728] sm:$0xf]
  %v512 = vld [vmem:[%s2 + $0x72c] sm:$0xf]
  %v513 = vld [vmem:[%s2 + $0x730] sm:$0xf]
  %v514 = vld [vmem:[%s2 + $0x734] sm:$0xf]
  %v515 = vld [vmem:[%s2 + $0x738] sm:$0xf]
  %v516 = vld [vmem:[%s2 + $0x73c] sm:$0xf]
  %v517 = vld [vmem:[%s2 + $0x740] sm:$0xf]
  %v518 = vld [vmem:[%s2 + $0x744] sm:$0xf]
  %v519 = vld [vmem:[%s2 + $0x748] sm:$0xf]
  %v520 = vld [vmem:[%s2 + $0x74c] sm:$0xf]
  %v521 = vld [vmem:[%s2 + $0x750] sm:$0xf]
  %v522 = vld [vmem:[%s2 + $0x754] sm:$0xf]
  %v523 = vld [vmem:[%s2 + $0x758] sm:$0xf]
  %v524 = vld [vmem:[%s2 + $0x75c] sm:$0xf]
  %v525 = vld [vmem:[%s2 + $0x760] sm:$0xf]
  %v526 = vld [vmem:[%s2 + $0x764] sm:$0xf]
  %v527 = vld [vmem:[%s2 + $0x768] sm:$0xf]
  %v528 = vld [vmem:[%s2 + $0x76c] sm:$0xf]
  %v529 = vld [vmem:[%s2 + $0x770] sm:$0xf]
  %v530 = vld [vmem:[%s2 + $0x774] sm:$0xf]
  %v531 = vld [vmem:[%s2 + $0x778] sm:$0xf]
  %v532 = vld [vmem:[%s2 + $0x77c] sm:$0xf]
  %v533 = vld [vmem:[%s2 + $0x780] sm:$0xf]
  %v534 = vld [vmem:[%s2 + $0x784] sm:$0xf]
  %v535 = vld [vmem:[%s2 + $0x788] sm:$0xf]
  %v536 = vld [vmem:[%s2 + $0x78c] sm:$0xf]
  %v537 = vld [vmem:[%s2 + $0x790] sm:$0xf]
  %v538 = vld [vmem:[%s2 + $0x794] sm:$0xf]
  %v539 = vld [vmem:[%s2 + $0x798] sm:$0xf]
  %v540 = vld [vmem:[%s2 + $0x79c] sm:$0xf]
  %v541 = vld [vmem:[%s2 + $0x7a0] sm:$0xf]
  %v542 = vld [vmem:[%s2 + $0x7a4] sm:$0xf]
  %v543 = vld [vmem:[%s2 + $0x7a8] sm:$0xf]
  %v544 = vld [vmem:[%s2 + $0x7ac] sm:$0xf]
  %v545 = vld [vmem:[%s2 + $0x7b0] sm:$0xf]
  %v546 = vld [vmem:[%s2 + $0x7b4] sm:$0xf]
  %v547 = vld [vmem:[%s2 + $0x7b8] sm:$0xf]
  %v548 = vld [vmem:[%s2 + $0x7bc] sm:$0xf]
  %v549 = vld [vmem:[%s2 + $0x7c0] sm:$0xf]
  %v550 = vld [vmem:[%s2 + $0x7c4] sm:$0xf]
  %v551 = vld [vmem:[%s2 + $0x7c8] sm:$0xf]
  %v552 = vld [vmem:[%s2 + $0x7cc] sm:$0xf]
  %v553 = vld [vmem:[%s2 + $0x7d0] sm:$0xf]
  %v554 = vld [vmem:[%s2 + $0x7d4] sm:$0xf]
  %v555 = vld [vmem:[%s2 + $0x7d8] sm:$0xf]
  %v556 = vld [vmem:[%s2 + $0x7dc] sm:$0xf]
  %v557 = vld [vmem:[%s2 + $0x7e0] sm:$0xf]
  %v558 = vld [vmem:[%s2 + $0x7e4] sm:$0xf]
  %v559 = vld [vmem:[%s2 + $0x7e8] sm:$0xf]
  %v560 = vld [vmem:[%s2 + $0x7ec] sm:$0xf]
  %v561 = vld [vmem:[%s2 + $0x7f0] sm:$0xf]
  %v562 = vld [vmem:[%s2 + $0x7f4] sm:$0xf]
  %v563 = vld [vmem:[%s2 + $0x7f8] sm:$0xf]
  %v564 = vld [vmem:[%s2 + $0x7fc] sm:$0xf]
  %v565 = vld [vmem:[%s3] sm:$0x1]
  %v567 = vlaneseq
  %v568 = vshrl.u32 %v567, 7
  %v569 = vsub.s32 0, %v568
  %v570 = vrot.slane %v565, %v569
  %v588 = vunpack.c.l.b16 %v37
  %v589 = vunpack.c.h.b16 %v37
  %v590 = vunpack.c.l.b16 %v38
  %v591 = vunpack.c.h.b16 %v38
  %v592 = vunpack.c.l.b16 %v39
  %v593 = vunpack.c.h.b16 %v39
  %v594 = vunpack.c.l.b16 %v40
  %v595 = vunpack.c.h.b16 %v40
  %v596 = vunpack.c.l.b16 %v41
  %v597 = vunpack.c.h.b16 %v41
  %v598 = vunpack.c.l.b16 %v42
  %v599 = vunpack.c.h.b16 %v42
  %v600 = vunpack.c.l.b16 %v43
  %v601 = vunpack.c.h.b16 %v43
  %v602 = vunpack.c.l.b16 %v44
  %v603 = vunpack.c.h.b16 %v44
  %v604 = vunpack.c.l.b16 %v45
  %v605 = vunpack.c.h.b16 %v45
  %v606 = vunpack.c.l.b16 %v46
  %v607 = vunpack.c.h.b16 %v46
  %v608 = vunpack.c.l.b16 %v47
  %v609 = vunpack.c.h.b16 %v47
  %v610 = vunpack.c.l.b16 %v48
  %v611 = vunpack.c.h.b16 %v48
  %v612 = vunpack.c.l.b16 %v49
  %v613 = vunpack.c.h.b16 %v49
  %v614 = vunpack.c.l.b16 %v50
  %v615 = vunpack.c.h.b16 %v50
  %v616 = vunpack.c.l.b16 %v51
  %v617 = vunpack.c.h.b16 %v51
  %v618 = vunpack.c.l.b16 %v52
  %v619 = vunpack.c.h.b16 %v52
  %v620 = vpack.c.b16 %v588, %v588
  %v621 = vpack.c.b16 %v589, %v589
  %v622 = vpack.c.b16 %v590, %v590
  %v623 = vpack.c.b16 %v591, %v591
  %v624 = vpack.c.b16 %v592, %v592
  %v625 = vpack.c.b16 %v593, %v593
  %v626 = vpack.c.b16 %v594, %v594
  %v627 = vpack.c.b16 %v595, %v595
  %v628 = vpack.c.b16 %v596, %v596
  %v629 = vpack.c.b16 %v597, %v597
  %v630 = vpack.c.b16 %v598, %v598
  %v631 = vpack.c.b16 %v599, %v599
  %v632 = vpack.c.b16 %v600, %v600
  %v633 = vpack.c.b16 %v601, %v601
  %v634 = vpack.c.b16 %v602, %v602
  %v635 = vpack.c.b16 %v603, %v603
  %v636 = vpack.c.b16 %v604, %v604
  %v637 = vpack.c.b16 %v605, %v605
  %v638 = vpack.c.b16 %v606, %v606
  %v639 = vpack.c.b16 %v607, %v607
  %v640 = vpack.c.b16 %v608, %v608
  %v641 = vpack.c.b16 %v609, %v609
  %v642 = vpack.c.b16 %v610, %v610
  %v643 = vpack.c.b16 %v611, %v611
  %v644 = vpack.c.b16 %v612, %v612
  %v645 = vpack.c.b16 %v613, %v613
  %v646 = vpack.c.b16 %v614, %v614
  %v647 = vpack.c.b16 %v615, %v615
  %v648 = vpack.c.b16 %v616, %v616
  %v649 = vpack.c.b16 %v617, %v617
  %v650 = vpack.c.b16 %v618, %v618
  %v651 = vpack.c.b16 %v619, %v619
  %v1196 = vunpack.c.l.b16 %v53
  %v1197 = vunpack.c.l.b16 %v54
  %v1198 = vunpack.c.l.b16 %v55
  %v1199 = vunpack.c.l.b16 %v56
  %v1200 = vunpack.c.l.b16 %v57
  %v1201 = vunpack.c.l.b16 %v58
  %v1202 = vunpack.c.l.b16 %v59
  %v1203 = vunpack.c.l.b16 %v60
  %v1204 = vunpack.c.l.b16 %v61
  %v1205 = vunpack.c.l.b16 %v62
  %v1206 = vunpack.c.l.b16 %v63
  %v1207 = vunpack.c.l.b16 %v64
  %v1208 = vunpack.c.l.b16 %v65
  %v1209 = vunpack.c.l.b16 %v66
  %v1210 = vunpack.c.l.b16 %v67
  %v1211 = vunpack.c.l.b16 %v68
  %v1212 = vunpack.c.l.b16 %v69
  %v1213 = vunpack.c.l.b16 %v70
  %v1214 = vunpack.c.l.b16 %v71
  %v1215 = vunpack.c.l.b16 %v72
  %v1216 = vunpack.c.l.b16 %v73
  %v1217 = vunpack.c.l.b16 %v74
  %v1218 = vunpack.c.l.b16 %v75
  %v1219 = vunpack.c.l.b16 %v76
  %v1220 = vunpack.c.l.b16 %v77
  %v1221 = vunpack.c.l.b16 %v78
  %v1222 = vunpack.c.l.b16 %v79
  %v1223 = vunpack.c.l.b16 %v80
  %v1224 = vunpack.c.l.b16 %v81
  %v1225 = vunpack.c.l.b16 %v82
  %v1226 = vunpack.c.l.b16 %v83
  %v1227 = vunpack.c.l.b16 %v84
  %v1228 = vunpack.c.l.b16 %v85
  %v1229 = vunpack.c.l.b16 %v86
  %v1230 = vunpack.c.l.b16 %v87
  %v1231 = vunpack.c.l.b16 %v88
  %v1232 = vunpack.c.l.b16 %v89
  %v1233 = vunpack.c.l.b16 %v90
  %v1234 = vunpack.c.l.b16 %v91
  %v1235 = vunpack.c.l.b16 %v92
  %v1236 = vunpack.c.l.b16 %v93
  %v1237 = vunpack.c.l.b16 %v94
  %v1238 = vunpack.c.l.b16 %v95
  %v1239 = vunpack.c.l.b16 %v96
  %v1240 = vunpack.c.l.b16 %v97
  %v1241 = vunpack.c.l.b16 %v98
  %v1242 = vunpack.c.l.b16 %v99
  %v1243 = vunpack.c.l.b16 %v100
  %v1244 = vunpack.c.l.b16 %v101
  %v1245 = vunpack.c.l.b16 %v102
  %v1246 = vunpack.c.l.b16 %v103
  %v1247 = vunpack.c.l.b16 %v104
  %v1248 = vunpack.c.l.b16 %v105
  %v1249 = vunpack.c.l.b16 %v106
  %v1250 = vunpack.c.l.b16 %v107
  %v1251 = vunpack.c.l.b16 %v108
  %v1252 = vunpack.c.l.b16 %v109
  %v1253 = vunpack.c.l.b16 %v110
  %v1254 = vunpack.c.l.b16 %v111
  %v1255 = vunpack.c.l.b16 %v112
  %v1256 = vunpack.c.l.b16 %v113
  %v1257 = vunpack.c.l.b16 %v114
  %v1258 = vunpack.c.l.b16 %v115
  %v1259 = vunpack.c.l.b16 %v116
  %v1260 = vunpack.c.l.b16 %v117
  %v1261 = vunpack.c.l.b16 %v118
  %v1262 = vunpack.c.l.b16 %v119
  %v1263 = vunpack.c.l.b16 %v120
  %v1264 = vunpack.c.l.b16 %v121
  %v1265 = vunpack.c.l.b16 %v122
  %v1266 = vunpack.c.l.b16 %v123
  %v1267 = vunpack.c.l.b16 %v124
  %v1268 = vunpack.c.l.b16 %v125
  %v1269 = vunpack.c.l.b16 %v126
  %v1270 = vunpack.c.l.b16 %v127
  %v1271 = vunpack.c.l.b16 %v128
  %v1272 = vunpack.c.l.b16 %v129
  %v1273 = vunpack.c.l.b16 %v130
  %v1274 = vunpack.c.l.b16 %v131
  %v1275 = vunpack.c.l.b16 %v132
  %v1276 = vunpack.c.l.b16 %v133
  %v1277 = vunpack.c.l.b16 %v134
  %v1278 = vunpack.c.l.b16 %v135
  %v1279 = vunpack.c.l.b16 %v136
  %v1280 = vunpack.c.l.b16 %v137
  %v1281 = vunpack.c.l.b16 %v138
  %v1282 = vunpack.c.l.b16 %v139
  %v1283 = vunpack.c.l.b16 %v140
  %v1284 = vunpack.c.l.b16 %v141
  %v1285 = vunpack.c.l.b16 %v142
  %v1286 = vunpack.c.l.b16 %v143
  %v1287 = vunpack.c.l.b16 %v144
  %v1288 = vunpack.c.l.b16 %v145
  %v1289 = vunpack.c.l.b16 %v146
  %v1290 = vunpack.c.l.b16 %v147
  %v1291 = vunpack.c.l.b16 %v148
  %v1292 = vunpack.c.l.b16 %v149
  %v1293 = vunpack.c.l.b16 %v150
  %v1294 = vunpack.c.l.b16 %v151
  %v1295 = vunpack.c.l.b16 %v152
  %v1296 = vunpack.c.l.b16 %v153
  %v1297 = vunpack.c.l.b16 %v154
  %v1298 = vunpack.c.l.b16 %v155
  %v1299 = vunpack.c.l.b16 %v156
  %v1300 = vunpack.c.l.b16 %v157
  %v1301 = vunpack.c.l.b16 %v158
  %v1302 = vunpack.c.l.b16 %v159
  %v1303 = vunpack.c.l.b16 %v160
  %v1304 = vunpack.c.l.b16 %v161
  %v1305 = vunpack.c.l.b16 %v162
  %v1306 = vunpack.c.l.b16 %v163
  %v1307 = vunpack.c.l.b16 %v164
  %v1308 = vunpack.c.l.b16 %v165
  %v1309 = vunpack.c.l.b16 %v166
  %v1310 = vunpack.c.l.b16 %v167
  %v1311 = vunpack.c.l.b16 %v168
  %v1312 = vunpack.c.l.b16 %v169
  %v1313 = vunpack.c.l.b16 %v170
  %v1314 = vunpack.c.l.b16 %v171
  %v1315 = vunpack.c.l.b16 %v172
  %v1316 = vunpack.c.l.b16 %v173
  %v1317 = vunpack.c.l.b16 %v174
  %v1318 = vunpack.c.l.b16 %v175
  %v1319 = vunpack.c.l.b16 %v176
  %v1320 = vunpack.c.l.b16 %v177
  %v1321 = vunpack.c.l.b16 %v178
  %v1322 = vunpack.c.l.b16 %v179
  %v1323 = vunpack.c.l.b16 %v180
  %v1324 = vunpack.c.l.b16 %v181
  %v1325 = vunpack.c.l.b16 %v182
  %v1326 = vunpack.c.l.b16 %v183
  %v1327 = vunpack.c.l.b16 %v184
  %v1328 = vunpack.c.l.b16 %v185
  %v1329 = vunpack.c.l.b16 %v186
  %v1330 = vunpack.c.l.b16 %v187
  %v1331 = vunpack.c.l.b16 %v188
  %v1332 = vunpack.c.l.b16 %v189
  %v1333 = vunpack.c.l.b16 %v190
  %v1334 = vunpack.c.l.b16 %v191
  %v1335 = vunpack.c.l.b16 %v192
  %v1336 = vunpack.c.l.b16 %v193
  %v1337 = vunpack.c.l.b16 %v194
  %v1338 = vunpack.c.l.b16 %v195
  %v1339 = vunpack.c.l.b16 %v196
  %v1340 = vunpack.c.l.b16 %v197
  %v1341 = vunpack.c.l.b16 %v198
  %v1342 = vunpack.c.l.b16 %v199
  %v1343 = vunpack.c.l.b16 %v200
  %v1344 = vunpack.c.l.b16 %v201
  %v1345 = vunpack.c.l.b16 %v202
  %v1346 = vunpack.c.l.b16 %v203
  %v1347 = vunpack.c.l.b16 %v204
  %v1348 = vunpack.c.l.b16 %v205
  %v1349 = vunpack.c.l.b16 %v206
  %v1350 = vunpack.c.l.b16 %v207
  %v1351 = vunpack.c.l.b16 %v208
  %v1352 = vunpack.c.l.b16 %v209
  %v1353 = vunpack.c.l.b16 %v210
  %v1354 = vunpack.c.l.b16 %v211
  %v1355 = vunpack.c.l.b16 %v212
  %v1356 = vunpack.c.l.b16 %v213
  %v1357 = vunpack.c.l.b16 %v214
  %v1358 = vunpack.c.l.b16 %v215
  %v1359 = vunpack.c.l.b16 %v216
  %v1360 = vunpack.c.l.b16 %v217
  %v1361 = vunpack.c.l.b16 %v218
  %v1362 = vunpack.c.l.b16 %v219
  %v1363 = vunpack.c.l.b16 %v220
  %v1364 = vunpack.c.l.b16 %v221
  %v1365 = vunpack.c.l.b16 %v222
  %v1366 = vunpack.c.l.b16 %v223
  %v1367 = vunpack.c.l.b16 %v224
  %v1368 = vunpack.c.l.b16 %v225
  %v1369 = vunpack.c.l.b16 %v226
  %v1370 = vunpack.c.l.b16 %v227
  %v1371 = vunpack.c.l.b16 %v228
  %v1372 = vunpack.c.l.b16 %v229
  %v1373 = vunpack.c.l.b16 %v230
  %v1374 = vunpack.c.l.b16 %v231
  %v1375 = vunpack.c.l.b16 %v232
  %v1376 = vunpack.c.l.b16 %v233
  %v1377 = vunpack.c.l.b16 %v234
  %v1378 = vunpack.c.l.b16 %v235
  %v1379 = vunpack.c.l.b16 %v236
  %v1380 = vunpack.c.l.b16 %v237
  %v1381 = vunpack.c.l.b16 %v238
  %v1382 = vunpack.c.l.b16 %v239
  %v1383 = vunpack.c.l.b16 %v240
  %v1384 = vunpack.c.l.b16 %v241
  %v1385 = vunpack.c.l.b16 %v242
  %v1386 = vunpack.c.l.b16 %v243
  %v1387 = vunpack.c.l.b16 %v244
  %v1388 = vunpack.c.l.b16 %v245
  %v1389 = vunpack.c.l.b16 %v246
  %v1390 = vunpack.c.l.b16 %v247
  %v1391 = vunpack.c.l.b16 %v248
  %v1392 = vunpack.c.l.b16 %v249
  %v1393 = vunpack.c.l.b16 %v250
  %v1394 = vunpack.c.l.b16 %v251
  %v1395 = vunpack.c.l.b16 %v252
  %v1396 = vunpack.c.l.b16 %v253
  %v1397 = vunpack.c.l.b16 %v254
  %v1398 = vunpack.c.l.b16 %v255
  %v1399 = vunpack.c.l.b16 %v256
  %v1400 = vunpack.c.l.b16 %v257
  %v1401 = vunpack.c.l.b16 %v258
  %v1402 = vunpack.c.l.b16 %v259
  %v1403 = vunpack.c.l.b16 %v260
  %v1404 = vunpack.c.l.b16 %v261
  %v1405 = vunpack.c.l.b16 %v262
  %v1406 = vunpack.c.l.b16 %v263
  %v1407 = vunpack.c.l.b16 %v264
  %v1408 = vunpack.c.l.b16 %v265
  %v1409 = vunpack.c.l.b16 %v266
  %v1410 = vunpack.c.l.b16 %v267
  %v1411 = vunpack.c.l.b16 %v268
  %v1412 = vunpack.c.l.b16 %v269
  %v1413 = vunpack.c.l.b16 %v270
  %v1414 = vunpack.c.l.b16 %v271
  %v1415 = vunpack.c.l.b16 %v272
  %v1416 = vunpack.c.l.b16 %v273
  %v1417 = vunpack.c.l.b16 %v274
  %v1418 = vunpack.c.l.b16 %v275
  %v1419 = vunpack.c.l.b16 %v276
  %v1420 = vunpack.c.l.b16 %v277
  %v1421 = vunpack.c.l.b16 %v278
  %v1422 = vunpack.c.l.b16 %v279
  %v1423 = vunpack.c.l.b16 %v280
  %v1424 = vunpack.c.l.b16 %v281
  %v1425 = vunpack.c.l.b16 %v282
  %v1426 = vunpack.c.l.b16 %v283
  %v1427 = vunpack.c.l.b16 %v284
  %v1428 = vunpack.c.l.b16 %v285
  %v1429 = vunpack.c.l.b16 %v286
  %v1430 = vunpack.c.l.b16 %v287
  %v1431 = vunpack.c.l.b16 %v288
  %v1432 = vunpack.c.l.b16 %v289
  %v1433 = vunpack.c.l.b16 %v290
  %v1434 = vunpack.c.l.b16 %v291
  %v1435 = vunpack.c.l.b16 %v292
  %v1436 = vunpack.c.l.b16 %v293
  %v1437 = vunpack.c.l.b16 %v294
  %v1438 = vunpack.c.l.b16 %v295
  %v1439 = vunpack.c.l.b16 %v296
  %v1440 = vunpack.c.l.b16 %v297
  %v1441 = vunpack.c.l.b16 %v298
  %v1442 = vunpack.c.l.b16 %v299
  %v1443 = vunpack.c.l.b16 %v300
  %v1444 = vunpack.c.l.b16 %v301
  %v1445 = vunpack.c.l.b16 %v302
  %v1446 = vunpack.c.l.b16 %v303
  %v1447 = vunpack.c.l.b16 %v304
  %v1448 = vunpack.c.l.b16 %v305
  %v1449 = vunpack.c.l.b16 %v306
  %v1450 = vunpack.c.l.b16 %v307
  %v1451 = vunpack.c.l.b16 %v308
  %v1452 = vunpack.c.l.b16 %v309
  %v1453 = vunpack.c.l.b16 %v310
  %v1454 = vunpack.c.l.b16 %v311
  %v1455 = vunpack.c.l.b16 %v312
  %v1456 = vunpack.c.l.b16 %v313
  %v1457 = vunpack.c.l.b16 %v314
  %v1458 = vunpack.c.l.b16 %v315
  %v1459 = vunpack.c.l.b16 %v316
  %v1460 = vunpack.c.l.b16 %v317
  %v1461 = vunpack.c.l.b16 %v318
  %v1462 = vunpack.c.l.b16 %v319
  %v1463 = vunpack.c.l.b16 %v320
  %v1464 = vunpack.c.l.b16 %v321
  %v1465 = vunpack.c.l.b16 %v322
  %v1466 = vunpack.c.l.b16 %v323
  %v1467 = vunpack.c.l.b16 %v324
  %v1468 = vunpack.c.l.b16 %v325
  %v1469 = vunpack.c.l.b16 %v326
  %v1470 = vunpack.c.l.b16 %v327
  %v1471 = vunpack.c.l.b16 %v328
  %v1472 = vunpack.c.l.b16 %v329
  %v1473 = vunpack.c.l.b16 %v330
  %v1474 = vunpack.c.l.b16 %v331
  %v1475 = vunpack.c.l.b16 %v332
  %v1476 = vunpack.c.l.b16 %v333
  %v1477 = vunpack.c.l.b16 %v334
  %v1478 = vunpack.c.l.b16 %v335
  %v1479 = vunpack.c.l.b16 %v336
  %v1480 = vunpack.c.l.b16 %v337
  %v1481 = vunpack.c.l.b16 %v338
  %v1482 = vunpack.c.l.b16 %v339
  %v1483 = vunpack.c.l.b16 %v340
  %v1484 = vunpack.c.l.b16 %v341
  %v1485 = vunpack.c.l.b16 %v342
  %v1486 = vunpack.c.l.b16 %v343
  %v1487 = vunpack.c.l.b16 %v344
  %v1488 = vunpack.c.l.b16 %v345
  %v1489 = vunpack.c.l.b16 %v346
  %v1490 = vunpack.c.l.b16 %v347
  %v1491 = vunpack.c.l.b16 %v348
  %v1492 = vunpack.c.l.b16 %v349
  %v1493 = vunpack.c.l.b16 %v350
  %v1494 = vunpack.c.l.b16 %v351
  %v1495 = vunpack.c.l.b16 %v352
  %v1496 = vunpack.c.l.b16 %v353
  %v1497 = vunpack.c.l.b16 %v354
  %v1498 = vunpack.c.l.b16 %v355
  %v1499 = vunpack.c.l.b16 %v356
  %v1500 = vunpack.c.l.b16 %v357
  %v1501 = vunpack.c.l.b16 %v358
  %v1502 = vunpack.c.l.b16 %v359
  %v1503 = vunpack.c.l.b16 %v360
  %v1504 = vunpack.c.l.b16 %v361
  %v1505 = vunpack.c.l.b16 %v362
  %v1506 = vunpack.c.l.b16 %v363
  %v1507 = vunpack.c.l.b16 %v364
  %v1508 = vunpack.c.l.b16 %v365
  %v1509 = vunpack.c.l.b16 %v366
  %v1510 = vunpack.c.l.b16 %v367
  %v1511 = vunpack.c.l.b16 %v368
  %v1512 = vunpack.c.l.b16 %v369
  %v1513 = vunpack.c.l.b16 %v370
  %v1514 = vunpack.c.l.b16 %v371
  %v1515 = vunpack.c.l.b16 %v372
  %v1516 = vunpack.c.l.b16 %v373
  %v1517 = vunpack.c.l.b16 %v374
  %v1518 = vunpack.c.l.b16 %v375
  %v1519 = vunpack.c.l.b16 %v376
  %v1520 = vunpack.c.l.b16 %v377
  %v1521 = vunpack.c.l.b16 %v378
  %v1522 = vunpack.c.l.b16 %v379
  %v1523 = vunpack.c.l.b16 %v380
  %v1524 = vunpack.c.l.b16 %v381
  %v1525 = vunpack.c.l.b16 %v382
  %v1526 = vunpack.c.l.b16 %v383
  %v1527 = vunpack.c.l.b16 %v384
  %v1528 = vunpack.c.l.b16 %v385
  %v1529 = vunpack.c.l.b16 %v386
  %v1530 = vunpack.c.l.b16 %v387
  %v1531 = vunpack.c.l.b16 %v388
  %v1532 = vunpack.c.l.b16 %v389
  %v1533 = vunpack.c.l.b16 %v390
  %v1534 = vunpack.c.l.b16 %v391
  %v1535 = vunpack.c.l.b16 %v392
  %v1536 = vunpack.c.l.b16 %v393
  %v1537 = vunpack.c.l.b16 %v394
  %v1538 = vunpack.c.l.b16 %v395
  %v1539 = vunpack.c.l.b16 %v396
  %v1540 = vunpack.c.l.b16 %v397
  %v1541 = vunpack.c.l.b16 %v398
  %v1542 = vunpack.c.l.b16 %v399
  %v1543 = vunpack.c.l.b16 %v400
  %v1544 = vunpack.c.l.b16 %v401
  %v1545 = vunpack.c.l.b16 %v402
  %v1546 = vunpack.c.l.b16 %v403
  %v1547 = vunpack.c.l.b16 %v404
  %v1548 = vunpack.c.l.b16 %v405
  %v1549 = vunpack.c.l.b16 %v406
  %v1550 = vunpack.c.l.b16 %v407
  %v1551 = vunpack.c.l.b16 %v408
  %v1552 = vunpack.c.l.b16 %v409
  %v1553 = vunpack.c.l.b16 %v410
  %v1554 = vunpack.c.l.b16 %v411
  %v1555 = vunpack.c.l.b16 %v412
  %v1556 = vunpack.c.l.b16 %v413
  %v1557 = vunpack.c.l.b16 %v414
  %v1558 = vunpack.c.l.b16 %v415
  %v1559 = vunpack.c.l.b16 %v416
  %v1560 = vunpack.c.l.b16 %v417
  %v1561 = vunpack.c.l.b16 %v418
  %v1562 = vunpack.c.l.b16 %v419
  %v1563 = vunpack.c.l.b16 %v420
  %v1564 = vunpack.c.l.b16 %v421
  %v1565 = vunpack.c.l.b16 %v422
  %v1566 = vunpack.c.l.b16 %v423
  %v1567 = vunpack.c.l.b16 %v424
  %v1568 = vunpack.c.l.b16 %v425
  %v1569 = vunpack.c.l.b16 %v426
  %v1570 = vunpack.c.l.b16 %v427
  %v1571 = vunpack.c.l.b16 %v428
  %v1572 = vunpack.c.l.b16 %v429
  %v1573 = vunpack.c.l.b16 %v430
  %v1574 = vunpack.c.l.b16 %v431
  %v1575 = vunpack.c.l.b16 %v432
  %v1576 = vunpack.c.l.b16 %v433
  %v1577 = vunpack.c.l.b16 %v434
  %v1578 = vunpack.c.l.b16 %v435
  %v1579 = vunpack.c.l.b16 %v436
  %v1580 = vunpack.c.l.b16 %v437
  %v1581 = vunpack.c.l.b16 %v438
  %v1582 = vunpack.c.l.b16 %v439
  %v1583 = vunpack.c.l.b16 %v440
  %v1584 = vunpack.c.l.b16 %v441
  %v1585 = vunpack.c.l.b16 %v442
  %v1586 = vunpack.c.l.b16 %v443
  %v1587 = vunpack.c.l.b16 %v444
  %v1588 = vunpack.c.l.b16 %v445
  %v1589 = vunpack.c.l.b16 %v446
  %v1590 = vunpack.c.l.b16 %v447
  %v1591 = vunpack.c.l.b16 %v448
  %v1592 = vunpack.c.l.b16 %v449
  %v1593 = vunpack.c.l.b16 %v450
  %v1594 = vunpack.c.l.b16 %v451
  %v1595 = vunpack.c.l.b16 %v452
  %v1596 = vunpack.c.l.b16 %v453
  %v1597 = vunpack.c.l.b16 %v454
  %v1598 = vunpack.c.l.b16 %v455
  %v1599 = vunpack.c.l.b16 %v456
  %v1600 = vunpack.c.l.b16 %v457
  %v1601 = vunpack.c.l.b16 %v458
  %v1602 = vunpack.c.l.b16 %v459
  %v1603 = vunpack.c.l.b16 %v460
  %v1604 = vunpack.c.l.b16 %v461
  %v1605 = vunpack.c.l.b16 %v462
  %v1606 = vunpack.c.l.b16 %v463
  %v1607 = vunpack.c.l.b16 %v464
  %v1608 = vunpack.c.l.b16 %v465
  %v1609 = vunpack.c.l.b16 %v466
  %v1610 = vunpack.c.l.b16 %v467
  %v1611 = vunpack.c.l.b16 %v468
  %v1612 = vunpack.c.l.b16 %v469
  %v1613 = vunpack.c.l.b16 %v470
  %v1614 = vunpack.c.l.b16 %v471
  %v1615 = vunpack.c.l.b16 %v472
  %v1616 = vunpack.c.l.b16 %v473
  %v1617 = vunpack.c.l.b16 %v474
  %v1618 = vunpack.c.l.b16 %v475
  %v1619 = vunpack.c.l.b16 %v476
  %v1620 = vunpack.c.l.b16 %v477
  %v1621 = vunpack.c.l.b16 %v478
  %v1622 = vunpack.c.l.b16 %v479
  %v1623 = vunpack.c.l.b16 %v480
  %v1624 = vunpack.c.l.b16 %v481
  %v1625 = vunpack.c.l.b16 %v482
  %v1626 = vunpack.c.l.b16 %v483
  %v1627 = vunpack.c.l.b16 %v484
  %v1628 = vunpack.c.l.b16 %v485
  %v1629 = vunpack.c.l.b16 %v486
  %v1630 = vunpack.c.l.b16 %v487
  %v1631 = vunpack.c.l.b16 %v488
  %v1632 = vunpack.c.l.b16 %v489
  %v1633 = vunpack.c.l.b16 %v490
  %v1634 = vunpack.c.l.b16 %v491
  %v1635 = vunpack.c.l.b16 %v492
  %v1636 = vunpack.c.l.b16 %v493
  %v1637 = vunpack.c.l.b16 %v494
  %v1638 = vunpack.c.l.b16 %v495
  %v1639 = vunpack.c.l.b16 %v496
  %v1640 = vunpack.c.l.b16 %v497
  %v1641 = vunpack.c.l.b16 %v498
  %v1642 = vunpack.c.l.b16 %v499
  %v1643 = vunpack.c.l.b16 %v500
  %v1644 = vunpack.c.l.b16 %v501
  %v1645 = vunpack.c.l.b16 %v502
  %v1646 = vunpack.c.l.b16 %v503
  %v1647 = vunpack.c.l.b16 %v504
  %v1648 = vunpack.c.l.b16 %v505
  %v1649 = vunpack.c.l.b16 %v506
  %v1650 = vunpack.c.l.b16 %v507
  %v1651 = vunpack.c.l.b16 %v508
  %v1652 = vunpack.c.l.b16 %v509
  %v1653 = vunpack.c.l.b16 %v510
  %v1654 = vunpack.c.l.b16 %v511
  %v1655 = vunpack.c.l.b16 %v512
  %v1656 = vunpack.c.l.b16 %v513
  %v1657 = vunpack.c.l.b16 %v514
  %v1658 = vunpack.c.l.b16 %v515
  %v1659 = vunpack.c.l.b16 %v516
  %v1660 = vunpack.c.l.b16 %v517
  %v1661 = vunpack.c.l.b16 %v518
  %v1662 = vunpack.c.l.b16 %v519
  %v1663 = vunpack.c.l.b16 %v520
  %v1664 = vunpack.c.l.b16 %v521
  %v1665 = vunpack.c.l.b16 %v522
  %v1666 = vunpack.c.l.b16 %v523
  %v1667 = vunpack.c.l.b16 %v524
  %v1668 = vunpack.c.l.b16 %v525
  %v1669 = vunpack.c.l.b16 %v526
  %v1670 = vunpack.c.l.b16 %v527
  %v1671 = vunpack.c.l.b16 %v528
  %v1672 = vunpack.c.l.b16 %v529
  %v1673 = vunpack.c.l.b16 %v530
  %v1674 = vunpack.c.l.b16 %v531
  %v1675 = vunpack.c.l.b16 %v532
  %v1676 = vunpack.c.l.b16 %v533
  %v1677 = vunpack.c.l.b16 %v534
  %v1678 = vunpack.c.l.b16 %v535
  %v1679 = vunpack.c.l.b16 %v536
  %v1680 = vunpack.c.l.b16 %v537
  %v1681 = vunpack.c.l.b16 %v538
  %v1682 = vunpack.c.l.b16 %v539
  %v1683 = vunpack.c.l.b16 %v540
  %v1684 = vunpack.c.l.b16 %v541
  %v1685 = vunpack.c.l.b16 %v542
  %v1686 = vunpack.c.l.b16 %v543
  %v1687 = vunpack.c.l.b16 %v544
  %v1688 = vunpack.c.l.b16 %v545
  %v1689 = vunpack.c.l.b16 %v546
  %v1690 = vunpack.c.l.b16 %v547
  %v1691 = vunpack.c.l.b16 %v548
  %v1692 = vunpack.c.l.b16 %v549
  %v1693 = vunpack.c.l.b16 %v550
  %v1694 = vunpack.c.l.b16 %v551
  %v1695 = vunpack.c.l.b16 %v552
  %v1696 = vunpack.c.l.b16 %v553
  %v1697 = vunpack.c.l.b16 %v554
  %v1698 = vunpack.c.l.b16 %v555
  %v1699 = vunpack.c.l.b16 %v556
  %v1700 = vunpack.c.l.b16 %v557
  %v1701 = vunpack.c.l.b16 %v558
  %v1702 = vunpack.c.l.b16 %v559
  %v1703 = vunpack.c.l.b16 %v560
  %v1704 = vunpack.c.l.b16 %v561
  %v1705 = vunpack.c.l.b16 %v562
  %v1706 = vunpack.c.l.b16 %v563
  %v1707 = vunpack.c.l.b16 %v564
  %v1708 = vpack.c.b16 %v1197, %v1196
  %v1709 = vpack.c.b16 %v1199, %v1198
  %v1710 = vpack.c.b16 %v1201, %v1200
  %v1711 = vpack.c.b16 %v1203, %v1202
  %v1712 = vpack.c.b16 %v1205, %v1204
  %v1713 = vpack.c.b16 %v1207, %v1206
  %v1714 = vpack.c.b16 %v1209, %v1208
  %v1715 = vpack.c.b16 %v1211, %v1210
  %v1716 = vpack.c.b16 %v1213, %v1212
  %v1717 = vpack.c.b16 %v1215, %v1214
  %v1718 = vpack.c.b16 %v1217, %v1216
  %v1719 = vpack.c.b16 %v1219, %v1218
  %v1720 = vpack.c.b16 %v1221, %v1220
  %v1721 = vpack.c.b16 %v1223, %v1222
  %v1722 = vpack.c.b16 %v1225, %v1224
  %v1723 = vpack.c.b16 %v1227, %v1226
  %v1724 = vpack.c.b16 %v1229, %v1228
  %v1725 = vpack.c.b16 %v1231, %v1230
  %v1726 = vpack.c.b16 %v1233, %v1232
  %v1727 = vpack.c.b16 %v1235, %v1234
  %v1728 = vpack.c.b16 %v1237, %v1236
  %v1729 = vpack.c.b16 %v1239, %v1238
  %v1730 = vpack.c.b16 %v1241, %v1240
  %v1731 = vpack.c.b16 %v1243, %v1242
  %v1732 = vpack.c.b16 %v1245, %v1244
  %v1733 = vpack.c.b16 %v1247, %v1246
  %v1734 = vpack.c.b16 %v1249, %v1248
  %v1735 = vpack.c.b16 %v1251, %v1250
  %v1736 = vpack.c.b16 %v1253, %v1252
  %v1737 = vpack.c.b16 %v1255, %v1254
  %v1738 = vpack.c.b16 %v1257, %v1256
  %v1739 = vpack.c.b16 %v1259, %v1258
  %v1740 = vpack.c.b16 %v1261, %v1260
  %v1741 = vpack.c.b16 %v1263, %v1262
  %v1742 = vpack.c.b16 %v1265, %v1264
  %v1743 = vpack.c.b16 %v1267, %v1266
  %v1744 = vpack.c.b16 %v1269, %v1268
  %v1745 = vpack.c.b16 %v1271, %v1270
  %v1746 = vpack.c.b16 %v1273, %v1272
  %v1747 = vpack.c.b16 %v1275, %v1274
  %v1748 = vpack.c.b16 %v1277, %v1276
  %v1749 = vpack.c.b16 %v1279, %v1278
  %v1750 = vpack.c.b16 %v1281, %v1280
  %v1751 = vpack.c.b16 %v1283, %v1282
  %v1752 = vpack.c.b16 %v1285, %v1284
  %v1753 = vpack.c.b16 %v1287, %v1286
  %v1754 = vpack.c.b16 %v1289, %v1288
  %v1755 = vpack.c.b16 %v1291, %v1290
  %v1756 = vpack.c.b16 %v1293, %v1292
  %v1757 = vpack.c.b16 %v1295, %v1294
  %v1758 = vpack.c.b16 %v1297, %v1296
  %v1759 = vpack.c.b16 %v1299, %v1298
  %v1760 = vpack.c.b16 %v1301, %v1300
  %v1761 = vpack.c.b16 %v1303, %v1302
  %v1762 = vpack.c.b16 %v1305, %v1304
  %v1763 = vpack.c.b16 %v1307, %v1306
  %v1764 = vpack.c.b16 %v1309, %v1308
  %v1765 = vpack.c.b16 %v1311, %v1310
  %v1766 = vpack.c.b16 %v1313, %v1312
  %v1767 = vpack.c.b16 %v1315, %v1314
  %v1768 = vpack.c.b16 %v1317, %v1316
  %v1769 = vpack.c.b16 %v1319, %v1318
  %v1770 = vpack.c.b16 %v1321, %v1320
  %v1771 = vpack.c.b16 %v1323, %v1322
  %v1772 = vpack.c.b16 %v1325, %v1324
  %v1773 = vpack.c.b16 %v1327, %v1326
  %v1774 = vpack.c.b16 %v1329, %v1328
  %v1775 = vpack.c.b16 %v1331, %v1330
  %v1776 = vpack.c.b16 %v1333, %v1332
  %v1777 = vpack.c.b16 %v1335, %v1334
  %v1778 = vpack.c.b16 %v1337, %v1336
  %v1779 = vpack.c.b16 %v1339, %v1338
  %v1780 = vpack.c.b16 %v1341, %v1340
  %v1781 = vpack.c.b16 %v1343, %v1342
  %v1782 = vpack.c.b16 %v1345, %v1344
  %v1783 = vpack.c.b16 %v1347, %v1346
  %v1784 = vpack.c.b16 %v1349, %v1348
  %v1785 = vpack.c.b16 %v1351, %v1350
  %v1786 = vpack.c.b16 %v1353, %v1352
  %v1787 = vpack.c.b16 %v1355, %v1354
  %v1788 = vpack.c.b16 %v1357, %v1356
  %v1789 = vpack.c.b16 %v1359, %v1358
  %v1790 = vpack.c.b16 %v1361, %v1360
  %v1791 = vpack.c.b16 %v1363, %v1362
  %v1792 = vpack.c.b16 %v1365, %v1364
  %v1793 = vpack.c.b16 %v1367, %v1366
  %v1794 = vpack.c.b16 %v1369, %v1368
  %v1795 = vpack.c.b16 %v1371, %v1370
  %v1796 = vpack.c.b16 %v1373, %v1372
  %v1797 = vpack.c.b16 %v1375, %v1374
  %v1798 = vpack.c.b16 %v1377, %v1376
  %v1799 = vpack.c.b16 %v1379, %v1378
  %v1800 = vpack.c.b16 %v1381, %v1380
  %v1801 = vpack.c.b16 %v1383, %v1382
  %v1802 = vpack.c.b16 %v1385, %v1384
  %v1803 = vpack.c.b16 %v1387, %v1386
  %v1804 = vpack.c.b16 %v1389, %v1388
  %v1805 = vpack.c.b16 %v1391, %v1390
  %v1806 = vpack.c.b16 %v1393, %v1392
  %v1807 = vpack.c.b16 %v1395, %v1394
  %v1808 = vpack.c.b16 %v1397, %v1396
  %v1809 = vpack.c.b16 %v1399, %v1398
  %v1810 = vpack.c.b16 %v1401, %v1400
  %v1811 = vpack.c.b16 %v1403, %v1402
  %v1812 = vpack.c.b16 %v1405, %v1404
  %v1813 = vpack.c.b16 %v1407, %v1406
  %v1814 = vpack.c.b16 %v1409, %v1408
  %v1815 = vpack.c.b16 %v1411, %v1410
  %v1816 = vpack.c.b16 %v1413, %v1412
  %v1817 = vpack.c.b16 %v1415, %v1414
  %v1818 = vpack.c.b16 %v1417, %v1416
  %v1819 = vpack.c.b16 %v1419, %v1418
  %v1820 = vpack.c.b16 %v1421, %v1420
  %v1821 = vpack.c.b16 %v1423, %v1422
  %v1822 = vpack.c.b16 %v1425, %v1424
  %v1823 = vpack.c.b16 %v1427, %v1426
  %v1824 = vpack.c.b16 %v1429, %v1428
  %v1825 = vpack.c.b16 %v1431, %v1430
  %v1826 = vpack.c.b16 %v1433, %v1432
  %v1827 = vpack.c.b16 %v1435, %v1434
  %v1828 = vpack.c.b16 %v1437, %v1436
  %v1829 = vpack.c.b16 %v1439, %v1438
  %v1830 = vpack.c.b16 %v1441, %v1440
  %v1831 = vpack.c.b16 %v1443, %v1442
  %v1832 = vpack.c.b16 %v1445, %v1444
  %v1833 = vpack.c.b16 %v1447, %v1446
  %v1834 = vpack.c.b16 %v1449, %v1448
  %v1835 = vpack.c.b16 %v1451, %v1450
  %v1836 = vpack.c.b16 %v1453, %v1452
  %v1837 = vpack.c.b16 %v1455, %v1454
  %v1838 = vpack.c.b16 %v1457, %v1456
  %v1839 = vpack.c.b16 %v1459, %v1458
  %v1840 = vpack.c.b16 %v1461, %v1460
  %v1841 = vpack.c.b16 %v1463, %v1462
  %v1842 = vpack.c.b16 %v1465, %v1464
  %v1843 = vpack.c.b16 %v1467, %v1466
  %v1844 = vpack.c.b16 %v1469, %v1468
  %v1845 = vpack.c.b16 %v1471, %v1470
  %v1846 = vpack.c.b16 %v1473, %v1472
  %v1847 = vpack.c.b16 %v1475, %v1474
  %v1848 = vpack.c.b16 %v1477, %v1476
  %v1849 = vpack.c.b16 %v1479, %v1478
  %v1850 = vpack.c.b16 %v1481, %v1480
  %v1851 = vpack.c.b16 %v1483, %v1482
  %v1852 = vpack.c.b16 %v1485, %v1484
  %v1853 = vpack.c.b16 %v1487, %v1486
  %v1854 = vpack.c.b16 %v1489, %v1488
  %v1855 = vpack.c.b16 %v1491, %v1490
  %v1856 = vpack.c.b16 %v1493, %v1492
  %v1857 = vpack.c.b16 %v1495, %v1494
  %v1858 = vpack.c.b16 %v1497, %v1496
  %v1859 = vpack.c.b16 %v1499, %v1498
  %v1860 = vpack.c.b16 %v1501, %v1500
  %v1861 = vpack.c.b16 %v1503, %v1502
  %v1862 = vpack.c.b16 %v1505, %v1504
  %v1863 = vpack.c.b16 %v1507, %v1506
  %v1864 = vpack.c.b16 %v1509, %v1508
  %v1865 = vpack.c.b16 %v1511, %v1510
  %v1866 = vpack.c.b16 %v1513, %v1512
  %v1867 = vpack.c.b16 %v1515, %v1514
  %v1868 = vpack.c.b16 %v1517, %v1516
  %v1869 = vpack.c.b16 %v1519, %v1518
  %v1870 = vpack.c.b16 %v1521, %v1520
  %v1871 = vpack.c.b16 %v1523, %v1522
  %v1872 = vpack.c.b16 %v1525, %v1524
  %v1873 = vpack.c.b16 %v1527, %v1526
  %v1874 = vpack.c.b16 %v1529, %v1528
  %v1875 = vpack.c.b16 %v1531, %v1530
  %v1876 = vpack.c.b16 %v1533, %v1532
  %v1877 = vpack.c.b16 %v1535, %v1534
  %v1878 = vpack.c.b16 %v1537, %v1536
  %v1879 = vpack.c.b16 %v1539, %v1538
  %v1880 = vpack.c.b16 %v1541, %v1540
  %v1881 = vpack.c.b16 %v1543, %v1542
  %v1882 = vpack.c.b16 %v1545, %v1544
  %v1883 = vpack.c.b16 %v1547, %v1546
  %v1884 = vpack.c.b16 %v1549, %v1548
  %v1885 = vpack.c.b16 %v1551, %v1550
  %v1886 = vpack.c.b16 %v1553, %v1552
  %v1887 = vpack.c.b16 %v1555, %v1554
  %v1888 = vpack.c.b16 %v1557, %v1556
  %v1889 = vpack.c.b16 %v1559, %v1558
  %v1890 = vpack.c.b16 %v1561, %v1560
  %v1891 = vpack.c.b16 %v1563, %v1562
  %v1892 = vpack.c.b16 %v1565, %v1564
  %v1893 = vpack.c.b16 %v1567, %v1566
  %v1894 = vpack.c.b16 %v1569, %v1568
  %v1895 = vpack.c.b16 %v1571, %v1570
  %v1896 = vpack.c.b16 %v1573, %v1572
  %v1897 = vpack.c.b16 %v1575, %v1574
  %v1898 = vpack.c.b16 %v1577, %v1576
  %v1899 = vpack.c.b16 %v1579, %v1578
  %v1900 = vpack.c.b16 %v1581, %v1580
  %v1901 = vpack.c.b16 %v1583, %v1582
  %v1902 = vpack.c.b16 %v1585, %v1584
  %v1903 = vpack.c.b16 %v1587, %v1586
  %v1904 = vpack.c.b16 %v1589, %v1588
  %v1905 = vpack.c.b16 %v1591, %v1590
  %v1906 = vpack.c.b16 %v1593, %v1592
  %v1907 = vpack.c.b16 %v1595, %v1594
  %v1908 = vpack.c.b16 %v1597, %v1596
  %v1909 = vpack.c.b16 %v1599, %v1598
  %v1910 = vpack.c.b16 %v1601, %v1600
  %v1911 = vpack.c.b16 %v1603, %v1602
  %v1912 = vpack.c.b16 %v1605, %v1604
  %v1913 = vpack.c.b16 %v1607, %v1606
  %v1914 = vpack.c.b16 %v1609, %v1608
  %v1915 = vpack.c.b16 %v1611, %v1610
  %v1916 = vpack.c.b16 %v1613, %v1612
  %v1917 = vpack.c.b16 %v1615, %v1614
  %v1918 = vpack.c.b16 %v1617, %v1616
  %v1919 = vpack.c.b16 %v1619, %v1618
  %v1920 = vpack.c.b16 %v1621, %v1620
  %v1921 = vpack.c.b16 %v1623, %v1622
  %v1922 = vpack.c.b16 %v1625, %v1624
  %v1923 = vpack.c.b16 %v1627, %v1626
  %v1924 = vpack.c.b16 %v1629, %v1628
  %v1925 = vpack.c.b16 %v1631, %v1630
  %v1926 = vpack.c.b16 %v1633, %v1632
  %v1927 = vpack.c.b16 %v1635, %v1634
  %v1928 = vpack.c.b16 %v1637, %v1636
  %v1929 = vpack.c.b16 %v1639, %v1638
  %v1930 = vpack.c.b16 %v1641, %v1640
  %v1931 = vpack.c.b16 %v1643, %v1642
  %v1932 = vpack.c.b16 %v1645, %v1644
  %v1933 = vpack.c.b16 %v1647, %v1646
  %v1934 = vpack.c.b16 %v1649, %v1648
  %v1935 = vpack.c.b16 %v1651, %v1650
  %v1936 = vpack.c.b16 %v1653, %v1652
  %v1937 = vpack.c.b16 %v1655, %v1654
  %v1938 = vpack.c.b16 %v1657, %v1656
  %v1939 = vpack.c.b16 %v1659, %v1658
  %v1940 = vpack.c.b16 %v1661, %v1660
  %v1941 = vpack.c.b16 %v1663, %v1662
  %v1942 = vpack.c.b16 %v1665, %v1664
  %v1943 = vpack.c.b16 %v1667, %v1666
  %v1944 = vpack.c.b16 %v1669, %v1668
  %v1945 = vpack.c.b16 %v1671, %v1670
  %v1946 = vpack.c.b16 %v1673, %v1672
  %v1947 = vpack.c.b16 %v1675, %v1674
  %v1948 = vpack.c.b16 %v1677, %v1676
  %v1949 = vpack.c.b16 %v1679, %v1678
  %v1950 = vpack.c.b16 %v1681, %v1680
  %v1951 = vpack.c.b16 %v1683, %v1682
  %v1952 = vpack.c.b16 %v1685, %v1684
  %v1953 = vpack.c.b16 %v1687, %v1686
  %v1954 = vpack.c.b16 %v1689, %v1688
  %v1955 = vpack.c.b16 %v1691, %v1690
  %v1956 = vpack.c.b16 %v1693, %v1692
  %v1957 = vpack.c.b16 %v1695, %v1694
  %v1958 = vpack.c.b16 %v1697, %v1696
  %v1959 = vpack.c.b16 %v1699, %v1698
  %v1960 = vpack.c.b16 %v1701, %v1700
  %v1961 = vpack.c.b16 %v1703, %v1702
  %v1962 = vpack.c.b16 %v1705, %v1704
  %v1963 = vpack.c.b16 %v1707, %v1706
  %2220 = vmatprep.subr.bf16.mxu0 0
  %2221 = vmatpush1.bf16.msra.mxu0 %v1708
  %2222 = vmatprep.subr.bf16.mxu0 0
  %2223 = vmatpush1.bf16.msra.mxu0 %v1709
  %2224 = vmatprep.subr.bf16.mxu0 0
  %2225 = vmatpush1.bf16.msra.mxu0 %v1710
  %2226 = vmatprep.subr.bf16.mxu0 0
  %2227 = vmatpush1.bf16.msra.mxu0 %v1711
  %2228 = vmatprep.subr.bf16.mxu0 0
  %2229 = vmatpush1.bf16.msra.mxu0 %v1712
  %2230 = vmatprep.subr.bf16.mxu0 0
  %2231 = vmatpush1.bf16.msra.mxu0 %v1713
  %2232 = vmatprep.subr.bf16.mxu0 0
  %2233 = vmatpush1.bf16.msra.mxu0 %v1714
  %2234 = vmatprep.subr.bf16.mxu0 0
  %2235 = vmatpush1.bf16.msra.mxu0 %v1715
  %2236 = vmatprep.subr.bf16.mxu0 0
  %2237 = vmatpush1.bf16.msra.mxu0 %v1716
  %2238 = vmatprep.subr.bf16.mxu0 0
  %2239 = vmatpush1.bf16.msra.mxu0 %v1717
  %2240 = vmatprep.subr.bf16.mxu0 0
  %2241 = vmatpush1.bf16.msra.mxu0 %v1718
  %2242 = vmatprep.subr.bf16.mxu0 0
  %2243 = vmatpush1.bf16.msra.mxu0 %v1719
  %2244 = vmatprep.subr.bf16.mxu0 0
  %2245 = vmatpush1.bf16.msra.mxu0 %v1720
  %2246 = vmatprep.subr.bf16.mxu0 0
  %2247 = vmatpush1.bf16.msra.mxu0 %v1721
  %2248 = vmatprep.subr.bf16.mxu0 0
  %2249 = vmatpush1.bf16.msra.mxu0 %v1722
  %2250 = vmatprep.subr.bf16.mxu0 0
  %2251 = vmatpush1.bf16.msra.mxu0 %v1723
  %2252 = vmatprep.mubr.bf16.mxu0 %v621
  %2253 = vmatmul.mubr.bf16.gmra.mrb[0].mxu0 %v620
  %v2254 = vpop.f32.mrb[0].mxu0
  %v2255 = vadd.f32 %v570, %v2254
  %v2256 = vpop.f32.mrb[0].mxu0
  %v2257 = vpop.f32.mrb[0].mxu0
  %v2258 = vpop.f32.mrb[0].mxu0
  %2259 = vdwg.mxu0
  %2260 = vmatprep.subr.bf16.mxu0 0
  %2261 = vmatpush1.bf16.msra.mxu0 %v1724
  %2262 = vmatprep.subr.bf16.mxu0 0
  %2263 = vmatpush1.bf16.msra.mxu0 %v1725
  %2264 = vmatprep.subr.bf16.mxu0 0
  %2265 = vmatpush1.bf16.msra.mxu0 %v1726
  %2266 = vmatprep.subr.bf16.mxu0 0
  %2267 = vmatpush1.bf16.msra.mxu0 %v1727
  %2268 = vmatprep.subr.bf16.mxu0 0
  %2269 = vmatpush1.bf16.msra.mxu0 %v1728
  %2270 = vmatprep.subr.bf16.mxu0 0
  %2271 = vmatpush1.bf16.msra.mxu0 %v1729
  %2272 = vmatprep.subr.bf16.mxu0 0
  %2273 = vmatpush1.bf16.msra.mxu0 %v1730
  %2274 = vmatprep.subr.bf16.mxu0 0
  %2275 = vmatpush1.bf16.msra.mxu0 %v1731
  %2276 = vmatprep.subr.bf16.mxu0 0
  %2277 = vmatpush1.bf16.msra.mxu0 %v1732
  %2278 = vmatprep.subr.bf16.mxu0 0
  %2279 = vmatpush1.bf16.msra.mxu0 %v1733
  %2280 = vmatprep.subr.bf16.mxu0 0
  %2281 = vmatpush1.bf16.msra.mxu0 %v1734
  %2282 = vmatprep.subr.bf16.mxu0 0
  %2283 = vmatpush1.bf16.msra.mxu0 %v1735
  %2284 = vmatprep.subr.bf16.mxu0 0
  %2285 = vmatpush1.bf16.msra.mxu0 %v1736
  %2286 = vmatprep.subr.bf16.mxu0 0
  %2287 = vmatpush1.bf16.msra.mxu0 %v1737
  %2288 = vmatprep.subr.bf16.mxu0 0
  %2289 = vmatpush1.bf16.msra.mxu0 %v1738
  %2290 = vmatprep.subr.bf16.mxu0 0
  %2291 = vmatpush1.bf16.msra.mxu0 %v1739
  %2292 = vmatprep.mubr.bf16.mxu0 %v623
  %2293 = vmatmul.mubr.bf16.gmra.mrb[0].mxu0 %v622
  %v2294 = vpop.f32.mrb[0].mxu0
  %v2295 = vadd.f32 %v2255, %v2294
  %v2296 = vpop.f32.mrb[0].mxu0
  %v2297 = vpop.f32.mrb[0].mxu0
  %v2298 = vpop.f32.mrb[0].mxu0
  %2299 = vdwg.mxu0
  %2300 = vmatprep.subr.bf16.mxu0 0
  %2301 = vmatpush1.bf16.msra.mxu0 %v1740
  %2302 = vmatprep.subr.bf16.mxu0 0
  %2303 = vmatpush1.bf16.msra.mxu0 %v1741
  %2304 = vmatprep.subr.bf16.mxu0 0
  %2305 = vmatpush1.bf16.msra.mxu0 %v1742
  %2306 = vmatprep.subr.bf16.mxu0 0
  %2307 = vmatpush1.bf16.msra.mxu0 %v1743
  %2308 = vmatprep.subr.bf16.mxu0 0
  %2309 = vmatpush1.bf16.msra.mxu0 %v1744
  %2310 = vmatprep.subr.bf16.mxu0 0
  %2311 = vmatpush1.bf16.msra.mxu0 %v1745
  %2312 = vmatprep.subr.bf16.mxu0 0
  %2313 = vmatpush1.bf16.msra.mxu0 %v1746
  %2314 = vmatprep.subr.bf16.mxu0 0
  %2315 = vmatpush1.bf16.msra.mxu0 %v1747
  %2316 = vmatprep.subr.bf16.mxu0 0
  %2317 = vmatpush1.bf16.msra.mxu0 %v1748
  %2318 = vmatprep.subr.bf16.mxu0 0
  %2319 = vmatpush1.bf16.msra.mxu0 %v1749
  %2320 = vmatprep.subr.bf16.mxu0 0
  %2321 = vmatpush1.bf16.msra.mxu0 %v1750
  %2322 = vmatprep.subr.bf16.mxu0 0
  %2323 = vmatpush1.bf16.msra.mxu0 %v1751
  %2324 = vmatprep.subr.bf16.mxu0 0
  %2325 = vmatpush1.bf16.msra.mxu0 %v1752
  %2326 = vmatprep.subr.bf16.mxu0 0
  %2327 = vmatpush1.bf16.msra.mxu0 %v1753
  %2328 = vmatprep.subr.bf16.mxu0 0
  %2329 = vmatpush1.bf16.msra.mxu0 %v1754
  %2330 = vmatprep.subr.bf16.mxu0 0
  %2331 = vmatpush1.bf16.msra.mxu0 %v1755
  %2332 = vmatprep.mubr.bf16.mxu0 %v625
  %2333 = vmatmul.mubr.bf16.gmra.mrb[0].mxu0 %v624
  %v2334 = vpop.f32.mrb[0].mxu0
  %v2335 = vadd.f32 %v2295, %v2334
  %v2336 = vpop.f32.mrb[0].mxu0
  %v2337 = vpop.f32.mrb[0].mxu0
  %v2338 = vpop.f32.mrb[0].mxu0
  %2339 = vdwg.mxu0
  %2340 = vmatprep.subr.bf16.mxu0 0
  %2341 = vmatpush1.bf16.msra.mxu0 %v1756
  %2342 = vmatprep.subr.bf16.mxu0 0
  %2343 = vmatpush1.bf16.msra.mxu0 %v1757
  %2344 = vmatprep.subr.bf16.mxu0 0
  %2345 = vmatpush1.bf16.msra.mxu0 %v1758
  %2346 = vmatprep.subr.bf16.mxu0 0
  %2347 = vmatpush1.bf16.msra.mxu0 %v1759
  %2348 = vmatprep.subr.bf16.mxu0 0
  %2349 = vmatpush1.bf16.msra.mxu0 %v1760
  %2350 = vmatprep.subr.bf16.mxu0 0
  %2351 = vmatpush1.bf16.msra.mxu0 %v1761
  %2352 = vmatprep.subr.bf16.mxu0 0
  %2353 = vmatpush1.bf16.msra.mxu0 %v1762
  %2354 = vmatprep.subr.bf16.mxu0 0
  %2355 = vmatpush1.bf16.msra.mxu0 %v1763
  %2356 = vmatprep.subr.bf16.mxu0 0
  %2357 = vmatpush1.bf16.msra.mxu0 %v1764
  %2358 = vmatprep.subr.bf16.mxu0 0
  %2359 = vmatpush1.bf16.msra.mxu0 %v1765
  %2360 = vmatprep.subr.bf16.mxu0 0
  %2361 = vmatpush1.bf16.msra.mxu0 %v1766
  %2362 = vmatprep.subr.bf16.mxu0 0
  %2363 = vmatpush1.bf16.msra.mxu0 %v1767
  %2364 = vmatprep.subr.bf16.mxu0 0
  %2365 = vmatpush1.bf16.msra.mxu0 %v1768
  %2366 = vmatprep.subr.bf16.mxu0 0
  %2367 = vmatpush1.bf16.msra.mxu0 %v1769
  %2368 = vmatprep.subr.bf16.mxu0 0
  %2369 = vmatpush1.bf16.msra.mxu0 %v1770
  %2370 = vmatprep.subr.bf16.mxu0 0
  %2371 = vmatpush1.bf16.msra.mxu0 %v1771
  %2372 = vmatprep.mubr.bf16.mxu0 %v627
  %2373 = vmatmul.mubr.bf16.gmra.mrb[0].mxu0 %v626
  %v2374 = vpop.f32.mrb[0].mxu0
  %v2375 = vadd.f32 %v2335, %v2374
  %v2376 = vpop.f32.mrb[0].mxu0
  %v2377 = vpop.f32.mrb[0].mxu0
  %v2378 = vpop.f32.mrb[0].mxu0
  %2379 = vdwg.mxu0
  %2380 = vmatprep.subr.bf16.mxu0 0
  %2381 = vmatpush1.bf16.msra.mxu0 %v1772
  %2382 = vmatprep.subr.bf16.mxu0 0
  %2383 = vmatpush1.bf16.msra.mxu0 %v1773
  %2384 = vmatprep.subr.bf16.mxu0 0
  %2385 = vmatpush1.bf16.msra.mxu0 %v1774
  %2386 = vmatprep.subr.bf16.mxu0 0
  %2387 = vmatpush1.bf16.msra.mxu0 %v1775
  %2388 = vmatprep.subr.bf16.mxu0 0
  %2389 = vmatpush1.bf16.msra.mxu0 %v1776
  %2390 = vmatprep.subr.bf16.mxu0 0
  %2391 = vmatpush1.bf16.msra.mxu0 %v1777
  %2392 = vmatprep.subr.bf16.mxu0 0
  %2393 = vmatpush1.bf16.msra.mxu0 %v1778
  %2394 = vmatprep.subr.bf16.mxu0 0
  %2395 = vmatpush1.bf16.msra.mxu0 %v1779
  %2396 = vmatprep.subr.bf16.mxu0 0
  %2397 = vmatpush1.bf16.msra.mxu0 %v1780
  %2398 = vmatprep.subr.bf16.mxu0 0
  %2399 = vmatpush1.bf16.msra.mxu0 %v1781
  %2400 = vmatprep.subr.bf16.mxu0 0
  %2401 = vmatpush1.bf16.msra.mxu0 %v1782
  %2402 = vmatprep.subr.bf16.mxu0 0
  %2403 = vmatpush1.bf16.msra.mxu0 %v1783
  %2404 = vmatprep.subr.bf16.mxu0 0
  %2405 = vmatpush1.bf16.msra.mxu0 %v1784
  %2406 = vmatprep.subr.bf16.mxu0 0
  %2407 = vmatpush1.bf16.msra.mxu0 %v1785
  %2408 = vmatprep.subr.bf16.mxu0 0
  %2409 = vmatpush1.bf16.msra.mxu0 %v1786
  %2410 = vmatprep.subr.bf16.mxu0 0
  %2411 = vmatpush1.bf16.msra.mxu0 %v1787
  %2412 = vmatprep.mubr.bf16.mxu0 %v629
  %2413 = vmatmul.mubr.bf16.gmra.mrb[0].mxu0 %v628
  %v2414 = vpop.f32.mrb[0].mxu0
  %v2415 = vadd.f32 %v2375, %v2414
  %v2416 = vpop.f32.mrb[0].mxu0
  %v2417 = vpop.f32.mrb[0].mxu0
  %v2418 = vpop.f32.mrb[0].mxu0
  %2419 = vdwg.mxu0
  %2420 = vmatprep.subr.bf16.mxu0 0
  %2421 = vmatpush1.bf16.msra.mxu0 %v1788
  %2422 = vmatprep.subr.bf16.mxu0 0
  %2423 = vmatpush1.bf16.msra.mxu0 %v1789
  %2424 = vmatprep.subr.bf16.mxu0 0
  %2425 = vmatpush1.bf16.msra.mxu0 %v1790
  %2426 = vmatprep.subr.bf16.mxu0 0
  %2427 = vmatpush1.bf16.msra.mxu0 %v1791
  %2428 = vmatprep.subr.bf16.mxu0 0
  %2429 = vmatpush1.bf16.msra.mxu0 %v1792
  %2430 = vmatprep.subr.bf16.mxu0 0
  %2431 = vmatpush1.bf16.msra.mxu0 %v1793
  %2432 = vmatprep.subr.bf16.mxu0 0
  %2433 = vmatpush1.bf16.msra.mxu0 %v1794
  %2434 = vmatprep.subr.bf16.mxu0 0
  %2435 = vmatpush1.bf16.msra.mxu0 %v1795
  %2436 = vmatprep.subr.bf16.mxu0 0
  %2437 = vmatpush1.bf16.msra.mxu0 %v1796
  %2438 = vmatprep.subr.bf16.mxu0 0
  %2439 = vmatpush1.bf16.msra.mxu0 %v1797
  %2440 = vmatprep.subr.bf16.mxu0 0
  %2441 = vmatpush1.bf16.msra.mxu0 %v1798
  %2442 = vmatprep.subr.bf16.mxu0 0
  %2443 = vmatpush1.bf16.msra.mxu0 %v1799
  %2444 = vmatprep.subr.bf16.mxu0 0
  %2445 = vmatpush1.bf16.msra.mxu0 %v1800
  %2446 = vmatprep.subr.bf16.mxu0 0
  %2447 = vmatpush1.bf16.msra.mxu0 %v1801
  %2448 = vmatprep.subr.bf16.mxu0 0
  %2449 = vmatpush1.bf16.msra.mxu0 %v1802
  %2450 = vmatprep.subr.bf16.mxu0 0
  %2451 = vmatpush1.bf16.msra.mxu0 %v1803
  %2452 = vmatprep.mubr.bf16.mxu0 %v631
  %2453 = vmatmul.mubr.bf16.gmra.mrb[0].mxu0 %v630
  %v2454 = vpop.f32.mrb[0].mxu0
  %v2455 = vadd.f32 %v2415, %v2454
  %v2456 = vpop.f32.mrb[0].mxu0
  %v2457 = vpop.f32.mrb[0].mxu0
  %v2458 = vpop.f32.mrb[0].mxu0
  %2459 = vdwg.mxu0
  %2460 = vmatprep.subr.bf16.mxu0 0
  %2461 = vmatpush1.bf16.msra.mxu0 %v1804
  %2462 = vmatprep.subr.bf16.mxu0 0
  %2463 = vmatpush1.bf16.msra.mxu0 %v1805
  %2464 = vmatprep.subr.bf16.mxu0 0
  %2465 = vmatpush1.bf16.msra.mxu0 %v1806
  %2466 = vmatprep.subr.bf16.mxu0 0
  %2467 = vmatpush1.bf16.msra.mxu0 %v1807
  %2468 = vmatprep.subr.bf16.mxu0 0
  %2469 = vmatpush1.bf16.msra.mxu0 %v1808
  %2470 = vmatprep.subr.bf16.mxu0 0
  %2471 = vmatpush1.bf16.msra.mxu0 %v1809
  %2472 = vmatprep.subr.bf16.mxu0 0
  %2473 = vmatpush1.bf16.msra.mxu0 %v1810
  %2474 = vmatprep.subr.bf16.mxu0 0
  %2475 = vmatpush1.bf16.msra.mxu0 %v1811
  %2476 = vmatprep.subr.bf16.mxu0 0
  %2477 = vmatpush1.bf16.msra.mxu0 %v1812
  %2478 = vmatprep.subr.bf16.mxu0 0
  %2479 = vmatpush1.bf16.msra.mxu0 %v1813
  %2480 = vmatprep.subr.bf16.mxu0 0
  %2481 = vmatpush1.bf16.msra.mxu0 %v1814
  %2482 = vmatprep.subr.bf16.mxu0 0
  %2483 = vmatpush1.bf16.msra.mxu0 %v1815
  %2484 = vmatprep.subr.bf16.mxu0 0
  %2485 = vmatpush1.bf16.msra.mxu0 %v1816
  %2486 = vmatprep.subr.bf16.mxu0 0
  %2487 = vmatpush1.bf16.msra.mxu0 %v1817
  %2488 = vmatprep.subr.bf16.mxu0 0
  %2489 = vmatpush1.bf16.msra.mxu0 %v1818
  %2490 = vmatprep.subr.bf16.mxu0 0
  %2491 = vmatpush1.bf16.msra.mxu0 %v1819
  %2492 = vmatprep.mubr.bf16.mxu0 %v633
  %2493 = vmatmul.mubr.bf16.gmra.mrb[0].mxu0 %v632
  %v2494 = vpop.f32.mrb[0].mxu0
  %v2495 = vadd.f32 %v2455, %v2494
  %v2496 = vpop.f32.mrb[0].mxu0
  %v2497 = vpop.f32.mrb[0].mxu0
  %v2498 = vpop.f32.mrb[0].mxu0
  %2499 = vdwg.mxu0
  %2500 = vmatprep.subr.bf16.mxu0 0
  %2501 = vmatpush1.bf16.msra.mxu0 %v1820
  %2502 = vmatprep.subr.bf16.mxu0 0
  %2503 = vmatpush1.bf16.msra.mxu0 %v1821
  %2504 = vmatprep.subr.bf16.mxu0 0
  %2505 = vmatpush1.bf16.msra.mxu0 %v1822
  %2506 = vmatprep.subr.bf16.mxu0 0
  %2507 = vmatpush1.bf16.msra.mxu0 %v1823
  %2508 = vmatprep.subr.bf16.mxu0 0
  %2509 = vmatpush1.bf16.msra.mxu0 %v1824
  %2510 = vmatprep.subr.bf16.mxu0 0
  %2511 = vmatpush1.bf16.msra.mxu0 %v1825
  %2512 = vmatprep.subr.bf16.mxu0 0
  %2513 = vmatpush1.bf16.msra.mxu0 %v1826
  %2514 = vmatprep.subr.bf16.mxu0 0
  %2515 = vmatpush1.bf16.msra.mxu0 %v1827
  %2516 = vmatprep.subr.bf16.mxu0 0
  %2517 = vmatpush1.bf16.msra.mxu0 %v1828
  %2518 = vmatprep.subr.bf16.mxu0 0
  %2519 = vmatpush1.bf16.msra.mxu0 %v1829
  %2520 = vmatprep.subr.bf16.mxu0 0
  %2521 = vmatpush1.bf16.msra.mxu0 %v1830
  %2522 = vmatprep.subr.bf16.mxu0 0
  %2523 = vmatpush1.bf16.msra.mxu0 %v1831
  %2524 = vmatprep.subr.bf16.mxu0 0
  %2525 = vmatpush1.bf16.msra.mxu0 %v1832
  %2526 = vmatprep.subr.bf16.mxu0 0
  %2527 = vmatpush1.bf16.msra.mxu0 %v1833
  %2528 = vmatprep.subr.bf16.mxu0 0
  %2529 = vmatpush1.bf16.msra.mxu0 %v1834
  %2530 = vmatprep.subr.bf16.mxu0 0
  %2531 = vmatpush1.bf16.msra.mxu0 %v1835
  %2532 = vmatprep.mubr.bf16.mxu0 %v635
  %2533 = vmatmul.mubr.bf16.gmra.mrb[0].mxu0 %v634
  %v2534 = vpop.f32.mrb[0].mxu0
  %v2535 = vadd.f32 %v2495, %v2534
  %v2536 = vpop.f32.mrb[0].mxu0
  %v2537 = vpop.f32.mrb[0].mxu0
  %v2538 = vpop.f32.mrb[0].mxu0
  %2539 = vdwg.mxu0
  %2540 = vmatprep.subr.bf16.mxu0 0
  %2541 = vmatpush1.bf16.msra.mxu0 %v1836
  %2542 = vmatprep.subr.bf16.mxu0 0
  %2543 = vmatpush1.bf16.msra.mxu0 %v1837
  %2544 = vmatprep.subr.bf16.mxu0 0
  %2545 = vmatpush1.bf16.msra.mxu0 %v1838
  %2546 = vmatprep.subr.bf16.mxu0 0
  %2547 = vmatpush1.bf16.msra.mxu0 %v1839
  %2548 = vmatprep.subr.bf16.mxu0 0
  %2549 = vmatpush1.bf16.msra.mxu0 %v1840
  %2550 = vmatprep.subr.bf16.mxu0 0
  %2551 = vmatpush1.bf16.msra.mxu0 %v1841
  %2552 = vmatprep.subr.bf16.mxu0 0
  %2553 = vmatpush1.bf16.msra.mxu0 %v1842
  %2554 = vmatprep.subr.bf16.mxu0 0
  %2555 = vmatpush1.bf16.msra.mxu0 %v1843
  %2556 = vmatprep.subr.bf16.mxu0 0
  %2557 = vmatpush1.bf16.msra.mxu0 %v1844
  %2558 = vmatprep.subr.bf16.mxu0 0
  %2559 = vmatpush1.bf16.msra.mxu0 %v1845
  %2560 = vmatprep.subr.bf16.mxu0 0
  %2561 = vmatpush1.bf16.msra.mxu0 %v1846
  %2562 = vmatprep.subr.bf16.mxu0 0
  %2563 = vmatpush1.bf16.msra.mxu0 %v1847
  %2564 = vmatprep.subr.bf16.mxu0 0
  %2565 = vmatpush1.bf16.msra.mxu0 %v1848
  %2566 = vmatprep.subr.bf16.mxu0 0
  %2567 = vmatpush1.bf16.msra.mxu0 %v1849
  %2568 = vmatprep.subr.bf16.mxu0 0
  %2569 = vmatpush1.bf16.msra.mxu0 %v1850
  %2570 = vmatprep.subr.bf16.mxu0 0
  %2571 = vmatpush1.bf16.msra.mxu0 %v1851
  %2572 = vmatprep.mubr.bf16.mxu0 %v637
  %2573 = vmatmul.mubr.bf16.gmra.mrb[0].mxu0 %v636
  %v2574 = vpop.f32.mrb[0].mxu0
  %v2575 = vadd.f32 %v2535, %v2574
  %v2576 = vpop.f32.mrb[0].mxu0
  %v2577 = vpop.f32.mrb[0].mxu0
  %v2578 = vpop.f32.mrb[0].mxu0
  %2579 = vdwg.mxu0
  %2580 = vmatprep.subr.bf16.mxu0 0
  %2581 = vmatpush1.bf16.msra.mxu0 %v1852
  %2582 = vmatprep.subr.bf16.mxu0 0
  %2583 = vmatpush1.bf16.msra.mxu0 %v1853
  %2584 = vmatprep.subr.bf16.mxu0 0
  %2585 = vmatpush1.bf16.msra.mxu0 %v1854
  %2586 = vmatprep.subr.bf16.mxu0 0
  %2587 = vmatpush1.bf16.msra.mxu0 %v1855
  %2588 = vmatprep.subr.bf16.mxu0 0
  %2589 = vmatpush1.bf16.msra.mxu0 %v1856
  %2590 = vmatprep.subr.bf16.mxu0 0
  %2591 = vmatpush1.bf16.msra.mxu0 %v1857
  %2592 = vmatprep.subr.bf16.mxu0 0
  %2593 = vmatpush1.bf16.msra.mxu0 %v1858
  %2594 = vmatprep.subr.bf16.mxu0 0
  %2595 = vmatpush1.bf16.msra.mxu0 %v1859
  %2596 = vmatprep.subr.bf16.mxu0 0
  %2597 = vmatpush1.bf16.msra.mxu0 %v1860
  %2598 = vmatprep.subr.bf16.mxu0 0
  %2599 = vmatpush1.bf16.msra.mxu0 %v1861
  %2600 = vmatprep.subr.bf16.mxu0 0
  %2601 = vmatpush1.bf16.msra.mxu0 %v1862
  %2602 = vmatprep.subr.bf16.mxu0 0
  %2603 = vmatpush1.bf16.msra.mxu0 %v1863
  %2604 = vmatprep.subr.bf16.mxu0 0
  %2605 = vmatpush1.bf16.msra.mxu0 %v1864
  %2606 = vmatprep.subr.bf16.mxu0 0
  %2607 = vmatpush1.bf16.msra.mxu0 %v1865
  %2608 = vmatprep.subr.bf16.mxu0 0
  %2609 = vmatpush1.bf16.msra.mxu0 %v1866
  %2610 = vmatprep.subr.bf16.mxu0 0
  %2611 = vmatpush1.bf16.msra.mxu0 %v1867
  %2612 = vmatprep.mubr.bf16.mxu0 %v639
  %2613 = vmatmul.mubr.bf16.gmra.mrb[0].mxu0 %v638
  %v2614 = vpop.f32.mrb[0].mxu0
  %v2615 = vadd.f32 %v2575, %v2614
  %v2616 = vpop.f32.mrb[0].mxu0
  %v2617 = vpop.f32.mrb[0].mxu0
  %v2618 = vpop.f32.mrb[0].mxu0
  %2619 = vdwg.mxu0
  %2620 = vmatprep.subr.bf16.mxu0 0
  %2621 = vmatpush1.bf16.msra.mxu0 %v1868
  %2622 = vmatprep.subr.bf16.mxu0 0
  %2623 = vmatpush1.bf16.msra.mxu0 %v1869
  %2624 = vmatprep.subr.bf16.mxu0 0
  %2625 = vmatpush1.bf16.msra.mxu0 %v1870
  %2626 = vmatprep.subr.bf16.mxu0 0
  %2627 = vmatpush1.bf16.msra.mxu0 %v1871
  %2628 = vmatprep.subr.bf16.mxu0 0
  %2629 = vmatpush1.bf16.msra.mxu0 %v1872
  %2630 = vmatprep.subr.bf16.mxu0 0
  %2631 = vmatpush1.bf16.msra.mxu0 %v1873
  %2632 = vmatprep.subr.bf16.mxu0 0
  %2633 = vmatpush1.bf16.msra.mxu0 %v1874
  %2634 = vmatprep.subr.bf16.mxu0 0
  %2635 = vmatpush1.bf16.msra.mxu0 %v1875
  %2636 = vmatprep.subr.bf16.mxu0 0
  %2637 = vmatpush1.bf16.msra.mxu0 %v1876
  %2638 = vmatprep.subr.bf16.mxu0 0
  %2639 = vmatpush1.bf16.msra.mxu0 %v1877
  %2640 = vmatprep.subr.bf16.mxu0 0
  %2641 = vmatpush1.bf16.msra.mxu0 %v1878
  %2642 = vmatprep.subr.bf16.mxu0 0
  %2643 = vmatpush1.bf16.msra.mxu0 %v1879
  %2644 = vmatprep.subr.bf16.mxu0 0
  %2645 = vmatpush1.bf16.msra.mxu0 %v1880
  %2646 = vmatprep.subr.bf16.mxu0 0
  %2647 = vmatpush1.bf16.msra.mxu0 %v1881
  %2648 = vmatprep.subr.bf16.mxu0 0
  %2649 = vmatpush1.bf16.msra.mxu0 %v1882
  %2650 = vmatprep.subr.bf16.mxu0 0
  %2651 = vmatpush1.bf16.msra.mxu0 %v1883
  %2652 = vmatprep.mubr.bf16.mxu0 %v641
  %2653 = vmatmul.mubr.bf16.gmra.mrb[0].mxu0 %v640
  %v2654 = vpop.f32.mrb[0].mxu0
  %v2655 = vadd.f32 %v2615, %v2654
  %v2656 = vpop.f32.mrb[0].mxu0
  %v2657 = vpop.f32.mrb[0].mxu0
  %v2658 = vpop.f32.mrb[0].mxu0
  %2659 = vdwg.mxu0
  %2660 = vmatprep.subr.bf16.mxu0 0
  %2661 = vmatpush1.bf16.msra.mxu0 %v1884
  %2662 = vmatprep.subr.bf16.mxu0 0
  %2663 = vmatpush1.bf16.msra.mxu0 %v1885
  %2664 = vmatprep.subr.bf16.mxu0 0
  %2665 = vmatpush1.bf16.msra.mxu0 %v1886
  %2666 = vmatprep.subr.bf16.mxu0 0
  %2667 = vmatpush1.bf16.msra.mxu0 %v1887
  %2668 = vmatprep.subr.bf16.mxu0 0
  %2669 = vmatpush1.bf16.msra.mxu0 %v1888
  %2670 = vmatprep.subr.bf16.mxu0 0
  %2671 = vmatpush1.bf16.msra.mxu0 %v1889
  %2672 = vmatprep.subr.bf16.mxu0 0
  %2673 = vmatpush1.bf16.msra.mxu0 %v1890
  %2674 = vmatprep.subr.bf16.mxu0 0
  %2675 = vmatpush1.bf16.msra.mxu0 %v1891
  %2676 = vmatprep.subr.bf16.mxu0 0
  %2677 = vmatpush1.bf16.msra.mxu0 %v1892
  %2678 = vmatprep.subr.bf16.mxu0 0
  %2679 = vmatpush1.bf16.msra.mxu0 %v1893
  %2680 = vmatprep.subr.bf16.mxu0 0
  %2681 = vmatpush1.bf16.msra.mxu0 %v1894
  %2682 = vmatprep.subr.bf16.mxu0 0
  %2683 = vmatpush1.bf16.msra.mxu0 %v1895
  %2684 = vmatprep.subr.bf16.mxu0 0
  %2685 = vmatpush1.bf16.msra.mxu0 %v1896
  %2686 = vmatprep.subr.bf16.mxu0 0
  %2687 = vmatpush1.bf16.msra.mxu0 %v1897
  %2688 = vmatprep.subr.bf16.mxu0 0
  %2689 = vmatpush1.bf16.msra.mxu0 %v1898
  %2690 = vmatprep.subr.bf16.mxu0 0
  %2691 = vmatpush1.bf16.msra.mxu0 %v1899
  %2692 = vmatprep.mubr.bf16.mxu0 %v643
  %2693 = vmatmul.mubr.bf16.gmra.mrb[0].mxu0 %v642
  %v2694 = vpop.f32.mrb[0].mxu0
  %v2695 = vadd.f32 %v2655, %v2694
  %v2696 = vpop.f32.mrb[0].mxu0
  %v2697 = vpop.f32.mrb[0].mxu0
  %v2698 = vpop.f32.mrb[0].mxu0
  %2699 = vdwg.mxu0
  %2700 = vmatprep.subr.bf16.mxu0 0
  %2701 = vmatpush1.bf16.msra.mxu0 %v1900
  %2702 = vmatprep.subr.bf16.mxu0 0
  %2703 = vmatpush1.bf16.msra.mxu0 %v1901
  %2704 = vmatprep.subr.bf16.mxu0 0
  %2705 = vmatpush1.bf16.msra.mxu0 %v1902
  %2706 = vmatprep.subr.bf16.mxu0 0
  %2707 = vmatpush1.bf16.msra.mxu0 %v1903
  %2708 = vmatprep.subr.bf16.mxu0 0
  %2709 = vmatpush1.bf16.msra.mxu0 %v1904
  %2710 = vmatprep.subr.bf16.mxu0 0
  %2711 = vmatpush1.bf16.msra.mxu0 %v1905
  %2712 = vmatprep.subr.bf16.mxu0 0
  %2713 = vmatpush1.bf16.msra.mxu0 %v1906
  %2714 = vmatprep.subr.bf16.mxu0 0
  %2715 = vmatpush1.bf16.msra.mxu0 %v1907
  %2716 = vmatprep.subr.bf16.mxu0 0
  %2717 = vmatpush1.bf16.msra.mxu0 %v1908
  %2718 = vmatprep.subr.bf16.mxu0 0
  %2719 = vmatpush1.bf16.msra.mxu0 %v1909
  %2720 = vmatprep.subr.bf16.mxu0 0
  %2721 = vmatpush1.bf16.msra.mxu0 %v1910
  %2722 = vmatprep.subr.bf16.mxu0 0
  %2723 = vmatpush1.bf16.msra.mxu0 %v1911
  %2724 = vmatprep.subr.bf16.mxu0 0
  %2725 = vmatpush1.bf16.msra.mxu0 %v1912
  %2726 = vmatprep.subr.bf16.mxu0 0
  %2727 = vmatpush1.bf16.msra.mxu0 %v1913
  %2728 = vmatprep.subr.bf16.mxu0 0
  %2729 = vmatpush1.bf16.msra.mxu0 %v1914
  %2730 = vmatprep.subr.bf16.mxu0 0
  %2731 = vmatpush1.bf16.msra.mxu0 %v1915
  %2732 = vmatprep.mubr.bf16.mxu0 %v645
  %2733 = vmatmul.mubr.bf16.gmra.mrb[0].mxu0 %v644
  %v2734 = vpop.f32.mrb[0].mxu0
  %v2735 = vadd.f32 %v2695, %v2734
  %v2736 = vpop.f32.mrb[0].mxu0
  %v2737 = vpop.f32.mrb[0].mxu0
  %v2738 = vpop.f32.mrb[0].mxu0
  %2739 = vdwg.mxu0
  %2740 = vmatprep.subr.bf16.mxu0 0
  %2741 = vmatpush1.bf16.msra.mxu0 %v1916
  %2742 = vmatprep.subr.bf16.mxu0 0
  %2743 = vmatpush1.bf16.msra.mxu0 %v1917
  %2744 = vmatprep.subr.bf16.mxu0 0
  %2745 = vmatpush1.bf16.msra.mxu0 %v1918
  %2746 = vmatprep.subr.bf16.mxu0 0
  %2747 = vmatpush1.bf16.msra.mxu0 %v1919
  %2748 = vmatprep.subr.bf16.mxu0 0
  %2749 = vmatpush1.bf16.msra.mxu0 %v1920
  %2750 = vmatprep.subr.bf16.mxu0 0
  %2751 = vmatpush1.bf16.msra.mxu0 %v1921
  %2752 = vmatprep.subr.bf16.mxu0 0
  %2753 = vmatpush1.bf16.msra.mxu0 %v1922
  %2754 = vmatprep.subr.bf16.mxu0 0
  %2755 = vmatpush1.bf16.msra.mxu0 %v1923
  %2756 = vmatprep.subr.bf16.mxu0 0
  %2757 = vmatpush1.bf16.msra.mxu0 %v1924
  %2758 = vmatprep.subr.bf16.mxu0 0
  %2759 = vmatpush1.bf16.msra.mxu0 %v1925
  %2760 = vmatprep.subr.bf16.mxu0 0
  %2761 = vmatpush1.bf16.msra.mxu0 %v1926
  %2762 = vmatprep.subr.bf16.mxu0 0
  %2763 = vmatpush1.bf16.msra.mxu0 %v1927
  %2764 = vmatprep.subr.bf16.mxu0 0
  %2765 = vmatpush1.bf16.msra.mxu0 %v1928
  %2766 = vmatprep.subr.bf16.mxu0 0
  %2767 = vmatpush1.bf16.msra.mxu0 %v1929
  %2768 = vmatprep.subr.bf16.mxu0 0
  %2769 = vmatpush1.bf16.msra.mxu0 %v1930
  %2770 = vmatprep.subr.bf16.mxu0 0
  %2771 = vmatpush1.bf16.msra.mxu0 %v1931
  %2772 = vmatprep.mubr.bf16.mxu0 %v647
  %2773 = vmatmul.mubr.bf16.gmra.mrb[0].mxu0 %v646
  %v2774 = vpop.f32.mrb[0].mxu0
  %v2775 = vadd.f32 %v2735, %v2774
  %v2776 = vpop.f32.mrb[0].mxu0
  %v2777 = vpop.f32.mrb[0].mxu0
  %v2778 = vpop.f32.mrb[0].mxu0
  %2779 = vdwg.mxu0
  %2780 = vmatprep.subr.bf16.mxu0 0
  %2781 = vmatpush1.bf16.msra.mxu0 %v1932
  %2782 = vmatprep.subr.bf16.mxu0 0
  %2783 = vmatpush1.bf16.msra.mxu0 %v1933
  %2784 = vmatprep.subr.bf16.mxu0 0
  %2785 = vmatpush1.bf16.msra.mxu0 %v1934
  %2786 = vmatprep.subr.bf16.mxu0 0
  %2787 = vmatpush1.bf16.msra.mxu0 %v1935
  %2788 = vmatprep.subr.bf16.mxu0 0
  %2789 = vmatpush1.bf16.msra.mxu0 %v1936
  %2790 = vmatprep.subr.bf16.mxu0 0
  %2791 = vmatpush1.bf16.msra.mxu0 %v1937
  %2792 = vmatprep.subr.bf16.mxu0 0
  %2793 = vmatpush1.bf16.msra.mxu0 %v1938
  %2794 = vmatprep.subr.bf16.mxu0 0
  %2795 = vmatpush1.bf16.msra.mxu0 %v1939
  %2796 = vmatprep.subr.bf16.mxu0 0
  %2797 = vmatpush1.bf16.msra.mxu0 %v1940
  %2798 = vmatprep.subr.bf16.mxu0 0
  %2799 = vmatpush1.bf16.msra.mxu0 %v1941
  %2800 = vmatprep.subr.bf16.mxu0 0
  %2801 = vmatpush1.bf16.msra.mxu0 %v1942
  %2802 = vmatprep.subr.bf16.mxu0 0
  %2803 = vmatpush1.bf16.msra.mxu0 %v1943
  %2804 = vmatprep.subr.bf16.mxu0 0
  %2805 = vmatpush1.bf16.msra.mxu0 %v1944
  %2806 = vmatprep.subr.bf16.mxu0 0
  %2807 = vmatpush1.bf16.msra.mxu0 %v1945
  %2808 = vmatprep.subr.bf16.mxu0 0
  %2809 = vmatpush1.bf16.msra.mxu0 %v1946
  %2810 = vmatprep.subr.bf16.mxu0 0
  %2811 = vmatpush1.bf16.msra.mxu0 %v1947
  %2812 = vmatprep.mubr.bf16.mxu0 %v649
  %2813 = vmatmul.mubr.bf16.gmra.mrb[0].mxu0 %v648
  %v2814 = vpop.f32.mrb[0].mxu0
  %v2815 = vadd.f32 %v2775, %v2814
  %v2816 = vpop.f32.mrb[0].mxu0
  %v2817 = vpop.f32.mrb[0].mxu0
  %v2818 = vpop.f32.mrb[0].mxu0
  %2819 = vdwg.mxu0
  %2820 = vmatprep.subr.bf16.mxu0 0
  %2821 = vmatpush1.bf16.msra.mxu0 %v1948
  %2822 = vmatprep.subr.bf16.mxu0 0
  %2823 = vmatpush1.bf16.msra.mxu0 %v1949
  %2824 = vmatprep.subr.bf16.mxu0 0
  %2825 = vmatpush1.bf16.msra.mxu0 %v1950
  %2826 = vmatprep.subr.bf16.mxu0 0
  %2827 = vmatpush1.bf16.msra.mxu0 %v1951
  %2828 = vmatprep.subr.bf16.mxu0 0
  %2829 = vmatpush1.bf16.msra.mxu0 %v1952
  %2830 = vmatprep.subr.bf16.mxu0 0
  %2831 = vmatpush1.bf16.msra.mxu0 %v1953
  %2832 = vmatprep.subr.bf16.mxu0 0
  %2833 = vmatpush1.bf16.msra.mxu0 %v1954
  %2834 = vmatprep.subr.bf16.mxu0 0
  %2835 = vmatpush1.bf16.msra.mxu0 %v1955
  %2836 = vmatprep.subr.bf16.mxu0 0
  %2837 = vmatpush1.bf16.msra.mxu0 %v1956
  %2838 = vmatprep.subr.bf16.mxu0 0
  %2839 = vmatpush1.bf16.msra.mxu0 %v1957
  %2840 = vmatprep.subr.bf16.mxu0 0
  %2841 = vmatpush1.bf16.msra.mxu0 %v1958
  %2842 = vmatprep.subr.bf16.mxu0 0
  %2843 = vmatpush1.bf16.msra.mxu0 %v1959
  %2844 = vmatprep.subr.bf16.mxu0 0
  %2845 = vmatpush1.bf16.msra.mxu0 %v1960
  %2846 = vmatprep.subr.bf16.mxu0 0
  %2847 = vmatpush1.bf16.msra.mxu0 %v1961
  %2848 = vmatprep.subr.bf16.mxu0 0
  %2849 = vmatpush1.bf16.msra.mxu0 %v1962
  %2850 = vmatprep.subr.bf16.mxu0 0
  %2851 = vmatpush1.bf16.msra.mxu0 %v1963
  %2852 = vmatprep.mubr.bf16.mxu0 %v651
  %2853 = vmatmul.mubr.bf16.gmra.mrb[0].mxu0 %v650
  %v2854 = vpop.f32.mrb[0].mxu0
  %v2855 = vadd.f32 %v2815, %v2854
  %v2856 = vpop.f32.mrb[0].mxu0
  %v2857 = vpop.f32.mrb[0].mxu0
  %v2858 = vpop.f32.mrb[0].mxu0
  %2859 = vdwg.mxu0
  %2861 = vset.pattern.permute.xlu0 0
  %2862 = vperm.xlu0 %2861, %v36
  %v2863 = vpop.permute.xlu0 %2862
  %v2865 = vmul.f32 %v2855, %v2863
  %vm2866 = vcmask 261120
  %v2867 = vsel %vm2866, %v2865, 0.0
  %v2868 = vrot.slane %v2867, 4
  %v2869 = vadd.f32 %v2867, %v2868
  %v2870 = vrot.slane %v2869, 2
  %v2871 = vadd.f32 %v2869, %v2870
  %v2872 = vrot.slane %v2871, 1
  %v2873 = vadd.f32 %v2871, %v2872
  %v2874 = vmul.f32 %v2873, 0.5
  %v2875 = vsub.f32 %v2855, %v2874
  %v2876 = vmul.f32 %v2875, %v2875
  %v2877 = vmul.f32 %v2876, %v2863
  %v2878 = vsel %vm2866, %v2877, 0.0
  %v2879 = vrot.slane %v2878, 4
  %v2880 = vadd.f32 %v2878, %v2879
  %v2881 = vrot.slane %v2880, 2
  %v2882 = vadd.f32 %v2880, %v2881
  %v2883 = vrot.slane %v2882, 1
  %v2884 = vadd.f32 %v2882, %v2883
  %v2885 = vmul.f32 %v2884, 0.5
  %v2886 = vadd.f32 %v2885, 0.8
  %v2887 = vrsqrt.pop %v2886
  %v2888 = vmul.f32 %v2875, %v2887
  %v2889 = vld [vmem:[%s4] sm:$0x1]
  %v2891 = vlaneseq
  %v2892 = vshrl.u32 %v2891, 7
  %v2893 = vsub.s32 0, %v2892
  %v2894 = vrot.slane %v2889, %v2893
  %v2896 = vmul.f32 %v2888, %v2894
  %v2897 = vld [vmem:[%s5] sm:$0x1]
  %v2899 = vlaneseq
  %v2900 = vshrl.u32 %v2899, 7
  %v2901 = vsub.s32 0, %v2900
  %v2902 = vrot.slane %v2897, %v2901
  %v2904 = vadd.f32 %v2896, %v2902
  %v2905 = vmax.f32 %v2904, 0.0
  %v2906 = vmul.f32 %v2905, %v2863
  %v2907 = vpack.c.bf16 %v2906, %v2906
  %v2908 = vld [vmem:[%s6] sm:$0xff]
  %v2909 = vld [vmem:[%s6 + $0x8] sm:$0xff]
  %v2910 = vld [vmem:[%s6 + $0x10] sm:$0xff]
  %v2911 = vld [vmem:[%s6 + $0x18] sm:$0xff]
  %v2912 = vld [vmem:[%s6 + $0x20] sm:$0xff]
  %v2913 = vld [vmem:[%s6 + $0x28] sm:$0xff]
  %v2914 = vld [vmem:[%s6 + $0x30] sm:$0xff]
  %v2915 = vld [vmem:[%s6 + $0x38] sm:$0xff]
  %v2916 = vld [vmem:[%s6 + $0x40] sm:$0xff]
  %v2917 = vld [vmem:[%s6 + $0x48] sm:$0xff]
  %v2918 = vld [vmem:[%s6 + $0x50] sm:$0xff]
  %v2919 = vld [vmem:[%s6 + $0x58] sm:$0xff]
  %v2920 = vld [vmem:[%s6 + $0x60] sm:$0xff]
  %v2921 = vld [vmem:[%s6 + $0x68] sm:$0xff]
  %v2922 = vld [vmem:[%s6 + $0x70] sm:$0xff]
  %v2923 = vld [vmem:[%s6 + $0x78] sm:$0xff]
  %v2924 = vld [vmem:[%s6 + $0x80] sm:$0xff]
  %v2925 = vld [vmem:[%s6 + $0x88] sm:$0xff]
  %v2926 = vld [vmem:[%s6 + $0x90] sm:$0xff]
  %v2927 = vld [vmem:[%s6 + $0x98] sm:$0xff]
  %v2928 = vld [vmem:[%s6 + $0xa0] sm:$0xff]
  %v2929 = vld [vmem:[%s6 + $0xa8] sm:$0xff]
  %v2930 = vld [vmem:[%s6 + $0xb0] sm:$0xff]
  %v2931 = vld [vmem:[%s6 + $0xb8] sm:$0xff]
  %v2932 = vld [vmem:[%s6 + $0xc0] sm:$0xff]
  %v2933 = vld [vmem:[%s6 + $0xc8] sm:$0xff]
  %v2934 = vld [vmem:[%s6 + $0xd0] sm:$0xff]
  %v2935 = vld [vmem:[%s6 + $0xd8] sm:$0xff]
  %v2936 = vld [vmem:[%s6 + $0xe0] sm:$0xff]
  %v2937 = vld [vmem:[%s6 + $0xe8] sm:$0xff]
  %v2938 = vld [vmem:[%s6 + $0xf0] sm:$0xff]
  %v2939 = vld [vmem:[%s6 + $0xf8] sm:$0xff]
  %v2940 = vld [vmem:[%s6 + $0x100] sm:$0xff]
  %v2941 = vld [vmem:[%s6 + $0x108] sm:$0xff]
  %v2942 = vld [vmem:[%s6 + $0x110] sm:$0xff]
  %v2943 = vld [vmem:[%s6 + $0x118] sm:$0xff]
  %v2944 = vld [vmem:[%s6 + $0x120] sm:$0xff]
  %v2945 = vld [vmem:[%s6 + $0x128] sm:$0xff]
  %v2946 = vld [vmem:[%s6 + $0x130] sm:$0xff]
  %v2947 = vld [vmem:[%s6 + $0x138] sm:$0xff]
  %v2948 = vld [vmem:[%s6 + $0x140] sm:$0xff]
  %v2949 = vld [vmem:[%s6 + $0x148] sm:$0xff]
  %v2950 = vld [vmem:[%s6 + $0x150] sm:$0xff]
  %v2951 = vld [vmem:[%s6 + $0x158] sm:$0xff]
  %v2952 = vld [vmem:[%s6 + $0x160] sm:$0xff]
  %v2953 = vld [vmem:[%s6 + $0x168] sm:$0xff]
  %v2954 = vld [vmem:[%s6 + $0x170] sm:$0xff]
  %v2955 = vld [vmem:[%s6 + $0x178] sm:$0xff]
  %v2956 = vld [vmem:[%s6 + $0x180] sm:$0xff]
  %v2957 = vld [vmem:[%s6 + $0x188] sm:$0xff]
  %v2958 = vld [vmem:[%s6 + $0x190] sm:$0xff]
  %v2959 = vld [vmem:[%s6 + $0x198] sm:$0xff]
  %v2960 = vld [vmem:[%s6 + $0x1a0] sm:$0xff]
  %v2961 = vld [vmem:[%s6 + $0x1a8] sm:$0xff]
  %v2962 = vld [vmem:[%s6 + $0x1b0] sm:$0xff]
  %v2963 = vld [vmem:[%s6 + $0x1b8] sm:$0xff]
  %v2964 = vld [vmem:[%s6 + $0x1c0] sm:$0xff]
  %v2965 = vld [vmem:[%s6 + $0x1c8] sm:$0xff]
  %v2966 = vld [vmem:[%s6 + $0x1d0] sm:$0xff]
  %v2967 = vld [vmem:[%s6 + $0x1d8] sm:$0xff]
  %v2968 = vld [vmem:[%s6 + $0x1e0] sm:$0xff]
  %v2969 = vld [vmem:[%s6 + $0x1e8] sm:$0xff]
  %v2970 = vld [vmem:[%s6 + $0x1f0] sm:$0xff]
  %v2971 = vld [vmem:[%s6 + $0x1f8] sm:$0xff]
  %v2972 = vld [vmem:[%s7] sm:$0xff]
  %v2973 = vld [vmem:[%s7 + $0x8] sm:$0xff]
  %v2974 = vld [vmem:[%s7 + $0x10] sm:$0xff]
  %v2975 = vld [vmem:[%s7 + $0x18] sm:$0xff]
  %v2980 = vlaneseq
  %v2981 = vshrl.u32 %v2980, 7
  %v2982 = vsub.s32 0, %v2981
  %v2983 = vrot.slane %v2972, %v2982
  %v2984 = vlaneseq
  %v2985 = vshrl.u32 %v2984, 7
  %v2986 = vsub.s32 1, %v2985
  %v2987 = vrot.slane %v2972, %v2986
  %v2988 = vlaneseq
  %v2989 = vshrl.u32 %v2988, 7
  %v2990 = vsub.s32 2, %v2989
  %v2991 = vrot.slane %v2972, %v2990
  %v2992 = vlaneseq
  %v2993 = vshrl.u32 %v2992, 7
  %v2994 = vsub.s32 3, %v2993
  %v2995 = vrot.slane %v2972, %v2994
  %v2996 = vlaneseq
  %v2997 = vshrl.u32 %v2996, 7
  %v2998 = vsub.s32 4, %v2997
  %v2999 = vrot.slane %v2972, %v2998
  %v3000 = vlaneseq
  %v3001 = vshrl.u32 %v3000, 7
  %v3002 = vsub.s32 5, %v3001
  %v3003 = vrot.slane %v2972, %v3002
  %v3004 = vlaneseq
  %v3005 = vshrl.u32 %v3004, 7
  %v3006 = vsub.s32 6, %v3005
  %v3007 = vrot.slane %v2972, %v3006
  %v3008 = vlaneseq
  %v3009 = vshrl.u32 %v3008, 7
  %v3010 = vsub.s32 7, %v3009
  %v3011 = vrot.slane %v2972, %v3010
  %v3012 = vlaneseq
  %v3013 = vshrl.u32 %v3012, 7
  %v3014 = vsub.s32 0, %v3013
  %v3015 = vrot.slane %v2973, %v3014
  %v3016 = vlaneseq
  %v3017 = vshrl.u32 %v3016, 7
  %v3018 = vsub.s32 1, %v3017
  %v3019 = vrot.slane %v2973, %v3018
  %v3020 = vlaneseq
  %v3021 = vshrl.u32 %v3020, 7
  %v3022 = vsub.s32 2, %v3021
  %v3023 = vrot.slane %v2973, %v3022
  %v3024 = vlaneseq
  %v3025 = vshrl.u32 %v3024, 7
  %v3026 = vsub.s32 3, %v3025
  %v3027 = vrot.slane %v2973, %v3026
  %v3028 = vlaneseq
  %v3029 = vshrl.u32 %v3028, 7
  %v3030 = vsub.s32 4, %v3029
  %v3031 = vrot.slane %v2973, %v3030
  %v3032 = vlaneseq
  %v3033 = vshrl.u32 %v3032, 7
  %v3034 = vsub.s32 5, %v3033
  %v3035 = vrot.slane %v2973, %v3034
  %v3036 = vlaneseq
  %v3037 = vshrl.u32 %v3036, 7
  %v3038 = vsub.s32 6, %v3037
  %v3039 = vrot.slane %v2973, %v3038
  %v3040 = vlaneseq
  %v3041 = vshrl.u32 %v3040, 7
  %v3042 = vsub.s32 7, %v3041
  %v3043 = vrot.slane %v2973, %v3042
  %v3044 = vlaneseq
  %v3045 = vshrl.u32 %v3044, 7
  %v3046 = vsub.s32 0, %v3045
  %v3047 = vrot.slane %v2974, %v3046
  %v3048 = vlaneseq
  %v3049 = vshrl.u32 %v3048, 7
  %v3050 = vsub.s32 1, %v3049
  %v3051 = vrot.slane %v2974, %v3050
  %v3052 = vlaneseq
  %v3053 = vshrl.u32 %v3052, 7
  %v3054 = vsub.s32 2, %v3053
  %v3055 = vrot.slane %v2974, %v3054
  %v3056 = vlaneseq
  %v3057 = vshrl.u32 %v3056, 7
  %v3058 = vsub.s32 3, %v3057
  %v3059 = vrot.slane %v2974, %v3058
  %v3060 = vlaneseq
  %v3061 = vshrl.u32 %v3060, 7
  %v3062 = vsub.s32 4, %v3061
  %v3063 = vrot.slane %v2974, %v3062
  %v3064 = vlaneseq
  %v3065 = vshrl.u32 %v3064, 7
  %v3066 = vsub.s32 5, %v3065
  %v3067 = vrot.slane %v2974, %v3066
  %v3068 = vlaneseq
  %v3069 = vshrl.u32 %v3068, 7
  %v3070 = vsub.s32 6, %v3069
  %v3071 = vrot.slane %v2974, %v3070
  %v3072 = vlaneseq
  %v3073 = vshrl.u32 %v3072, 7
  %v3074 = vsub.s32 7, %v3073
  %v3075 = vrot.slane %v2974, %v3074
  %v3076 = vlaneseq
  %v3077 = vshrl.u32 %v3076, 7
  %v3078 = vsub.s32 0, %v3077
  %v3079 = vrot.slane %v2975, %v3078
  %v3080 = vlaneseq
  %v3081 = vshrl.u32 %v3080, 7
  %v3082 = vsub.s32 1, %v3081
  %v3083 = vrot.slane %v2975, %v3082
  %v3084 = vlaneseq
  %v3085 = vshrl.u32 %v3084, 7
  %v3086 = vsub.s32 2, %v3085
  %v3087 = vrot.slane %v2975, %v3086
  %v3088 = vlaneseq
  %v3089 = vshrl.u32 %v3088, 7
  %v3090 = vsub.s32 3, %v3089
  %v3091 = vrot.slane %v2975, %v3090
  %v3092 = vlaneseq
  %v3093 = vshrl.u32 %v3092, 7
  %v3094 = vsub.s32 4, %v3093
  %v3095 = vrot.slane %v2975, %v3094
  %v3096 = vlaneseq
  %v3097 = vshrl.u32 %v3096, 7
  %v3098 = vsub.s32 5, %v3097
  %v3099 = vrot.slane %v2975, %v3098
  %v3100 = vlaneseq
  %v3101 = vshrl.u32 %v3100, 7
  %v3102 = vsub.s32 6, %v3101
  %v3103 = vrot.slane %v2975, %v3102
  %v3104 = vlaneseq
  %v3105 = vshrl.u32 %v3104, 7
  %v3106 = vsub.s32 7, %v3105
  %v3107 = vrot.slane %v2975, %v3106
  %v3204 = vunpack.c.l.b16 %v2908
  %v3205 = vunpack.c.h.b16 %v2908
  %v3206 = vunpack.c.l.b16 %v2909
  %v3207 = vunpack.c.h.b16 %v2909
  %v3208 = vunpack.c.l.b16 %v2910
  %v3209 = vunpack.c.h.b16 %v2910
  %v3210 = vunpack.c.l.b16 %v2911
  %v3211 = vunpack.c.h.b16 %v2911
  %v3212 = vunpack.c.l.b16 %v2912
  %v3213 = vunpack.c.h.b16 %v2912
  %v3214 = vunpack.c.l.b16 %v2913
  %v3215 = vunpack.c.h.b16 %v2913
  %v3216 = vunpack.c.l.b16 %v2914
  %v3217 = vunpack.c.h.b16 %v2914
  %v3218 = vunpack.c.l.b16 %v2915
  %v3219 = vunpack.c.h.b16 %v2915
  %v3220 = vunpack.c.l.b16 %v2916
  %v3221 = vunpack.c.h.b16 %v2916
  %v3222 = vunpack.c.l.b16 %v2917
  %v3223 = vunpack.c.h.b16 %v2917
  %v3224 = vunpack.c.l.b16 %v2918
  %v3225 = vunpack.c.h.b16 %v2918
  %v3226 = vunpack.c.l.b16 %v2919
  %v3227 = vunpack.c.h.b16 %v2919
  %v3228 = vunpack.c.l.b16 %v2920
  %v3229 = vunpack.c.h.b16 %v2920
  %v3230 = vunpack.c.l.b16 %v2921
  %v3231 = vunpack.c.h.b16 %v2921
  %v3232 = vunpack.c.l.b16 %v2922
  %v3233 = vunpack.c.h.b16 %v2922
  %v3234 = vunpack.c.l.b16 %v2923
  %v3235 = vunpack.c.h.b16 %v2923
  %v3236 = vunpack.c.l.b16 %v2924
  %v3237 = vunpack.c.h.b16 %v2924
  %v3238 = vunpack.c.l.b16 %v2925
  %v3239 = vunpack.c.h.b16 %v2925
  %v3240 = vunpack.c.l.b16 %v2926
  %v3241 = vunpack.c.h.b16 %v2926
  %v3242 = vunpack.c.l.b16 %v2927
  %v3243 = vunpack.c.h.b16 %v2927
  %v3244 = vunpack.c.l.b16 %v2928
  %v3245 = vunpack.c.h.b16 %v2928
  %v3246 = vunpack.c.l.b16 %v2929
  %v3247 = vunpack.c.h.b16 %v2929
  %v3248 = vunpack.c.l.b16 %v2930
  %v3249 = vunpack.c.h.b16 %v2930
  %v3250 = vunpack.c.l.b16 %v2931
  %v3251 = vunpack.c.h.b16 %v2931
  %v3252 = vunpack.c.l.b16 %v2932
  %v3253 = vunpack.c.h.b16 %v2932
  %v3254 = vunpack.c.l.b16 %v2933
  %v3255 = vunpack.c.h.b16 %v2933
  %v3256 = vunpack.c.l.b16 %v2934
  %v3257 = vunpack.c.h.b16 %v2934
  %v3258 = vunpack.c.l.b16 %v2935
  %v3259 = vunpack.c.h.b16 %v2935
  %v3260 = vunpack.c.l.b16 %v2936
  %v3261 = vunpack.c.h.b16 %v2936
  %v3262 = vunpack.c.l.b16 %v2937
  %v3263 = vunpack.c.h.b16 %v2937
  %v3264 = vunpack.c.l.b16 %v2938
  %v3265 = vunpack.c.h.b16 %v2938
  %v3266 = vunpack.c.l.b16 %v2939
  %v3267 = vunpack.c.h.b16 %v2939
  %v3268 = vunpack.c.l.b16 %v2940
  %v3269 = vunpack.c.h.b16 %v2940
  %v3270 = vunpack.c.l.b16 %v2941
  %v3271 = vunpack.c.h.b16 %v2941
  %v3272 = vunpack.c.l.b16 %v2942
  %v3273 = vunpack.c.h.b16 %v2942
  %v3274 = vunpack.c.l.b16 %v2943
  %v3275 = vunpack.c.h.b16 %v2943
  %v3276 = vunpack.c.l.b16 %v2944
  %v3277 = vunpack.c.h.b16 %v2944
  %v3278 = vunpack.c.l.b16 %v2945
  %v3279 = vunpack.c.h.b16 %v2945
  %v3280 = vunpack.c.l.b16 %v2946
  %v3281 = vunpack.c.h.b16 %v2946
  %v3282 = vunpack.c.l.b16 %v2947
  %v3283 = vunpack.c.h.b16 %v2947
  %v3284 = vunpack.c.l.b16 %v2948
  %v3285 = vunpack.c.h.b16 %v2948
  %v3286 = vunpack.c.l.b16 %v2949
  %v3287 = vunpack.c.h.b16 %v2949
  %v3288 = vunpack.c.l.b16 %v2950
  %v3289 = vunpack.c.h.b16 %v2950
  %v3290 = vunpack.c.l.b16 %v2951
  %v3291 = vunpack.c.h.b16 %v2951
  %v3292 = vunpack.c.l.b16 %v2952
  %v3293 = vunpack.c.h.b16 %v2952
  %v3294 = vunpack.c.l.b16 %v2953
  %v3295 = vunpack.c.h.b16 %v2953
  %v3296 = vunpack.c.l.b16 %v2954
  %v3297 = vunpack.c.h.b16 %v2954
  %v3298 = vunpack.c.l.b16 %v2955
  %v3299 = vunpack.c.h.b16 %v2955
  %v3300 = vunpack.c.l.b16 %v2956
  %v3301 = vunpack.c.h.b16 %v2956
  %v3302 = vunpack.c.l.b16 %v2957
  %v3303 = vunpack.c.h.b16 %v2957
  %v3304 = vunpack.c.l.b16 %v2958
  %v3305 = vunpack.c.h.b16 %v2958
  %v3306 = vunpack.c.l.b16 %v2959
  %v3307 = vunpack.c.h.b16 %v2959
  %v3308 = vunpack.c.l.b16 %v2960
  %v3309 = vunpack.c.h.b16 %v2960
  %v3310 = vunpack.c.l.b16 %v2961
  %v3311 = vunpack.c.h.b16 %v2961
  %v3312 = vunpack.c.l.b16 %v2962
  %v3313 = vunpack.c.h.b16 %v2962
  %v3314 = vunpack.c.l.b16 %v2963
  %v3315 = vunpack.c.h.b16 %v2963
  %v3316 = vunpack.c.l.b16 %v2964
  %v3317 = vunpack.c.h.b16 %v2964
  %v3318 = vunpack.c.l.b16 %v2965
  %v3319 = vunpack.c.h.b16 %v2965
  %v3320 = vunpack.c.l.b16 %v2966
  %v3321 = vunpack.c.h.b16 %v2966
  %v3322 = vunpack.c.l.b16 %v2967
  %v3323 = vunpack.c.h.b16 %v2967
  %v3324 = vunpack.c.l.b16 %v2968
  %v3325 = vunpack.c.h.b16 %v2968
  %v3326 = vunpack.c.l.b16 %v2969
  %v3327 = vunpack.c.h.b16 %v2969
  %v3328 = vunpack.c.l.b16 %v2970
  %v3329 = vunpack.c.h.b16 %v2970
  %v3330 = vunpack.c.l.b16 %v2971
  %v3331 = vunpack.c.h.b16 %v2971
  %v3332 = vpack.c.b16 %v3236, %v3204
  %v3333 = vpack.c.b16 %v3237, %v3205
  %v3334 = vpack.c.b16 %v3238, %v3206
  %v3335 = vpack.c.b16 %v3239, %v3207
  %v3336 = vpack.c.b16 %v3240, %v3208
  %v3337 = vpack.c.b16 %v3241, %v3209
  %v3338 = vpack.c.b16 %v3242, %v3210
  %v3339 = vpack.c.b16 %v3243, %v3211
  %v3340 = vpack.c.b16 %v3244, %v3212
  %v3341 = vpack.c.b16 %v3245, %v3213
  %v3342 = vpack.c.b16 %v3246, %v3214
  %v3343 = vpack.c.b16 %v3247, %v3215
  %v3344 = vpack.c.b16 %v3248, %v3216
  %v3345 = vpack.c.b16 %v3249, %v3217
  %v3346 = vpack.c.b16 %v3250, %v3218
  %v3347 = vpack.c.b16 %v3251, %v3219
  %v3348 = vpack.c.b16 %v3252, %v3220
  %v3349 = vpack.c.b16 %v3253, %v3221
  %v3350 = vpack.c.b16 %v3254, %v3222
  %v3351 = vpack.c.b16 %v3255, %v3223
  %v3352 = vpack.c.b16 %v3256, %v3224
  %v3353 = vpack.c.b16 %v3257, %v3225
  %v3354 = vpack.c.b16 %v3258, %v3226
  %v3355 = vpack.c.b16 %v3259, %v3227
  %v3356 = vpack.c.b16 %v3260, %v3228
  %v3357 = vpack.c.b16 %v3261, %v3229
  %v3358 = vpack.c.b16 %v3262, %v3230
  %v3359 = vpack.c.b16 %v3263, %v3231
  %v3360 = vpack.c.b16 %v3264, %v3232
  %v3361 = vpack.c.b16 %v3265, %v3233
  %v3362 = vpack.c.b16 %v3266, %v3234
  %v3363 = vpack.c.b16 %v3267, %v3235
  %v3364 = vpack.c.b16 %v3300, %v3268
  %v3365 = vpack.c.b16 %v3301, %v3269
  %v3366 = vpack.c.b16 %v3302, %v3270
  %v3367 = vpack.c.b16 %v3303, %v3271
  %v3368 = vpack.c.b16 %v3304, %v3272
  %v3369 = vpack.c.b16 %v3305, %v3273
  %v3370 = vpack.c.b16 %v3306, %v3274
  %v3371 = vpack.c.b16 %v3307, %v3275
  %v3372 = vpack.c.b16 %v3308, %v3276
  %v3373 = vpack.c.b16 %v3309, %v3277
  %v3374 = vpack.c.b16 %v3310, %v3278
  %v3375 = vpack.c.b16 %v3311, %v3279
  %v3376 = vpack.c.b16 %v3312, %v3280
  %v3377 = vpack.c.b16 %v3313, %v3281
  %v3378 = vpack.c.b16 %v3314, %v3282
  %v3379 = vpack.c.b16 %v3315, %v3283
  %v3380 = vpack.c.b16 %v3316, %v3284
  %v3381 = vpack.c.b16 %v3317, %v3285
  %v3382 = vpack.c.b16 %v3318, %v3286
  %v3383 = vpack.c.b16 %v3319, %v3287
  %v3384 = vpack.c.b16 %v3320, %v3288
  %v3385 = vpack.c.b16 %v3321, %v3289
  %v3386 = vpack.c.b16 %v3322, %v3290
  %v3387 = vpack.c.b16 %v3323, %v3291
  %v3388 = vpack.c.b16 %v3324, %v3292
  %v3389 = vpack.c.b16 %v3325, %v3293
  %v3390 = vpack.c.b16 %v3326, %v3294
  %v3391 = vpack.c.b16 %v3327, %v3295
  %v3392 = vpack.c.b16 %v3328, %v3296
  %v3393 = vpack.c.b16 %v3329, %v3297
  %v3394 = vpack.c.b16 %v3330, %v3298
  %v3395 = vpack.c.b16 %v3331, %v3299
  %v3461 = vsel %vm2866, %v2907, 0
  %3463 = vmatprep.subr.bf16.mxu0 %v3333
  %3464 = vmatpush1.bf16.msra.mxu0 %v3332
  %3465 = vmatprep.subr.bf16.mxu0 %v3365
  %3466 = vmatpush1.bf16.msra.mxu0 %v3364
  %3467 = vmatprep.subr.bf16.mxu0 0
  %3468 = vmatpush1.bf16.msra.mxu0 0
  %3469 = vmatprep.subr.bf16.mxu0 0
  %3470 = vmatpush1.bf16.msra.mxu0 0
  %3471 = vmatprep.subr.bf16.mxu0 0
  %3472 = vmatpush1.bf16.msra.mxu0 0
  %3473 = vmatprep.subr.bf16.mxu0 0
  %3474 = vmatpush1.bf16.msra.mxu0 0
  %3475 = vmatprep.subr.bf16.mxu0 0
  %3476 = vmatpush1.bf16.msra.mxu0 0
  %3477 = vmatprep.subr.bf16.mxu0 0
  %3478 = vmatpush1.bf16.msra.mxu0 0
  %3479 = vmatprep.subr.bf16.mxu0 0
  %3480 = vmatpush1.bf16.msra.mxu0 0
  %3481 = vmatprep.subr.bf16.mxu0 0
  %3482 = vmatpush1.bf16.msra.mxu0 0
  %3483 = vmatprep.subr.bf16.mxu0 0
  %3484 = vmatpush1.bf16.msra.mxu0 0
  %3485 = vmatprep.subr.bf16.mxu0 0
  %3486 = vmatpush1.bf16.msra.mxu0 0
  %3487 = vmatprep.subr.bf16.mxu0 0
  %3488 = vmatpush1.bf16.msra.mxu0 0
  %3489 = vmatprep.subr.bf16.mxu0 0
  %3490 = vmatpush1.bf16.msra.mxu0 0
  %3491 = vmatprep.subr.bf16.mxu0 0
  %3492 = vmatpush1.bf16.msra.mxu0 0
  %3493 = vmatprep.subr.bf16.mxu0 0
  %3494 = vmatpush1.bf16.msra.mxu0 0
  %3495 = vmatprep.mubr.bf16.mxu0 0
  %3496 = vmatmul.mubr.bf16.gmra.mrb[0].mxu0 %v3461
  %v3497 = vpop.f32.mrb[0].mxu0
  %v3498 = vadd.f32 %v2983, %v3497
  %v3499 = vpop.f32.mrb[0].mxu0
  %v3500 = vadd.f32 %v2987, %v3499
  %v3501 = vpop.f32.mrb[0].mxu0
  %v3502 = vpop.f32.mrb[0].mxu0
  %3503 = vdwg.mxu0
  %3504 = vmatprep.subr.bf16.mxu0 %v3335
  %3505 = vmatpush1.bf16.msra.mxu0 %v3334
  %3506 = vmatprep.subr.bf16.mxu0 %v3367
  %3507 = vmatpush1.bf16.msra.mxu0 %v3366
  %3508 = vmatprep.subr.bf16.mxu0 0
  %3509 = vmatpush1.bf16.msra.mxu0 0
  %3510 = vmatprep.subr.bf16.mxu0 0
  %3511 = vmatpush1.bf16.msra.mxu0 0
  %3512 = vmatprep.subr.bf16.mxu0 0
  %3513 = vmatpush1.bf16.msra.mxu0 0
  %3514 = vmatprep.subr.bf16.mxu0 0
  %3515 = vmatpush1.bf16.msra.mxu0 0
  %3516 = vmatprep.subr.bf16.mxu0 0
  %3517 = vmatpush1.bf16.msra.mxu0 0
  %3518 = vmatprep.subr.bf16.mxu0 0
  %3519 = vmatpush1.bf16.msra.mxu0 0
  %3520 = vmatprep.subr.bf16.mxu0 0
  %3521 = vmatpush1.bf16.msra.mxu0 0
  %3522 = vmatprep.subr.bf16.mxu0 0
  %3523 = vmatpush1.bf16.msra.mxu0 0
  %3524 = vmatprep.subr.bf16.mxu0 0
  %3525 = vmatpush1.bf16.msra.mxu0 0
  %3526 = vmatprep.subr.bf16.mxu0 0
  %3527 = vmatpush1.bf16.msra.mxu0 0
  %3528 = vmatprep.subr.bf16.mxu0 0
  %3529 = vmatpush1.bf16.msra.mxu0 0
  %3530 = vmatprep.subr.bf16.mxu0 0
  %3531 = vmatpush1.bf16.msra.mxu0 0
  %3532 = vmatprep.subr.bf16.mxu0 0
  %3533 = vmatpush1.bf16.msra.mxu0 0
  %3534 = vmatprep.subr.bf16.mxu0 0
  %3535 = vmatpush1.bf16.msra.mxu0 0
  %3536 = vmatprep.mubr.bf16.mxu0 0
  %3537 = vmatmul.mubr.bf16.gmra.mrb[0].mxu0 %v3461
  %v3538 = vpop.f32.mrb[0].mxu0
  %v3539 = vadd.f32 %v2991, %v3538
  %v3540 = vpop.f32.mrb[0].mxu0
  %v3541 = vadd.f32 %v2995, %v3540
  %v3542 = vpop.f32.mrb[0].mxu0
  %v3543 = vpop.f32.mrb[0].mxu0
  %3544 = vdwg.mxu0
  %3545 = vmatprep.subr.bf16.mxu0 %v3337
  %3546 = vmatpush1.bf16.msra.mxu0 %v3336
  %3547 = vmatprep.subr.bf16.mxu0 %v3369
  %3548 = vmatpush1.bf16.msra.mxu0 %v3368
  %3549 = vmatprep.subr.bf16.mxu0 0
  %3550 = vmatpush1.bf16.msra.mxu0 0
  %3551 = vmatprep.subr.bf16.mxu0 0
  %3552 = vmatpush1.bf16.msra.mxu0 0
  %3553 = vmatprep.subr.bf16.mxu0 0
  %3554 = vmatpush1.bf16.msra.mxu0 0
  %3555 = vmatprep.subr.bf16.mxu0 0
  %3556 = vmatpush1.bf16.msra.mxu0 0
  %3557 = vmatprep.subr.bf16.mxu0 0
  %3558 = vmatpush1.bf16.msra.mxu0 0
  %3559 = vmatprep.subr.bf16.mxu0 0
  %3560 = vmatpush1.bf16.msra.mxu0 0
  %3561 = vmatprep.subr.bf16.mxu0 0
  %3562 = vmatpush1.bf16.msra.mxu0 0
  %3563 = vmatprep.subr.bf16.mxu0 0
  %3564 = vmatpush1.bf16.msra.mxu0 0
  %3565 = vmatprep.subr.bf16.mxu0 0
  %3566 = vmatpush1.bf16.msra.mxu0 0
  %3567 = vmatprep.subr.bf16.mxu0 0
  %3568 = vmatpush1.bf16.msra.mxu0 0
  %3569 = vmatprep.subr.bf16.mxu0 0
  %3570 = vmatpush1.bf16.msra.mxu0 0
  %3571 = vmatprep.subr.bf16.mxu0 0
  %3572 = vmatpush1.bf16.msra.mxu0 0
  %3573 = vmatprep.subr.bf16.mxu0 0
  %3574 = vmatpush1.bf16.msra.mxu0 0
  %3575 = vmatprep.subr.bf16.mxu0 0
  %3576 = vmatpush1.bf16.msra.mxu0 0
  %3577 = vmatprep.mubr.bf16.mxu0 0
  %3578 = vmatmul.mubr.bf16.gmra.mrb[0].mxu0 %v3461
  %v3579 = vpop.f32.mrb[0].mxu0
  %v3580 = vadd.f32 %v2999, %v3579
  %v3581 = vpop.f32.mrb[0].mxu0
  %v3582 = vadd.f32 %v3003, %v3581
  %v3583 = vpop.f32.mrb[0].mxu0
  %v3584 = vpop.f32.mrb[0].mxu0
  %3585 = vdwg.mxu0
  %3586 = vmatprep.subr.bf16.mxu0 %v3339
  %3587 = vmatpush1.bf16.msra.mxu0 %v3338
  %3588 = vmatprep.subr.bf16.mxu0 %v3371
  %3589 = vmatpush1.bf16.msra.mxu0 %v3370
  %3590 = vmatprep.subr.bf16.mxu0 0
  %3591 = vmatpush1.bf16.msra.mxu0 0
  %3592 = vmatprep.subr.bf16.mxu0 0
  %3593 = vmatpush1.bf16.msra.mxu0 0
  %3594 = vmatprep.subr.bf16.mxu0 0
  %3595 = vmatpush1.bf16.msra.mxu0 0
  %3596 = vmatprep.subr.bf16.mxu0 0
  %3597 = vmatpush1.bf16.msra.mxu0 0
  %3598 = vmatprep.subr.bf16.mxu0 0
  %3599 = vmatpush1.bf16.msra.mxu0 0
  %3600 = vmatprep.subr.bf16.mxu0 0
  %3601 = vmatpush1.bf16.msra.mxu0 0
  %3602 = vmatprep.subr.bf16.mxu0 0
  %3603 = vmatpush1.bf16.msra.mxu0 0
  %3604 = vmatprep.subr.bf16.mxu0 0
  %3605 = vmatpush1.bf16.msra.mxu0 0
  %3606 = vmatprep.subr.bf16.mxu0 0
  %3607 = vmatpush1.bf16.msra.mxu0 0
  %3608 = vmatprep.subr.bf16.mxu0 0
  %3609 = vmatpush1.bf16.msra.mxu0 0
  %3610 = vmatprep.subr.bf16.mxu0 0
  %3611 = vmatpush1.bf16.msra.mxu0 0
  %3612 = vmatprep.subr.bf16.mxu0 0
  %3613 = vmatpush1.bf16.msra.mxu0 0
  %3614 = vmatprep.subr.bf16.mxu0 0
  %3615 = vmatpush1.bf16.msra.mxu0 0
  %3616 = vmatprep.subr.bf16.mxu0 0
  %3617 = vmatpush1.bf16.msra.mxu0 0
  %3618 = vmatprep.mubr.bf16.mxu0 0
  %3619 = vmatmul.mubr.bf16.gmra.mrb[0].mxu0 %v3461
  %v3620 = vpop.f32.mrb[0].mxu0
  %v3621 = vadd.f32 %v3007, %v3620
  %v3622 = vpop.f32.mrb[0].mxu0
  %v3623 = vadd.f32 %v3011, %v3622
  %v3624 = vpop.f32.mrb[0].mxu0
  %v3625 = vpop.f32.mrb[0].mxu0
  %3626 = vdwg.mxu0
  %3627 = vmatprep.subr.bf16.mxu0 %v3341
  %3628 = vmatpush1.bf16.msra.mxu0 %v3340
  %3629 = vmatprep.subr.bf16.mxu0 %v3373
  %3630 = vmatpush1.bf16.msra.mxu0 %v3372
  %3631 = vmatprep.subr.bf16.mxu0 0
  %3632 = vmatpush1.bf16.msra.mxu0 0
  %3633 = vmatprep.subr.bf16.mxu0 0
  %3634 = vmatpush1.bf16.msra.mxu0 0
  %3635 = vmatprep.subr.bf16.mxu0 0
  %3636 = vmatpush1.bf16.msra.mxu0 0
  %3637 = vmatprep.subr.bf16.mxu0 0
  %3638 = vmatpush1.bf16.msra.mxu0 0
  %3639 = vmatprep.subr.bf16.mxu0 0
  %3640 = vmatpush1.bf16.msra.mxu0 0
  %3641 = vmatprep.subr.bf16.mxu0 0
  %3642 = vmatpush1.bf16.msra.mxu0 0
  %3643 = vmatprep.subr.bf16.mxu0 0
  %3644 = vmatpush1.bf16.msra.mxu0 0
  %3645 = vmatprep.subr.bf16.mxu0 0
  %3646 = vmatpush1.bf16.msra.mxu0 0
  %3647 = vmatprep.subr.bf16.mxu0 0
  %3648 = vmatpush1.bf16.msra.mxu0 0
  %3649 = vmatprep.subr.bf16.mxu0 0
  %3650 = vmatpush1.bf16.msra.mxu0 0
  %3651 = vmatprep.subr.bf16.mxu0 0
  %3652 = vmatpush1.bf16.msra.mxu0 0
  %3653 = vmatprep.subr.bf16.mxu0 0
  %3654 = vmatpush1.bf16.msra.mxu0 0
  %3655 = vmatprep.subr.bf16.mxu0 0
  %3656 = vmatpush1.bf16.msra.mxu0 0
  %3657 = vmatprep.subr.bf16.mxu0 0
  %3658 = vmatpush1.bf16.msra.mxu0 0
  %3659 = vmatprep.mubr.bf16.mxu0 0
  %3660 = vmatmul.mubr.bf16.gmra.mrb[0].mxu0 %v3461
  %v3661 = vpop.f32.mrb[0].mxu0
  %v3662 = vadd.f32 %v3015, %v3661
  %v3663 = vpop.f32.mrb[0].mxu0
  %v3664 = vadd.f32 %v3019, %v3663
  %v3665 = vpop.f32.mrb[0].mxu0
  %v3666 = vpop.f32.mrb[0].mxu0
  %3667 = vdwg.mxu0
  %3668 = vmatprep.subr.bf16.mxu0 %v3343
  %3669 = vmatpush1.bf16.msra.mxu0 %v3342
  %3670 = vmatprep.subr.bf16.mxu0 %v3375
  %3671 = vmatpush1.bf16.msra.mxu0 %v3374
  %3672 = vmatprep.subr.bf16.mxu0 0
  %3673 = vmatpush1.bf16.msra.mxu0 0
  %3674 = vmatprep.subr.bf16.mxu0 0
  %3675 = vmatpush1.bf16.msra.mxu0 0
  %3676 = vmatprep.subr.bf16.mxu0 0
  %3677 = vmatpush1.bf16.msra.mxu0 0
  %3678 = vmatprep.subr.bf16.mxu0 0
  %3679 = vmatpush1.bf16.msra.mxu0 0
  %3680 = vmatprep.subr.bf16.mxu0 0
  %3681 = vmatpush1.bf16.msra.mxu0 0
  %3682 = vmatprep.subr.bf16.mxu0 0
  %3683 = vmatpush1.bf16.msra.mxu0 0
  %3684 = vmatprep.subr.bf16.mxu0 0
  %3685 = vmatpush1.bf16.msra.mxu0 0
  %3686 = vmatprep.subr.bf16.mxu0 0
  %3687 = vmatpush1.bf16.msra.mxu0 0
  %3688 = vmatprep.subr.bf16.mxu0 0
  %3689 = vmatpush1.bf16.msra.mxu0 0
  %3690 = vmatprep.subr.bf16.mxu0 0
  %3691 = vmatpush1.bf16.msra.mxu0 0
  %3692 = vmatprep.subr.bf16.mxu0 0
  %3693 = vmatpush1.bf16.msra.mxu0 0
  %3694 = vmatprep.subr.bf16.mxu0 0
  %3695 = vmatpush1.bf16.msra.mxu0 0
  %3696 = vmatprep.subr.bf16.mxu0 0
  %3697 = vmatpush1.bf16.msra.mxu0 0
  %3698 = vmatprep.subr.bf16.mxu0 0
  %3699 = vmatpush1.bf16.msra.mxu0 0
  %3700 = vmatprep.mubr.bf16.mxu0 0
  %3701 = vmatmul.mubr.bf16.gmra.mrb[0].mxu0 %v3461
  %v3702 = vpop.f32.mrb[0].mxu0
  %v3703 = vadd.f32 %v3023, %v3702
  %v3704 = vpop.f32.mrb[0].mxu0
  %v3705 = vadd.f32 %v3027, %v3704
  %v3706 = vpop.f32.mrb[0].mxu0
  %v3707 = vpop.f32.mrb[0].mxu0
  %3708 = vdwg.mxu0
  %3709 = vmatprep.subr.bf16.mxu0 %v3345
  %3710 = vmatpush1.bf16.msra.mxu0 %v3344
  %3711 = vmatprep.subr.bf16.mxu0 %v3377
  %3712 = vmatpush1.bf16.msra.mxu0 %v3376
  %3713 = vmatprep.subr.bf16.mxu0 0
  %3714 = vmatpush1.bf16.msra.mxu0 0
  %3715 = vmatprep.subr.bf16.mxu0 0
  %3716 = vmatpush1.bf16.msra.mxu0 0
  %3717 = vmatprep.subr.bf16.mxu0 0
  %3718 = vmatpush1.bf16.msra.mxu0 0
  %3719 = vmatprep.subr.bf16.mxu0 0
  %3720 = vmatpush1.bf16.msra.mxu0 0
  %3721 = vmatprep.subr.bf16.mxu0 0
  %3722 = vmatpush1.bf16.msra.mxu0 0
  %3723 = vmatprep.subr.bf16.mxu0 0
  %3724 = vmatpush1.bf16.msra.mxu0 0
  %3725 = vmatprep.subr.bf16.mxu0 0
  %3726 = vmatpush1.bf16.msra.mxu0 0
  %3727 = vmatprep.subr.bf16.mxu0 0
  %3728 = vmatpush1.bf16.msra.mxu0 0
  %3729 = vmatprep.subr.bf16.mxu0 0
  %3730 = vmatpush1.bf16.msra.mxu0 0
  %3731 = vmatprep.subr.bf16.mxu0 0
  %3732 = vmatpush1.bf16.msra.mxu0 0
  %3733 = vmatprep.subr.bf16.mxu0 0
  %3734 = vmatpush1.bf16.msra.mxu0 0
  %3735 = vmatprep.subr.bf16.mxu0 0
  %3736 = vmatpush1.bf16.msra.mxu0 0
  %3737 = vmatprep.subr.bf16.mxu0 0
  %3738 = vmatpush1.bf16.msra.mxu0 0
  %3739 = vmatprep.subr.bf16.mxu0 0
  %3740 = vmatpush1.bf16.msra.mxu0 0
  %3741 = vmatprep.mubr.bf16.mxu0 0
  %3742 = vmatmul.mubr.bf16.gmra.mrb[0].mxu0 %v3461
  %v3743 = vpop.f32.mrb[0].mxu0
  %v3744 = vadd.f32 %v3031, %v3743
  %v3745 = vpop.f32.mrb[0].mxu0
  %v3746 = vadd.f32 %v3035, %v3745
  %v3747 = vpop.f32.mrb[0].mxu0
  %v3748 = vpop.f32.mrb[0].mxu0
  %3749 = vdwg.mxu0
  %3750 = vmatprep.subr.bf16.mxu0 %v3347
  %3751 = vmatpush1.bf16.msra.mxu0 %v3346
  %3752 = vmatprep.subr.bf16.mxu0 %v3379
  %3753 = vmatpush1.bf16.msra.mxu0 %v3378
  %3754 = vmatprep.subr.bf16.mxu0 0
  %3755 = vmatpush1.bf16.msra.mxu0 0
  %3756 = vmatprep.subr.bf16.mxu0 0
  %3757 = vmatpush1.bf16.msra.mxu0 0
  %3758 = vmatprep.subr.bf16.mxu0 0
  %3759 = vmatpush1.bf16.msra.mxu0 0
  %3760 = vmatprep.subr.bf16.mxu0 0
  %3761 = vmatpush1.bf16.msra.mxu0 0
  %3762 = vmatprep.subr.bf16.mxu0 0
  %3763 = vmatpush1.bf16.msra.mxu0 0
  %3764 = vmatprep.subr.bf16.mxu0 0
  %3765 = vmatpush1.bf16.msra.mxu0 0
  %3766 = vmatprep.subr.bf16.mxu0 0
  %3767 = vmatpush1.bf16.msra.mxu0 0
  %3768 = vmatprep.subr.bf16.mxu0 0
  %3769 = vmatpush1.bf16.msra.mxu0 0
  %3770 = vmatprep.subr.bf16.mxu0 0
  %3771 = vmatpush1.bf16.msra.mxu0 0
  %3772 = vmatprep.subr.bf16.mxu0 0
  %3773 = vmatpush1.bf16.msra.mxu0 0
  %3774 = vmatprep.subr.bf16.mxu0 0
  %3775 = vmatpush1.bf16.msra.mxu0 0
  %3776 = vmatprep.subr.bf16.mxu0 0
  %3777 = vmatpush1.bf16.msra.mxu0 0
  %3778 = vmatprep.subr.bf16.mxu0 0
  %3779 = vmatpush1.bf16.msra.mxu0 0
  %3780 = vmatprep.subr.bf16.mxu0 0
  %3781 = vmatpush1.bf16.msra.mxu0 0
  %3782 = vmatprep.mubr.bf16.mxu0 0
  %3783 = vmatmul.mubr.bf16.gmra.mrb[0].mxu0 %v3461
  %v3784 = vpop.f32.mrb[0].mxu0
  %v3785 = vadd.f32 %v3039, %v3784
  %v3786 = vpop.f32.mrb[0].mxu0
  %v3787 = vadd.f32 %v3043, %v3786
  %v3788 = vpop.f32.mrb[0].mxu0
  %v3789 = vpop.f32.mrb[0].mxu0
  %3790 = vdwg.mxu0
  %3791 = vmatprep.subr.bf16.mxu0 %v3349
  %3792 = vmatpush1.bf16.msra.mxu0 %v3348
  %3793 = vmatprep.subr.bf16.mxu0 %v3381
  %3794 = vmatpush1.bf16.msra.mxu0 %v3380
  %3795 = vmatprep.subr.bf16.mxu0 0
  %3796 = vmatpush1.bf16.msra.mxu0 0
  %3797 = vmatprep.subr.bf16.mxu0 0
  %3798 = vmatpush1.bf16.msra.mxu0 0
  %3799 = vmatprep.subr.bf16.mxu0 0
  %3800 = vmatpush1.bf16.msra.mxu0 0
  %3801 = vmatprep.subr.bf16.mxu0 0
  %3802 = vmatpush1.bf16.msra.mxu0 0
  %3803 = vmatprep.subr.bf16.mxu0 0
  %3804 = vmatpush1.bf16.msra.mxu0 0
  %3805 = vmatprep.subr.bf16.mxu0 0
  %3806 = vmatpush1.bf16.msra.mxu0 0
  %3807 = vmatprep.subr.bf16.mxu0 0
  %3808 = vmatpush1.bf16.msra.mxu0 0
  %3809 = vmatprep.subr.bf16.mxu0 0
  %3810 = vmatpush1.bf16.msra.mxu0 0
  %3811 = vmatprep.subr.bf16.mxu0 0
  %3812 = vmatpush1.bf16.msra.mxu0 0
  %3813 = vmatprep.subr.bf16.mxu0 0
  %3814 = vmatpush1.bf16.msra.mxu0 0
  %3815 = vmatprep.subr.bf16.mxu0 0
  %3816 = vmatpush1.bf16.msra.mxu0 0
  %3817 = vmatprep.subr.bf16.mxu0 0
  %3818 = vmatpush1.bf16.msra.mxu0 0
  %3819 = vmatprep.subr.bf16.mxu0 0
  %3820 = vmatpush1.bf16.msra.mxu0 0
  %3821 = vmatprep.subr.bf16.mxu0 0
  %3822 = vmatpush1.bf16.msra.mxu0 0
  %3823 = vmatprep.mubr.bf16.mxu0 0
  %3824 = vmatmul.mubr.bf16.gmra.mrb[0].mxu0 %v3461
  %v3825 = vpop.f32.mrb[0].mxu0
  %v3826 = vadd.f32 %v3047, %v3825
  %v3827 = vpop.f32.mrb[0].mxu0
  %v3828 = vadd.f32 %v3051, %v3827
  %v3829 = vpop.f32.mrb[0].mxu0
  %v3830 = vpop.f32.mrb[0].mxu0
  %3831 = vdwg.mxu0
  %3832 = vmatprep.subr.bf16.mxu0 %v3351
  %3833 = vmatpush1.bf16.msra.mxu0 %v3350
  %3834 = vmatprep.subr.bf16.mxu0 %v3383
  %3835 = vmatpush1.bf16.msra.mxu0 %v3382
  %3836 = vmatprep.subr.bf16.mxu0 0
  %3837 = vmatpush1.bf16.msra.mxu0 0
  %3838 = vmatprep.subr.bf16.mxu0 0
  %3839 = vmatpush1.bf16.msra.mxu0 0
  %3840 = vmatprep.subr.bf16.mxu0 0
  %3841 = vmatpush1.bf16.msra.mxu0 0
  %3842 = vmatprep.subr.bf16.mxu0 0
  %3843 = vmatpush1.bf16.msra.mxu0 0
  %3844 = vmatprep.subr.bf16.mxu0 0
  %3845 = vmatpush1.bf16.msra.mxu0 0
  %3846 = vmatprep.subr.bf16.mxu0 0
  %3847 = vmatpush1.bf16.msra.mxu0 0
  %3848 = vmatprep.subr.bf16.mxu0 0
  %3849 = vmatpush1.bf16.msra.mxu0 0
  %3850 = vmatprep.subr.bf16.mxu0 0
  %3851 = vmatpush1.bf16.msra.mxu0 0
  %3852 = vmatprep.subr.bf16.mxu0 0
  %3853 = vmatpush1.bf16.msra.mxu0 0
  %3854 = vmatprep.subr.bf16.mxu0 0
  %3855 = vmatpush1.bf16.msra.mxu0 0
  %3856 = vmatprep.subr.bf16.mxu0 0
  %3857 = vmatpush1.bf16.msra.mxu0 0
  %3858 = vmatprep.subr.bf16.mxu0 0
  %3859 = vmatpush1.bf16.msra.mxu0 0
  %3860 = vmatprep.subr.bf16.mxu0 0
  %3861 = vmatpush1.bf16.msra.mxu0 0
  %3862 = vmatprep.subr.bf16.mxu0 0
  %3863 = vmatpush1.bf16.msra.mxu0 0
  %3864 = vmatprep.mubr.bf16.mxu0 0
  %3865 = vmatmul.mubr.bf16.gmra.mrb[0].mxu0 %v3461
  %v3866 = vpop.f32.mrb[0].mxu0
  %v3867 = vadd.f32 %v3055, %v3866
  %v3868 = vpop.f32.mrb[0].mxu0
  %v3869 = vadd.f32 %v3059, %v3868
  %v3870 = vpop.f32.mrb[0].mxu0
  %v3871 = vpop.f32.mrb[0].mxu0
  %3872 = vdwg.mxu0
  %3873 = vmatprep.subr.bf16.mxu0 %v3353
  %3874 = vmatpush1.bf16.msra.mxu0 %v3352
  %3875 = vmatprep.subr.bf16.mxu0 %v3385
  %3876 = vmatpush1.bf16.msra.mxu0 %v3384
  %3877 = vmatprep.subr.bf16.mxu0 0
  %3878 = vmatpush1.bf16.msra.mxu0 0
  %3879 = vmatprep.subr.bf16.mxu0 0
  %3880 = vmatpush1.bf16.msra.mxu0 0
  %3881 = vmatprep.subr.bf16.mxu0 0
  %3882 = vmatpush1.bf16.msra.mxu0 0
  %3883 = vmatprep.subr.bf16.mxu0 0
  %3884 = vmatpush1.bf16.msra.mxu0 0
  %3885 = vmatprep.subr.bf16.mxu0 0
  %3886 = vmatpush1.bf16.msra.mxu0 0
  %3887 = vmatprep.subr.bf16.mxu0 0
  %3888 = vmatpush1.bf16.msra.mxu0 0
  %3889 = vmatprep.subr.bf16.mxu0 0
  %3890 = vmatpush1.bf16.msra.mxu0 0
  %3891 = vmatprep.subr.bf16.mxu0 0
  %3892 = vmatpush1.bf16.msra.mxu0 0
  %3893 = vmatprep.subr.bf16.mxu0 0
  %3894 = vmatpush1.bf16.msra.mxu0 0
  %3895 = vmatprep.subr.bf16.mxu0 0
  %3896 = vmatpush1.bf16.msra.mxu0 0
  %3897 = vmatprep.subr.bf16.mxu0 0
  %3898 = vmatpush1.bf16.msra.mxu0 0
  %3899 = vmatprep.subr.bf16.mxu0 0
  %3900 = vmatpush1.bf16.msra.mxu0 0
  %3901 = vmatprep.subr.bf16.mxu0 0
  %3902 = vmatpush1.bf16.msra.mxu0 0
  %3903 = vmatprep.subr.bf16.mxu0 0
  %3904 = vmatpush1.bf16.msra.mxu0 0
  %3905 = vmatprep.mubr.bf16.mxu0 0
  %3906 = vmatmul.mubr.bf16.gmra.mrb[0].mxu0 %v3461
  %v3907 = vpop.f32.mrb[0].mxu0
  %v3908 = vadd.f32 %v3063, %v3907
  %v3909 = vpop.f32.mrb[0].mxu0
  %v3910 = vadd.f32 %v3067, %v3909
  %v3911 = vpop.f32.mrb[0].mxu0
  %v3912 = vpop.f32.mrb[0].mxu0
  %3913 = vdwg.mxu0
  %3914 = vmatprep.subr.bf16.mxu0 %v3355
  %3915 = vmatpush1.bf16.msra.mxu0 %v3354
  %3916 = vmatprep.subr.bf16.mxu0 %v3387
  %3917 = vmatpush1.bf16.msra.mxu0 %v3386
  %3918 = vmatprep.subr.bf16.mxu0 0
  %3919 = vmatpush1.bf16.msra.mxu0 0
  %3920 = vmatprep.subr.bf16.mxu0 0
  %3921 = vmatpush1.bf16.msra.mxu0 0
  %3922 = vmatprep.subr.bf16.mxu0 0
  %3923 = vmatpush1.bf16.msra.mxu0 0
  %3924 = vmatprep.subr.bf16.mxu0 0
  %3925 = vmatpush1.bf16.msra.mxu0 0
  %3926 = vmatprep.subr.bf16.mxu0 0
  %3927 = vmatpush1.bf16.msra.mxu0 0
  %3928 = vmatprep.subr.bf16.mxu0 0
  %3929 = vmatpush1.bf16.msra.mxu0 0
  %3930 = vmatprep.subr.bf16.mxu0 0
  %3931 = vmatpush1.bf16.msra.mxu0 0
  %3932 = vmatprep.subr.bf16.mxu0 0
  %3933 = vmatpush1.bf16.msra.mxu0 0
  %3934 = vmatprep.subr.bf16.mxu0 0
  %3935 = vmatpush1.bf16.msra.mxu0 0
  %3936 = vmatprep.subr.bf16.mxu0 0
  %3937 = vmatpush1.bf16.msra.mxu0 0
  %3938 = vmatprep.subr.bf16.mxu0 0
  %3939 = vmatpush1.bf16.msra.mxu0 0
  %3940 = vmatprep.subr.bf16.mxu0 0
  %3941 = vmatpush1.bf16.msra.mxu0 0
  %3942 = vmatprep.subr.bf16.mxu0 0
  %3943 = vmatpush1.bf16.msra.mxu0 0
  %3944 = vmatprep.subr.bf16.mxu0 0
  %3945 = vmatpush1.bf16.msra.mxu0 0
  %3946 = vmatprep.mubr.bf16.mxu0 0
  %3947 = vmatmul.mubr.bf16.gmra.mrb[0].mxu0 %v3461
  %v3948 = vpop.f32.mrb[0].mxu0
  %v3949 = vadd.f32 %v3071, %v3948
  %v3950 = vpop.f32.mrb[0].mxu0
  %v3951 = vadd.f32 %v3075, %v3950
  %v3952 = vpop.f32.mrb[0].mxu0
  %v3953 = vpop.f32.mrb[0].mxu0
  %3954 = vdwg.mxu0
  %3955 = vmatprep.subr.bf16.mxu0 %v3357
  %3956 = vmatpush1.bf16.msra.mxu0 %v3356
  %3957 = vmatprep.subr.bf16.mxu0 %v3389
  %3958 = vmatpush1.bf16.msra.mxu0 %v3388
  %3959 = vmatprep.subr.bf16.mxu0 0
  %3960 = vmatpush1.bf16.msra.mxu0 0
  %3961 = vmatprep.subr.bf16.mxu0 0
  %3962 = vmatpush1.bf16.msra.mxu0 0
  %3963 = vmatprep.subr.bf16.mxu0 0
  %3964 = vmatpush1.bf16.msra.mxu0 0
  %3965 = vmatprep.subr.bf16.mxu0 0
  %3966 = vmatpush1.bf16.msra.mxu0 0
  %3967 = vmatprep.subr.bf16.mxu0 0
  %3968 = vmatpush1.bf16.msra.mxu0 0
  %3969 = vmatprep.subr.bf16.mxu0 0
  %3970 = vmatpush1.bf16.msra.mxu0 0
  %3971 = vmatprep.subr.bf16.mxu0 0
  %3972 = vmatpush1.bf16.msra.mxu0 0
  %3973 = vmatprep.subr.bf16.mxu0 0
  %3974 = vmatpush1.bf16.msra.mxu0 0
  %3975 = vmatprep.subr.bf16.mxu0 0
  %3976 = vmatpush1.bf16.msra.mxu0 0
  %3977 = vmatprep.subr.bf16.mxu0 0
  %3978 = vmatpush1.bf16.msra.mxu0 0
  %3979 = vmatprep.subr.bf16.mxu0 0
  %3980 = vmatpush1.bf16.msra.mxu0 0
  %3981 = vmatprep.subr.bf16.mxu0 0
  %3982 = vmatpush1.bf16.msra.mxu0 0
  %3983 = vmatprep.subr.bf16.mxu0 0
  %3984 = vmatpush1.bf16.msra.mxu0 0
  %3985 = vmatprep.subr.bf16.mxu0 0
  %3986 = vmatpush1.bf16.msra.mxu0 0
  %3987 = vmatprep.mubr.bf16.mxu0 0
  %3988 = vmatmul.mubr.bf16.gmra.mrb[0].mxu0 %v3461
  %v3989 = vpop.f32.mrb[0].mxu0
  %v3990 = vadd.f32 %v3079, %v3989
  %v3991 = vpop.f32.mrb[0].mxu0
  %v3992 = vadd.f32 %v3083, %v3991
  %v3993 = vpop.f32.mrb[0].mxu0
  %v3994 = vpop.f32.mrb[0].mxu0
  %3995 = vdwg.mxu0
  %3996 = vmatprep.subr.bf16.mxu0 %v3359
  %3997 = vmatpush1.bf16.msra.mxu0 %v3358
  %3998 = vmatprep.subr.bf16.mxu0 %v3391
  %3999 = vmatpush1.bf16.msra.mxu0 %v3390
  %4000 = vmatprep.subr.bf16.mxu0 0
  %4001 = vmatpush1.bf16.msra.mxu0 0
  %4002 = vmatprep.subr.bf16.mxu0 0
  %4003 = vmatpush1.bf16.msra.mxu0 0
  %4004 = vmatprep.subr.bf16.mxu0 0
  %4005 = vmatpush1.bf16.msra.mxu0 0
  %4006 = vmatprep.subr.bf16.mxu0 0
  %4007 = vmatpush1.bf16.msra.mxu0 0
  %4008 = vmatprep.subr.bf16.mxu0 0
  %4009 = vmatpush1.bf16.msra.mxu0 0
  %4010 = vmatprep.subr.bf16.mxu0 0
  %4011 = vmatpush1.bf16.msra.mxu0 0
  %4012 = vmatprep.subr.bf16.mxu0 0
  %4013 = vmatpush1.bf16.msra.mxu0 0
  %4014 = vmatprep.subr.bf16.mxu0 0
  %4015 = vmatpush1.bf16.msra.mxu0 0
  %4016 = vmatprep.subr.bf16.mxu0 0
  %4017 = vmatpush1.bf16.msra.mxu0 0
  %4018 = vmatprep.subr.bf16.mxu0 0
  %4019 = vmatpush1.bf16.msra.mxu0 0
  %4020 = vmatprep.subr.bf16.mxu0 0
  %4021 = vmatpush1.bf16.msra.mxu0 0
  %4022 = vmatprep.subr.bf16.mxu0 0
  %4023 = vmatpush1.bf16.msra.mxu0 0
  %4024 = vmatprep.subr.bf16.mxu0 0
  %4025 = vmatpush1.bf16.msra.mxu0 0
  %4026 = vmatprep.subr.bf16.mxu0 0
  %4027 = vmatpush1.bf16.msra.mxu0 0
  %4028 = vmatprep.mubr.bf16.mxu0 0
  %4029 = vmatmul.mubr.bf16.gmra.mrb[0].mxu0 %v3461
  %v4030 = vpop.f32.mrb[0].mxu0
  %v4031 = vadd.f32 %v3087, %v4030
  %v4032 = vpop.f32.mrb[0].mxu0
  %v4033 = vadd.f32 %v3091, %v4032
  %v4034 = vpop.f32.mrb[0].mxu0
  %v4035 = vpop.f32.mrb[0].mxu0
  %4036 = vdwg.mxu0
  %4037 = vmatprep.subr.bf16.mxu0 %v3361
  %4038 = vmatpush1.bf16.msra.mxu0 %v3360
  %4039 = vmatprep.subr.bf16.mxu0 %v3393
  %4040 = vmatpush1.bf16.msra.mxu0 %v3392
  %4041 = vmatprep.subr.bf16.mxu0 0
  %4042 = vmatpush1.bf16.msra.mxu0 0
  %4043 = vmatprep.subr.bf16.mxu0 0
  %4044 = vmatpush1.bf16.msra.mxu0 0
  %4045 = vmatprep.subr.bf16.mxu0 0
  %4046 = vmatpush1.bf16.msra.mxu0 0
  %4047 = vmatprep.subr.bf16.mxu0 0
  %4048 = vmatpush1.bf16.msra.mxu0 0
  %4049 = vmatprep.subr.bf16.mxu0 0
  %4050 = vmatpush1.bf16.msra.mxu0 0
  %4051 = vmatprep.subr.bf16.mxu0 0
  %4052 = vmatpush1.bf16.msra.mxu0 0
  %4053 = vmatprep.subr.bf16.mxu0 0
  %4054 = vmatpush1.bf16.msra.mxu0 0
  %4055 = vmatprep.subr.bf16.mxu0 0
  %4056 = vmatpush1.bf16.msra.mxu0 0
  %4057 = vmatprep.subr.bf16.mxu0 0
  %4058 = vmatpush1.bf16.msra.mxu0 0
  %4059 = vmatprep.subr.bf16.mxu0 0
  %4060 = vmatpush1.bf16.msra.mxu0 0
  %4061 = vmatprep.subr.bf16.mxu0 0
  %4062 = vmatpush1.bf16.msra.mxu0 0
  %4063 = vmatprep.subr.bf16.mxu0 0
  %4064 = vmatpush1.bf16.msra.mxu0 0
  %4065 = vmatprep.subr.bf16.mxu0 0
  %4066 = vmatpush1.bf16.msra.mxu0 0
  %4067 = vmatprep.subr.bf16.mxu0 0
  %4068 = vmatpush1.bf16.msra.mxu0 0
  %4069 = vmatprep.mubr.bf16.mxu0 0
  %4070 = vmatmul.mubr.bf16.gmra.mrb[0].mxu0 %v3461
  %v4071 = vpop.f32.mrb[0].mxu0
  %v4072 = vadd.f32 %v3095, %v4071
  %v4073 = vpop.f32.mrb[0].mxu0
  %v4074 = vadd.f32 %v3099, %v4073
  %v4075 = vpop.f32.mrb[0].mxu0
  %v4076 = vpop.f32.mrb[0].mxu0
  %4077 = vdwg.mxu0
  %4078 = vmatprep.subr.bf16.mxu0 %v3363
  %4079 = vmatpush1.bf16.msra.mxu0 %v3362
  %4080 = vmatprep.subr.bf16.mxu0 %v3395
  %4081 = vmatpush1.bf16.msra.mxu0 %v3394
  %4082 = vmatprep.subr.bf16.mxu0 0
  %4083 = vmatpush1.bf16.msra.mxu0 0
  %4084 = vmatprep.subr.bf16.mxu0 0
  %4085 = vmatpush1.bf16.msra.mxu0 0
  %4086 = vmatprep.subr.bf16.mxu0 0
  %4087 = vmatpush1.bf16.msra.mxu0 0
  %4088 = vmatprep.subr.bf16.mxu0 0
  %4089 = vmatpush1.bf16.msra.mxu0 0
  %4090 = vmatprep.subr.bf16.mxu0 0
  %4091 = vmatpush1.bf16.msra.mxu0 0
  %4092 = vmatprep.subr.bf16.mxu0 0
  %4093 = vmatpush1.bf16.msra.mxu0 0
  %4094 = vmatprep.subr.bf16.mxu0 0
  %4095 = vmatpush1.bf16.msra.mxu0 0
  %4096 = vmatprep.subr.bf16.mxu0 0
  %4097 = vmatpush1.bf16.msra.mxu0 0
  %4098 = vmatprep.subr.bf16.mxu0 0
  %4099 = vmatpush1.bf16.msra.mxu0 0
  %4100 = vmatprep.subr.bf16.mxu0 0
  %4101 = vmatpush1.bf16.msra.mxu0 0
  %4102 = vmatprep.subr.bf16.mxu0 0
  %4103 = vmatpush1.bf16.msra.mxu0 0
  %4104 = vmatprep.subr.bf16.mxu0 0
  %4105 = vmatpush1.bf16.msra.mxu0 0
  %4106 = vmatprep.subr.bf16.mxu0 0
  %4107 = vmatpush1.bf16.msra.mxu0 0
  %4108 = vmatprep.subr.bf16.mxu0 0
  %4109 = vmatpush1.bf16.msra.mxu0 0
  %4110 = vmatprep.mubr.bf16.mxu0 0
  %4111 = vmatmul.mubr.bf16.gmra.mrb[0].mxu0 %v3461
  %v4112 = vpop.f32.mrb[0].mxu0
  %v4113 = vadd.f32 %v3103, %v4112
  %v4114 = vpop.f32.mrb[0].mxu0
  %v4115 = vadd.f32 %v3107, %v4114
  %v4116 = vpop.f32.mrb[0].mxu0
  %v4117 = vpop.f32.mrb[0].mxu0
  %4118 = vdwg.mxu0
  %v4119 = vmul.f32 %v3498, %v2863
  %v4120 = vmul.f32 %v3500, %v2863
  %v4121 = vmul.f32 %v3539, %v2863
  %v4122 = vmul.f32 %v3541, %v2863
  %v4123 = vmul.f32 %v3580, %v2863
  %v4124 = vmul.f32 %v3582, %v2863
  %v4125 = vmul.f32 %v3621, %v2863
  %v4126 = vmul.f32 %v3623, %v2863
  %v4127 = vmul.f32 %v3662, %v2863
  %v4128 = vmul.f32 %v3664, %v2863
  %v4129 = vmul.f32 %v3703, %v2863
  %v4130 = vmul.f32 %v3705, %v2863
  %v4131 = vmul.f32 %v3744, %v2863
  %v4132 = vmul.f32 %v3746, %v2863
  %v4133 = vmul.f32 %v3785, %v2863
  %v4134 = vmul.f32 %v3787, %v2863
  %v4135 = vmul.f32 %v3826, %v2863
  %v4136 = vmul.f32 %v3828, %v2863
  %v4137 = vmul.f32 %v3867, %v2863
  %v4138 = vmul.f32 %v3869, %v2863
  %v4139 = vmul.f32 %v3908, %v2863
  %v4140 = vmul.f32 %v3910, %v2863
  %v4141 = vmul.f32 %v3949, %v2863
  %v4142 = vmul.f32 %v3951, %v2863
  %v4143 = vmul.f32 %v3990, %v2863
  %v4144 = vmul.f32 %v3992, %v2863
  %v4145 = vmul.f32 %v4031, %v2863
  %v4146 = vmul.f32 %v4033, %v2863
  %v4147 = vmul.f32 %v4072, %v2863
  %v4148 = vmul.f32 %v4074, %v2863
  %v4149 = vmul.f32 %v4113, %v2863
  %v4150 = vmul.f32 %v4115, %v2863
  %v4151 = vrot.slane %v4119, 4
  %v4152 = vadd.f32 %v4119, %v4151
  %v4153 = vrot.slane %v4152, 2
  %v4154 = vadd.f32 %v4152, %v4153
  %v4155 = vrot.slane %v4154, 1
  %v4156 = vadd.f32 %v4154, %v4155
  %v4157 = vrot.slane %v4120, 4
  %v4158 = vadd.f32 %v4120, %v4157
  %v4159 = vrot.slane %v4158, 2
  %v4160 = vadd.f32 %v4158, %v4159
  %v4161 = vrot.slane %v4160, 1
  %v4162 = vadd.f32 %v4160, %v4161
  %v4163 = vrot.slane %v4121, 4
  %v4164 = vadd.f32 %v4121, %v4163
  %v4165 = vrot.slane %v4164, 2
  %v4166 = vadd.f32 %v4164, %v4165
  %v4167 = vrot.slane %v4166, 1
  %v4168 = vadd.f32 %v4166, %v4167
  %v4169 = vrot.slane %v4122, 4
  %v4170 = vadd.f32 %v4122, %v4169
  %v4171 = vrot.slane %v4170, 2
  %v4172 = vadd.f32 %v4170, %v4171
  %v4173 = vrot.slane %v4172, 1
  %v4174 = vadd.f32 %v4172, %v4173
  %v4175 = vrot.slane %v4123, 4
  %v4176 = vadd.f32 %v4123, %v4175
  %v4177 = vrot.slane %v4176, 2
  %v4178 = vadd.f32 %v4176, %v4177
  %v4179 = vrot.slane %v4178, 1
  %v4180 = vadd.f32 %v4178, %v4179
  %v4181 = vrot.slane %v4124, 4
  %v4182 = vadd.f32 %v4124, %v4181
  %v4183 = vrot.slane %v4182, 2
  %v4184 = vadd.f32 %v4182, %v4183
  %v4185 = vrot.slane %v4184, 1
  %v4186 = vadd.f32 %v4184, %v4185
  %v4187 = vrot.slane %v4125, 4
  %v4188 = vadd.f32 %v4125, %v4187
  %v4189 = vrot.slane %v4188, 2
  %v4190 = vadd.f32 %v4188, %v4189
  %v4191 = vrot.slane %v4190, 1
  %v4192 = vadd.f32 %v4190, %v4191
  %v4193 = vrot.slane %v4126, 4
  %v4194 = vadd.f32 %v4126, %v4193
  %v4195 = vrot.slane %v4194, 2
  %v4196 = vadd.f32 %v4194, %v4195
  %v4197 = vrot.slane %v4196, 1
  %v4198 = vadd.f32 %v4196, %v4197
  %v4199 = vrot.slane %v4127, 4
  %v4200 = vadd.f32 %v4127, %v4199
  %v4201 = vrot.slane %v4200, 2
  %v4202 = vadd.f32 %v4200, %v4201
  %v4203 = vrot.slane %v4202, 1
  %v4204 = vadd.f32 %v4202, %v4203
  %v4205 = vrot.slane %v4128, 4
  %v4206 = vadd.f32 %v4128, %v4205
  %v4207 = vrot.slane %v4206, 2
  %v4208 = vadd.f32 %v4206, %v4207
  %v4209 = vrot.slane %v4208, 1
  %v4210 = vadd.f32 %v4208, %v4209
  %v4211 = vrot.slane %v4129, 4
  %v4212 = vadd.f32 %v4129, %v4211
  %v4213 = vrot.slane %v4212, 2
  %v4214 = vadd.f32 %v4212, %v4213
  %v4215 = vrot.slane %v4214, 1
  %v4216 = vadd.f32 %v4214, %v4215
  %v4217 = vrot.slane %v4130, 4
  %v4218 = vadd.f32 %v4130, %v4217
  %v4219 = vrot.slane %v4218, 2
  %v4220 = vadd.f32 %v4218, %v4219
  %v4221 = vrot.slane %v4220, 1
  %v4222 = vadd.f32 %v4220, %v4221
  %v4223 = vrot.slane %v4131, 4
  %v4224 = vadd.f32 %v4131, %v4223
  %v4225 = vrot.slane %v4224, 2
  %v4226 = vadd.f32 %v4224, %v4225
  %v4227 = vrot.slane %v4226, 1
  %v4228 = vadd.f32 %v4226, %v4227
  %v4229 = vrot.slane %v4132, 4
  %v4230 = vadd.f32 %v4132, %v4229
  %v4231 = vrot.slane %v4230, 2
  %v4232 = vadd.f32 %v4230, %v4231
  %v4233 = vrot.slane %v4232, 1
  %v4234 = vadd.f32 %v4232, %v4233
  %v4235 = vrot.slane %v4133, 4
  %v4236 = vadd.f32 %v4133, %v4235
  %v4237 = vrot.slane %v4236, 2
  %v4238 = vadd.f32 %v4236, %v4237
  %v4239 = vrot.slane %v4238, 1
  %v4240 = vadd.f32 %v4238, %v4239
  %v4241 = vrot.slane %v4134, 4
  %v4242 = vadd.f32 %v4134, %v4241
  %v4243 = vrot.slane %v4242, 2
  %v4244 = vadd.f32 %v4242, %v4243
  %v4245 = vrot.slane %v4244, 1
  %v4246 = vadd.f32 %v4244, %v4245
  %v4247 = vrot.slane %v4135, 4
  %v4248 = vadd.f32 %v4135, %v4247
  %v4249 = vrot.slane %v4248, 2
  %v4250 = vadd.f32 %v4248, %v4249
  %v4251 = vrot.slane %v4250, 1
  %v4252 = vadd.f32 %v4250, %v4251
  %v4253 = vrot.slane %v4136, 4
  %v4254 = vadd.f32 %v4136, %v4253
  %v4255 = vrot.slane %v4254, 2
  %v4256 = vadd.f32 %v4254, %v4255
  %v4257 = vrot.slane %v4256, 1
  %v4258 = vadd.f32 %v4256, %v4257
  %v4259 = vrot.slane %v4137, 4
  %v4260 = vadd.f32 %v4137, %v4259
  %v4261 = vrot.slane %v4260, 2
  %v4262 = vadd.f32 %v4260, %v4261
  %v4263 = vrot.slane %v4262, 1
  %v4264 = vadd.f32 %v4262, %v4263
  %v4265 = vrot.slane %v4138, 4
  %v4266 = vadd.f32 %v4138, %v4265
  %v4267 = vrot.slane %v4266, 2
  %v4268 = vadd.f32 %v4266, %v4267
  %v4269 = vrot.slane %v4268, 1
  %v4270 = vadd.f32 %v4268, %v4269
  %v4271 = vrot.slane %v4139, 4
  %v4272 = vadd.f32 %v4139, %v4271
  %v4273 = vrot.slane %v4272, 2
  %v4274 = vadd.f32 %v4272, %v4273
  %v4275 = vrot.slane %v4274, 1
  %v4276 = vadd.f32 %v4274, %v4275
  %v4277 = vrot.slane %v4140, 4
  %v4278 = vadd.f32 %v4140, %v4277
  %v4279 = vrot.slane %v4278, 2
  %v4280 = vadd.f32 %v4278, %v4279
  %v4281 = vrot.slane %v4280, 1
  %v4282 = vadd.f32 %v4280, %v4281
  %v4283 = vrot.slane %v4141, 4
  %v4284 = vadd.f32 %v4141, %v4283
  %v4285 = vrot.slane %v4284, 2
  %v4286 = vadd.f32 %v4284, %v4285
  %v4287 = vrot.slane %v4286, 1
  %v4288 = vadd.f32 %v4286, %v4287
  %v4289 = vrot.slane %v4142, 4
  %v4290 = vadd.f32 %v4142, %v4289
  %v4291 = vrot.slane %v4290, 2
  %v4292 = vadd.f32 %v4290, %v4291
  %v4293 = vrot.slane %v4292, 1
  %v4294 = vadd.f32 %v4292, %v4293
  %v4295 = vrot.slane %v4143, 4
  %v4296 = vadd.f32 %v4143, %v4295
  %v4297 = vrot.slane %v4296, 2
  %v4298 = vadd.f32 %v4296, %v4297
  %v4299 = vrot.slane %v4298, 1
  %v4300 = vadd.f32 %v4298, %v4299
  %v4301 = vrot.slane %v4144, 4
  %v4302 = vadd.f32 %v4144, %v4301
  %v4303 = vrot.slane %v4302, 2
  %v4304 = vadd.f32 %v4302, %v4303
  %v4305 = vrot.slane %v4304, 1
  %v4306 = vadd.f32 %v4304, %v4305
  %v4307 = vrot.slane %v4145, 4
  %v4308 = vadd.f32 %v4145, %v4307
  %v4309 = vrot.slane %v4308, 2
  %v4310 = vadd.f32 %v4308, %v4309
  %v4311 = vrot.slane %v4310, 1
  %v4312 = vadd.f32 %v4310, %v4311
  %v4313 = vrot.slane %v4146, 4
  %v4314 = vadd.f32 %v4146, %v4313
  %v4315 = vrot.slane %v4314, 2
  %v4316 = vadd.f32 %v4314, %v4315
  %v4317 = vrot.slane %v4316, 1
  %v4318 = vadd.f32 %v4316, %v4317
  %v4319 = vrot.slane %v4147, 4
  %v4320 = vadd.f32 %v4147, %v4319
  %v4321 = vrot.slane %v4320, 2
  %v4322 = vadd.f32 %v4320, %v4321
  %v4323 = vrot.slane %v4322, 1
  %v4324 = vadd.f32 %v4322, %v4323
  %v4325 = vrot.slane %v4148, 4
  %v4326 = vadd.f32 %v4148, %v4325
  %v4327 = vrot.slane %v4326, 2
  %v4328 = vadd.f32 %v4326, %v4327
  %v4329 = vrot.slane %v4328, 1
  %v4330 = vadd.f32 %v4328, %v4329
  %v4331 = vrot.slane %v4149, 4
  %v4332 = vadd.f32 %v4149, %v4331
  %v4333 = vrot.slane %v4332, 2
  %v4334 = vadd.f32 %v4332, %v4333
  %v4335 = vrot.slane %v4334, 1
  %v4336 = vadd.f32 %v4334, %v4335
  %v4337 = vrot.slane %v4150, 4
  %v4338 = vadd.f32 %v4150, %v4337
  %v4339 = vrot.slane %v4338, 2
  %v4340 = vadd.f32 %v4338, %v4339
  %v4341 = vrot.slane %v4340, 1
  %v4342 = vadd.f32 %v4340, %v4341
  %v4343 = vmul.f32 %v4156, 0.5
  %v4344 = vmul.f32 %v4162, 0.5
  %v4345 = vmul.f32 %v4168, 0.5
  %v4346 = vmul.f32 %v4174, 0.5
  %v4347 = vmul.f32 %v4180, 0.5
  %v4348 = vmul.f32 %v4186, 0.5
  %v4349 = vmul.f32 %v4192, 0.5
  %v4350 = vmul.f32 %v4198, 0.5
  %v4351 = vmul.f32 %v4204, 0.5
  %v4352 = vmul.f32 %v4210, 0.5
  %v4353 = vmul.f32 %v4216, 0.5
  %v4354 = vmul.f32 %v4222, 0.5
  %v4355 = vmul.f32 %v4228, 0.5
  %v4356 = vmul.f32 %v4234, 0.5
  %v4357 = vmul.f32 %v4240, 0.5
  %v4358 = vmul.f32 %v4246, 0.5
  %v4359 = vmul.f32 %v4252, 0.5
  %v4360 = vmul.f32 %v4258, 0.5
  %v4361 = vmul.f32 %v4264, 0.5
  %v4362 = vmul.f32 %v4270, 0.5
  %v4363 = vmul.f32 %v4276, 0.5
  %v4364 = vmul.f32 %v4282, 0.5
  %v4365 = vmul.f32 %v4288, 0.5
  %v4366 = vmul.f32 %v4294, 0.5
  %v4367 = vmul.f32 %v4300, 0.5
  %v4368 = vmul.f32 %v4306, 0.5
  %v4369 = vmul.f32 %v4312, 0.5
  %v4370 = vmul.f32 %v4318, 0.5
  %v4371 = vmul.f32 %v4324, 0.5
  %v4372 = vmul.f32 %v4330, 0.5
  %v4373 = vmul.f32 %v4336, 0.5
  %v4374 = vmul.f32 %v4342, 0.5
  %v4375 = vsub.f32 %v3498, %v4343
  %v4376 = vsub.f32 %v3500, %v4344
  %v4377 = vsub.f32 %v3539, %v4345
  %v4378 = vsub.f32 %v3541, %v4346
  %v4379 = vsub.f32 %v3580, %v4347
  %v4380 = vsub.f32 %v3582, %v4348
  %v4381 = vsub.f32 %v3621, %v4349
  %v4382 = vsub.f32 %v3623, %v4350
  %v4383 = vsub.f32 %v3662, %v4351
  %v4384 = vsub.f32 %v3664, %v4352
  %v4385 = vsub.f32 %v3703, %v4353
  %v4386 = vsub.f32 %v3705, %v4354
  %v4387 = vsub.f32 %v3744, %v4355
  %v4388 = vsub.f32 %v3746, %v4356
  %v4389 = vsub.f32 %v3785, %v4357
  %v4390 = vsub.f32 %v3787, %v4358
  %v4391 = vsub.f32 %v3826, %v4359
  %v4392 = vsub.f32 %v3828, %v4360
  %v4393 = vsub.f32 %v3867, %v4361
  %v4394 = vsub.f32 %v3869, %v4362
  %v4395 = vsub.f32 %v3908, %v4363
  %v4396 = vsub.f32 %v3910, %v4364
  %v4397 = vsub.f32 %v3949, %v4365
  %v4398 = vsub.f32 %v3951, %v4366
  %v4399 = vsub.f32 %v3990, %v4367
  %v4400 = vsub.f32 %v3992, %v4368
  %v4401 = vsub.f32 %v4031, %v4369
  %v4402 = vsub.f32 %v4033, %v4370
  %v4403 = vsub.f32 %v4072, %v4371
  %v4404 = vsub.f32 %v4074, %v4372
  %v4405 = vsub.f32 %v4113, %v4373
  %v4406 = vsub.f32 %v4115, %v4374
  %v4407 = vmul.f32 %v4375, %v4375
  %v4408 = vmul.f32 %v4376, %v4376
  %v4409 = vmul.f32 %v4377, %v4377
  %v4410 = vmul.f32 %v4378, %v4378
  %v4411 = vmul.f32 %v4379, %v4379
  %v4412 = vmul.f32 %v4380, %v4380
  %v4413 = vmul.f32 %v4381, %v4381
  %v4414 = vmul.f32 %v4382, %v4382
  %v4415 = vmul.f32 %v4383, %v4383
  %v4416 = vmul.f32 %v4384, %v4384
  %v4417 = vmul.f32 %v4385, %v4385
  %v4418 = vmul.f32 %v4386, %v4386
  %v4419 = vmul.f32 %v4387, %v4387
  %v4420 = vmul.f32 %v4388, %v4388
  %v4421 = vmul.f32 %v4389, %v4389
  %v4422 = vmul.f32 %v4390, %v4390
  %v4423 = vmul.f32 %v4391, %v4391
  %v4424 = vmul.f32 %v4392, %v4392
  %v4425 = vmul.f32 %v4393, %v4393
  %v4426 = vmul.f32 %v4394, %v4394
  %v4427 = vmul.f32 %v4395, %v4395
  %v4428 = vmul.f32 %v4396, %v4396
  %v4429 = vmul.f32 %v4397, %v4397
  %v4430 = vmul.f32 %v4398, %v4398
  %v4431 = vmul.f32 %v4399, %v4399
  %v4432 = vmul.f32 %v4400, %v4400
  %v4433 = vmul.f32 %v4401, %v4401
  %v4434 = vmul.f32 %v4402, %v4402
  %v4435 = vmul.f32 %v4403, %v4403
  %v4436 = vmul.f32 %v4404, %v4404
  %v4437 = vmul.f32 %v4405, %v4405
  %v4438 = vmul.f32 %v4406, %v4406
  %v4439 = vmul.f32 %v4407, %v2863
  %v4440 = vmul.f32 %v4408, %v2863
  %v4441 = vmul.f32 %v4409, %v2863
  %v4442 = vmul.f32 %v4410, %v2863
  %v4443 = vmul.f32 %v4411, %v2863
  %v4444 = vmul.f32 %v4412, %v2863
  %v4445 = vmul.f32 %v4413, %v2863
  %v4446 = vmul.f32 %v4414, %v2863
  %v4447 = vmul.f32 %v4415, %v2863
  %v4448 = vmul.f32 %v4416, %v2863
  %v4449 = vmul.f32 %v4417, %v2863
  %v4450 = vmul.f32 %v4418, %v2863
  %v4451 = vmul.f32 %v4419, %v2863
  %v4452 = vmul.f32 %v4420, %v2863
  %v4453 = vmul.f32 %v4421, %v2863
  %v4454 = vmul.f32 %v4422, %v2863
  %v4455 = vmul.f32 %v4423, %v2863
  %v4456 = vmul.f32 %v4424, %v2863
  %v4457 = vmul.f32 %v4425, %v2863
  %v4458 = vmul.f32 %v4426, %v2863
  %v4459 = vmul.f32 %v4427, %v2863
  %v4460 = vmul.f32 %v4428, %v2863
  %v4461 = vmul.f32 %v4429, %v2863
  %v4462 = vmul.f32 %v4430, %v2863
  %v4463 = vmul.f32 %v4431, %v2863
  %v4464 = vmul.f32 %v4432, %v2863
  %v4465 = vmul.f32 %v4433, %v2863
  %v4466 = vmul.f32 %v4434, %v2863
  %v4467 = vmul.f32 %v4435, %v2863
  %v4468 = vmul.f32 %v4436, %v2863
  %v4469 = vmul.f32 %v4437, %v2863
  %v4470 = vmul.f32 %v4438, %v2863
  %v4471 = vrot.slane %v4439, 4
  %v4472 = vadd.f32 %v4439, %v4471
  %v4473 = vrot.slane %v4472, 2
  %v4474 = vadd.f32 %v4472, %v4473
  %v4475 = vrot.slane %v4474, 1
  %v4476 = vadd.f32 %v4474, %v4475
  %v4477 = vrot.slane %v4440, 4
  %v4478 = vadd.f32 %v4440, %v4477
  %v4479 = vrot.slane %v4478, 2
  %v4480 = vadd.f32 %v4478, %v4479
  %v4481 = vrot.slane %v4480, 1
  %v4482 = vadd.f32 %v4480, %v4481
  %v4483 = vrot.slane %v4441, 4
  %v4484 = vadd.f32 %v4441, %v4483
  %v4485 = vrot.slane %v4484, 2
  %v4486 = vadd.f32 %v4484, %v4485
  %v4487 = vrot.slane %v4486, 1
  %v4488 = vadd.f32 %v4486, %v4487
  %v4489 = vrot.slane %v4442, 4
  %v4490 = vadd.f32 %v4442, %v4489
  %v4491 = vrot.slane %v4490, 2
  %v4492 = vadd.f32 %v4490, %v4491
  %v4493 = vrot.slane %v4492, 1
  %v4494 = vadd.f32 %v4492, %v4493
  %v4495 = vrot.slane %v4443, 4
  %v4496 = vadd.f32 %v4443, %v4495
  %v4497 = vrot.slane %v4496, 2
  %v4498 = vadd.f32 %v4496, %v4497
  %v4499 = vrot.slane %v4498, 1
  %v4500 = vadd.f32 %v4498, %v4499
  %v4501 = vrot.slane %v4444, 4
  %v4502 = vadd.f32 %v4444, %v4501
  %v4503 = vrot.slane %v4502, 2
  %v4504 = vadd.f32 %v4502, %v4503
  %v4505 = vrot.slane %v4504, 1
  %v4506 = vadd.f32 %v4504, %v4505
  %v4507 = vrot.slane %v4445, 4
  %v4508 = vadd.f32 %v4445, %v4507
  %v4509 = vrot.slane %v4508, 2
  %v4510 = vadd.f32 %v4508, %v4509
  %v4511 = vrot.slane %v4510, 1
  %v4512 = vadd.f32 %v4510, %v4511
  %v4513 = vrot.slane %v4446, 4
  %v4514 = vadd.f32 %v4446, %v4513
  %v4515 = vrot.slane %v4514, 2
  %v4516 = vadd.f32 %v4514, %v4515
  %v4517 = vrot.slane %v4516, 1
  %v4518 = vadd.f32 %v4516, %v4517
  %v4519 = vrot.slane %v4447, 4
  %v4520 = vadd.f32 %v4447, %v4519
  %v4521 = vrot.slane %v4520, 2
  %v4522 = vadd.f32 %v4520, %v4521
  %v4523 = vrot.slane %v4522, 1
  %v4524 = vadd.f32 %v4522, %v4523
  %v4525 = vrot.slane %v4448, 4
  %v4526 = vadd.f32 %v4448, %v4525
  %v4527 = vrot.slane %v4526, 2
  %v4528 = vadd.f32 %v4526, %v4527
  %v4529 = vrot.slane %v4528, 1
  %v4530 = vadd.f32 %v4528, %v4529
  %v4531 = vrot.slane %v4449, 4
  %v4532 = vadd.f32 %v4449, %v4531
  %v4533 = vrot.slane %v4532, 2
  %v4534 = vadd.f32 %v4532, %v4533
  %v4535 = vrot.slane %v4534, 1
  %v4536 = vadd.f32 %v4534, %v4535
  %v4537 = vrot.slane %v4450, 4
  %v4538 = vadd.f32 %v4450, %v4537
  %v4539 = vrot.slane %v4538, 2
  %v4540 = vadd.f32 %v4538, %v4539
  %v4541 = vrot.slane %v4540, 1
  %v4542 = vadd.f32 %v4540, %v4541
  %v4543 = vrot.slane %v4451, 4
  %v4544 = vadd.f32 %v4451, %v4543
  %v4545 = vrot.slane %v4544, 2
  %v4546 = vadd.f32 %v4544, %v4545
  %v4547 = vrot.slane %v4546, 1
  %v4548 = vadd.f32 %v4546, %v4547
  %v4549 = vrot.slane %v4452, 4
  %v4550 = vadd.f32 %v4452, %v4549
  %v4551 = vrot.slane %v4550, 2
  %v4552 = vadd.f32 %v4550, %v4551
  %v4553 = vrot.slane %v4552, 1
  %v4554 = vadd.f32 %v4552, %v4553
  %v4555 = vrot.slane %v4453, 4
  %v4556 = vadd.f32 %v4453, %v4555
  %v4557 = vrot.slane %v4556, 2
  %v4558 = vadd.f32 %v4556, %v4557
  %v4559 = vrot.slane %v4558, 1
  %v4560 = vadd.f32 %v4558, %v4559
  %v4561 = vrot.slane %v4454, 4
  %v4562 = vadd.f32 %v4454, %v4561
  %v4563 = vrot.slane %v4562, 2
  %v4564 = vadd.f32 %v4562, %v4563
  %v4565 = vrot.slane %v4564, 1
  %v4566 = vadd.f32 %v4564, %v4565
  %v4567 = vrot.slane %v4455, 4
  %v4568 = vadd.f32 %v4455, %v4567
  %v4569 = vrot.slane %v4568, 2
  %v4570 = vadd.f32 %v4568, %v4569
  %v4571 = vrot.slane %v4570, 1
  %v4572 = vadd.f32 %v4570, %v4571
  %v4573 = vrot.slane %v4456, 4
  %v4574 = vadd.f32 %v4456, %v4573
  %v4575 = vrot.slane %v4574, 2
  %v4576 = vadd.f32 %v4574, %v4575
  %v4577 = vrot.slane %v4576, 1
  %v4578 = vadd.f32 %v4576, %v4577
  %v4579 = vrot.slane %v4457, 4
  %v4580 = vadd.f32 %v4457, %v4579
  %v4581 = vrot.slane %v4580, 2
  %v4582 = vadd.f32 %v4580, %v4581
  %v4583 = vrot.slane %v4582, 1
  %v4584 = vadd.f32 %v4582, %v4583
  %v4585 = vrot.slane %v4458, 4
  %v4586 = vadd.f32 %v4458, %v4585
  %v4587 = vrot.slane %v4586, 2
  %v4588 = vadd.f32 %v4586, %v4587
  %v4589 = vrot.slane %v4588, 1
  %v4590 = vadd.f32 %v4588, %v4589
  %v4591 = vrot.slane %v4459, 4
  %v4592 = vadd.f32 %v4459, %v4591
  %v4593 = vrot.slane %v4592, 2
  %v4594 = vadd.f32 %v4592, %v4593
  %v4595 = vrot.slane %v4594, 1
  %v4596 = vadd.f32 %v4594, %v4595
  %v4597 = vrot.slane %v4460, 4
  %v4598 = vadd.f32 %v4460, %v4597
  %v4599 = vrot.slane %v4598, 2
  %v4600 = vadd.f32 %v4598, %v4599
  %v4601 = vrot.slane %v4600, 1
  %v4602 = vadd.f32 %v4600, %v4601
  %v4603 = vrot.slane %v4461, 4
  %v4604 = vadd.f32 %v4461, %v4603
  %v4605 = vrot.slane %v4604, 2
  %v4606 = vadd.f32 %v4604, %v4605
  %v4607 = vrot.slane %v4606, 1
  %v4608 = vadd.f32 %v4606, %v4607
  %v4609 = vrot.slane %v4462, 4
  %v4610 = vadd.f32 %v4462, %v4609
  %v4611 = vrot.slane %v4610, 2
  %v4612 = vadd.f32 %v4610, %v4611
  %v4613 = vrot.slane %v4612, 1
  %v4614 = vadd.f32 %v4612, %v4613
  %v4615 = vrot.slane %v4463, 4
  %v4616 = vadd.f32 %v4463, %v4615
  %v4617 = vrot.slane %v4616, 2
  %v4618 = vadd.f32 %v4616, %v4617
  %v4619 = vrot.slane %v4618, 1
  %v4620 = vadd.f32 %v4618, %v4619
  %v4621 = vrot.slane %v4464, 4
  %v4622 = vadd.f32 %v4464, %v4621
  %v4623 = vrot.slane %v4622, 2
  %v4624 = vadd.f32 %v4622, %v4623
  %v4625 = vrot.slane %v4624, 1
  %v4626 = vadd.f32 %v4624, %v4625
  %v4627 = vrot.slane %v4465, 4
  %v4628 = vadd.f32 %v4465, %v4627
  %v4629 = vrot.slane %v4628, 2
  %v4630 = vadd.f32 %v4628, %v4629
  %v4631 = vrot.slane %v4630, 1
  %v4632 = vadd.f32 %v4630, %v4631
  %v4633 = vrot.slane %v4466, 4
  %v4634 = vadd.f32 %v4466, %v4633
  %v4635 = vrot.slane %v4634, 2
  %v4636 = vadd.f32 %v4634, %v4635
  %v4637 = vrot.slane %v4636, 1
  %v4638 = vadd.f32 %v4636, %v4637
  %v4639 = vrot.slane %v4467, 4
  %v4640 = vadd.f32 %v4467, %v4639
  %v4641 = vrot.slane %v4640, 2
  %v4642 = vadd.f32 %v4640, %v4641
  %v4643 = vrot.slane %v4642, 1
  %v4644 = vadd.f32 %v4642, %v4643
  %v4645 = vrot.slane %v4468, 4
  %v4646 = vadd.f32 %v4468, %v4645
  %v4647 = vrot.slane %v4646, 2
  %v4648 = vadd.f32 %v4646, %v4647
  %v4649 = vrot.slane %v4648, 1
  %v4650 = vadd.f32 %v4648, %v4649
  %v4651 = vrot.slane %v4469, 4
  %v4652 = vadd.f32 %v4469, %v4651
  %v4653 = vrot.slane %v4652, 2
  %v4654 = vadd.f32 %v4652, %v4653
  %v4655 = vrot.slane %v4654, 1
  %v4656 = vadd.f32 %v4654, %v4655
  %v4657 = vrot.slane %v4470, 4
  %v4658 = vadd.f32 %v4470, %v4657
  %v4659 = vrot.slane %v4658, 2
  %v4660 = vadd.f32 %v4658, %v4659
  %v4661 = vrot.slane %v4660, 1
  %v4662 = vadd.f32 %v4660, %v4661
  %v4663 = vmul.f32 %v4476, 0.5
  %v4664 = vmul.f32 %v4482, 0.5
  %v4665 = vmul.f32 %v4488, 0.5
  %v4666 = vmul.f32 %v4494, 0.5
  %v4667 = vmul.f32 %v4500, 0.5
  %v4668 = vmul.f32 %v4506, 0.5
  %v4669 = vmul.f32 %v4512, 0.5
  %v4670 = vmul.f32 %v4518, 0.5
  %v4671 = vmul.f32 %v4524, 0.5
  %v4672 = vmul.f32 %v4530, 0.5
  %v4673 = vmul.f32 %v4536, 0.5
  %v4674 = vmul.f32 %v4542, 0.5
  %v4675 = vmul.f32 %v4548, 0.5
  %v4676 = vmul.f32 %v4554, 0.5
  %v4677 = vmul.f32 %v4560, 0.5
  %v4678 = vmul.f32 %v4566, 0.5
  %v4679 = vmul.f32 %v4572, 0.5
  %v4680 = vmul.f32 %v4578, 0.5
  %v4681 = vmul.f32 %v4584, 0.5
  %v4682 = vmul.f32 %v4590, 0.5
  %v4683 = vmul.f32 %v4596, 0.5
  %v4684 = vmul.f32 %v4602, 0.5
  %v4685 = vmul.f32 %v4608, 0.5
  %v4686 = vmul.f32 %v4614, 0.5
  %v4687 = vmul.f32 %v4620, 0.5
  %v4688 = vmul.f32 %v4626, 0.5
  %v4689 = vmul.f32 %v4632, 0.5
  %v4690 = vmul.f32 %v4638, 0.5
  %v4691 = vmul.f32 %v4644, 0.5
  %v4692 = vmul.f32 %v4650, 0.5
  %v4693 = vmul.f32 %v4656, 0.5
  %v4694 = vmul.f32 %v4662, 0.5
  %v4695 = vadd.f32 %v4663, 1e-05
  %v4696 = vadd.f32 %v4664, 1e-05
  %v4697 = vadd.f32 %v4665, 1e-05
  %v4698 = vadd.f32 %v4666, 1e-05
  %v4699 = vadd.f32 %v4667, 1e-05
  %v4700 = vadd.f32 %v4668, 1e-05
  %v4701 = vadd.f32 %v4669, 1e-05
  %v4702 = vadd.f32 %v4670, 1e-05
  %v4703 = vadd.f32 %v4671, 1e-05
  %v4704 = vadd.f32 %v4672, 1e-05
  %v4705 = vadd.f32 %v4673, 1e-05
  %v4706 = vadd.f32 %v4674, 1e-05
  %v4707 = vadd.f32 %v4675, 1e-05
  %v4708 = vadd.f32 %v4676, 1e-05
  %v4709 = vadd.f32 %v4677, 1e-05
  %v4710 = vadd.f32 %v4678, 1e-05
  %v4711 = vadd.f32 %v4679, 1e-05
  %v4712 = vadd.f32 %v4680, 1e-05
  %v4713 = vadd.f32 %v4681, 1e-05
  %v4714 = vadd.f32 %v4682, 1e-05
  %v4715 = vadd.f32 %v4683, 1e-05
  %v4716 = vadd.f32 %v4684, 1e-05
  %v4717 = vadd.f32 %v4685, 1e-05
  %v4718 = vadd.f32 %v4686, 1e-05
  %v4719 = vadd.f32 %v4687, 1e-05
  %v4720 = vadd.f32 %v4688, 1e-05
  %v4721 = vadd.f32 %v4689, 1e-05
  %v4722 = vadd.f32 %v4690, 1e-05
  %v4723 = vadd.f32 %v4691, 1e-05
  %v4724 = vadd.f32 %v4692, 1e-05
  %v4725 = vadd.f32 %v4693, 1e-05
  %v4726 = vadd.f32 %v4694, 1e-05
  %v4727 = vrsqrt.pop %v4695
  %v4728 = vrsqrt.pop %v4696
  %v4729 = vrsqrt.pop %v4697
  %v4730 = vrsqrt.pop %v4698
  %v4731 = vrsqrt.pop %v4699
  %v4732 = vrsqrt.pop %v4700
  %v4733 = vrsqrt.pop %v4701
  %v4734 = vrsqrt.pop %v4702
  %v4735 = vrsqrt.pop %v4703
  %v4736 = vrsqrt.pop %v4704
  %v4737 = vrsqrt.pop %v4705
  %v4738 = vrsqrt.pop %v4706
  %v4739 = vrsqrt.pop %v4707
  %v4740 = vrsqrt.pop %v4708
  %v4741 = vrsqrt.pop %v4709
  %v4742 = vrsqrt.pop %v4710
  %v4743 = vrsqrt.pop %v4711
  %v4744 = vrsqrt.pop %v4712
  %v4745 = vrsqrt.pop %v4713
  %v4746 = vrsqrt.pop %v4714
  %v4747 = vrsqrt.pop %v4715
  %v4748 = vrsqrt.pop %v4716
  %v4749 = vrsqrt.pop %v4717
  %v4750 = vrsqrt.pop %v4718
  %v4751 = vrsqrt.pop %v4719
  %v4752 = vrsqrt.pop %v4720
  %v4753 = vrsqrt.pop %v4721
  %v4754 = vrsqrt.pop %v4722
  %v4755 = vrsqrt.pop %v4723
  %v4756 = vrsqrt.pop %v4724
  %v4757 = vrsqrt.pop %v4725
  %v4758 = vrsqrt.pop %v4726
  %v4759 = vmul.f32 %v4375, %v4727
  %v4760 = vmul.f32 %v4376, %v4728
  %v4761 = vmul.f32 %v4377, %v4729
  %v4762 = vmul.f32 %v4378, %v4730
  %v4763 = vmul.f32 %v4379, %v4731
  %v4764 = vmul.f32 %v4380, %v4732
  %v4765 = vmul.f32 %v4381, %v4733
  %v4766 = vmul.f32 %v4382, %v4734
  %v4767 = vmul.f32 %v4383, %v4735
  %v4768 = vmul.f32 %v4384, %v4736
  %v4769 = vmul.f32 %v4385, %v4737
  %v4770 = vmul.f32 %v4386, %v4738
  %v4771 = vmul.f32 %v4387, %v4739
  %v4772 = vmul.f32 %v4388, %v4740
  %v4773 = vmul.f32 %v4389, %v4741
  %v4774 = vmul.f32 %v4390, %v4742
  %v4775 = vmul.f32 %v4391, %v4743
  %v4776 = vmul.f32 %v4392, %v4744
  %v4777 = vmul.f32 %v4393, %v4745
  %v4778 = vmul.f32 %v4394, %v4746
  %v4779 = vmul.f32 %v4395, %v4747
  %v4780 = vmul.f32 %v4396, %v4748
  %v4781 = vmul.f32 %v4397, %v4749
  %v4782 = vmul.f32 %v4398, %v4750
  %v4783 = vmul.f32 %v4399, %v4751
  %v4784 = vmul.f32 %v4400, %v4752
  %v4785 = vmul.f32 %v4401, %v4753
  %v4786 = vmul.f32 %v4402, %v4754
  %v4787 = vmul.f32 %v4403, %v4755
  %v4788 = vmul.f32 %v4404, %v4756
  %v4789 = vmul.f32 %v4405, %v4757
  %v4790 = vmul.f32 %v4406, %v4758
  %v4791 = vld [vmem:[%s8] sm:$0xff]
  %v4792 = vld [vmem:[%s8 + $0x8] sm:$0xff]
  %v4793 = vld [vmem:[%s8 + $0x10] sm:$0xff]
  %v4794 = vld [vmem:[%s8 + $0x18] sm:$0xff]
  %v4799 = vlaneseq
  %v4800 = vshrl.u32 %v4799, 7
  %v4801 = vsub.s32 0, %v4800
  %v4802 = vrot.slane %v4791, %v4801
  %v4803 = vlaneseq
  %v4804 = vshrl.u32 %v4803, 7
  %v4805 = vsub.s32 1, %v4804
  %v4806 = vrot.slane %v4791, %v4805
  %v4807 = vlaneseq
  %v4808 = vshrl.u32 %v4807, 7
  %v4809 = vsub.s32 2, %v4808
  %v4810 = vrot.slane %v4791, %v4809
  %v4811 = vlaneseq
  %v4812 = vshrl.u32 %v4811, 7
  %v4813 = vsub.s32 3, %v4812
  %v4814 = vrot.slane %v4791, %v4813
  %v4815 = vlaneseq
  %v4816 = vshrl.u32 %v4815, 7
  %v4817 = vsub.s32 4, %v4816
  %v4818 = vrot.slane %v4791, %v4817
  %v4819 = vlaneseq
  %v4820 = vshrl.u32 %v4819, 7
  %v4821 = vsub.s32 5, %v4820
  %v4822 = vrot.slane %v4791, %v4821
  %v4823 = vlaneseq
  %v4824 = vshrl.u32 %v4823, 7
  %v4825 = vsub.s32 6, %v4824
  %v4826 = vrot.slane %v4791, %v4825
  %v4827 = vlaneseq
  %v4828 = vshrl.u32 %v4827, 7
  %v4829 = vsub.s32 7, %v4828
  %v4830 = vrot.slane %v4791, %v4829
  %v4831 = vlaneseq
  %v4832 = vshrl.u32 %v4831, 7
  %v4833 = vsub.s32 0, %v4832
  %v4834 = vrot.slane %v4792, %v4833
  %v4835 = vlaneseq
  %v4836 = vshrl.u32 %v4835, 7
  %v4837 = vsub.s32 1, %v4836
  %v4838 = vrot.slane %v4792, %v4837
  %v4839 = vlaneseq
  %v4840 = vshrl.u32 %v4839, 7
  %v4841 = vsub.s32 2, %v4840
  %v4842 = vrot.slane %v4792, %v4841
  %v4843 = vlaneseq
  %v4844 = vshrl.u32 %v4843, 7
  %v4845 = vsub.s32 3, %v4844
  %v4846 = vrot.slane %v4792, %v4845
  %v4847 = vlaneseq
  %v4848 = vshrl.u32 %v4847, 7
  %v4849 = vsub.s32 4, %v4848
  %v4850 = vrot.slane %v4792, %v4849
  %v4851 = vlaneseq
  %v4852 = vshrl.u32 %v4851, 7
  %v4853 = vsub.s32 5, %v4852
  %v4854 = vrot.slane %v4792, %v4853
  %v4855 = vlaneseq
  %v4856 = vshrl.u32 %v4855, 7
  %v4857 = vsub.s32 6, %v4856
  %v4858 = vrot.slane %v4792, %v4857
  %v4859 = vlaneseq
  %v4860 = vshrl.u32 %v4859, 7
  %v4861 = vsub.s32 7, %v4860
  %v4862 = vrot.slane %v4792, %v4861
  %v4863 = vlaneseq
  %v4864 = vshrl.u32 %v4863, 7
  %v4865 = vsub.s32 0, %v4864
  %v4866 = vrot.slane %v4793, %v4865
  %v4867 = vlaneseq
  %v4868 = vshrl.u32 %v4867, 7
  %v4869 = vsub.s32 1, %v4868
  %v4870 = vrot.slane %v4793, %v4869
  %v4871 = vlaneseq
  %v4872 = vshrl.u32 %v4871, 7
  %v4873 = vsub.s32 2, %v4872
  %v4874 = vrot.slane %v4793, %v4873
  %v4875 = vlaneseq
  %v4876 = vshrl.u32 %v4875, 7
  %v4877 = vsub.s32 3, %v4876
  %v4878 = vrot.slane %v4793, %v4877
  %v4879 = vlaneseq
  %v4880 = vshrl.u32 %v4879, 7
  %v4881 = vsub.s32 4, %v4880
  %v4882 = vrot.slane %v4793, %v4881
  %v4883 = vlaneseq
  %v4884 = vshrl.u32 %v4883, 7
  %v4885 = vsub.s32 5, %v4884
  %v4886 = vrot.slane %v4793, %v4885
  %v4887 = vlaneseq
  %v4888 = vshrl.u32 %v4887, 7
  %v4889 = vsub.s32 6, %v4888
  %v4890 = vrot.slane %v4793, %v4889
  %v4891 = vlaneseq
  %v4892 = vshrl.u32 %v4891, 7
  %v4893 = vsub.s32 7, %v4892
  %v4894 = vrot.slane %v4793, %v4893
  %v4895 = vlaneseq
  %v4896 = vshrl.u32 %v4895, 7
  %v4897 = vsub.s32 0, %v4896
  %v4898 = vrot.slane %v4794, %v4897
  %v4899 = vlaneseq
  %v4900 = vshrl.u32 %v4899, 7
  %v4901 = vsub.s32 1, %v4900
  %v4902 = vrot.slane %v4794, %v4901
  %v4903 = vlaneseq
  %v4904 = vshrl.u32 %v4903, 7
  %v4905 = vsub.s32 2, %v4904
  %v4906 = vrot.slane %v4794, %v4905
  %v4907 = vlaneseq
  %v4908 = vshrl.u32 %v4907, 7
  %v4909 = vsub.s32 3, %v4908
  %v4910 = vrot.slane %v4794, %v4909
  %v4911 = vlaneseq
  %v4912 = vshrl.u32 %v4911, 7
  %v4913 = vsub.s32 4, %v4912
  %v4914 = vrot.slane %v4794, %v4913
  %v4915 = vlaneseq
  %v4916 = vshrl.u32 %v4915, 7
  %v4917 = vsub.s32 5, %v4916
  %v4918 = vrot.slane %v4794, %v4917
  %v4919 = vlaneseq
  %v4920 = vshrl.u32 %v4919, 7
  %v4921 = vsub.s32 6, %v4920
  %v4922 = vrot.slane %v4794, %v4921
  %v4923 = vlaneseq
  %v4924 = vshrl.u32 %v4923, 7
  %v4925 = vsub.s32 7, %v4924
  %v4926 = vrot.slane %v4794, %v4925
  %v4959 = vmul.f32 %v4759, %v4802
  %v4960 = vmul.f32 %v4760, %v4806
  %v4961 = vmul.f32 %v4761, %v4810
  %v4962 = vmul.f32 %v4762, %v4814
  %v4963 = vmul.f32 %v4763, %v4818
  %v4964 = vmul.f32 %v4764, %v4822
  %v4965 = vmul.f32 %v4765, %v4826
  %v4966 = vmul.f32 %v4766, %v4830
  %v4967 = vmul.f32 %v4767, %v4834
  %v4968 = vmul.f32 %v4768, %v4838
  %v4969 = vmul.f32 %v4769, %v4842
  %v4970 = vmul.f32 %v4770, %v4846
  %v4971 = vmul.f32 %v4771, %v4850
  %v4972 = vmul.f32 %v4772, %v4854
  %v4973 = vmul.f32 %v4773, %v4858
  %v4974 = vmul.f32 %v4774, %v4862
  %v4975 = vmul.f32 %v4775, %v4866
  %v4976 = vmul.f32 %v4776, %v4870
  %v4977 = vmul.f32 %v4777, %v4874
  %v4978 = vmul.f32 %v4778, %v4878
  %v4979 = vmul.f32 %v4779, %v4882
  %v4980 = vmul.f32 %v4780, %v4886
  %v4981 = vmul.f32 %v4781, %v4890
  %v4982 = vmul.f32 %v4782, %v4894
  %v4983 = vmul.f32 %v4783, %v4898
  %v4984 = vmul.f32 %v4784, %v4902
  %v4985 = vmul.f32 %v4785, %v4906
  %v4986 = vmul.f32 %v4786, %v4910
  %v4987 = vmul.f32 %v4787, %v4914
  %v4988 = vmul.f32 %v4788, %v4918
  %v4989 = vmul.f32 %v4789, %v4922
  %v4990 = vmul.f32 %v4790, %v4926
  %v4991 = vld [vmem:[%s9] sm:$0xff]
  %v4992 = vld [vmem:[%s9 + $0x8] sm:$0xff]
  %v4993 = vld [vmem:[%s9 + $0x10] sm:$0xff]
  %v4994 = vld [vmem:[%s9 + $0x18] sm:$0xff]
  %v4999 = vlaneseq
  %v5000 = vshrl.u32 %v4999, 7
  %v5001 = vsub.s32 0, %v5000
  %v5002 = vrot.slane %v4991, %v5001
  %v5003 = vlaneseq
  %v5004 = vshrl.u32 %v5003, 7
  %v5005 = vsub.s32 1, %v5004
  %v5006 = vrot.slane %v4991, %v5005
  %v5007 = vlaneseq
  %v5008 = vshrl.u32 %v5007, 7
  %v5009 = vsub.s32 2, %v5008
  %v5010 = vrot.slane %v4991, %v5009
  %v5011 = vlaneseq
  %v5012 = vshrl.u32 %v5011, 7
  %v5013 = vsub.s32 3, %v5012
  %v5014 = vrot.slane %v4991, %v5013
  %v5015 = vlaneseq
  %v5016 = vshrl.u32 %v5015, 7
  %v5017 = vsub.s32 4, %v5016
  %v5018 = vrot.slane %v4991, %v5017
  %v5019 = vlaneseq
  %v5020 = vshrl.u32 %v5019, 7
  %v5021 = vsub.s32 5, %v5020
  %v5022 = vrot.slane %v4991, %v5021
  %v5023 = vlaneseq
  %v5024 = vshrl.u32 %v5023, 7
  %v5025 = vsub.s32 6, %v5024
  %v5026 = vrot.slane %v4991, %v5025
  %v5027 = vlaneseq
  %v5028 = vshrl.u32 %v5027, 7
  %v5029 = vsub.s32 7, %v5028
  %v5030 = vrot.slane %v4991, %v5029
  %v5031 = vlaneseq
  %v5032 = vshrl.u32 %v5031, 7
  %v5033 = vsub.s32 0, %v5032
  %v5034 = vrot.slane %v4992, %v5033
  %v5035 = vlaneseq
  %v5036 = vshrl.u32 %v5035, 7
  %v5037 = vsub.s32 1, %v5036
  %v5038 = vrot.slane %v4992, %v5037
  %v5039 = vlaneseq
  %v5040 = vshrl.u32 %v5039, 7
  %v5041 = vsub.s32 2, %v5040
  %v5042 = vrot.slane %v4992, %v5041
  %v5043 = vlaneseq
  %v5044 = vshrl.u32 %v5043, 7
  %v5045 = vsub.s32 3, %v5044
  %v5046 = vrot.slane %v4992, %v5045
  %v5047 = vlaneseq
  %v5048 = vshrl.u32 %v5047, 7
  %v5049 = vsub.s32 4, %v5048
  %v5050 = vrot.slane %v4992, %v5049
  %v5051 = vlaneseq
  %v5052 = vshrl.u32 %v5051, 7
  %v5053 = vsub.s32 5, %v5052
  %v5054 = vrot.slane %v4992, %v5053
  %v5055 = vlaneseq
  %v5056 = vshrl.u32 %v5055, 7
  %v5057 = vsub.s32 6, %v5056
  %v5058 = vrot.slane %v4992, %v5057
  %v5059 = vlaneseq
  %v5060 = vshrl.u32 %v5059, 7
  %v5061 = vsub.s32 7, %v5060
  %v5062 = vrot.slane %v4992, %v5061
  %v5063 = vlaneseq
  %v5064 = vshrl.u32 %v5063, 7
  %v5065 = vsub.s32 0, %v5064
  %v5066 = vrot.slane %v4993, %v5065
  %v5067 = vlaneseq
  %v5068 = vshrl.u32 %v5067, 7
  %v5069 = vsub.s32 1, %v5068
  %v5070 = vrot.slane %v4993, %v5069
  %v5071 = vlaneseq
  %v5072 = vshrl.u32 %v5071, 7
  %v5073 = vsub.s32 2, %v5072
  %v5074 = vrot.slane %v4993, %v5073
  %v5075 = vlaneseq
  %v5076 = vshrl.u32 %v5075, 7
  %v5077 = vsub.s32 3, %v5076
  %v5078 = vrot.slane %v4993, %v5077
  %v5079 = vlaneseq
  %v5080 = vshrl.u32 %v5079, 7
  %v5081 = vsub.s32 4, %v5080
  %v5082 = vrot.slane %v4993, %v5081
  %v5083 = vlaneseq
  %v5084 = vshrl.u32 %v5083, 7
  %v5085 = vsub.s32 5, %v5084
  %v5086 = vrot.slane %v4993, %v5085
  %v5087 = vlaneseq
  %v5088 = vshrl.u32 %v5087, 7
  %v5089 = vsub.s32 6, %v5088
  %v5090 = vrot.slane %v4993, %v5089
  %v5091 = vlaneseq
  %v5092 = vshrl.u32 %v5091, 7
  %v5093 = vsub.s32 7, %v5092
  %v5094 = vrot.slane %v4993, %v5093
  %v5095 = vlaneseq
  %v5096 = vshrl.u32 %v5095, 7
  %v5097 = vsub.s32 0, %v5096
  %v5098 = vrot.slane %v4994, %v5097
  %v5099 = vlaneseq
  %v5100 = vshrl.u32 %v5099, 7
  %v5101 = vsub.s32 1, %v5100
  %v5102 = vrot.slane %v4994, %v5101
  %v5103 = vlaneseq
  %v5104 = vshrl.u32 %v5103, 7
  %v5105 = vsub.s32 2, %v5104
  %v5106 = vrot.slane %v4994, %v5105
  %v5107 = vlaneseq
  %v5108 = vshrl.u32 %v5107, 7
  %v5109 = vsub.s32 3, %v5108
  %v5110 = vrot.slane %v4994, %v5109
  %v5111 = vlaneseq
  %v5112 = vshrl.u32 %v5111, 7
  %v5113 = vsub.s32 4, %v5112
  %v5114 = vrot.slane %v4994, %v5113
  %v5115 = vlaneseq
  %v5116 = vshrl.u32 %v5115, 7
  %v5117 = vsub.s32 5, %v5116
  %v5118 = vrot.slane %v4994, %v5117
  %v5119 = vlaneseq
  %v5120 = vshrl.u32 %v5119, 7
  %v5121 = vsub.s32 6, %v5120
  %v5122 = vrot.slane %v4994, %v5121
  %v5123 = vlaneseq
  %v5124 = vshrl.u32 %v5123, 7
  %v5125 = vsub.s32 7, %v5124
  %v5126 = vrot.slane %v4994, %v5125
  %v5159 = vadd.f32 %v4959, %v5002
  %v5160 = vadd.f32 %v4960, %v5006
  %v5161 = vadd.f32 %v4961, %v5010
  %v5162 = vadd.f32 %v4962, %v5014
  %v5163 = vadd.f32 %v4963, %v5018
  %v5164 = vadd.f32 %v4964, %v5022
  %v5165 = vadd.f32 %v4965, %v5026
  %v5166 = vadd.f32 %v4966, %v5030
  %v5167 = vadd.f32 %v4967, %v5034
  %v5168 = vadd.f32 %v4968, %v5038
  %v5169 = vadd.f32 %v4969, %v5042
  %v5170 = vadd.f32 %v4970, %v5046
  %v5171 = vadd.f32 %v4971, %v5050
  %v5172 = vadd.f32 %v4972, %v5054
  %v5173 = vadd.f32 %v4973, %v5058
  %v5174 = vadd.f32 %v4974, %v5062
  %v5175 = vadd.f32 %v4975, %v5066
  %v5176 = vadd.f32 %v4976, %v5070
  %v5177 = vadd.f32 %v4977, %v5074
  %v5178 = vadd.f32 %v4978, %v5078
  %v5179 = vadd.f32 %v4979, %v5082
  %v5180 = vadd.f32 %v4980, %v5086
  %v5181 = vadd.f32 %v4981, %v5090
  %v5182 = vadd.f32 %v4982, %v5094
  %v5183 = vadd.f32 %v4983, %v5098
  %v5184 = vadd.f32 %v4984, %v5102
  %v5185 = vadd.f32 %v4985, %v5106
  %v5186 = vadd.f32 %v4986, %v5110
  %v5187 = vadd.f32 %v4987, %v5114
  %v5188 = vadd.f32 %v4988, %v5118
  %v5189 = vadd.f32 %v4989, %v5122
  %v5190 = vadd.f32 %v4990, %v5126
  %v5191 = vmax.f32 %v5159, 0.0
  %v5192 = vmax.f32 %v5160, 0.0
  %v5193 = vmax.f32 %v5161, 0.0
  %v5194 = vmax.f32 %v5162, 0.0
  %v5195 = vmax.f32 %v5163, 0.0
  %v5196 = vmax.f32 %v5164, 0.0
  %v5197 = vmax.f32 %v5165, 0.0
  %v5198 = vmax.f32 %v5166, 0.0
  %v5199 = vmax.f32 %v5167, 0.0
  %v5200 = vmax.f32 %v5168, 0.0
  %v5201 = vmax.f32 %v5169, 0.0
  %v5202 = vmax.f32 %v5170, 0.0
  %v5203 = vmax.f32 %v5171, 0.0
  %v5204 = vmax.f32 %v5172, 0.0
  %v5205 = vmax.f32 %v5173, 0.0
  %v5206 = vmax.f32 %v5174, 0.0
  %v5207 = vmax.f32 %v5175, 0.0
  %v5208 = vmax.f32 %v5176, 0.0
  %v5209 = vmax.f32 %v5177, 0.0
  %v5210 = vmax.f32 %v5178, 0.0
  %v5211 = vmax.f32 %v5179, 0.0
  %v5212 = vmax.f32 %v5180, 0.0
  %v5213 = vmax.f32 %v5181, 0.0
  %v5214 = vmax.f32 %v5182, 0.0
  %v5215 = vmax.f32 %v5183, 0.0
  %v5216 = vmax.f32 %v5184, 0.0
  %v5217 = vmax.f32 %v5185, 0.0
  %v5218 = vmax.f32 %v5186, 0.0
  %v5219 = vmax.f32 %v5187, 0.0
  %v5220 = vmax.f32 %v5188, 0.0
  %v5221 = vmax.f32 %v5189, 0.0
  %v5222 = vmax.f32 %v5190, 0.0
  %v5223 = vpack.c.bf16 %v5191, %v5191
  %v5224 = vpack.c.bf16 %v5192, %v5192
  %v5225 = vpack.c.bf16 %v5193, %v5193
  %v5226 = vpack.c.bf16 %v5194, %v5194
  %v5227 = vpack.c.bf16 %v5195, %v5195
  %v5228 = vpack.c.bf16 %v5196, %v5196
  %v5229 = vpack.c.bf16 %v5197, %v5197
  %v5230 = vpack.c.bf16 %v5198, %v5198
  %v5231 = vpack.c.bf16 %v5199, %v5199
  %v5232 = vpack.c.bf16 %v5200, %v5200
  %v5233 = vpack.c.bf16 %v5201, %v5201
  %v5234 = vpack.c.bf16 %v5202, %v5202
  %v5235 = vpack.c.bf16 %v5203, %v5203
  %v5236 = vpack.c.bf16 %v5204, %v5204
  %v5237 = vpack.c.bf16 %v5205, %v5205
  %v5238 = vpack.c.bf16 %v5206, %v5206
  %v5239 = vpack.c.bf16 %v5207, %v5207
  %v5240 = vpack.c.bf16 %v5208, %v5208
  %v5241 = vpack.c.bf16 %v5209, %v5209
  %v5242 = vpack.c.bf16 %v5210, %v5210
  %v5243 = vpack.c.bf16 %v5211, %v5211
  %v5244 = vpack.c.bf16 %v5212, %v5212
  %v5245 = vpack.c.bf16 %v5213, %v5213
  %v5246 = vpack.c.bf16 %v5214, %v5214
  %v5247 = vpack.c.bf16 %v5215, %v5215
  %v5248 = vpack.c.bf16 %v5216, %v5216
  %v5249 = vpack.c.bf16 %v5217, %v5217
  %v5250 = vpack.c.bf16 %v5218, %v5218
  %v5251 = vpack.c.bf16 %v5219, %v5219
  %v5252 = vpack.c.bf16 %v5220, %v5220
  %v5253 = vpack.c.bf16 %v5221, %v5221
  %v5254 = vpack.c.bf16 %v5222, %v5222
  %v5287 = vunpack.c.l.b16 %v5223
  %v5288 = vunpack.c.l.b16 %v5224
  %v5289 = vunpack.c.l.b16 %v5225
  %v5290 = vunpack.c.l.b16 %v5226
  %v5291 = vunpack.c.l.b16 %v5227
  %v5292 = vunpack.c.l.b16 %v5228
  %v5293 = vunpack.c.l.b16 %v5229
  %v5294 = vunpack.c.l.b16 %v5230
  %v5295 = vunpack.c.l.b16 %v5231
  %v5296 = vunpack.c.l.b16 %v5232
  %v5297 = vunpack.c.l.b16 %v5233
  %v5298 = vunpack.c.l.b16 %v5234
  %v5299 = vunpack.c.l.b16 %v5235
  %v5300 = vunpack.c.l.b16 %v5236
  %v5301 = vunpack.c.l.b16 %v5237
  %v5302 = vunpack.c.l.b16 %v5238
  %v5303 = vunpack.c.l.b16 %v5239
  %v5304 = vunpack.c.l.b16 %v5240
  %v5305 = vunpack.c.l.b16 %v5241
  %v5306 = vunpack.c.l.b16 %v5242
  %v5307 = vunpack.c.l.b16 %v5243
  %v5308 = vunpack.c.l.b16 %v5244
  %v5309 = vunpack.c.l.b16 %v5245
  %v5310 = vunpack.c.l.b16 %v5246
  %v5311 = vunpack.c.l.b16 %v5247
  %v5312 = vunpack.c.l.b16 %v5248
  %v5313 = vunpack.c.l.b16 %v5249
  %v5314 = vunpack.c.l.b16 %v5250
  %v5315 = vunpack.c.l.b16 %v5251
  %v5316 = vunpack.c.l.b16 %v5252
  %v5317 = vunpack.c.l.b16 %v5253
  %v5318 = vunpack.c.l.b16 %v5254
  %v5319 = vpack.c.b16 %v5288, %v5287
  %v5320 = vpack.c.b16 %v5290, %v5289
  %v5321 = vpack.c.b16 %v5292, %v5291
  %v5322 = vpack.c.b16 %v5294, %v5293
  %v5323 = vpack.c.b16 %v5296, %v5295
  %v5324 = vpack.c.b16 %v5298, %v5297
  %v5325 = vpack.c.b16 %v5300, %v5299
  %v5326 = vpack.c.b16 %v5302, %v5301
  %v5327 = vpack.c.b16 %v5304, %v5303
  %v5328 = vpack.c.b16 %v5306, %v5305
  %v5329 = vpack.c.b16 %v5308, %v5307
  %v5330 = vpack.c.b16 %v5310, %v5309
  %v5331 = vpack.c.b16 %v5312, %v5311
  %v5332 = vpack.c.b16 %v5314, %v5313
  %v5333 = vpack.c.b16 %v5316, %v5315
  %v5334 = vpack.c.b16 %v5318, %v5317
  %5351 = vst [vmem:[%s10] sm:$0xff] %v5319
  %5352 = vst [vmem:[%s10 + $0x8] sm:$0xff] %v5320
  %5353 = vst [vmem:[%s10 + $0x10] sm:$0xff] %v5321
  %5354 = vst [vmem:[%s10 + $0x18] sm:$0xff] %v5322
  %5355 = vst [vmem:[%s10 + $0x20] sm:$0xff] %v5323
  %5356 = vst [vmem:[%s10 + $0x28] sm:$0xff] %v5324
  %5357 = vst [vmem:[%s10 + $0x30] sm:$0xff] %v5325
  %5358 = vst [vmem:[%s10 + $0x38] sm:$0xff] %v5326
  %5359 = vst [vmem:[%s10 + $0x40] sm:$0xff] %v5327
  %5360 = vst [vmem:[%s10 + $0x48] sm:$0xff] %v5328
  %5361 = vst [vmem:[%s10 + $0x50] sm:$0xff] %v5329
  %5362 = vst [vmem:[%s10 + $0x58] sm:$0xff] %v5330
  %5363 = vst [vmem:[%s10 + $0x60] sm:$0xff] %v5331
  %5364 = vst [vmem:[%s10 + $0x68] sm:$0xff] %v5332
  %5365 = vst [vmem:[%s10 + $0x70] sm:$0xff] %v5333
  %5366 = vst [vmem:[%s10 + $0x78] sm:$0xff] %v5334
  // Predicated region
  $region42: #{discriminator_forward.4} parent=0 // pred_check
    _
  $region43: #{discriminator_forward.4} parent=0 // pred_check_branch
    %5368 = sbr.rel (0) target = $region45
  $region44: #{discriminator_forward.4} parent=0 // pred_region
    _
  $region45: #{discriminator_forward.4} parent=0 // pred_fallthru
    _
  // Predicated region
  $region46: #{discriminator_forward.4} parent=0 // pred_check
    _
  $region47: #{discriminator_forward.4} parent=0 // pred_check_branch
    %5370 = sbr.rel (0) target = $region49
  $region48: #{discriminator_forward.4} parent=0 // pred_region
    _
  $region49: #{discriminator_forward.4} parent=0 // pred_fallthru
    _

// kernel: discriminator_forward.5
$region0: #{discriminator_forward.5}
  #allocation0 [shape = 'u32[]', space=smem, size = 0x4, offset = 0x4, fixed_abs, tag = 'smem constant byte address 0x4 - core index']
  #allocation1 [shape = 'u32[144,128]{1,0:T(1,128)}', space=vmem, size = 0x12000, scoped, tag = 'internal scratch']
  %s0 = inlined_call_operand.vmem [shape: bf16[2,64,512], index: 0, kind: input, shape index: {}]
  %s1 = inlined_call_operand.vmem [shape: bf16[9,8,64], index: 1, kind: input, shape index: {}]
  %s2 = inlined_call_operand.vmem [shape: f32[8,1], index: 2, kind: input, shape index: {}]
  %s3 = inlined_call_operand.vmem [shape: f32[2,8,384], index: 3, kind: output, shape index: {}]
  %s4 = sld [smem:[#allocation0]]
  $region45: #{discriminator_forward.5} parent=0
    _
  %s6 = ssub.s32 1, %s4
  %s7 = scalar_select 0, %s6, %s4
  loop: start=0, step=1, limit=4
  $region2: #{discriminator_forward.5} parent=0 // loop_pre_header
    _
  $region3: #{discriminator_forward.5} parent=0 // loop_header
    %s9 = sphi 0, %s13
    %p10 = scmp.ge.s32.totalorder %s9, 4
    %s19 = sphi 0, %s21
    %s22 = sphi 0, %s19
    %s23 = sphi 0, %s22
    %s39 = sphi 0, %s23
    %s43 = sphi 0, %s43
    %s45 = sphi 0, %s43
    %s46 = sphi 0, %s45
    %s60 = sphi 0, %s46
    %s64 = sphi 0, %s64
    %s66 = sphi 0, %s64
    %s67 = sphi 0, %s66
    %s81 = sphi 0, %s67
    %s87 = sphi 0, %s89
    %s90 = sphi 0, %s87
    %s91 = sphi 0, %s90
    %s107 = sphi 0, %s91
  $region4: #{discriminator_forward.5} parent=0 // loop_header_branch
    %12 = sbr.rel (%p10) target = $region8
  $region5: #{discriminator_forward.5} parent=0 // loop_body
    %s14 = ssub.s32 %s9, 1
    %s15 = ssub.s32 %s9, 2
    %s16 = sadd.s32 %s9, 1
    %s17 = ssub.s32 %s9, %s16
    %p18 = scmp.eq.s32.totalorder %s17, 0
    %s20 = sadd.s32 %s19, 1
    %s21 = scalar_select %p18, %s19, %s20
    %p24 = pneg %p18
    %p25 = scmp.eq.s32.totalorder %s9, 1
    %p26 = por %p24, %p25
    %p27 = scmp.ne.s32.totalorder %s19, %s22
    %p28 = scmp.eq.s32.totalorder %s9, 0
    %p29 = por %p27, %p28
    %p30 = scmp.ne.s32.totalorder %s19, %s22
    %p31 = scmp.eq.s32.totalorder %s14, 1
    %p32 = por %p30, %p31
    %p33 = scmp.ne.s32.totalorder %s22, %s23
    %p34 = scmp.eq.s32.totalorder %s14, 0
    %p35 = por %p33, %p34
    %p36 = scmp.ne.s32.totalorder %s22, %s23
    %p37 = scmp.eq.s32.totalorder %s15, 1
    %p38 = por %p36, %p37
    %p40 = scmp.ne.s32.totalorder %s23, %s39
    %p41 = scmp.eq.s32.totalorder %s15, 0
    %p42 = por %p40, %p41
    %s44 = sadd.s32 %s43, 1
    %p47 = scmp.eq.s32.totalorder %s9, 1
    %p48 = scmp.ne.s32.totalorder %s43, %s45
    %p49 = scmp.eq.s32.totalorder %s9, 0
    %p50 = por %p48, %p49
    %p51 = scmp.ne.s32.totalorder %s43, %s45
    %p52 = scmp.eq.s32.totalorder %s14, 1
    %p53 = por %p51, %p52
    %p54 = scmp.ne.s32.totalorder %s45, %s46
    %p55 = scmp.eq.s32.totalorder %s14, 0
    %p56 = por %p54, %p55
    %p57 = scmp.ne.s32.totalorder %s45, %s46
    %p58 = scmp.eq.s32.totalorder %s15, 1
    %p59 = por %p57, %p58
    %p61 = scmp.ne.s32.totalorder %s46, %s60
    %p62 = scmp.eq.s32.totalorder %s15, 0
    %p63 = por %p61, %p62
    %s65 = sadd.s32 %s64, 1
    %p68 = scmp.eq.s32.totalorder %s9, 1
    %p69 = scmp.ne.s32.totalorder %s64, %s66
    %p70 = scmp.eq.s32.totalorder %s9, 0
    %p71 = por %p69, %p70
    %p72 = scmp.ne.s32.totalorder %s64, %s66
    %p73 = scmp.eq.s32.totalorder %s14, 1
    %p74 = por %p72, %p73
    %p75 = scmp.ne.s32.totalorder %s66, %s67
    %p76 = scmp.eq.s32.totalorder %s14, 0
    %p77 = por %p75, %p76
    %p78 = scmp.ne.s32.totalorder %s66, %s67
    %p79 = scmp.eq.s32.totalorder %s15, 1
    %p80 = por %p78, %p79
    %p82 = scmp.ne.s32.totalorder %s67, %s81
    %p83 = scmp.eq.s32.totalorder %s15, 0
    %p84 = por %p82, %p83
    %s85 = ssub.s32 %s9, %s16
    %p86 = scmp.eq.s32.totalorder %s85, 0
    %s88 = sadd.s32 %s87, 1
    %s89 = scalar_select %p86, %s87, %s88
    %p92 = pneg %p86
    %p93 = scmp.eq.s32.totalorder %s9, 1
    %p94 = por %p92, %p93
    %p95 = scmp.ne.s32.totalorder %s87, %s90
    %p96 = scmp.eq.s32.totalorder %s9, 0
    %p97 = por %p95, %p96
    %p98 = scmp.ne.s32.totalorder %s87, %s90
    %p99 = scmp.eq.s32.totalorder %s14, 1
    %p100 = por %p98, %p99
    %p101 = scmp.ne.s32.totalorder %s90, %s91
    %p102 = scmp.eq.s32.totalorder %s14, 0
    %p103 = por %p101, %p102
    %p104 = scmp.ne.s32.totalorder %s90, %s91
    %p105 = scmp.eq.s32.totalorder %s15, 1
    %p106 = por %p104, %p105
    %p108 = scmp.ne.s32.totalorder %s91, %s107
    %p109 = scmp.eq.s32.totalorder %s15, 0
    %p110 = por %p108, %p109
    %p111 = scmp.le.s32.totalorder 1, %s9
    %p112 = scmp.lt.s32.totalorder %s9, 3
    %p113 = pnand %p111, %p112
    %p114 = pneg %p113
    // Predicated region
    $region9: #{discriminator_forward.5} parent=5 // pred_check
      _
    $region10: #{discriminator_forward.5} parent=5 // pred_check_branch
      %116 = sbr.rel (%p113) target = $region12
    $region11: #{discriminator_forward.5} parent=5 // pred_region
      %s117 = ssub.s32 %s9, 1
      // Predicated region
      $region13: #{discriminator_forward.5} parent=11 // pred_check
        %p118 = pneg %p56
      $region14: #{discriminator_forward.5} parent=11 // pred_check_branch
        %120 = sbr.rel (%p118) target = $region16
      $region15: #{discriminator_forward.5} parent=11 // pred_region
        _
      $region16: #{discriminator_forward.5} parent=11 // pred_fallthru
        _
      // Predicated region
      $region17: #{discriminator_forward.5} parent=11 // pred_check
        %p121 = pneg %p77
      $region18: #{discriminator_forward.5} parent=11 // pred_check_branch
        %123 = sbr.rel (%p121) target = $region20
      $region19: #{discriminator_forward.5} parent=11 // pred_region
        _
      $region20: #{discriminator_forward.5} parent=11 // pred_fallthru
        _
    $region12: #{discriminator_forward.5} parent=5 // pred_fallthru
      _
    %p124 = scmp.lt.s32.totalorder %s9, 2
    // Predicated region
    $region21: #{discriminator_forward.5} parent=5 // pred_check
      %p125 = pneg %p124
    $region22: #{discriminator_forward.5} parent=5 // pred_check_branch
      %127 = sbr.rel (%p125) target = $region24
    $region23: #{discriminator_forward.5} parent=5 // pred_region
      // Predicated region
      $region25: #{discriminator_forward.5} parent=23 // pred_check
        %p128 = pneg %p29
      $region26: #{discriminator_forward.5} parent=23 // pred_check_branch
        %130 = sbr.rel (%p128) target = $region28
      $region27: #{discriminator_forward.5} parent=23 // pred_region
        %p131 = scmp.lt.s32.totalorder %s9, 1
        %s132 = scalar_select %p131, %s9, 1
        %s133 = smul.addr %s132, 32
        %s134 = smul.addr %s133, 4
        %s135 = scalar_lea.vmem %s0, %s134
      $region28: #{discriminator_forward.5} parent=23 // pred_fallthru
        _
    $region24: #{discriminator_forward.5} parent=5 // pred_fallthru
      _
    %p136 = scmp.le.s32.totalorder 1, %s9
    %p137 = scmp.lt.s32.totalorder %s9, 3
    %p138 = pnand %p136, %p137
    %p139 = pneg %p138
    // Predicated region
    $region29: #{discriminator_forward.5} parent=5 // pred_check
      _
    $region30: #{discriminator_forward.5} parent=5 // pred_check_branch
      %141 = sbr.rel (%p138) target = $region32
    $region31: #{discriminator_forward.5} parent=5 // pred_region
      %s142 = ssub.s32 %s9, 1
      %p143 = scmp.lt.s32.totalorder %s14, 1
      %s144 = scalar_select %p143, %s14, 1
      %s145 = smul.addr %s144, 32
      %s146 = smul.addr %s145, 4
      %s147 = scalar_lea.vmem %s0, %s146
      %p148 = pneg %p35
      %p149 = pneg %p32
      %p150 = pneg %p56
      %p151 = pneg %p53
      %p152 = pneg %p77
      %p153 = pneg %p74
      %p154 = pneg %p103
      %p155 = pneg %p100
      %p156 = scmp.lt.s32.totalorder %s14, 1
      %s157 = scalar_select %p156, %s14, 1
      %s158 = smul.addr %s157, 3
      %s159 = smul.addr %s158, 8
      %s160 = scalar_lea.vmem %s3, %s159
      %p161 = scmp.lt.s32.totalorder %s14, 1
      %s162 = scalar_select %p161, %s14, 1
      %s163 = smul.addr %s162, 32
      %s164 = smul.addr %s163, 4
      %s165 = scalar_lea.vmem %s0, %s164
      %p166 = scmp.lt.s32.totalorder %s14, 1
      %s167 = scalar_select %p166, %s14, 1
      %s168 = smul.addr %s167, 3
      %s169 = smul.addr %s168, 8
      %s170 = scalar_lea.vmem %s3, %s169
      %v172 = vld [vmem:[%s165] sm:$0xff]
      %v173 = vld [vmem:[%s165 + $0x8] sm:$0xff]
      %v174 = vld [vmem:[%s165 + $0x10] sm:$0xff]
      %v175 = vld [vmem:[%s165 + $0x18] sm:$0xff]
      %v176 = vld [vmem:[%s165 + $0x20] sm:$0xff]
      %v177 = vld [vmem:[%s165 + $0x28] sm:$0xff]
      %v178 = vld [vmem:[%s165 + $0x30] sm:$0xff]
      %v179 = vld [vmem:[%s165 + $0x38] sm:$0xff]
      %v180 = vld [vmem:[%s165 + $0x40] sm:$0xff]
      %v181 = vld [vmem:[%s165 + $0x48] sm:$0xff]
      %v182 = vld [vmem:[%s165 + $0x50] sm:$0xff]
      %v183 = vld [vmem:[%s165 + $0x58] sm:$0xff]
      %v184 = vld [vmem:[%s165 + $0x60] sm:$0xff]
      %v185 = vld [vmem:[%s165 + $0x68] sm:$0xff]
      %v186 = vld [vmem:[%s165 + $0x70] sm:$0xff]
      %v187 = vld [vmem:[%s165 + $0x78] sm:$0xff]
      %v188 = vld [vmem:[%s2] sm:$0xff]
      %190 = vset.pattern.permute.xlu0 0
      %191 = vperm.xlu0 %190, %v188
      %v192 = vpop.permute.xlu0 %191
      %v194 = vadd.f32 %v192, 0.0
      %v195 = vld [vmem:[%s1] sm:$0xf]
      %v212 = vunpack.c.l.b16 %v172
      %v213 = vunpack.c.h.b16 %v172
      %v214 = vunpack.c.l.b16 %v173
      %v215 = vunpack.c.h.b16 %v173
      %v216 = vunpack.c.l.b16 %v174
      %v217 = vunpack.c.h.b16 %v174
      %v218 = vunpack.c.l.b16 %v175
      %v219 = vunpack.c.h.b16 %v175
      %v220 = vunpack.c.l.b16 %v176
      %v221 = vunpack.c.h.b16 %v176
      %v222 = vunpack.c.l.b16 %v177
      %v223 = vunpack.c.h.b16 %v177
      %v224 = vunpack.c.l.b16 %v178
      %v225 = vunpack.c.h.b16 %v178
      %v226 = vunpack.c.l.b16 %v179
      %v227 = vunpack.c.h.b16 %v179
      %v228 = vunpack.c.l.b16 %v180
      %v229 = vunpack.c.h.b16 %v180
      %v230 = vunpack.c.l.b16 %v181
      %v231 = vunpack.c.h.b16 %v181
      %v232 = vunpack.c.l.b16 %v182
      %v233 = vunpack.c.h.b16 %v182
      %v234 = vunpack.c.l.b16 %v183
      %v235 = vunpack.c.h.b16 %v183
      %v236 = vunpack.c.l.b16 %v184
      %v237 = vunpack.c.h.b16 %v184
      %v238 = vunpack.c.l.b16 %v185
      %v239 = vunpack.c.h.b16 %v185
      %v240 = vunpack.c.l.b16 %v186
      %v241 = vunpack.c.h.b16 %v186
      %v242 = vunpack.c.l.b16 %v187
      %v243 = vunpack.c.h.b16 %v187
      %v244 = vpack.c.b16 %v216, %v212
      %v245 = vpack.c.b16 %v217, %v213
      %v246 = vpack.c.b16 %v218, %v214
      %v247 = vpack.c.b16 %v219, %v215
      %v248 = vpack.c.b16 %v224, %v220
      %v249 = vpack.c.b16 %v225, %v221
      %v250 = vpack.c.b16 %v226, %v222
      %v251 = vpack.c.b16 %v227, %v223
      %v252 = vpack.c.b16 %v232, %v228
      %v253 = vpack.c.b16 %v233, %v229
      %v254 = vpack.c.b16 %v234, %v230
      %v255 = vpack.c.b16 %v235, %v231
      %v256 = vpack.c.b16 %v240, %v236
      %v257 = vpack.c.b16 %v241, %v237
      %v258 = vpack.c.b16 %v242, %v238
      %v259 = vpack.c.b16 %v243, %v239
      %260 = vrot.lane.b32.xlu0 %v244, 127
      %v261 = vpop.permute.xlu0 %260
      %262 = vrot.lane.b32.xlu0 %v245, 127
      %v263 = vpop.permute.xlu0 %262
      %264 = vrot.lane.b32.xlu0 %v246, 127
      %v265 = vpop.permute.xlu0 %264
      %266 = vrot.lane.b32.xlu0 %v247, 127
      %v267 = vpop.permute.xlu0 %266
      %268 = vrot.lane.b32.xlu0 %v248, 127
      %v269 = vpop.permute.xlu0 %268
      %270 = vrot.lane.b32.xlu0 %v249, 127
      %v271 = vpop.permute.xlu0 %270
      %272 = vrot.lane.b32.xlu0 %v250, 127
      %v273 = vpop.permute.xlu0 %272
      %274 = vrot.lane.b32.xlu0 %v251, 127
      %v275 = vpop.permute.xlu0 %274
      %276 = vrot.lane.b32.xlu0 %v252, 127
      %v277 = vpop.permute.xlu0 %276
      %278 = vrot.lane.b32.xlu0 %v253, 127
      %v279 = vpop.permute.xlu0 %278
      %280 = vrot.lane.b32.xlu0 %v254, 127
      %v281 = vpop.permute.xlu0 %280
      %282 = vrot.lane.b32.xlu0 %v255, 127
      %v283 = vpop.permute.xlu0 %282
      %284 = vrot.lane.b32.xlu0 %v256, 127
      %v285 = vpop.permute.xlu0 %284
      %286 = vrot.lane.b32.xlu0 %v257, 127
      %v287 = vpop.permute.xlu0 %286
      %288 = vrot.lane.b32.xlu0 %v258, 127
      %v289 = vpop.permute.xlu0 %288
      %290 = vrot.lane.b32.xlu0 %v259, 127
      %v291 = vpop.permute.xlu0 %290
      %vm292 = vcmask 1039360
      %v293 = vsel %vm292, %v261, %v263
      %v294 = vsel %vm292, %v263, %v265
      %v295 = vsel %vm292, %v265, %v267
      %v296 = vsel %vm292, %v269, %v271
      %v297 = vsel %vm292, %v271, %v273
      %v298 = vsel %vm292, %v273, %v275
      %v299 = vsel %vm292, %v277, %v279
      %v300 = vsel %vm292, %v279, %v281
      %v301 = vsel %vm292, %v281, %v283
      %v302 = vsel %vm292, %v285, %v287
      %v303 = vsel %vm292, %v287, %v289
      %v304 = vsel %vm292, %v289, %v291
      %vm317 = vcmask 523264
      %v319 = vsel %vm317, %v195, 0
      %321 = vmatprep.subr.bf16.mxu0 %v294
      %322 = vmatpush1.bf16.msra.mxu0 %v293
      %323 = vmatprep.subr.bf16.mxu0 %v297
      %324 = vmatpush1.bf16.msra.mxu0 %v296
      %325 = vmatprep.subr.bf16.mxu0 %v300
      %326 = vmatpush1.bf16.msra.mxu0 %v299
      %327 = vmatprep.subr.bf16.mxu0 %v303
      %328 = vmatpush1.bf16.msra.mxu0 %v302
      %329 = vmatprep.subr.bf16.mxu0 0
      %330 = vmatpush1.bf16.msra.mxu0 0
      %331 = vmatprep.subr.bf16.mxu0 0
      %332 = vmatpush1.bf16.msra.mxu0 0
      %333 = vmatprep.subr.bf16.mxu0 0
      %334 = vmatpush1.bf16.msra.mxu0 0
      %335 = vmatprep.subr.bf16.mxu0 0
      %336 = vmatpush1.bf16.msra.mxu0 0
      %337 = vmatprep.subr.bf16.mxu0 0
      %338 = vmatpush1.bf16.msra.mxu0 0
      %339 = vmatprep.subr.bf16.mxu0 0
      %340 = vmatpush1.bf16.msra.mxu0 0
      %341 = vmatprep.subr.bf16.mxu0 0
      %342 = vmatpush1.bf16.msra.mxu0 0
      %343 = vmatprep.subr.bf16.mxu0 0
      %344 = vmatpush1.bf16.msra.mxu0 0
      %345 = vmatprep.subr.bf16.mxu0 0
      %346 = vmatpush1.bf16.msra.mxu0 0
      %347 = vmatprep.subr.bf16.mxu0 0
      %348 = vmatpush1.bf16.msra.mxu0 0
      %349 = vmatprep.subr.bf16.mxu0 0
      %350 = vmatpush1.bf16.msra.mxu0 0
      %351 = vmatprep.subr.bf16.mxu0 0
      %352 = vmatpush1.bf16.msra.mxu0 0
      %353 = vmatprep.mubr.bf16.mxu0 0
      %354 = vmatmul.mubr.bf16.gmra.mrb[0].mxu0 %v319
      %v355 = vpop.f32.mrb[0].mxu0
      %v356 = vadd.f32 0.0, %v355
      %v357 = vpop.f32.mrb[0].mxu0
      %v358 = vadd.f32 0.0, %v357
      %v359 = vpop.f32.mrb[0].mxu0
      %v360 = vpop.f32.mrb[0].mxu0
      %361 = vdwg.mxu0
      %362 = vmatprep.subr.bf16.mxu0 0
      %363 = vmatpush1.bf16.msra.mxu0 %v295
      %364 = vmatprep.subr.bf16.mxu0 0
      %365 = vmatpush1.bf16.msra.mxu0 %v298
      %366 = vmatprep.subr.bf16.mxu0 0
      %367 = vmatpush1.bf16.msra.mxu0 %v301
      %368 = vmatprep.subr.bf16.mxu0 0
      %369 = vmatpush1.bf16.msra.mxu0 %v304
      %370 = vmatprep.subr.bf16.mxu0 0
      %371 = vmatpush1.bf16.msra.mxu0 0
      %372 = vmatprep.subr.bf16.mxu0 0
      %373 = vmatpush1.bf16.msra.mxu0 0
      %374 = vmatprep.subr.bf16.mxu0 0
      %375 = vmatpush1.bf16.msra.mxu0 0
      %376 = vmatprep.subr.bf16.mxu0 0
      %377 = vmatpush1.bf16.msra.mxu0 0
      %378 = vmatprep.subr.bf16.mxu0 0
      %379 = vmatpush1.bf16.msra.mxu0 0
      %380 = vmatprep.subr.bf16.mxu0 0
      %381 = vmatpush1.bf16.msra.mxu0 0
      %382 = vmatprep.subr.bf16.mxu0 0
      %383 = vmatpush1.bf16.msra.mxu0 0
      %384 = vmatprep.subr.bf16.mxu0 0
      %385 = vmatpush1.bf16.msra.mxu0 0
      %386 = vmatprep.subr.bf16.mxu0 0
      %387 = vmatpush1.bf16.msra.mxu0 0
      %388 = vmatprep.subr.bf16.mxu0 0
      %389 = vmatpush1.bf16.msra.mxu0 0
      %390 = vmatprep.subr.bf16.mxu0 0
      %391 = vmatpush1.bf16.msra.mxu0 0
      %392 = vmatprep.subr.bf16.mxu0 0
      %393 = vmatpush1.bf16.msra.mxu0 0
      %394 = vmatprep.mubr.bf16.mxu0 0
      %395 = vmatmul.mubr.bf16.gmra.mrb[0].mxu0 %v319
      %v396 = vpop.f32.mrb[0].mxu0
      %v397 = vadd.f32 0.0, %v396
      %v398 = vpop.f32.mrb[0].mxu0
      %v399 = vpop.f32.mrb[0].mxu0
      %v400 = vpop.f32.mrb[0].mxu0
      %401 = vdwg.mxu0
      %v402 = vadd.f32 %v194, %v356
      %v403 = vadd.f32 %v194, %v358
      %v404 = vadd.f32 %v194, %v397
      %s405 = scalar_lea.vmem %s1, 4
      %v406 = vld [vmem:[%s405] sm:$0xf]
      %407 = vrot.lane.b32.xlu0 %v244, 126
      %v408 = vpop.permute.xlu0 %407
      %409 = vrot.lane.b32.xlu0 %v245, 126
      %v410 = vpop.permute.xlu0 %409
      %411 = vrot.lane.b32.xlu0 %v246, 126
      %v412 = vpop.permute.xlu0 %411
      %413 = vrot.lane.b32.xlu0 %v247, 126
      %v414 = vpop.permute.xlu0 %413
      %415 = vrot.lane.b32.xlu0 %v248, 126
      %v416 = vpop.permute.xlu0 %415
      %417 = vrot.lane.b32.xlu0 %v249, 126
      %v418 = vpop.permute.xlu0 %417
      %419 = vrot.lane.b32.xlu0 %v250, 126
      %v420 = vpop.permute.xlu0 %419
      %421 = vrot.lane.b32.xlu0 %v251, 126
      %v422 = vpop.permute.xlu0 %421
      %423 = vrot.lane.b32.xlu0 %v252, 126
      %v424 = vpop.permute.xlu0 %423
      %425 = vrot.lane.b32.xlu0 %v253, 126
      %v426 = vpop.permute.xlu0 %425
      %427 = vrot.lane.b32.xlu0 %v254, 126
      %v428 = vpop.permute.xlu0 %427
      %429 = vrot.lane.b32.xlu0 %v255, 126
      %v430 = vpop.permute.xlu0 %429
      %431 = vrot.lane.b32.xlu0 %v256, 126
      %v432 = vpop.permute.xlu0 %431
      %433 = vrot.lane.b32.xlu0 %v257, 126
      %v434 = vpop.permute.xlu0 %433
      %435 = vrot.lane.b32.xlu0 %v258, 126
      %v436 = vpop.permute.xlu0 %435
      %437 = vrot.lane.b32.xlu0 %v259, 126
      %v438 = vpop.permute.xlu0 %437
      %vm439 = vcmask 1031168
      %v440 = vsel %vm439, %v408, %v410
      %v441 = vsel %vm439, %v410, %v412
      %v442 = vsel %vm439, %v412, %v414
      %v443 = vsel %vm439, %v416, %v418
      %v444 = vsel %vm439, %v418, %v420
      %v445 = vsel %vm439, %v420, %v422
      %v446 = vsel %vm439, %v424, %v426
      %v447 = vsel %vm439, %v426, %v428
      %v448 = vsel %vm439, %v428, %v430
      %v449 = vsel %vm439, %v432, %v434
      %v450 = vsel %vm439, %v434, %v436
      %v451 = vsel %vm439, %v436, %v438
      %v465 = vsel %vm317, %v406, 0
      %467 = vmatprep.subr.bf16.mxu0 %v441
      %468 = vmatpush1.bf16.msra.mxu0 %v440
      %469 = vmatprep.subr.bf16.mxu0 %v444
      %470 = vmatpush1.bf16.msra.mxu0 %v443
      %471 = vmatprep.subr.bf16.mxu0 %v447
      %472 = vmatpush1.bf16.msra.mxu0 %v446
      %473 = vmatprep.subr.bf16.mxu0 %v450
      %474 = vmatpush1.bf16.msra.mxu0 %v449
      %475 = vmatprep.subr.bf16.mxu0 0
      %476 = vmatpush1.bf16.msra.mxu0 0
      %477 = vmatprep.subr.bf16.mxu0 0
      %478 = vmatpush1.bf16.msra.mxu0 0
      %479 = vmatprep.subr.bf16.mxu0 0
      %480 = vmatpush1.bf16.msra.mxu0 0
      %481 = vmatprep.subr.bf16.mxu0 0
      %482 = vmatpush1.bf16.msra.mxu0 0
      %483 = vmatprep.subr.bf16.mxu0 0
      %484 = vmatpush1.bf16.msra.mxu0 0
      %485 = vmatprep.subr.bf16.mxu0 0
      %486 = vmatpush1.bf16.msra.mxu0 0
      %487 = vmatprep.subr.bf16.mxu0 0
      %488 = vmatpush1.bf16.msra.mxu0 0
      %489 = vmatprep.subr.bf16.mxu0 0
      %490 = vmatpush1.bf16.msra.mxu0 0
      %491 = vmatprep.subr.bf16.mxu0 0
      %492 = vmatpush1.bf16.msra.mxu0 0
      %493 = vmatprep.subr.bf16.mxu0 0
      %494 = vmatpush1.bf16.msra.mxu0 0
      %495 = vmatprep.subr.bf16.mxu0 0
      %496 = vmatpush1.bf16.msra.mxu0 0
      %497 = vmatprep.subr.bf16.mxu0 0
      %498 = vmatpush1.bf16.msra.mxu0 0
      %499 = vmatprep.mubr.bf16.mxu0 0
      %500 = vmatmul.mubr.bf16.gmra.mrb[0].mxu0 %v465
      %v501 = vpop.f32.mrb[0].mxu0
      %v502 = vadd.f32 0.0, %v501
      %v503 = vpop.f32.mrb[0].mxu0
      %v504 = vadd.f32 0.0, %v503
      %v505 = vpop.f32.mrb[0].mxu0
      %v506 = vpop.f32.mrb[0].mxu0
      %507 = vdwg.mxu0
      %508 = vmatprep.subr.bf16.mxu0 0
      %509 = vmatpush1.bf16.msra.mxu0 %v442
      %510 = vmatprep.subr.bf16.mxu0 0
      %511 = vmatpush1.bf16.msra.mxu0 %v445
      %512 = vmatprep.subr.bf16.mxu0 0
      %513 = vmatpush1.bf16.msra.mxu0 %v448
      %514 = vmatprep.subr.bf16.mxu0 0
      %515 = vmatpush1.bf16.msra.mxu0 %v451
      %516 = vmatprep.subr.bf16.mxu0 0
      %517 = vmatpush1.bf16.msra.mxu0 0
      %518 = vmatprep.subr.bf16.mxu0 0
      %519 = vmatpush1.bf16.msra.mxu0 0
      %520 = vmatprep.subr.bf16.mxu0 0
      %521 = vmatpush1.bf16.msra.mxu0 0
      %522 = vmatprep.subr.bf16.mxu0 0
      %523 = vmatpush1.bf16.msra.mxu0 0
      %524 = vmatprep.subr.bf16.mxu0 0
      %525 = vmatpush1.bf16.msra.mxu0 0
      %526 = vmatprep.subr.bf16.mxu0 0
      %527 = vmatpush1.bf16.msra.mxu0 0
      %528 = vmatprep.subr.bf16.mxu0 0
      %529 = vmatpush1.bf16.msra.mxu0 0
      %530 = vmatprep.subr.bf16.mxu0 0
      %531 = vmatpush1.bf16.msra.mxu0 0
      %532 = vmatprep.subr.bf16.mxu0 0
      %533 = vmatpush1.bf16.msra.mxu0 0
      %534 = vmatprep.subr.bf16.mxu0 0
      %535 = vmatpush1.bf16.msra.mxu0 0
      %536 = vmatprep.subr.bf16.mxu0 0
      %537 = vmatpush1.bf16.msra.mxu0 0
      %538 = vmatprep.subr.bf16.mxu0 0
      %539 = vmatpush1.bf16.msra.mxu0 0
      %540 = vmatprep.mubr.bf16.mxu0 0
      %541 = vmatmul.mubr.bf16.gmra.mrb[0].mxu0 %v465
      %v542 = vpop.f32.mrb[0].mxu0
      %v543 = vadd.f32 0.0, %v542
      %v544 = vpop.f32.mrb[0].mxu0
      %v545 = vpop.f32.mrb[0].mxu0
      %v546 = vpop.f32.mrb[0].mxu0
      %547 = vdwg.mxu0
      %v548 = vadd.f32 %v402, %v502
      %v549 = vadd.f32 %v403, %v504
      %v550 = vadd.f32 %v404, %v543
      %s551 = scalar_lea.vmem %s1, 8
      %v552 = vld [vmem:[%s551] sm:$0xf]
      %553 = vrot.lane.b32.xlu0 %v244, 125
      %v554 = vpop.permute.xlu0 %553
      %555 = vrot.lane.b32.xlu0 %v245, 125
      %v556 = vpop.permute.xlu0 %555
      %557 = vrot.lane.b32.xlu0 %v246, 125
      %v558 = vpop.permute.xlu0 %557
      %559 = vrot.lane.b32.xlu0 %v247, 125
      %v560 = vpop.permute.xlu0 %559
      %561 = vrot.lane.b32.xlu0 %v248, 125
      %v562 = vpop.permute.xlu0 %561
      %563 = vrot.lane.b32.xlu0 %v249, 125
      %v564 = vpop.permute.xlu0 %563
      %565 = vrot.lane.b32.xlu0 %v250, 125
      %v566 = vpop.permute.xlu0 %565
      %567 = vrot.lane.b32.xlu0 %v251, 125
      %v568 = vpop.permute.xlu0 %567
      %569 = vrot.lane.b32.xlu0 %v252, 125
      %v570 = vpop.permute.xlu0 %569
      %571 = vrot.lane.b32.xlu0 %v253, 125
      %v572 = vpop.permute.xlu0 %571
      %573 = vrot.lane.b32.xlu0 %v254, 125
      %v574 = vpop.permute.xlu0 %573
      %575 = vrot.lane.b32.xlu0 %v255, 125
      %v576 = vpop.permute.xlu0 %575
      %577 = vrot.lane.b32.xlu0 %v256, 125
      %v578 = vpop.permute.xlu0 %577
      %579 = vrot.lane.b32.xlu0 %v257, 125
      %v580 = vpop.permute.xlu0 %579
      %581 = vrot.lane.b32.xlu0 %v258, 125
      %v582 = vpop.permute.xlu0 %581
      %583 = vrot.lane.b32.xlu0 %v259, 125
      %v584 = vpop.permute.xlu0 %583
      %vm585 = vcmask 1022976
      %v586 = vsel %vm585, %v554, %v556
      %v587 = vsel %vm585, %v556, %v558
      %v588 = vsel %vm585, %v558, %v560
      %v589 = vsel %vm585, %v562, %v564
      %v590 = vsel %vm585, %v564, %v566
      %v591 = vsel %vm585, %v566, %v568
      %v592 = vsel %vm585, %v570, %v572
      %v593 = vsel %vm585, %v572, %v574
      %v594 = vsel %vm585, %v574, %v576
      %v595 = vsel %vm585, %v578, %v580
      %v596 = vsel %vm585, %v580, %v582
      %v597 = vsel %vm585, %v582, %v584
      %v611 = vsel %vm317, %v552, 0
      %613 = vmatprep.subr.bf16.mxu0 %v587
      %614 = vmatpush1.bf16.msra.mxu0 %v586
      %615 = vmatprep.subr.bf16.mxu0 %v590
      %616 = vmatpush1.bf16.msra.mxu0 %v589
      %617 = vmatprep.subr.bf16.mxu0 %v593
      %618 = vmatpush1.bf16.msra.mxu0 %v592
      %619 = vmatprep.subr.bf16.mxu0 %v596
      %620 = vmatpush1.bf16.msra.mxu0 %v595
      %621 = vmatprep.subr.bf16.mxu0 0
      %622 = vmatpush1.bf16.msra.mxu0 0
      %623 = vmatprep.subr.bf16.mxu0 0
      %624 = vmatpush1.bf16.msra.mxu0 0
      %625 = vmatprep.subr.bf16.mxu0 0
      %626 = vmatpush1.bf16.msra.mxu0 0
      %627 = vmatprep.subr.bf16.mxu0 0
      %628 = vmatpush1.bf16.msra.mxu0 0
      %629 = vmatprep.subr.bf16.mxu0 0
      %630 = vmatpush1.bf16.msra.mxu0 0
      %631 = vmatprep.subr.bf16.mxu0 0
      %632 = vmatpush1.bf16.msra.mxu0 0
      %633 = vmatprep.subr.bf16.mxu0 0
      %634 = vmatpush1.bf16.msra.mxu0 0
      %635 = vmatprep.subr.bf16.mxu0 0
      %636 = vmatpush1.bf16.msra.mxu0 0
      %637 = vmatprep.subr.bf16.mxu0 0
      %638 = vmatpush1.bf16.msra.mxu0 0
      %639 = vmatprep.subr.bf16.mxu0 0
      %640 = vmatpush1.bf16.msra.mxu0 0
      %641 = vmatprep.subr.bf16.mxu0 0
      %642 = vmatpush1.bf16.msra.mxu0 0
      %643 = vmatprep.subr.bf16.mxu0 0
      %644 = vmatpush1.bf16.msra.mxu0 0
      %645 = vmatprep.mubr.bf16.mxu0 0
      %646 = vmatmul.mubr.bf16.gmra.mrb[0].mxu0 %v611
      %v647 = vpop.f32.mrb[0].mxu0
      %v648 = vadd.f32 0.0, %v647
      %v649 = vpop.f32.mrb[0].mxu0
      %v650 = vadd.f32 0.0, %v649
      %v651 = vpop.f32.mrb[0].mxu0
      %v652 = vpop.f32.mrb[0].mxu0
      %653 = vdwg.mxu0
      %654 = vmatprep.subr.bf16.mxu0 0
      %655 = vmatpush1.bf16.msra.mxu0 %v588
      %656 = vmatprep.subr.bf16.mxu0 0
      %657 = vmatpush1.bf16.msra.mxu0 %v591
      %658 = vmatprep.subr.bf16.mxu0 0
      %659 = vmatpush1.bf16.msra.mxu0 %v594
      %660 = vmatprep.subr.bf16.mxu0 0
      %661 = vmatpush1.bf16.msra.mxu0 %v597
      %662 = vmatprep.subr.bf16.mxu0 0
      %663 = vmatpush1.bf16.msra.mxu0 0
      %664 = vmatprep.subr.bf16.mxu0 0
      %665 = vmatpush1.bf16.msra.mxu0 0
      %666 = vmatprep.subr.bf16.mxu0 0
      %667 = vmatpush1.bf16.msra.mxu0 0
      %668 = vmatprep.subr.bf16.mxu0 0
      %669 = vmatpush1.bf16.msra.mxu0 0
      %670 = vmatprep.subr.bf16.mxu0 0
      %671 = vmatpush1.bf16.msra.mxu0 0
      %672 = vmatprep.subr.bf16.mxu0 0
      %673 = vmatpush1.bf16.msra.mxu0 0
      %674 = vmatprep.subr.bf16.mxu0 0
      %675 = vmatpush1.bf16.msra.mxu0 0
      %676 = vmatprep.subr.bf16.mxu0 0
      %677 = vmatpush1.bf16.msra.mxu0 0
      %678 = vmatprep.subr.bf16.mxu0 0
      %679 = vmatpush1.bf16.msra.mxu0 0
      %680 = vmatprep.subr.bf16.mxu0 0
      %681 = vmatpush1.bf16.msra.mxu0 0
      %682 = vmatprep.subr.bf16.mxu0 0
      %683 = vmatpush1.bf16.msra.mxu0 0
      %684 = vmatprep.subr.bf16.mxu0 0
      %685 = vmatpush1.bf16.msra.mxu0 0
      %686 = vmatprep.mubr.bf16.mxu0 0
      %687 = vmatmul.mubr.bf16.gmra.mrb[0].mxu0 %v611
      %v688 = vpop.f32.mrb[0].mxu0
      %v689 = vadd.f32 0.0, %v688
      %v690 = vpop.f32.mrb[0].mxu0
      %v691 = vpop.f32.mrb[0].mxu0
      %v692 = vpop.f32.mrb[0].mxu0
      %693 = vdwg.mxu0
      %v694 = vadd.f32 %v548, %v648
      %v695 = vadd.f32 %v549, %v650
      %v696 = vadd.f32 %v550, %v689
      %s697 = scalar_lea.vmem %s1, 12
      %v698 = vld [vmem:[%s697] sm:$0xf]
      %699 = vrot.lane.b32.xlu0 %v244, 109
      %v700 = vpop.permute.xlu0 %699
      %701 = vrot.lane.b32.xlu0 %v245, 109
      %v702 = vpop.permute.xlu0 %701
      %703 = vrot.lane.b32.xlu0 %v246, 109
      %v704 = vpop.permute.xlu0 %703
      %705 = vrot.lane.b32.xlu0 %v247, 109
      %v706 = vpop.permute.xlu0 %705
      %707 = vrot.lane.b32.xlu0 %v248, 109
      %v708 = vpop.permute.xlu0 %707
      %709 = vrot.lane.b32.xlu0 %v249, 109
      %v710 = vpop.permute.xlu0 %709
      %711 = vrot.lane.b32.xlu0 %v250, 109
      %v712 = vpop.permute.xlu0 %711
      %713 = vrot.lane.b32.xlu0 %v251, 109
      %v714 = vpop.permute.xlu0 %713
      %715 = vrot.lane.b32.xlu0 %v252, 109
      %v716 = vpop.permute.xlu0 %715
      %717 = vrot.lane.b32.xlu0 %v253, 109
      %v718 = vpop.permute.xlu0 %717
      %719 = vrot.lane.b32.xlu0 %v254, 109
      %v720 = vpop.permute.xlu0 %719
      %721 = vrot.lane.b32.xlu0 %v255, 109
      %v722 = vpop.permute.xlu0 %721
      %723 = vrot.lane.b32.xlu0 %v256, 109
      %v724 = vpop.permute.xlu0 %723
      %725 = vrot.lane.b32.xlu0 %v257, 109
      %v726 = vpop.permute.xlu0 %725
      %727 = vrot.lane.b32.xlu0 %v258, 109
      %v728 = vpop.permute.xlu0 %727
      %729 = vrot.lane.b32.xlu0 %v259, 109
      %v730 = vpop.permute.xlu0 %729
      %vm731 = vcmask 891904
      %v732 = vsel %vm731, %v700, %v702
      %v733 = vsel %vm731, %v702, %v704
      %v734 = vsel %vm731, %v704, %v706
      %v735 = vsel %vm731, %v708, %v710
      %v736 = vsel %vm731, %v710, %v712
      %v737 = vsel %vm731, %v712, %v714
      %v738 = vsel %vm731, %v716, %v718
      %v739 = vsel %vm731, %v718, %v720
      %v740 = vsel %vm731, %v720, %v722
      %v741 = vsel %vm731, %v724, %v726
      %v742 = vsel %vm731, %v726, %v728
      %v743 = vsel %vm731, %v728, %v730
      %v757 = vsel %vm317, %v698, 0
      %759 = vmatprep.subr.bf16.mxu0 %v733
      %760 = vmatpush1.bf16.msra.mxu0 %v732
      %761 = vmatprep.subr.bf16.mxu0 %v736
      %762 = vmatpush1.bf16.msra.mxu0 %v735
      %763 = vmatprep.subr.bf16.mxu0 %v739
      %764 = vmatpush1.bf16.msra.mxu0 %v738
      %765 = vmatprep.subr.bf16.mxu0 %v742
      %766 = vmatpush1.bf16.msra.mxu0 %v741
      %767 = vmatprep.subr.bf16.mxu0 0
      %768 = vmatpush1.bf16.msra.mxu0 0
      %769 = vmatprep.subr.bf16.mxu0 0
      %770 = vmatpush1.bf16.msra.mxu0 0
      %771 = vmatprep.subr.bf16.mxu0 0
      %772 = vmatpush1.bf16.msra.mxu0 0
      %773 = vmatprep.subr.bf16.mxu0 0
      %774 = vmatpush1.bf16.msra.mxu0 0
      %775 = vmatprep.subr.bf16.mxu0 0
      %776 = vmatpush1.bf16.msra.mxu0 0
      %777 = vmatprep.subr.bf16.mxu0 0
      %778 = vmatpush1.bf16.msra.mxu0 0
      %779 = vmatprep.subr.bf16.mxu0 0
      %780 = vmatpush1.bf16.msra.mxu0 0
      %781 = vmatprep.subr.bf16.mxu0 0
      %782 = vmatpush1.bf16.msra.mxu0 0
      %783 = vmatprep.subr.bf16.mxu0 0
      %784 = vmatpush1.bf16.msra.mxu0 0
      %785 = vmatprep.subr.bf16.mxu0 0
      %786 = vmatpush1.bf16.msra.mxu0 0
      %787 = vmatprep.subr.bf16.mxu0 0
      %788 = vmatpush1.bf16.msra.mxu0 0
      %789 = vmatprep.subr.bf16.mxu0 0
      %790 = vmatpush1.bf16.msra.mxu0 0
      %791 = vmatprep.mubr.bf16.mxu0 0
      %792 = vmatmul.mubr.bf16.gmra.mrb[0].mxu0 %v757
      %v793 = vpop.f32.mrb[0].mxu0
      %v794 = vadd.f32 0.0, %v793
      %v795 = vpop.f32.mrb[0].mxu0
      %v796 = vadd.f32 0.0, %v795
      %v797 = vpop.f32.mrb[0].mxu0
      %v798 = vpop.f32.mrb[0].mxu0
      %799 = vdwg.mxu0
      %800 = vmatprep.subr.bf16.mxu0 0
      %801 = vmatpush1.bf16.msra.mxu0 %v734
      %802 = vmatprep.subr.bf16.mxu0 0
      %803 = vmatpush1.bf16.msra.mxu0 %v737
      %804 = vmatprep.subr.bf16.mxu0 0
      %805 = vmatpush1.bf16.msra.mxu0 %v740
      %806 = vmatprep.subr.bf16.mxu0 0
      %807 = vmatpush1.bf16.msra.mxu0 %v743
      %808 = vmatprep.subr.bf16.mxu0 0
      %809 = vmatpush1.bf16.msra.mxu0 0
      %810 = vmatprep.subr.bf16.mxu0 0
      %811 = vmatpush1.bf16.msra.mxu0 0
      %812 = vmatprep.subr.bf16.mxu0 0
      %813 = vmatpush1.bf16.msra.mxu0 0
      %814 = vmatprep.subr.bf16.mxu0 0
      %815 = vmatpush1.bf16.msra.mxu0 0
      %816 = vmatprep.subr.bf16.mxu0 0
      %817 = vmatpush1.bf16.msra.mxu0 0
      %818 = vmatprep.subr.bf16.mxu0 0
      %819 = vmatpush1.bf16.msra.mxu0 0
      %820 = vmatprep.subr.bf16.mxu0 0
      %821 = vmatpush1.bf16.msra.mxu0 0
      %822 = vmatprep.subr.bf16.mxu0 0
      %823 = vmatpush1.bf16.msra.mxu0 0
      %824 = vmatprep.subr.bf16.mxu0 0
      %825 = vmatpush1.bf16.msra.mxu0 0
      %826 = vmatprep.subr.bf16.mxu0 0
      %827 = vmatpush1.bf16.msra.mxu0 0
      %828 = vmatprep.subr.bf16.mxu0 0
      %829 = vmatpush1.bf16.msra.mxu0 0
      %830 = vmatprep.subr.bf16.mxu0 0
      %831 = vmatpush1.bf16.msra.mxu0 0
      %832 = vmatprep.mubr.bf16.mxu0 0
      %833 = vmatmul.mubr.bf16.gmra.mrb[0].mxu0 %v757
      %v834 = vpop.f32.mrb[0].mxu0
      %v835 = vadd.f32 0.0, %v834
      %v836 = vpop.f32.mrb[0].mxu0
      %v837 = vpop.f32.mrb[0].mxu0
      %v838 = vpop.f32.mrb[0].mxu0
      %839 = vdwg.mxu0
      %v840 = vadd.f32 %v694, %v794
      %v841 = vadd.f32 %v695, %v796
      %v842 = vadd.f32 %v696, %v835
      %s843 = scalar_lea.vmem %s1, 16
      %v844 = vld [vmem:[%s843] sm:$0xf]
      %845 = vrot.lane.b32.xlu0 %v244, 108
      %v846 = vpop.permute.xlu0 %845
      %847 = vrot.lane.b32.xlu0 %v245, 108
      %v848 = vpop.permute.xlu0 %847
      %849 = vrot.lane.b32.xlu0 %v246, 108
      %v850 = vpop.permute.xlu0 %849
      %851 = vrot.lane.b32.xlu0 %v247, 108
      %v852 = vpop.permute.xlu0 %851
      %853 = vrot.lane.b32.xlu0 %v248, 108
      %v854 = vpop.permute.xlu0 %853
      %855 = vrot.lane.b32.xlu0 %v249, 108
      %v856 = vpop.permute.xlu0 %855
      %857 = vrot.lane.b32.xlu0 %v250, 108
      %v858 = vpop.permute.xlu0 %857
      %859 = vrot.lane.b32.xlu0 %v251, 108
      %v860 = vpop.permute.xlu0 %859
      %861 = vrot.lane.b32.xlu0 %v252, 108
      %v862 = vpop.permute.xlu0 %861
      %863 = vrot.lane.b32.xlu0 %v253, 108
      %v864 = vpop.permute.xlu0 %863
      %865 = vrot.lane.b32.xlu0 %v254, 108
      %v866 = vpop.permute.xlu0 %865
      %867 = vrot.lane.b32.xlu0 %v255, 108
      %v868 = vpop.permute.xlu0 %867
      %869 = vrot.lane.b32.xlu0 %v256, 108
      %v870 = vpop.permute.xlu0 %869
      %871 = vrot.lane.b32.xlu0 %v257, 108
      %v872 = vpop.permute.xlu0 %871
      %873 = vrot.lane.b32.xlu0 %v258, 108
      %v874 = vpop.permute.xlu0 %873
      %875 = vrot.lane.b32.xlu0 %v259, 108
      %v876 = vpop.permute.xlu0 %875
      %vm877 = vcmask 883712
      %v878 = vsel %vm877, %v846, %v848
      %v879 = vsel %vm877, %v848, %v850
      %v880 = vsel %vm877, %v850, %v852
      %v881 = vsel %vm877, %v854, %v856
      %v882 = vsel %vm877, %v856, %v858
      %v883 = vsel %vm877, %v858, %v860
      %v884 = vsel %vm877, %v862, %v864
      %v885 = vsel %vm877, %v864, %v866
      %v886 = vsel %vm877, %v866, %v868
      %v887 = vsel %vm877, %v870, %v872
      %v888 = vsel %vm877, %v872, %v874
      %v889 = vsel %vm877, %v874, %v876
      %v903 = vsel %vm317, %v844, 0
      %905 = vmatprep.subr.bf16.mxu0 %v879
      %906 = vmatpush1.bf16.msra.mxu0 %v878
      %907 = vmatprep.subr.bf16.mxu0 %v882
      %908 = vmatpush1.bf16.msra.mxu0 %v881
      %909 = vmatprep.subr.bf16.mxu0 %v885
      %910 = vmatpush1.bf16.msra.mxu0 %v884
      %911 = vmatprep.subr.bf16.mxu0 %v888
      %912 = vmatpush1.bf16.msra.mxu0 %v887
      %913 = vmatprep.subr.bf16.mxu0 0
      %914 = vmatpush1.bf16.msra.mxu0 0
      %915 = vmatprep.subr.bf16.mxu0 0
      %916 = vmatpush1.bf16.msra.mxu0 0
      %917 = vmatprep.subr.bf16.mxu0 0
      %918 = vmatpush1.bf16.msra.mxu0 0
      %919 = vmatprep.subr.bf16.mxu0 0
      %920 = vmatpush1.bf16.msra.mxu0 0
      %921 = vmatprep.subr.bf16.mxu0 0
      %922 = vmatpush1.bf16.msra.mxu0 0
      %923 = vmatprep.subr.bf16.mxu0 0
      %924 = vmatpush1.bf16.msra.mxu0 0
      %925 = vmatprep.subr.bf16.mxu0 0
      %926 = vmatpush1.bf16.msra.mxu0 0
      %927 = vmatprep.subr.bf16.mxu0 0
      %928 = vmatpush1.bf16.msra.mxu0 0
      %929 = vmatprep.subr.bf16.mxu0 0
      %930 = vmatpush1.bf16.msra.mxu0 0
      %931 = vmatprep.subr.bf16.mxu0 0
      %932 = vmatpush1.bf16.msra.mxu0 0
      %933 = vmatprep.subr.bf16.mxu0 0
      %934 = vmatpush1.bf16.msra.mxu0 0
      %935 = vmatprep.subr.bf16.mxu0 0
      %936 = vmatpush1.bf16.msra.mxu0 0
      %937 = vmatprep.mubr.bf16.mxu0 0
      %938 = vmatmul.mubr.bf16.gmra.mrb[0].mxu0 %v903
      %v939 = vpop.f32.mrb[0].mxu0
      %v940 = vadd.f32 0.0, %v939
      %v941 = vpop.f32.mrb[0].mxu0
      %v942 = vadd.f32 0.0, %v941
      %v943 = vpop.f32.mrb[0].mxu0
      %v944 = vpop.f32.mrb[0].mxu0
      %945 = vdwg.mxu0
      %946 = vmatprep.subr.bf16.mxu0 0
      %947 = vmatpush1.bf16.msra.mxu0 %v880
      %948 = vmatprep.subr.bf16.mxu0 0
      %949 = vmatpush1.bf16.msra.mxu0 %v883
      %950 = vmatprep.subr.bf16.mxu0 0
      %951 = vmatpush1.bf16.msra.mxu0 %v886
      %952 = vmatprep.subr.bf16.mxu0 0
      %953 = vmatpush1.bf16.msra.mxu0 %v889
      %954 = vmatprep.subr.bf16.mxu0 0
      %955 = vmatpush1.bf16.msra.mxu0 0
      %956 = vmatprep.subr.bf16.mxu0 0
      %957 = vmatpush1.bf16.msra.mxu0 0
      %958 = vmatprep.subr.bf16.mxu0 0
      %959 = vmatpush1.bf16.msra.mxu0 0
      %960 = vmatprep.subr.bf16.mxu0 0
      %961 = vmatpush1.bf16.msra.mxu0 0
      %962 = vmatprep.subr.bf16.mxu0 0
      %963 = vmatpush1.bf16.msra.mxu0 0
      %964 = vmatprep.subr.bf16.mxu0 0
      %965 = vmatpush1.bf16.msra.mxu0 0
      %966 = vmatprep.subr.bf16.mxu0 0
      %967 = vmatpush1.bf16.msra.mxu0 0
      %968 = vmatprep.subr.bf16.mxu0 0
      %969 = vmatpush1.bf16.msra.mxu0 0
      %970 = vmatprep.subr.bf16.mxu0 0
      %971 = vmatpush1.bf16.msra.mxu0 0
      %972 = vmatprep.subr.bf16.mxu0 0
      %973 = vmatpush1.bf16.msra.mxu0 0
      %974 = vmatprep.subr.bf16.mxu0 0
      %975 = vmatpush1.bf16.msra.mxu0 0
      %976 = vmatprep.subr.bf16.mxu0 0
      %977 = vmatpush1.bf16.msra.mxu0 0
      %978 = vmatprep.mubr.bf16.mxu0 0
      %979 = vmatmul.mubr.bf16.gmra.mrb[0].mxu0 %v903
      %v980 = vpop.f32.mrb[0].mxu0
      %v981 = vadd.f32 0.0, %v980
      %v982 = vpop.f32.mrb[0].mxu0
      %v983 = vpop.f32.mrb[0].mxu0
      %v984 = vpop.f32.mrb[0].mxu0
      %985 = vdwg.mxu0
      %v986 = vadd.f32 %v840, %v940
      %v987 = vadd.f32 %v841, %v942
      %v988 = vadd.f32 %v842, %v981
      %s989 = scalar_lea.vmem %s1, 20
      %v990 = vld [vmem:[%s989] sm:$0xf]
      %991 = vrot.lane.b32.xlu0 %v244, 107
      %v992 = vpop.permute.xlu0 %991
      %993 = vrot.lane.b32.xlu0 %v245, 107
      %v994 = vpop.permute.xlu0 %993
      %995 = vrot.lane.b32.xlu0 %v246, 107
      %v996 = vpop.permute.xlu0 %995
      %997 = vrot.lane.b32.xlu0 %v247, 107
      %v998 = vpop.permute.xlu0 %997
      %999 = vrot.lane.b32.xlu0 %v248, 107
      %v1000 = vpop.permute.xlu0 %999
      %1001 = vrot.lane.b32.xlu0 %v249, 107
      %v1002 = vpop.permute.xlu0 %1001
      %1003 = vrot.lane.b32.xlu0 %v250, 107
      %v1004 = vpop.permute.xlu0 %1003
      %1005 = vrot.lane.b32.xlu0 %v251, 107
      %v1006 = vpop.permute.xlu0 %1005
      %1007 = vrot.lane.b32.xlu0 %v252, 107
      %v1008 = vpop.permute.xlu0 %1007
      %1009 = vrot.lane.b32.xlu0 %v253, 107
      %v1010 = vpop.permute.xlu0 %1009
      %1011 = vrot.lane.b32.xlu0 %v254, 107
      %v1012 = vpop.permute.xlu0 %1011
      %1013 = vrot.lane.b32.xlu0 %v255, 107
      %v1014 = vpop.permute.xlu0 %1013
      %1015 = vrot.lane.b32.xlu0 %v256, 107
      %v1016 = vpop.permute.xlu0 %1015
      %1017 = vrot.lane.b32.xlu0 %v257, 107
      %v1018 = vpop.permute.xlu0 %1017
      %1019 = vrot.lane.b32.xlu0 %v258, 107
      %v1020 = vpop.permute.xlu0 %1019
      %1021 = vrot.lane.b32.xlu0 %v259, 107
      %v1022 = vpop.permute.xlu0 %1021
      %vm1023 = vcmask 875520
      %v1024 = vsel %vm1023, %v992, %v994
      %v1025 = vsel %vm1023, %v994, %v996
      %v1026 = vsel %vm1023, %v996, %v998
      %v1027 = vsel %vm1023, %v1000, %v1002
      %v1028 = vsel %vm1023, %v1002, %v1004
      %v1029 = vsel %vm1023, %v1004, %v1006
      %v1030 = vsel %vm1023, %v1008, %v1010
      %v1031 = vsel %vm1023, %v1010, %v1012
      %v1032 = vsel %vm1023, %v1012, %v1014
      %v1033 = vsel %vm1023, %v1016, %v1018
      %v1034 = vsel %vm1023, %v1018, %v1020
      %v1035 = vsel %vm1023, %v1020, %v1022
      %v1049 = vsel %vm317, %v990, 0
      %1051 = vmatprep.subr.bf16.mxu0 %v1025
      %1052 = vmatpush1.bf16.msra.mxu0 %v1024
      %1053 = vmatprep.subr.bf16.mxu0 %v1028
      %1054 = vmatpush1.bf16.msra.mxu0 %v1027
      %1055 = vmatprep.subr.bf16.mxu0 %v1031
      %1056 = vmatpush1.bf16.msra.mxu0 %v1030
      %1057 = vmatprep.subr.bf16.mxu0 %v1034
      %1058 = vmatpush1.bf16.msra.mxu0 %v1033
      %1059 = vmatprep.subr.bf16.mxu0 0
      %1060 = vmatpush1.bf16.msra.mxu0 0
      %1061 = vmatprep.subr.bf16.mxu0 0
      %1062 = vmatpush1.bf16.msra.mxu0 0
      %1063 = vmatprep.subr.bf16.mxu0 0
      %1064 = vmatpush1.bf16.msra.mxu0 0
      %1065 = vmatprep.subr.bf16.mxu0 0
      %1066 = vmatpush1.bf16.msra.mxu0 0
      %1067 = vmatprep.subr.bf16.mxu0 0
      %1068 = vmatpush1.bf16.msra.mxu0 0
      %1069 = vmatprep.subr.bf16.mxu0 0
      %1070 = vmatpush1.bf16.msra.mxu0 0
      %1071 = vmatprep.subr.bf16.mxu0 0
      %1072 = vmatpush1.bf16.msra.mxu0 0
      %1073 = vmatprep.subr.bf16.mxu0 0
      %1074 = vmatpush1.bf16.msra.mxu0 0
      %1075 = vmatprep.subr.bf16.mxu0 0
      %1076 = vmatpush1.bf16.msra.mxu0 0
      %1077 = vmatprep.subr.bf16.mxu0 0
      %1078 = vmatpush1.bf16.msra.mxu0 0
      %1079 = vmatprep.subr.bf16.mxu0 0
      %1080 = vmatpush1.bf16.msra.mxu0 0
      %1081 = vmatprep.subr.bf16.mxu0 0
      %1082 = vmatpush1.bf16.msra.mxu0 0
      %1083 = vmatprep.mubr.bf16.mxu0 0
      %1084 = vmatmul.mubr.bf16.gmra.mrb[0].mxu0 %v1049
      %v1085 = vpop.f32.mrb[0].mxu0
      %v1086 = vadd.f32 0.0, %v1085
      %v1087 = vpop.f32.mrb[0].mxu0
      %v1088 = vadd.f32 0.0, %v1087
      %v1089 = vpop.f32.mrb[0].mxu0
      %v1090 = vpop.f32.mrb[0].mxu0
      %1091 = vdwg.mxu0
      %1092 = vmatprep.subr.bf16.mxu0 0
      %1093 = vmatpush1.bf16.msra.mxu0 %v1026
      %1094 = vmatprep.subr.bf16.mxu0 0
      %1095 = vmatpush1.bf16.msra.mxu0 %v1029
      %1096 = vmatprep.subr.bf16.mxu0 0
      %1097 = vmatpush1.bf16.msra.mxu0 %v1032
      %1098 = vmatprep.subr.bf16.mxu0 0
      %1099 = vmatpush1.bf16.msra.mxu0 %v1035
      %1100 = vmatprep.subr.bf16.mxu0 0
      %1101 = vmatpush1.bf16.msra.mxu0 0
      %1102 = vmatprep.subr.bf16.mxu0 0
      %1103 = vmatpush1.bf16.msra.mxu0 0
      %1104 = vmatprep.subr.bf16.mxu0 0
      %1105 = vmatpush1.bf16.msra.mxu0 0
      %1106 = vmatprep.subr.bf16.mxu0 0
      %1107 = vmatpush1.bf16.msra.mxu0 0
      %1108 = vmatprep.subr.bf16.mxu0 0
      %1109 = vmatpush1.bf16.msra.mxu0 0
      %1110 = vmatprep.subr.bf16.mxu0 0
      %1111 = vmatpush1.bf16.msra.mxu0 0
      %1112 = vmatprep.subr.bf16.mxu0 0
      %1113 = vmatpush1.bf16.msra.mxu0 0
      %1114 = vmatprep.subr.bf16.mxu0 0
      %1115 = vmatpush1.bf16.msra.mxu0 0
      %1116 = vmatprep.subr.bf16.mxu0 0
      %1117 = vmatpush1.bf16.msra.mxu0 0
      %1118 = vmatprep.subr.bf16.mxu0 0
      %1119 = vmatpush1.bf16.msra.mxu0 0
      %1120 = vmatprep.subr.bf16.mxu0 0
      %1121 = vmatpush1.bf16.msra.mxu0 0
      %1122 = vmatprep.subr.bf16.mxu0 0
      %1123 = vmatpush1.bf16.msra.mxu0 0
      %1124 = vmatprep.mubr.bf16.mxu0 0
      %1125 = vmatmul.mubr.bf16.gmra.mrb[0].mxu0 %v1049
      %v1126 = vpop.f32.mrb[0].mxu0
      %v1127 = vadd.f32 0.0, %v1126
      %v1128 = vpop.f32.mrb[0].mxu0
      %v1129 = vpop.f32.mrb[0].mxu0
      %v1130 = vpop.f32.mrb[0].mxu0
      %1131 = vdwg.mxu0
      %v1132 = vadd.f32 %v986, %v1086
      %v1133 = vadd.f32 %v987, %v1088
      %v1134 = vadd.f32 %v988, %v1127
      %s1135 = scalar_lea.vmem %s1, 24
      %v1136 = vld [vmem:[%s1135] sm:$0xf]
      %1137 = vrot.lane.b32.xlu0 %v244, 91
      %v1138 = vpop.permute.xlu0 %1137
      %1139 = vrot.lane.b32.xlu0 %v245, 91
      %v1140 = vpop.permute.xlu0 %1139
      %1141 = vrot.lane.b32.xlu0 %v246, 91
      %v1142 = vpop.permute.xlu0 %1141
      %1143 = vrot.lane.b32.xlu0 %v247, 91
      %v1144 = vpop.permute.xlu0 %1143
      %1145 = vrot.lane.b32.xlu0 %v248, 91
      %v1146 = vpop.permute.xlu0 %1145
      %1147 = vrot.lane.b32.xlu0 %v249, 91
      %v1148 = vpop.permute.xlu0 %1147
      %1149 = vrot.lane.b32.xlu0 %v250, 91
      %v1150 = vpop.permute.xlu0 %1149
      %1151 = vrot.lane.b32.xlu0 %v251, 91
      %v1152 = vpop.permute.xlu0 %1151
      %1153 = vrot.lane.b32.xlu0 %v252, 91
      %v1154 = vpop.permute.xlu0 %1153
      %1155 = vrot.lane.b32.xlu0 %v253, 91
      %v1156 = vpop.permute.xlu0 %1155
      %1157 = vrot.lane.b32.xlu0 %v254, 91
      %v1158 = vpop.permute.xlu0 %1157
      %1159 = vrot.lane.b32.xlu0 %v255, 91
      %v1160 = vpop.permute.xlu0 %1159
      %1161 = vrot.lane.b32.xlu0 %v256, 91
      %v1162 = vpop.permute.xlu0 %1161
      %1163 = vrot.lane.b32.xlu0 %v257, 91
      %v1164 = vpop.permute.xlu0 %1163
      %1165 = vrot.lane.b32.xlu0 %v258, 91
      %v1166 = vpop.permute.xlu0 %1165
      %1167 = vrot.lane.b32.xlu0 %v259, 91
      %v1168 = vpop.permute.xlu0 %1167
      %vm1169 = vcmask 744448
      %v1170 = vsel %vm1169, %v1138, %v1140
      %v1171 = vsel %vm1169, %v1140, %v1142
      %v1172 = vsel %vm1169, %v1142, %v1144
      %v1173 = vsel %vm1169, %v1146, %v1148
      %v1174 = vsel %vm1169, %v1148, %v1150
      %v1175 = vsel %vm1169, %v1150, %v1152
      %v1176 = vsel %vm1169, %v1154, %v1156
      %v1177 = vsel %vm1169, %v1156, %v1158
      %v1178 = vsel %vm1169, %v1158, %v1160
      %v1179 = vsel %vm1169, %v1162, %v1164
      %v1180 = vsel %vm1169, %v1164, %v1166
      %v1181 = vsel %vm1169, %v1166, %v1168
      %v1195 = vsel %vm317, %v1136, 0
      %1197 = vmatprep.subr.bf16.mxu0 %v1171
      %1198 = vmatpush1.bf16.msra.mxu0 %v1170
      %1199 = vmatprep.subr.bf16.mxu0 %v1174
      %1200 = vmatpush1.bf16.msra.mxu0 %v1173
      %1201 = vmatprep.subr.bf16.mxu0 %v1177
      %1202 = vmatpush1.bf16.msra.mxu0 %v1176
      %1203 = vmatprep.subr.bf16.mxu0 %v1180
      %1204 = vmatpush1.bf16.msra.mxu0 %v1179
      %1205 = vmatprep.subr.bf16.mxu0 0
      %1206 = vmatpush1.bf16.msra.mxu0 0
      %1207 = vmatprep.subr.bf16.mxu0 0
      %1208 = vmatpush1.bf16.msra.mxu0 0
      %1209 = vmatprep.subr.bf16.mxu0 0
      %1210 = vmatpush1.bf16.msra.mxu0 0
      %1211 = vmatprep.subr.bf16.mxu0 0
      %1212 = vmatpush1.bf16.msra.mxu0 0
      %1213 = vmatprep.subr.bf16.mxu0 0
      %1214 = vmatpush1.bf16.msra.mxu0 0
      %1215 = vmatprep.subr.bf16.mxu0 0
      %1216 = vmatpush1.bf16.msra.mxu0 0
      %1217 = vmatprep.subr.bf16.mxu0 0
      %1218 = vmatpush1.bf16.msra.mxu0 0
      %1219 = vmatprep.subr.bf16.mxu0 0
      %1220 = vmatpush1.bf16.msra.mxu0 0
      %1221 = vmatprep.subr.bf16.mxu0 0
      %1222 = vmatpush1.bf16.msra.mxu0 0
      %1223 = vmatprep.subr.bf16.mxu0 0
      %1224 = vmatpush1.bf16.msra.mxu0 0
      %1225 = vmatprep.subr.bf16.mxu0 0
      %1226 = vmatpush1.bf16.msra.mxu0 0
      %1227 = vmatprep.subr.bf16.mxu0 0
      %1228 = vmatpush1.bf16.msra.mxu0 0
      %1229 = vmatprep.mubr.bf16.mxu0 0
      %1230 = vmatmul.mubr.bf16.gmra.mrb[0].mxu0 %v1195
      %v1231 = vpop.f32.mrb[0].mxu0
      %v1232 = vadd.f32 0.0, %v1231
      %v1233 = vpop.f32.mrb[0].mxu0
      %v1234 = vadd.f32 0.0, %v1233
      %v1235 = vpop.f32.mrb[0].mxu0
      %v1236 = vpop.f32.mrb[0].mxu0
      %1237 = vdwg.mxu0
      %1238 = vmatprep.subr.bf16.mxu0 0
      %1239 = vmatpush1.bf16.msra.mxu0 %v1172
      %1240 = vmatprep.subr.bf16.mxu0 0
      %1241 = vmatpush1.bf16.msra.mxu0 %v1175
      %1242 = vmatprep.subr.bf16.mxu0 0
      %1243 = vmatpush1.bf16.msra.mxu0 %v1178
      %1244 = vmatprep.subr.bf16.mxu0 0
      %1245 = vmatpush1.bf16.msra.mxu0 %v1181
      %1246 = vmatprep.subr.bf16.mxu0 0
      %1247 = vmatpush1.bf16.msra.mxu0 0
      %1248 = vmatprep.subr.bf16.mxu0 0
      %1249 = vmatpush1.bf16.msra.mxu0 0
      %1250 = vmatprep.subr.bf16.mxu0 0
      %1251 = vmatpush1.bf16.msra.mxu0 0
      %1252 = vmatprep.subr.bf16.mxu0 0
      %1253 = vmatpush1.bf16.msra.mxu0 0
      %1254 = vmatprep.subr.bf16.mxu0 0
      %1255 = vmatpush1.bf16.msra.mxu0 0
      %1256 = vmatprep.subr.bf16.mxu0 0
      %1257 = vmatpush1.bf16.msra.mxu0 0
      %1258 = vmatprep.subr.bf16.mxu0 0
      %1259 = vmatpush1.bf16.msra.mxu0 0
      %1260 = vmatprep.subr.bf16.mxu0 0
      %1261 = vmatpush1.bf16.msra.mxu0 0
      %1262 = vmatprep.subr.bf16.mxu0 0
      %1263 = vmatpush1.bf16.msra.mxu0 0
      %1264 = vmatprep.subr.bf16.mxu0 0
      %1265 = vmatpush1.bf16.msra.mxu0 0
      %1266 = vmatprep.subr.bf16.mxu0 0
      %1267 = vmatpush1.bf16.msra.mxu0 0
      %1268 = vmatprep.subr.bf16.mxu0 0
      %1269 = vmatpush1.bf16.msra.mxu0 0
      %1270 = vmatprep.mubr.bf16.mxu0 0
      %1271 = vmatmul.mubr.bf16.gmra.mrb[0].mxu0 %v1195
      %v1272 = vpop.f32.mrb[0].mxu0
      %v1273 = vadd.f32 0.0, %v1272
      %v1274 = vpop.f32.mrb[0].mxu0
      %v1275 = vpop.f32.mrb[0].mxu0
      %v1276 = vpop.f32.mrb[0].mxu0
      %1277 = vdwg.mxu0
      %v1278 = vadd.f32 %v1132, %v1232
      %v1279 = vadd.f32 %v1133, %v1234
      %v1280 = vadd.f32 %v1134, %v1273
      %s1281 = scalar_lea.vmem %s1, 28
      %v1282 = vld [vmem:[%s1281] sm:$0xf]
      %1283 = vrot.lane.b32.xlu0 %v244, 90
      %v1284 = vpop.permute.xlu0 %1283
      %1285 = vrot.lane.b32.xlu0 %v245, 90
      %v1286 = vpop.permute.xlu0 %1285
      %1287 = vrot.lane.b32.xlu0 %v246, 90
      %v1288 = vpop.permute.xlu0 %1287
      %1289 = vrot.lane.b32.xlu0 %v247, 90
      %v1290 = vpop.permute.xlu0 %1289
      %1291 = vrot.lane.b32.xlu0 %v248, 90
      %v1292 = vpop.permute.xlu0 %1291
      %1293 = vrot.lane.b32.xlu0 %v249, 90
      %v1294 = vpop.permute.xlu0 %1293
      %1295 = vrot.lane.b32.xlu0 %v250, 90
      %v1296 = vpop.permute.xlu0 %1295
      %1297 = vrot.lane.b32.xlu0 %v251, 90
      %v1298 = vpop.permute.xlu0 %1297
      %1299 = vrot.lane.b32.xlu0 %v252, 90
      %v1300 = vpop.permute.xlu0 %1299
      %1301 = vrot.lane.b32.xlu0 %v253, 90
      %v1302 = vpop.permute.xlu0 %1301
      %1303 = vrot.lane.b32.xlu0 %v254, 90
      %v1304 = vpop.permute.xlu0 %1303
      %1305 = vrot.lane.b32.xlu0 %v255, 90
      %v1306 = vpop.permute.xlu0 %1305
      %1307 = vrot.lane.b32.xlu0 %v256, 90
      %v1308 = vpop.permute.xlu0 %1307
      %1309 = vrot.lane.b32.xlu0 %v257, 90
      %v1310 = vpop.permute.xlu0 %1309
      %1311 = vrot.lane.b32.xlu0 %v258, 90
      %v1312 = vpop.permute.xlu0 %1311
      %1313 = vrot.lane.b32.xlu0 %v259, 90
      %v1314 = vpop.permute.xlu0 %1313
      %vm1315 = vcmask 736256
      %v1316 = vsel %vm1315, %v1284, %v1286
      %v1317 = vsel %vm1315, %v1286, %v1288
      %v1318 = vsel %vm1315, %v1288, %v1290
      %v1319 = vsel %vm1315, %v1292, %v1294
      %v1320 = vsel %vm1315, %v1294, %v1296
      %v1321 = vsel %vm1315, %v1296, %v1298
      %v1322 = vsel %vm1315, %v1300, %v1302
      %v1323 = vsel %vm1315, %v1302, %v1304
      %v1324 = vsel %vm1315, %v1304, %v1306
      %v1325 = vsel %vm1315, %v1308, %v1310
      %v1326 = vsel %vm1315, %v1310, %v1312
      %v1327 = vsel %vm1315, %v1312, %v1314
      %v1341 = vsel %vm317, %v1282, 0
      %1343 = vmatprep.subr.bf16.mxu0 %v1317
      %1344 = vmatpush1.bf16.msra.mxu0 %v1316
      %1345 = vmatprep.subr.bf16.mxu0 %v1320
      %1346 = vmatpush1.bf16.msra.mxu0 %v1319
      %1347 = vmatprep.subr.bf16.mxu0 %v1323
      %1348 = vmatpush1.bf16.msra.mxu0 %v1322
      %1349 = vmatprep.subr.bf16.mxu0 %v1326
      %1350 = vmatpush1.bf16.msra.mxu0 %v1325
      %1351 = vmatprep.subr.bf16.mxu0 0
      %1352 = vmatpush1.bf16.msra.mxu0 0
      %1353 = vmatprep.subr.bf16.mxu0 0
      %1354 = vmatpush1.bf16.msra.mxu0 0
      %1355 = vmatprep.subr.bf16.mxu0 0
      %1356 = vmatpush1.bf16.msra.mxu0 0
      %1357 = vmatprep.subr.bf16.mxu0 0
      %1358 = vmatpush1.bf16.msra.mxu0 0
      %1359 = vmatprep.subr.bf16.mxu0 0
      %1360 = vmatpush1.bf16.msra.mxu0 0
      %1361 = vmatprep.subr.bf16.mxu0 0
      %1362 = vmatpush1.bf16.msra.mxu0 0
      %1363 = vmatprep.subr.bf16.mxu0 0
      %1364 = vmatpush1.bf16.msra.mxu0 0
      %1365 = vmatprep.subr.bf16.mxu0 0
      %1366 = vmatpush1.bf16.msra.mxu0 0
      %1367 = vmatprep.subr.bf16.mxu0 0
      %1368 = vmatpush1.bf16.msra.mxu0 0
      %1369 = vmatprep.subr.bf16.mxu0 0
      %1370 = vmatpush1.bf16.msra.mxu0 0
      %1371 = vmatprep.subr.bf16.mxu0 0
      %1372 = vmatpush1.bf16.msra.mxu0 0
      %1373 = vmatprep.subr.bf16.mxu0 0
      %1374 = vmatpush1.bf16.msra.mxu0 0
      %1375 = vmatprep.mubr.bf16.mxu0 0
      %1376 = vmatmul.mubr.bf16.gmra.mrb[0].mxu0 %v1341
      %v1377 = vpop.f32.mrb[0].mxu0
      %v1378 = vadd.f32 0.0, %v1377
      %v1379 = vpop.f32.mrb[0].mxu0
      %v1380 = vadd.f32 0.0, %v1379
      %v1381 = vpop.f32.mrb[0].mxu0
      %v1382 = vpop.f32.mrb[0].mxu0
      %1383 = vdwg.mxu0
      %1384 = vmatprep.subr.bf16.mxu0 0
      %1385 = vmatpush1.bf16.msra.mxu0 %v1318
      %1386 = vmatprep.subr.bf16.mxu0 0
      %1387 = vmatpush1.bf16.msra.mxu0 %v1321
      %1388 = vmatprep.subr.bf16.mxu0 0
      %1389 = vmatpush1.bf16.msra.mxu0 %v1324
      %1390 = vmatprep.subr.bf16.mxu0 0
      %1391 = vmatpush1.bf16.msra.mxu0 %v1327
      %1392 = vmatprep.subr.bf16.mxu0 0
      %1393 = vmatpush1.bf16.msra.mxu0 0
      %1394 = vmatprep.subr.bf16.mxu0 0
      %1395 = vmatpush1.bf16.msra.mxu0 0
      %1396 = vmatprep.subr.bf16.mxu0 0
      %1397 = vmatpush1.bf16.msra.mxu0 0
      %1398 = vmatprep.subr.bf16.mxu0 0
      %1399 = vmatpush1.bf16.msra.mxu0 0
      %1400 = vmatprep.subr.bf16.mxu0 0
      %1401 = vmatpush1.bf16.msra.mxu0 0
      %1402 = vmatprep.subr.bf16.mxu0 0
      %1403 = vmatpush1.bf16.msra.mxu0 0
      %1404 = vmatprep.subr.bf16.mxu0 0
      %1405 = vmatpush1.bf16.msra.mxu0 0
      %1406 = vmatprep.subr.bf16.mxu0 0
      %1407 = vmatpush1.bf16.msra.mxu0 0
      %1408 = vmatprep.subr.bf16.mxu0 0
      %1409 = vmatpush1.bf16.msra.mxu0 0
      %1410 = vmatprep.subr.bf16.mxu0 0
      %1411 = vmatpush1.bf16.msra.mxu0 0
      %1412 = vmatprep.subr.bf16.mxu0 0
      %1413 = vmatpush1.bf16.msra.mxu0 0
      %1414 = vmatprep.subr.bf16.mxu0 0
      %1415 = vmatpush1.bf16.msra.mxu0 0
      %1416 = vmatprep.mubr.bf16.mxu0 0
      %1417 = vmatmul.mubr.bf16.gmra.mrb[0].mxu0 %v1341
      %v1418 = vpop.f32.mrb[0].mxu0
      %v1419 = vadd.f32 0.0, %v1418
      %v1420 = vpop.f32.mrb[0].mxu0
      %v1421 = vpop.f32.mrb[0].mxu0
      %v1422 = vpop.f32.mrb[0].mxu0
      %1423 = vdwg.mxu0
      %v1424 = vadd.f32 %v1278, %v1378
      %v1425 = vadd.f32 %v1279, %v1380
      %v1426 = vadd.f32 %v1280, %v1419
      %s1427 = scalar_lea.vmem %s1, 32
      %v1428 = vld [vmem:[%s1427] sm:$0xf]
      %1429 = vrot.lane.b32.xlu0 %v244, 89
      %v1430 = vpop.permute.xlu0 %1429
      %1431 = vrot.lane.b32.xlu0 %v245, 89
      %v1432 = vpop.permute.xlu0 %1431
      %1433 = vrot.lane.b32.xlu0 %v246, 89
      %v1434 = vpop.permute.xlu0 %1433
      %1435 = vrot.lane.b32.xlu0 %v247, 89
      %v1436 = vpop.permute.xlu0 %1435
      %1437 = vrot.lane.b32.xlu0 %v248, 89
      %v1438 = vpop.permute.xlu0 %1437
      %1439 = vrot.lane.b32.xlu0 %v249, 89
      %v1440 = vpop.permute.xlu0 %1439
      %1441 = vrot.lane.b32.xlu0 %v250, 89
      %v1442 = vpop.permute.xlu0 %1441
      %1443 = vrot.lane.b32.xlu0 %v251, 89
      %v1444 = vpop.permute.xlu0 %1443
      %1445 = vrot.lane.b32.xlu0 %v252, 89
      %v1446 = vpop.permute.xlu0 %1445
      %1447 = vrot.lane.b32.xlu0 %v253, 89
      %v1448 = vpop.permute.xlu0 %1447
      %1449 = vrot.lane.b32.xlu0 %v254, 89
      %v1450 = vpop.permute.xlu0 %1449
      %1451 = vrot.lane.b32.xlu0 %v255, 89
      %v1452 = vpop.permute.xlu0 %1451
      %1453 = vrot.lane.b32.xlu0 %v256, 89
      %v1454 = vpop.permute.xlu0 %1453
      %1455 = vrot.lane.b32.xlu0 %v257, 89
      %v1456 = vpop.permute.xlu0 %1455
      %1457 = vrot.lane.b32.xlu0 %v258, 89
      %v1458 = vpop.permute.xlu0 %1457
      %1459 = vrot.lane.b32.xlu0 %v259, 89
      %v1460 = vpop.permute.xlu0 %1459
      %vm1461 = vcmask 728064
      %v1462 = vsel %vm1461, %v1430, %v1432
      %v1463 = vsel %vm1461, %v1432, %v1434
      %v1464 = vsel %vm1461, %v1434, %v1436
      %v1465 = vsel %vm1461, %v1438, %v1440
      %v1466 = vsel %vm1461, %v1440, %v1442
      %v1467 = vsel %vm1461, %v1442, %v1444
      %v1468 = vsel %vm1461, %v1446, %v1448
      %v1469 = vsel %vm1461, %v1448, %v1450
      %v1470 = vsel %vm1461, %v1450, %v1452
      %v1471 = vsel %vm1461, %v1454, %v1456
      %v1472 = vsel %vm1461, %v1456, %v1458
      %v1473 = vsel %vm1461, %v1458, %v1460
      %v1487 = vsel %vm317, %v1428, 0
      %1489 = vmatprep.subr.bf16.mxu0 %v1463
      %1490 = vmatpush1.bf16.msra.mxu0 %v1462
      %1491 = vmatprep.subr.bf16.mxu0 %v1466
      %1492 = vmatpush1.bf16.msra.mxu0 %v1465
      %1493 = vmatprep.subr.bf16.mxu0 %v1469
      %1494 = vmatpush1.bf16.msra.mxu0 %v1468
      %1495 = vmatprep.subr.bf16.mxu0 %v1472
      %1496 = vmatpush1.bf16.msra.mxu0 %v1471
      %1497 = vmatprep.subr.bf16.mxu0 0
      %1498 = vmatpush1.bf16.msra.mxu0 0
      %1499 = vmatprep.subr.bf16.mxu0 0
      %1500 = vmatpush1.bf16.msra.mxu0 0
      %1501 = vmatprep.subr.bf16.mxu0 0
      %1502 = vmatpush1.bf16.msra.mxu0 0
      %1503 = vmatprep.subr.bf16.mxu0 0
      %1504 = vmatpush1.bf16.msra.mxu0 0
      %1505 = vmatprep.subr.bf16.mxu0 0
      %1506 = vmatpush1.bf16.msra.mxu0 0
      %1507 = vmatprep.subr.bf16.mxu0 0
      %1508 = vmatpush1.bf16.msra.mxu0 0
      %1509 = vmatprep.subr.bf16.mxu0 0
      %1510 = vmatpush1.bf16.msra.mxu0 0
      %1511 = vmatprep.subr.bf16.mxu0 0
      %1512 = vmatpush1.bf16.msra.mxu0 0
      %1513 = vmatprep.subr.bf16.mxu0 0
      %1514 = vmatpush1.bf16.msra.mxu0 0
      %1515 = vmatprep.subr.bf16.mxu0 0
      %1516 = vmatpush1.bf16.msra.mxu0 0
      %1517 = vmatprep.subr.bf16.mxu0 0
      %1518 = vmatpush1.bf16.msra.mxu0 0
      %1519 = vmatprep.subr.bf16.mxu0 0
      %1520 = vmatpush1.bf16.msra.mxu0 0
      %1521 = vmatprep.mubr.bf16.mxu0 0
      %1522 = vmatmul.mubr.bf16.gmra.mrb[0].mxu0 %v1487
      %v1523 = vpop.f32.mrb[0].mxu0
      %v1524 = vadd.f32 0.0, %v1523
      %v1525 = vpop.f32.mrb[0].mxu0
      %v1526 = vadd.f32 0.0, %v1525
      %v1527 = vpop.f32.mrb[0].mxu0
      %v1528 = vpop.f32.mrb[0].mxu0
      %1529 = vdwg.mxu0
      %1530 = vmatprep.subr.bf16.mxu0 0
      %1531 = vmatpush1.bf16.msra.mxu0 %v1464
      %1532 = vmatprep.subr.bf16.mxu0 0
      %1533 = vmatpush1.bf16.msra.mxu0 %v1467
      %1534 = vmatprep.subr.bf16.mxu0 0
      %1535 = vmatpush1.bf16.msra.mxu0 %v1470
      %1536 = vmatprep.subr.bf16.mxu0 0
      %1537 = vmatpush1.bf16.msra.mxu0 %v1473
      %1538 = vmatprep.subr.bf16.mxu0 0
      %1539 = vmatpush1.bf16.msra.mxu0 0
      %1540 = vmatprep.subr.bf16.mxu0 0
      %1541 = vmatpush1.bf16.msra.mxu0 0
      %1542 = vmatprep.subr.bf16.mxu0 0
      %1543 = vmatpush1.bf16.msra.mxu0 0
      %1544 = vmatprep.subr.bf16.mxu0 0
      %1545 = vmatpush1.bf16.msra.mxu0 0
      %1546 = vmatprep.subr.bf16.mxu0 0
      %1547 = vmatpush1.bf16.msra.mxu0 0
      %1548 = vmatprep.subr.bf16.mxu0 0
      %1549 = vmatpush1.bf16.msra.mxu0 0
      %1550 = vmatprep.subr.bf16.mxu0 0
      %1551 = vmatpush1.bf16.msra.mxu0 0
      %1552 = vmatprep.subr.bf16.mxu0 0
      %1553 = vmatpush1.bf16.msra.mxu0 0
      %1554 = vmatprep.subr.bf16.mxu0 0
      %1555 = vmatpush1.bf16.msra.mxu0 0
      %1556 = vmatprep.subr.bf16.mxu0 0
      %1557 = vmatpush1.bf16.msra.mxu0 0
      %1558 = vmatprep.subr.bf16.mxu0 0
      %1559 = vmatpush1.bf16.msra.mxu0 0
      %1560 = vmatprep.subr.bf16.mxu0 0
      %1561 = vmatpush1.bf16.msra.mxu0 0
      %1562 = vmatprep.mubr.bf16.mxu0 0
      %1563 = vmatmul.mubr.bf16.gmra.mrb[0].mxu0 %v1487
      %v1564 = vpop.f32.mrb[0].mxu0
      %v1565 = vadd.f32 0.0, %v1564
      %v1566 = vpop.f32.mrb[0].mxu0
      %v1567 = vpop.f32.mrb[0].mxu0
      %v1568 = vpop.f32.mrb[0].mxu0
      %1569 = vdwg.mxu0
      %v1570 = vadd.f32 %v1424, %v1524
      %v1571 = vadd.f32 %v1425, %v1526
      %v1572 = vadd.f32 %v1426, %v1565
      %1573 = vst [vmem:[%s170] sm:$0xff] %v1570
      %1574 = vst [vmem:[%s170 + $0x8] sm:$0xff] %v1571
      %1575 = vst [vmem:[%s170 + $0x10] sm:$0xff] %v1572
      %p1576 = scmp.lt.s32.totalorder %s14, 1
      %s1577 = scalar_select %p1576, %s14, 1
      %s1578 = smul.addr %s1577, 3
      %s1579 = smul.addr %s1578, 8
      %s1580 = scalar_lea.vmem %s3, %s1579
      // Predicated region
      $region33: #{discriminator_forward.5} parent=31 // pred_check
        %p1581 = pneg %p100
      $region34: #{discriminator_forward.5} parent=31 // pred_check_branch
        %1583 = sbr.rel (%p1581) target = $region36
      $region35: #{discriminator_forward.5} parent=31 // pred_region
        _
      $region36: #{discriminator_forward.5} parent=31 // pred_fallthru
        _
    $region32: #{discriminator_forward.5} parent=5 // pred_fallthru
      _
    %p1584 = scmp.le.s32.totalorder 2, %s9
    // Predicated region
    $region37: #{discriminator_forward.5} parent=5 // pred_check
      %p1585 = pneg %p1584
    $region38: #{discriminator_forward.5} parent=5 // pred_check_branch
      %1587 = sbr.rel (%p1585) target = $region40
    $region39: #{discriminator_forward.5} parent=5 // pred_region
      %s1588 = ssub.s32 %s9, 2
      // Predicated region
      $region41: #{discriminator_forward.5} parent=39 // pred_check
        %p1589 = pneg %p106
      $region42: #{discriminator_forward.5} parent=39 // pred_check_branch
        %1591 = sbr.rel (%p1589) target = $region44
      $region43: #{discriminator_forward.5} parent=39 // pred_region
        %p1592 = scmp.lt.s32.totalorder %s15, 1
        %s1593 = scalar_select %p1592, %s15, 1
        %s1594 = smul.addr %s1593, 3
        %s1595 = smul.addr %s1594, 8
        %s1596 = scalar_lea.vmem %s3, %s1595
      $region44: #{discriminator_forward.5} parent=39 // pred_fallthru
        _
    $region40: #{discriminator_forward.5} parent=5 // pred_fallthru
      _
  $region6: #{discriminator_forward.5} parent=0 // loop_footer
    %s13 = sadd.s32 1, %s9
  $region7: #{discriminator_forward.5} parent=0 // loop_footer_branch
    %8 = sbr.rel target = $region3
  $region8: #{discriminator_forward.5} parent=0 // loop_exit
    _

</llo_original>
